<compile_context>
chip_gen: v5e
topology: v5e:2x2
jax: 0.10.0
libtpu: 0.0.40
codegen_flags: <defaults>
</compile_context>

<pallas_src>
import jax
import jax.numpy as jnp
from jax.experimental import pallas as pl
from jax.experimental.pallas import tpu as pltpu

CF = 64    # feature channels (x[0])
CC = 32    # condition channels (x[1])
PADW = 8   # column offset of the conv interior inside the padded scratch


def _leaky(t):
    return jnp.where(t > 0, t, 0.1 * t)


def resblock_sft_kernel(fea_ref, cond_ref,
                        sw0_ref, sb0_ref, sw1_ref, sb1_ref,   # packed SFT params
                        cw_ref, cb_ref,                       # packed 3x3 conv params
                        out_ref,
                        pad_ref,    # VMEM (H+2, W+2*PADW, CF) f32 padded conv input
                        col_ref):   # VMEM (H*W, 9*CF) bf16 im2col slab
    H, W = fea_ref.shape[1], fea_ref.shape[2]
    HW = H * W
    Hp, Wp = pad_ref.shape[0], pad_ref.shape[1]

    # Zero only the read border of the padded scratch (rows 0 / H+1 and the
    # two pad columns).  Done every grid step rather than gated on
    # program_id == 0 so megacore "parallel" sharding (a core may never run
    # step 0) stays correct.  The interior is fully overwritten per conv.
    zrow = jnp.zeros((1, Wp, CF), jnp.float32)
    pad_ref[0:1, :, :] = zrow
    pad_ref[H + 1:H + 2, :, :] = zrow
    zcol = jnp.zeros((Hp, 1, CF), jnp.float32)
    pad_ref[:, PADW - 1:PADW, :] = zcol
    pad_ref[:, PADW + W:PADW + W + 1, :] = zcol

    fea = fea_ref[...].reshape(HW, CF)                          # f32 (HW, 64)
    cond = cond_ref[...].reshape(HW, CC).astype(jnp.bfloat16)   # bf16 (HW, 32)

    def mm(a, b):
        # bf16 x bf16 -> f32 accumulation on the MXU (no fp32 emulation).
        return jnp.dot(a, b, preferred_element_type=jnp.float32)

    def sft(f, idx):
        # Fused scale/shift paths:
        #   stage 0: cond @ [scale_w0 | shift_w0]            -> (HW, 64)
        #   stage 1: h @ blockdiag(scale_w1, shift_w1)       -> (HW, 128)
        h = _leaky(mm(cond, sw0_ref[idx]) + sb0_ref[idx])                 # f32
        y = mm(h.astype(jnp.bfloat16), sw1_ref[idx]) + sb1_ref[idx]       # f32 (HW,128)
        scale = y[:, :CF]
        shift = y[:, CF:]
        return f * (scale + 1.0) + shift

    def conv3x3(f, idx):
        # Write interior (8-sublane-aligned column offset), then build the
        # im2col slab and do a single K=576 matmul.
        pad_ref[1:H + 1, PADW:PADW + W, :] = f.reshape(H, W, CF)
        for k in range(9):
            dy, dx = divmod(k, 3)
            c0 = PADW - 1 + dx
            slab = pad_ref[dy:dy + H, c0:c0 + W, :]                       # (H, W, CF)
            col_ref[:, k * CF:(k + 1) * CF] = (
                slab.reshape(HW, CF).astype(jnp.bfloat16))
        return mm(col_ref[...], cw_ref[idx]) + cb_ref[idx]                # f32 (HW, 64)

    fea0 = sft(fea, 0)                               # sft0(x)
    fea1 = jnp.maximum(conv3x3(fea0, 0), 0.0)        # relu(conv0(.))
    fea2 = sft(fea1, 1)                              # sft1((., x1))
    fea3 = conv3x3(fea2, 1)                          # conv1(.)
    out_ref[...] = (fea + fea3).reshape(1, H, W, CF)  # x0 + fea


def resblock_sft_pallas(fea_nhwc, cond_nhwc, packed):
    N, H, W, cf = fea_nhwc.shape
    cc = cond_nhwc.shape[-1]
    assert cf == CF and cc == CC
    assert W % 8 == 0, "W must be a multiple of 8 for layout-preserving reshapes"

    param_specs = [
        pl.BlockSpec(p.shape, lambda n, _nd=p.ndim: (0,) * _nd) for p in packed
    ]
    grid_spec = pltpu.PrefetchScalarGridSpec(
        num_scalar_prefetch=0,
        grid=(N,),
        in_specs=[
            pl.BlockSpec((1, H, W, CF), lambda n: (n, 0, 0, 0)),
            pl.BlockSpec((1, H, W, CC), lambda n: (n, 0, 0, 0)),
            *param_specs,
        ],
        out_specs=pl.BlockSpec((1, H, W, CF), lambda n: (n, 0, 0, 0)),
        scratch_shapes=[
            pltpu.VMEM((H + 2, W + 2 * PADW, CF), jnp.float32),
            pltpu.VMEM((H * W, 9 * CF), jnp.bfloat16),
        ],
    )
    out = pl.pallas_call(
        resblock_sft_kernel,
        out_shape=jax.ShapeDtypeStruct((N, H, W, CF), jnp.float32),
        grid_spec=grid_spec,
        compiler_params=pltpu.CompilerParams(
            dimension_semantics=("parallel",),
            vmem_limit_bytes=32 * 1024 * 1024,
        ),
    )(fea_nhwc, cond_nhwc, *packed)
    return out, cond_nhwc


# ----------------------------- parameters -----------------------------------

def init_params(key):
    """Deterministic synthetic weights in the module's natural shapes."""
    ks = jax.random.split(key, 20)

    def nrm(k, shape, scale):
        return jax.random.normal(k, shape, jnp.float32) * scale

    def sft_layer(keys):
        return dict(
            scale0_w=nrm(keys[0], (CC, CC), 0.1), scale0_b=nrm(keys[1], (CC,), 0.01),
            scale1_w=nrm(keys[2], (CC, CF), 0.1), scale1_b=nrm(keys[3], (CF,), 0.01),
            shift0_w=nrm(keys[4], (CC, CC), 0.1), shift0_b=nrm(keys[5], (CC,), 0.01),
            shift1_w=nrm(keys[6], (CC, CF), 0.1), shift1_b=nrm(keys[7], (CF,), 0.01),
        )

    return dict(
        sft0=sft_layer(ks[0:8]),
        conv0_w=nrm(ks[8], (3, 3, CF, CF), 0.04), conv0_b=nrm(ks[9], (CF,), 0.01),
        sft1=sft_layer(ks[10:18]),
        conv1_w=nrm(ks[18], (3, 3, CF, CF), 0.04), conv1_b=nrm(ks[19], (CF,), 0.01),
    )


def pack_params(P):
    """Fuse/stack module weights into 6 kernel arrays (weights in bf16)."""
    def sft_pack(L):
        w0 = jnp.concatenate([L["scale0_w"], L["shift0_w"]], axis=1)          # (32, 64)
        b0 = jnp.concatenate([L["scale0_b"], L["shift0_b"]]).reshape(1, 2 * CC)
        w1 = jnp.zeros((2 * CC, 2 * CF), jnp.float32)
        w1 = w1.at[:CC, :CF].set(L["scale1_w"]).at[CC:, CF:].set(L["shift1_w"])
        b1 = jnp.concatenate([L["scale1_b"], L["shift1_b"]]).reshape(1, 2 * CF)
        return w0, b0, w1, b1

    w0s, b0s, w1s, b1s = zip(*(sft_pack(P[k]) for k in ("sft0", "sft1")))
    sw0 = jnp.stack(w0s).astype(jnp.bfloat16)       # (2, 32, 64)
    sb0 = jnp.stack(b0s)                            # (2, 1, 64)   f32
    sw1 = jnp.stack(w1s).astype(jnp.bfloat16)       # (2, 64, 128)
    sb1 = jnp.stack(b1s)                            # (2, 1, 128)  f32
    cw = jnp.stack([P["conv0_w"].reshape(9 * CF, CF),
                    P["conv1_w"].reshape(9 * CF, CF)]).astype(jnp.bfloat16)  # (2,576,64)
    cb = jnp.stack([P["conv0_b"].reshape(1, CF),
                    P["conv1_b"].reshape(1, CF)])                            # (2,1,64)
    return (sw0, sb0, sw1, sb1, cw, cb)


# ----------------------------- reference ------------------------------------

def ref_forward(fea, cond, P):
    """Pure-JAX NHWC f32 reference mirroring the PyTorch forward."""
    prec = jax.lax.Precision.HIGHEST

    def conv1x1(x, w, b):
        return jnp.einsum("nhwc,cd->nhwd", x, w, precision=prec) + b

    def conv3x3(x, w_hwio, b):
        y = jax.lax.conv_general_dilated(
            x, w_hwio, (1, 1), "SAME",
            dimension_numbers=("NHWC", "HWIO", "NHWC"), precision=prec)
        return y + b

    def sft(f, c, L):
        scale = conv1x1(_leaky(conv1x1(c, L["scale0_w"], L["scale0_b"])),
                        L["scale1_w"], L["scale1_b"])
        shift = conv1x1(_leaky(conv1x1(c, L["shift0_w"], L["shift0_b"])),
                        L["shift1_w"], L["shift1_b"])
        return f * (scale + 1.0) + shift

    fea0 = sft(fea, cond, P["sft0"])
    fea1 = jnp.maximum(conv3x3(fea0, P["conv0_w"], P["conv0_b"]), 0.0)
    fea2 = sft(fea1, cond, P["sft1"])
    fea3 = conv3x3(fea2, P["conv1_w"], P["conv1_b"])
    return fea + fea3, cond


if __name__ == "__main__":
    key = jax.random.PRNGKey(0)
    k_x0, k_x1, k_p = jax.random.split(key, 3)

    N, H, W = 2, 16, 16
    # PyTorch-convention inputs (NCHW): x = (x[0]: features, x[1]: condition)
    x0_nchw = jax.random.normal(k_x0, (N, CF, H, W), jnp.float32)
    x1_nchw = jax.random.normal(k_x1, (N, CC, H, W), jnp.float32)

    fea_nhwc = jnp.transpose(x0_nchw, (0, 2, 3, 1))
    cond_nhwc = jnp.transpose(x1_nchw, (0, 2, 3, 1))

    P = init_params(k_p)
    packed = pack_params(P)

    out, cond_out = resblock_sft_pallas(fea_nhwc, cond_nhwc, packed)
    out = jax.block_until_ready(out)

    ref_out, ref_cond = ref_forward(fea_nhwc, cond_nhwc, P)
    assert out.shape == (N, H, W, CF)
    assert cond_out.shape == (N, H, W, CC)
    max_err = float(jnp.max(jnp.abs(out - ref_out)))
    assert jnp.allclose(out, ref_out, atol=5e-2, rtol=5e-2), (
        "mismatch vs reference, max abs err = %g" % max_err)
    assert jnp.array_equal(cond_out, ref_cond)

    print("KERNEL_OK")
</pallas_src>

<mosaic_0001>
module attributes {stable_mosaic.version = 11 : i64} {
  func.func @resblock_sft_kernel(%arg0: i32, %arg1: memref<1x16x16x64xf32, #tpu.memory_space<vmem>>, %arg2: memref<1x16x16x32xf32, #tpu.memory_space<vmem>>, %arg3: memref<2x32x64xbf16, #tpu.memory_space<vmem>>, %arg4: memref<2x1x64xf32, #tpu.memory_space<vmem>>, %arg5: memref<2x64x128xbf16, #tpu.memory_space<vmem>>, %arg6: memref<2x1x128xf32, #tpu.memory_space<vmem>>, %arg7: memref<2x576x64xbf16, #tpu.memory_space<vmem>>, %arg8: memref<2x1x64xf32, #tpu.memory_space<vmem>>, %arg9: memref<1x16x16x64xf32, #tpu.memory_space<vmem>>, %arg10: memref<18x32x64xf32, #tpu.memory_space<vmem>>, %arg11: memref<256x576xbf16, #tpu.memory_space<vmem>>) attributes {dimension_semantics = [#tpu.dimension_semantics<parallel>], iteration_bounds = array<i64: 2>, scalar_prefetch = 0 : i64, scratch_operands = 2 : i64, tpu.core_type = #tpu.core_type<tc>, window_params = [{transform_indices = @transform_0, window_bounds = array<i64: 1, 16, 16, 64>}, {transform_indices = @transform_1, window_bounds = array<i64: 1, 16, 16, 32>}, {pipeline_mode = #tpu.pipeline_mode<synchronous>, transform_indices = @transform_2, window_bounds = array<i64: 2, 32, 64>}, {pipeline_mode = #tpu.pipeline_mode<synchronous>, transform_indices = @transform_3, window_bounds = array<i64: 2, 1, 64>}, {pipeline_mode = #tpu.pipeline_mode<synchronous>, transform_indices = @transform_4, window_bounds = array<i64: 2, 64, 128>}, {pipeline_mode = #tpu.pipeline_mode<synchronous>, transform_indices = @transform_5, window_bounds = array<i64: 2, 1, 128>}, {pipeline_mode = #tpu.pipeline_mode<synchronous>, transform_indices = @transform_6, window_bounds = array<i64: 2, 576, 64>}, {pipeline_mode = #tpu.pipeline_mode<synchronous>, transform_indices = @transform_7, window_bounds = array<i64: 2, 1, 64>}, {transform_indices = @transform_8, window_bounds = array<i64: 1, 16, 16, 64>}]} {
    %cst = arith.constant 0.000000e+00 : f32
    %0 = vector.broadcast %cst : f32 to vector<1x32x64xf32>
    %c0 = arith.constant 0 : index
    %c0_0 = arith.constant 0 : index
    %c0_1 = arith.constant 0 : index
    %1 = vector.load %arg10[%c0, %c0_0, %c0_1] : memref<18x32x64xf32, #tpu.memory_space<vmem>>, vector<1x32x64xf32>
    tpu.vector_store %arg10[%c0, %c0_0, %c0_1], %0 {strides = array<i32>} : memref<18x32x64xf32, #tpu.memory_space<vmem>>, vector<1x32x64xf32>,
    %c17 = arith.constant 17 : index
    %c0_2 = arith.constant 0 : index
    %c0_3 = arith.constant 0 : index
    %2 = vector.load %arg10[%c17, %c0_2, %c0_3] : memref<18x32x64xf32, #tpu.memory_space<vmem>>, vector<1x32x64xf32>
    tpu.vector_store %arg10[%c17, %c0_2, %c0_3], %0 {strides = array<i32>} : memref<18x32x64xf32, #tpu.memory_space<vmem>>, vector<1x32x64xf32>,
    %cst_4 = arith.constant 0.000000e+00 : f32
    %3 = vector.broadcast %cst_4 : f32 to vector<18x1x64xf32>
    %c0_5 = arith.constant 0 : index
    %c7 = arith.constant 7 : index
    %c0_6 = arith.constant 0 : index
    %4 = vector.load %arg10[%c0_5, %c7, %c0_6] : memref<18x32x64xf32, #tpu.memory_space<vmem>>, vector<18x1x64xf32>
    tpu.vector_store %arg10[%c0_5, %c7, %c0_6], %3 {strides = array<i32>} : memref<18x32x64xf32, #tpu.memory_space<vmem>>, vector<18x1x64xf32>,
    %c0_7 = arith.constant 0 : index
    %c24 = arith.constant 24 : index
    %c0_8 = arith.constant 0 : index
    %5 = vector.load %arg10[%c0_7, %c24, %c0_8] : memref<18x32x64xf32, #tpu.memory_space<vmem>>, vector<18x1x64xf32>
    tpu.vector_store %arg10[%c0_7, %c24, %c0_8], %3 {strides = array<i32>} : memref<18x32x64xf32, #tpu.memory_space<vmem>>, vector<18x1x64xf32>,
    %c0_9 = arith.constant 0 : index
    %c0_10 = arith.constant 0 : index
    %c0_11 = arith.constant 0 : index
    %c0_12 = arith.constant 0 : index
    %6 = vector.load %arg1[%c0_9, %c0_10, %c0_11, %c0_12] : memref<1x16x16x64xf32, #tpu.memory_space<vmem>>, vector<1x16x16x64xf32>
    %7 = vector.shape_cast %6 : vector<1x16x16x64xf32> to vector<256x64xf32>
    %c0_13 = arith.constant 0 : index
    %c0_14 = arith.constant 0 : index
    %c0_15 = arith.constant 0 : index
    %c0_16 = arith.constant 0 : index
    %8 = vector.load %arg2[%c0_13, %c0_14, %c0_15, %c0_16] : memref<1x16x16x32xf32, #tpu.memory_space<vmem>>, vector<1x16x16x32xf32>
    %9 = vector.shape_cast %8 : vector<1x16x16x32xf32> to vector<256x32xf32>
    %10 = arith.truncf %9 : vector<256x32xf32> to vector<256x32xbf16>
    %c0_17 = arith.constant 0 : index
    %c0_18 = arith.constant 0 : index
    %c0_19 = arith.constant 0 : index
    %11 = vector.load %arg3[%c0_17, %c0_18, %c0_19] : memref<2x32x64xbf16, #tpu.memory_space<vmem>>, vector<1x32x64xbf16>
    %12 = vector.shape_cast %11 : vector<1x32x64xbf16> to vector<32x64xbf16>
    %cst_20 = arith.constant dense<0.000000e+00> : vector<256x64xf32>
    %13 = tpu.matmul %10, %12, %cst_20 {dimension_numbers = #tpu.dot_dimension_numbers<[1], [0], [0], [1], [0, 0, 1, 1], [], []>} : vector<256x32xbf16>, vector<32x64xbf16>, vector<256x64xf32> -> vector<256x64xf32>
    %c0_21 = arith.constant 0 : index
    %c0_22 = arith.constant 0 : index
    %c0_23 = arith.constant 0 : index
    %14 = vector.load %arg4[%c0_21, %c0_22, %c0_23] : memref<2x1x64xf32, #tpu.memory_space<vmem>>, vector<1x1x64xf32>
    %15 = vector.shape_cast %14 : vector<1x1x64xf32> to vector<1x64xf32>
    %16 = vector.broadcast %15 : vector<1x64xf32> to vector<256x64xf32>
    %17 = arith.addf %13, %16 : vector<256x64xf32>
    %cst_24 = arith.constant 0.000000e+00 : f32
    %18 = vector.broadcast %cst_24 : f32 to vector<256x64xf32>
    %19 = arith.cmpf ogt, %17, %18 : vector<256x64xf32>
    %cst_25 = arith.constant 1.000000e-01 : f32
    %20 = vector.broadcast %cst_25 : f32 to vector<256x64xf32>
    %21 = arith.mulf %20, %17 : vector<256x64xf32>
    %22 = arith.select %19, %17, %21 : vector<256x64xi1>, vector<256x64xf32>
    %23 = arith.truncf %22 : vector<256x64xf32> to vector<256x64xbf16>
    %c0_26 = arith.constant 0 : index
    %c0_27 = arith.constant 0 : index
    %c0_28 = arith.constant 0 : index
    %24 = vector.load %arg5[%c0_26, %c0_27, %c0_28] : memref<2x64x128xbf16, #tpu.memory_space<vmem>>, vector<1x64x128xbf16>
    %25 = vector.shape_cast %24 : vector<1x64x128xbf16> to vector<64x128xbf16>
    %cst_29 = arith.constant dense<0.000000e+00> : vector<256x128xf32>
    %26 = tpu.matmul %23, %25, %cst_29 {dimension_numbers = #tpu.dot_dimension_numbers<[1], [0], [0], [1], [0, 0, 1, 1], [], []>} : vector<256x64xbf16>, vector<64x128xbf16>, vector<256x128xf32> -> vector<256x128xf32>
    %c0_30 = arith.constant 0 : index
    %c0_31 = arith.constant 0 : index
    %c0_32 = arith.constant 0 : index
    %27 = vector.load %arg6[%c0_30, %c0_31, %c0_32] : memref<2x1x128xf32, #tpu.memory_space<vmem>>, vector<1x1x128xf32>
    %28 = vector.shape_cast %27 : vector<1x1x128xf32> to vector<1x128xf32>
    %29 = vector.broadcast %28 : vector<1x128xf32> to vector<256x128xf32>
    %30 = arith.addf %26, %29 : vector<256x128xf32>
    %31 = vector.extract_strided_slice %30 {offsets = [0, 0], sizes = [256, 64], strides = [1, 1]} : vector<256x128xf32> to vector<256x64xf32>
    %32 = vector.extract_strided_slice %30 {offsets = [0, 64], sizes = [256, 64], strides = [1, 1]} : vector<256x128xf32> to vector<256x64xf32>
    %cst_33 = arith.constant 1.000000e+00 : f32
    %33 = vector.broadcast %cst_33 : f32 to vector<256x64xf32>
    %34 = arith.addf %31, %33 : vector<256x64xf32>
    %35 = arith.mulf %7, %34 : vector<256x64xf32>
    %36 = arith.addf %35, %32 : vector<256x64xf32>
    %37 = vector.shape_cast %36 : vector<256x64xf32> to vector<16x16x64xf32>
    %c1 = arith.constant 1 : index
    %c8 = arith.constant 8 : index
    %c0_34 = arith.constant 0 : index
    %38 = vector.load %arg10[%c1, %c8, %c0_34] : memref<18x32x64xf32, #tpu.memory_space<vmem>>, vector<16x16x64xf32>
    tpu.vector_store %arg10[%c1, %c8, %c0_34], %37 {strides = array<i32>} : memref<18x32x64xf32, #tpu.memory_space<vmem>>, vector<16x16x64xf32>,
    %c0_35 = arith.constant 0 : index
    %c7_36 = arith.constant 7 : index
    %c0_37 = arith.constant 0 : index
    %39 = vector.load %arg10[%c0_35, %c7_36, %c0_37] : memref<18x32x64xf32, #tpu.memory_space<vmem>>, vector<16x16x64xf32>
    %40 = vector.shape_cast %39 : vector<16x16x64xf32> to vector<256x64xf32>
    %41 = arith.truncf %40 : vector<256x64xf32> to vector<256x64xbf16>
    %c0_38 = arith.constant 0 : index
    %c0_39 = arith.constant 0 : index
    %42 = vector.load %arg11[%c0_38, %c0_39] : memref<256x576xbf16, #tpu.memory_space<vmem>>, vector<256x64xbf16>
    tpu.vector_store %arg11[%c0_38, %c0_39], %41 {strides = array<i32>} : memref<256x576xbf16, #tpu.memory_space<vmem>>, vector<256x64xbf16>,
    %c0_40 = arith.constant 0 : index
    %c8_41 = arith.constant 8 : index
    %c0_42 = arith.constant 0 : index
    %43 = vector.load %arg10[%c0_40, %c8_41, %c0_42] : memref<18x32x64xf32, #tpu.memory_space<vmem>>, vector<16x16x64xf32>
    %44 = vector.shape_cast %43 : vector<16x16x64xf32> to vector<256x64xf32>
    %45 = arith.truncf %44 : vector<256x64xf32> to vector<256x64xbf16>
    %c0_43 = arith.constant 0 : index
    %c64 = arith.constant 64 : index
    %46 = vector.load %arg11[%c0_43, %c64] : memref<256x576xbf16, #tpu.memory_space<vmem>>, vector<256x64xbf16>
    tpu.vector_store %arg11[%c0_43, %c64], %45 {strides = array<i32>} : memref<256x576xbf16, #tpu.memory_space<vmem>>, vector<256x64xbf16>,
    %c0_44 = arith.constant 0 : index
    %c9 = arith.constant 9 : index
    %c0_45 = arith.constant 0 : index
    %47 = vector.load %arg10[%c0_44, %c9, %c0_45] : memref<18x32x64xf32, #tpu.memory_space<vmem>>, vector<16x16x64xf32>
    %48 = vector.shape_cast %47 : vector<16x16x64xf32> to vector<256x64xf32>
    %49 = arith.truncf %48 : vector<256x64xf32> to vector<256x64xbf16>
    %c0_46 = arith.constant 0 : index
    %c128 = arith.constant 128 : index
    %50 = vector.load %arg11[%c0_46, %c128] : memref<256x576xbf16, #tpu.memory_space<vmem>>, vector<256x64xbf16>
    tpu.vector_store %arg11[%c0_46, %c128], %49 {strides = array<i32>} : memref<256x576xbf16, #tpu.memory_space<vmem>>, vector<256x64xbf16>,
    %c1_47 = arith.constant 1 : index
    %c7_48 = arith.constant 7 : index
    %c0_49 = arith.constant 0 : index
    %51 = vector.load %arg10[%c1_47, %c7_48, %c0_49] : memref<18x32x64xf32, #tpu.memory_space<vmem>>, vector<16x16x64xf32>
    %52 = vector.shape_cast %51 : vector<16x16x64xf32> to vector<256x64xf32>
    %53 = arith.truncf %52 : vector<256x64xf32> to vector<256x64xbf16>
    %c0_50 = arith.constant 0 : index
    %c192 = arith.constant 192 : index
    %54 = vector.load %arg11[%c0_50, %c192] : memref<256x576xbf16, #tpu.memory_space<vmem>>, vector<256x64xbf16>
    tpu.vector_store %arg11[%c0_50, %c192], %53 {strides = array<i32>} : memref<256x576xbf16, #tpu.memory_space<vmem>>, vector<256x64xbf16>,
    %c1_51 = arith.constant 1 : index
    %c8_52 = arith.constant 8 : index
    %c0_53 = arith.constant 0 : index
    %55 = vector.load %arg10[%c1_51, %c8_52, %c0_53] : memref<18x32x64xf32, #tpu.memory_space<vmem>>, vector<16x16x64xf32>
    %56 = vector.shape_cast %55 : vector<16x16x64xf32> to vector<256x64xf32>
    %57 = arith.truncf %56 : vector<256x64xf32> to vector<256x64xbf16>
    %c0_54 = arith.constant 0 : index
    %c256 = arith.constant 256 : index
    %58 = vector.load %arg11[%c0_54, %c256] : memref<256x576xbf16, #tpu.memory_space<vmem>>, vector<256x64xbf16>
    tpu.vector_store %arg11[%c0_54, %c256], %57 {strides = array<i32>} : memref<256x576xbf16, #tpu.memory_space<vmem>>, vector<256x64xbf16>,
    %c1_55 = arith.constant 1 : index
    %c9_56 = arith.constant 9 : index
    %c0_57 = arith.constant 0 : index
    %59 = vector.load %arg10[%c1_55, %c9_56, %c0_57] : memref<18x32x64xf32, #tpu.memory_space<vmem>>, vector<16x16x64xf32>
    %60 = vector.shape_cast %59 : vector<16x16x64xf32> to vector<256x64xf32>
    %61 = arith.truncf %60 : vector<256x64xf32> to vector<256x64xbf16>
    %c0_58 = arith.constant 0 : index
    %c320 = arith.constant 320 : index
    %62 = vector.load %arg11[%c0_58, %c320] : memref<256x576xbf16, #tpu.memory_space<vmem>>, vector<256x64xbf16>
    tpu.vector_store %arg11[%c0_58, %c320], %61 {strides = array<i32>} : memref<256x576xbf16, #tpu.memory_space<vmem>>, vector<256x64xbf16>,
    %c2 = arith.constant 2 : index
    %c7_59 = arith.constant 7 : index
    %c0_60 = arith.constant 0 : index
    %63 = vector.load %arg10[%c2, %c7_59, %c0_60] : memref<18x32x64xf32, #tpu.memory_space<vmem>>, vector<16x16x64xf32>
    %64 = vector.shape_cast %63 : vector<16x16x64xf32> to vector<256x64xf32>
    %65 = arith.truncf %64 : vector<256x64xf32> to vector<256x64xbf16>
    %c0_61 = arith.constant 0 : index
    %c384 = arith.constant 384 : index
    %66 = vector.load %arg11[%c0_61, %c384] : memref<256x576xbf16, #tpu.memory_space<vmem>>, vector<256x64xbf16>
    tpu.vector_store %arg11[%c0_61, %c384], %65 {strides = array<i32>} : memref<256x576xbf16, #tpu.memory_space<vmem>>, vector<256x64xbf16>,
    %c2_62 = arith.constant 2 : index
    %c8_63 = arith.constant 8 : index
    %c0_64 = arith.constant 0 : index
    %67 = vector.load %arg10[%c2_62, %c8_63, %c0_64] : memref<18x32x64xf32, #tpu.memory_space<vmem>>, vector<16x16x64xf32>
    %68 = vector.shape_cast %67 : vector<16x16x64xf32> to vector<256x64xf32>
    %69 = arith.truncf %68 : vector<256x64xf32> to vector<256x64xbf16>
    %c0_65 = arith.constant 0 : index
    %c448 = arith.constant 448 : index
    %70 = vector.load %arg11[%c0_65, %c448] : memref<256x576xbf16, #tpu.memory_space<vmem>>, vector<256x64xbf16>
    tpu.vector_store %arg11[%c0_65, %c448], %69 {strides = array<i32>} : memref<256x576xbf16, #tpu.memory_space<vmem>>, vector<256x64xbf16>,
    %c2_66 = arith.constant 2 : index
    %c9_67 = arith.constant 9 : index
    %c0_68 = arith.constant 0 : index
    %71 = vector.load %arg10[%c2_66, %c9_67, %c0_68] : memref<18x32x64xf32, #tpu.memory_space<vmem>>, vector<16x16x64xf32>
    %72 = vector.shape_cast %71 : vector<16x16x64xf32> to vector<256x64xf32>
    %73 = arith.truncf %72 : vector<256x64xf32> to vector<256x64xbf16>
    %c0_69 = arith.constant 0 : index
    %c512 = arith.constant 512 : index
    %74 = vector.load %arg11[%c0_69, %c512] : memref<256x576xbf16, #tpu.memory_space<vmem>>, vector<256x64xbf16>
    tpu.vector_store %arg11[%c0_69, %c512], %73 {strides = array<i32>} : memref<256x576xbf16, #tpu.memory_space<vmem>>, vector<256x64xbf16>,
    %c0_70 = arith.constant 0 : index
    %c0_71 = arith.constant 0 : index
    %75 = vector.load %arg11[%c0_70, %c0_71] : memref<256x576xbf16, #tpu.memory_space<vmem>>, vector<256x576xbf16>
    %c0_72 = arith.constant 0 : index
    %c0_73 = arith.constant 0 : index
    %c0_74 = arith.constant 0 : index
    %76 = vector.load %arg7[%c0_72, %c0_73, %c0_74] : memref<2x576x64xbf16, #tpu.memory_space<vmem>>, vector<1x576x64xbf16>
    %77 = vector.shape_cast %76 : vector<1x576x64xbf16> to vector<576x64xbf16>
    %cst_75 = arith.constant dense<0.000000e+00> : vector<256x64xf32>
    %78 = tpu.matmul %75, %77, %cst_75 {dimension_numbers = #tpu.dot_dimension_numbers<[1], [0], [0], [1], [0, 0, 1, 1], [], []>} : vector<256x576xbf16>, vector<576x64xbf16>, vector<256x64xf32> -> vector<256x64xf32>
    %c0_76 = arith.constant 0 : index
    %c0_77 = arith.constant 0 : index
    %c0_78 = arith.constant 0 : index
    %79 = vector.load %arg8[%c0_76, %c0_77, %c0_78] : memref<2x1x64xf32, #tpu.memory_space<vmem>>, vector<1x1x64xf32>
    %80 = vector.shape_cast %79 : vector<1x1x64xf32> to vector<1x64xf32>
    %81 = vector.broadcast %80 : vector<1x64xf32> to vector<256x64xf32>
    %82 = arith.addf %78, %81 : vector<256x64xf32>
    %cst_79 = arith.constant 0.000000e+00 : f32
    %83 = vector.broadcast %cst_79 : f32 to vector<256x64xf32>
    %84 = arith.maximumf %82, %83 : vector<256x64xf32>
    %c1_80 = arith.constant 1 : index
    %c0_81 = arith.constant 0 : index
    %c0_82 = arith.constant 0 : index
    %85 = vector.load %arg3[%c1_80, %c0_81, %c0_82] : memref<2x32x64xbf16, #tpu.memory_space<vmem>>, vector<1x32x64xbf16>
    %86 = vector.shape_cast %85 : vector<1x32x64xbf16> to vector<32x64xbf16>
    %cst_83 = arith.constant dense<0.000000e+00> : vector<256x64xf32>
    %87 = tpu.matmul %10, %86, %cst_83 {dimension_numbers = #tpu.dot_dimension_numbers<[1], [0], [0], [1], [0, 0, 1, 1], [], []>} : vector<256x32xbf16>, vector<32x64xbf16>, vector<256x64xf32> -> vector<256x64xf32>
    %c1_84 = arith.constant 1 : index
    %c0_85 = arith.constant 0 : index
    %c0_86 = arith.constant 0 : index
    %88 = vector.load %arg4[%c1_84, %c0_85, %c0_86] : memref<2x1x64xf32, #tpu.memory_space<vmem>>, vector<1x1x64xf32>
    %89 = vector.shape_cast %88 : vector<1x1x64xf32> to vector<1x64xf32>
    %90 = vector.broadcast %89 : vector<1x64xf32> to vector<256x64xf32>
    %91 = arith.addf %87, %90 : vector<256x64xf32>
    %cst_87 = arith.constant 0.000000e+00 : f32
    %92 = vector.broadcast %cst_87 : f32 to vector<256x64xf32>
    %93 = arith.cmpf ogt, %91, %92 : vector<256x64xf32>
    %cst_88 = arith.constant 1.000000e-01 : f32
    %94 = vector.broadcast %cst_88 : f32 to vector<256x64xf32>
    %95 = arith.mulf %94, %91 : vector<256x64xf32>
    %96 = arith.select %93, %91, %95 : vector<256x64xi1>, vector<256x64xf32>
    %97 = arith.truncf %96 : vector<256x64xf32> to vector<256x64xbf16>
    %c1_89 = arith.constant 1 : index
    %c0_90 = arith.constant 0 : index
    %c0_91 = arith.constant 0 : index
    %98 = vector.load %arg5[%c1_89, %c0_90, %c0_91] : memref<2x64x128xbf16, #tpu.memory_space<vmem>>, vector<1x64x128xbf16>
    %99 = vector.shape_cast %98 : vector<1x64x128xbf16> to vector<64x128xbf16>
    %cst_92 = arith.constant dense<0.000000e+00> : vector<256x128xf32>
    %100 = tpu.matmul %97, %99, %cst_92 {dimension_numbers = #tpu.dot_dimension_numbers<[1], [0], [0], [1], [0, 0, 1, 1], [], []>} : vector<256x64xbf16>, vector<64x128xbf16>, vector<256x128xf32> -> vector<256x128xf32>
    %c1_93 = arith.constant 1 : index
    %c0_94 = arith.constant 0 : index
    %c0_95 = arith.constant 0 : index
    %101 = vector.load %arg6[%c1_93, %c0_94, %c0_95] : memref<2x1x128xf32, #tpu.memory_space<vmem>>, vector<1x1x128xf32>
    %102 = vector.shape_cast %101 : vector<1x1x128xf32> to vector<1x128xf32>
    %103 = vector.broadcast %102 : vector<1x128xf32> to vector<256x128xf32>
    %104 = arith.addf %100, %103 : vector<256x128xf32>
    %105 = vector.extract_strided_slice %104 {offsets = [0, 0], sizes = [256, 64], strides = [1, 1]} : vector<256x128xf32> to vector<256x64xf32>
    %106 = vector.extract_strided_slice %104 {offsets = [0, 64], sizes = [256, 64], strides = [1, 1]} : vector<256x128xf32> to vector<256x64xf32>
    %cst_96 = arith.constant 1.000000e+00 : f32
    %107 = vector.broadcast %cst_96 : f32 to vector<256x64xf32>
    %108 = arith.addf %105, %107 : vector<256x64xf32>
    %109 = arith.mulf %84, %108 : vector<256x64xf32>
    %110 = arith.addf %109, %106 : vector<256x64xf32>
    %111 = vector.shape_cast %110 : vector<256x64xf32> to vector<16x16x64xf32>
    %c1_97 = arith.constant 1 : index
    %c8_98 = arith.constant 8 : index
    %c0_99 = arith.constant 0 : index
    %112 = vector.load %arg10[%c1_97, %c8_98, %c0_99] : memref<18x32x64xf32, #tpu.memory_space<vmem>>, vector<16x16x64xf32>
    tpu.vector_store %arg10[%c1_97, %c8_98, %c0_99], %111 {strides = array<i32>} : memref<18x32x64xf32, #tpu.memory_space<vmem>>, vector<16x16x64xf32>,
    %c0_100 = arith.constant 0 : index
    %c7_101 = arith.constant 7 : index
    %c0_102 = arith.constant 0 : index
    %113 = vector.load %arg10[%c0_100, %c7_101, %c0_102] : memref<18x32x64xf32, #tpu.memory_space<vmem>>, vector<16x16x64xf32>
    %114 = vector.shape_cast %113 : vector<16x16x64xf32> to vector<256x64xf32>
    %115 = arith.truncf %114 : vector<256x64xf32> to vector<256x64xbf16>
    %c0_103 = arith.constant 0 : index
    %c0_104 = arith.constant 0 : index
    %116 = vector.load %arg11[%c0_103, %c0_104] : memref<256x576xbf16, #tpu.memory_space<vmem>>, vector<256x64xbf16>
    tpu.vector_store %arg11[%c0_103, %c0_104], %115 {strides = array<i32>} : memref<256x576xbf16, #tpu.memory_space<vmem>>, vector<256x64xbf16>,
    %c0_105 = arith.constant 0 : index
    %c8_106 = arith.constant 8 : index
    %c0_107 = arith.constant 0 : index
    %117 = vector.load %arg10[%c0_105, %c8_106, %c0_107] : memref<18x32x64xf32, #tpu.memory_space<vmem>>, vector<16x16x64xf32>
    %118 = vector.shape_cast %117 : vector<16x16x64xf32> to vector<256x64xf32>
    %119 = arith.truncf %118 : vector<256x64xf32> to vector<256x64xbf16>
    %c0_108 = arith.constant 0 : index
    %c64_109 = arith.constant 64 : index
    %120 = vector.load %arg11[%c0_108, %c64_109] : memref<256x576xbf16, #tpu.memory_space<vmem>>, vector<256x64xbf16>
    tpu.vector_store %arg11[%c0_108, %c64_109], %119 {strides = array<i32>} : memref<256x576xbf16, #tpu.memory_space<vmem>>, vector<256x64xbf16>,
    %c0_110 = arith.constant 0 : index
    %c9_111 = arith.constant 9 : index
    %c0_112 = arith.constant 0 : index
    %121 = vector.load %arg10[%c0_110, %c9_111, %c0_112] : memref<18x32x64xf32, #tpu.memory_space<vmem>>, vector<16x16x64xf32>
    %122 = vector.shape_cast %121 : vector<16x16x64xf32> to vector<256x64xf32>
    %123 = arith.truncf %122 : vector<256x64xf32> to vector<256x64xbf16>
    %c0_113 = arith.constant 0 : index
    %c128_114 = arith.constant 128 : index
    %124 = vector.load %arg11[%c0_113, %c128_114] : memref<256x576xbf16, #tpu.memory_space<vmem>>, vector<256x64xbf16>
    tpu.vector_store %arg11[%c0_113, %c128_114], %123 {strides = array<i32>} : memref<256x576xbf16, #tpu.memory_space<vmem>>, vector<256x64xbf16>,
    %c1_115 = arith.constant 1 : index
    %c7_116 = arith.constant 7 : index
    %c0_117 = arith.constant 0 : index
    %125 = vector.load %arg10[%c1_115, %c7_116, %c0_117] : memref<18x32x64xf32, #tpu.memory_space<vmem>>, vector<16x16x64xf32>
    %126 = vector.shape_cast %125 : vector<16x16x64xf32> to vector<256x64xf32>
    %127 = arith.truncf %126 : vector<256x64xf32> to vector<256x64xbf16>
    %c0_118 = arith.constant 0 : index
    %c192_119 = arith.constant 192 : index
    %128 = vector.load %arg11[%c0_118, %c192_119] : memref<256x576xbf16, #tpu.memory_space<vmem>>, vector<256x64xbf16>
    tpu.vector_store %arg11[%c0_118, %c192_119], %127 {strides = array<i32>} : memref<256x576xbf16, #tpu.memory_space<vmem>>, vector<256x64xbf16>,
    %c1_120 = arith.constant 1 : index
    %c8_121 = arith.constant 8 : index
    %c0_122 = arith.constant 0 : index
    %129 = vector.load %arg10[%c1_120, %c8_121, %c0_122] : memref<18x32x64xf32, #tpu.memory_space<vmem>>, vector<16x16x64xf32>
    %130 = vector.shape_cast %129 : vector<16x16x64xf32> to vector<256x64xf32>
    %131 = arith.truncf %130 : vector<256x64xf32> to vector<256x64xbf16>
    %c0_123 = arith.constant 0 : index
    %c256_124 = arith.constant 256 : index
    %132 = vector.load %arg11[%c0_123, %c256_124] : memref<256x576xbf16, #tpu.memory_space<vmem>>, vector<256x64xbf16>
    tpu.vector_store %arg11[%c0_123, %c256_124], %131 {strides = array<i32>} : memref<256x576xbf16, #tpu.memory_space<vmem>>, vector<256x64xbf16>,
    %c1_125 = arith.constant 1 : index
    %c9_126 = arith.constant 9 : index
    %c0_127 = arith.constant 0 : index
    %133 = vector.load %arg10[%c1_125, %c9_126, %c0_127] : memref<18x32x64xf32, #tpu.memory_space<vmem>>, vector<16x16x64xf32>
    %134 = vector.shape_cast %133 : vector<16x16x64xf32> to vector<256x64xf32>
    %135 = arith.truncf %134 : vector<256x64xf32> to vector<256x64xbf16>
    %c0_128 = arith.constant 0 : index
    %c320_129 = arith.constant 320 : index
    %136 = vector.load %arg11[%c0_128, %c320_129] : memref<256x576xbf16, #tpu.memory_space<vmem>>, vector<256x64xbf16>
    tpu.vector_store %arg11[%c0_128, %c320_129], %135 {strides = array<i32>} : memref<256x576xbf16, #tpu.memory_space<vmem>>, vector<256x64xbf16>,
    %c2_130 = arith.constant 2 : index
    %c7_131 = arith.constant 7 : index
    %c0_132 = arith.constant 0 : index
    %137 = vector.load %arg10[%c2_130, %c7_131, %c0_132] : memref<18x32x64xf32, #tpu.memory_space<vmem>>, vector<16x16x64xf32>
    %138 = vector.shape_cast %137 : vector<16x16x64xf32> to vector<256x64xf32>
    %139 = arith.truncf %138 : vector<256x64xf32> to vector<256x64xbf16>
    %c0_133 = arith.constant 0 : index
    %c384_134 = arith.constant 384 : index
    %140 = vector.load %arg11[%c0_133, %c384_134] : memref<256x576xbf16, #tpu.memory_space<vmem>>, vector<256x64xbf16>
    tpu.vector_store %arg11[%c0_133, %c384_134], %139 {strides = array<i32>} : memref<256x576xbf16, #tpu.memory_space<vmem>>, vector<256x64xbf16>,
    %c2_135 = arith.constant 2 : index
    %c8_136 = arith.constant 8 : index
    %c0_137 = arith.constant 0 : index
    %141 = vector.load %arg10[%c2_135, %c8_136, %c0_137] : memref<18x32x64xf32, #tpu.memory_space<vmem>>, vector<16x16x64xf32>
    %142 = vector.shape_cast %141 : vector<16x16x64xf32> to vector<256x64xf32>
    %143 = arith.truncf %142 : vector<256x64xf32> to vector<256x64xbf16>
    %c0_138 = arith.constant 0 : index
    %c448_139 = arith.constant 448 : index
    %144 = vector.load %arg11[%c0_138, %c448_139] : memref<256x576xbf16, #tpu.memory_space<vmem>>, vector<256x64xbf16>
    tpu.vector_store %arg11[%c0_138, %c448_139], %143 {strides = array<i32>} : memref<256x576xbf16, #tpu.memory_space<vmem>>, vector<256x64xbf16>,
    %c2_140 = arith.constant 2 : index
    %c9_141 = arith.constant 9 : index
    %c0_142 = arith.constant 0 : index
    %145 = vector.load %arg10[%c2_140, %c9_141, %c0_142] : memref<18x32x64xf32, #tpu.memory_space<vmem>>, vector<16x16x64xf32>
    %146 = vector.shape_cast %145 : vector<16x16x64xf32> to vector<256x64xf32>
    %147 = arith.truncf %146 : vector<256x64xf32> to vector<256x64xbf16>
    %c0_143 = arith.constant 0 : index
    %c512_144 = arith.constant 512 : index
    %148 = vector.load %arg11[%c0_143, %c512_144] : memref<256x576xbf16, #tpu.memory_space<vmem>>, vector<256x64xbf16>
    tpu.vector_store %arg11[%c0_143, %c512_144], %147 {strides = array<i32>} : memref<256x576xbf16, #tpu.memory_space<vmem>>, vector<256x64xbf16>,
    %c0_145 = arith.constant 0 : index
    %c0_146 = arith.constant 0 : index
    %149 = vector.load %arg11[%c0_145, %c0_146] : memref<256x576xbf16, #tpu.memory_space<vmem>>, vector<256x576xbf16>
    %c1_147 = arith.constant 1 : index
    %c0_148 = arith.constant 0 : index
    %c0_149 = arith.constant 0 : index
    %150 = vector.load %arg7[%c1_147, %c0_148, %c0_149] : memref<2x576x64xbf16, #tpu.memory_space<vmem>>, vector<1x576x64xbf16>
    %151 = vector.shape_cast %150 : vector<1x576x64xbf16> to vector<576x64xbf16>
    %cst_150 = arith.constant dense<0.000000e+00> : vector<256x64xf32>
    %152 = tpu.matmul %149, %151, %cst_150 {dimension_numbers = #tpu.dot_dimension_numbers<[1], [0], [0], [1], [0, 0, 1, 1], [], []>} : vector<256x576xbf16>, vector<576x64xbf16>, vector<256x64xf32> -> vector<256x64xf32>
    %c1_151 = arith.constant 1 : index
    %c0_152 = arith.constant 0 : index
    %c0_153 = arith.constant 0 : index
    %153 = vector.load %arg8[%c1_151, %c0_152, %c0_153] : memref<2x1x64xf32, #tpu.memory_space<vmem>>, vector<1x1x64xf32>
    %154 = vector.shape_cast %153 : vector<1x1x64xf32> to vector<1x64xf32>
    %155 = vector.broadcast %154 : vector<1x64xf32> to vector<256x64xf32>
    %156 = arith.addf %152, %155 : vector<256x64xf32>
    %157 = arith.addf %7, %156 : vector<256x64xf32>
    %158 = vector.shape_cast %157 : vector<256x64xf32> to vector<1x16x16x64xf32>
    %c0_154 = arith.constant 0 : index
    %c0_155 = arith.constant 0 : index
    %c0_156 = arith.constant 0 : index
    %c0_157 = arith.constant 0 : index
    %159 = vector.load %arg9[%c0_154, %c0_155, %c0_156, %c0_157] : memref<1x16x16x64xf32, #tpu.memory_space<vmem>>, vector<1x16x16x64xf32>
    tpu.vector_store %arg9[%c0_154, %c0_155, %c0_156, %c0_157], %158 {strides = array<i32>} : memref<1x16x16x64xf32, #tpu.memory_space<vmem>>, vector<1x16x16x64xf32>,
    return
  }
  func.func @transform_0(%arg0: i32) -> (i32, i32, i32, i32) {
    %c0_i32 = arith.constant 0 : i32
    %c0_i32_0 = arith.constant 0 : i32
    %c0_i32_1 = arith.constant 0 : i32
    %c0_i32_2 = arith.constant 0 : i32
    return %arg0, %c0_i32, %c0_i32_0, %c0_i32_1 : i32, i32, i32, i32
  }
  func.func @transform_1(%arg0: i32) -> (i32, i32, i32, i32) {
    %c0_i32 = arith.constant 0 : i32
    %c0_i32_0 = arith.constant 0 : i32
    %c0_i32_1 = arith.constant 0 : i32
    %c0_i32_2 = arith.constant 0 : i32
    return %arg0, %c0_i32, %c0_i32_0, %c0_i32_1 : i32, i32, i32, i32
  }
  func.func @transform_2(%arg0: i32) -> (i32, i32, i32) {
    %c0_i32 = arith.constant 0 : i32
    %c0_i32_0 = arith.constant 0 : i32
    %c0_i32_1 = arith.constant 0 : i32
    %c0_i32_2 = arith.constant 0 : i32
    return %c0_i32, %c0_i32_0, %c0_i32_1 : i32, i32, i32
  }
  func.func @transform_3(%arg0: i32) -> (i32, i32, i32) {
    %c0_i32 = arith.constant 0 : i32
    %c0_i32_0 = arith.constant 0 : i32
    %c0_i32_1 = arith.constant 0 : i32
    %c0_i32_2 = arith.constant 0 : i32
    return %c0_i32, %c0_i32_0, %c0_i32_1 : i32, i32, i32
  }
  func.func @transform_4(%arg0: i32) -> (i32, i32, i32) {
    %c0_i32 = arith.constant 0 : i32
    %c0_i32_0 = arith.constant 0 : i32
    %c0_i32_1 = arith.constant 0 : i32
    %c0_i32_2 = arith.constant 0 : i32
    return %c0_i32, %c0_i32_0, %c0_i32_1 : i32, i32, i32
  }
  func.func @transform_5(%arg0: i32) -> (i32, i32, i32) {
    %c0_i32 = arith.constant 0 : i32
    %c0_i32_0 = arith.constant 0 : i32
    %c0_i32_1 = arith.constant 0 : i32
    %c0_i32_2 = arith.constant 0 : i32
    return %c0_i32, %c0_i32_0, %c0_i32_1 : i32, i32, i32
  }
  func.func @transform_6(%arg0: i32) -> (i32, i32, i32) {
    %c0_i32 = arith.constant 0 : i32
    %c0_i32_0 = arith.constant 0 : i32
    %c0_i32_1 = arith.constant 0 : i32
    %c0_i32_2 = arith.constant 0 : i32
    return %c0_i32, %c0_i32_0, %c0_i32_1 : i32, i32, i32
  }
  func.func @transform_7(%arg0: i32) -> (i32, i32, i32) {
    %c0_i32 = arith.constant 0 : i32
    %c0_i32_0 = arith.constant 0 : i32
    %c0_i32_1 = arith.constant 0 : i32
    %c0_i32_2 = arith.constant 0 : i32
    return %c0_i32, %c0_i32_0, %c0_i32_1 : i32, i32, i32
  }
  func.func @transform_8(%arg0: i32) -> (i32, i32, i32, i32) {
    %c0_i32 = arith.constant 0 : i32
    %c0_i32_0 = arith.constant 0 : i32
    %c0_i32_1 = arith.constant 0 : i32
    %c0_i32_2 = arith.constant 0 : i32
    return %arg0, %c0_i32, %c0_i32_0, %c0_i32_1 : i32, i32, i32, i32
  }
}

</mosaic_0001>

<llo_original>
// kernel: tpu_custom_call.1
$region0: #{tpu_custom_call.1}
  #allocation0 [shape = 'u32[]', space=smem, size = 0x4, offset = 0x4, fixed_abs, tag = 'smem constant byte address 0x4 - core index']
  #allocation1 [shape = 'u32[72,128]{1,0:T(1,128)}', space=vmem, size = 0x9000, scoped, tag = 'internal scratch']
  #allocation2 [shape = 'f32[18,32,64]{2,1,0:T(8,128)}', space=vmem, size = 0x48000, scoped, tag = 'scratch operand']
  #allocation3 [shape = 'bf16[256,576]{1,0:T(8,128)(2,1)}', space=vmem, size = 0x50000, scoped, tag = 'scratch operand']
  %s0 = inlined_call_operand.vmem [shape: f32[2,16,16,64], index: 0, kind: input, shape index: {}]
  %s1 = inlined_call_operand.hbm [shape: f32[2,16,16,32], index: 1, kind: input, shape index: {}]
  %s2 = inlined_call_operand.vmem [shape: bf16[2,32,64], index: 2, kind: input, shape index: {}]
  %s3 = inlined_call_operand.vmem [shape: f32[2,1,64], index: 3, kind: input, shape index: {}]
  %s4 = inlined_call_operand.vmem [shape: bf16[2,64,128], index: 4, kind: input, shape index: {}]
  %s5 = inlined_call_operand.vmem [shape: f32[2,1,128], index: 5, kind: input, shape index: {}]
  %s6 = inlined_call_operand.vmem [shape: bf16[2,576,64], index: 6, kind: input, shape index: {}]
  %s7 = inlined_call_operand.vmem [shape: f32[2,1,64], index: 7, kind: input, shape index: {}]
  %s8 = inlined_call_operand.hbm [shape: f32[2,16,16,64], index: 8, kind: output, shape index: {}]
  %s9 = sld [smem:[#allocation0]]
  $region69: #{tpu_custom_call.1} parent=0
    _
  %s11 = ssub.s32 1, %s9
  %s12 = scalar_select 0, %s11, %s9
  $region1: #{tpu_custom_call.1} parent=0
    #allocation4 [shape = 'u8[262144]{0}', space=vmem, size = 0x40000, scoped, tag = 'input window, operand 1']
    #allocation5 [shape = 's32[2]{0}', space=sflag, size = 0x8, scoped, tag = 'scoped memory for tpu_custom_call.1']
    #allocation6 [shape = 's32[2]{0}', space=sflag, size = 0x8, scoped, tag = 'scoped memory for tpu_custom_call.1']
    #allocation7 [shape = 'u8[262144]{0}', space=vmem, size = 0x40000, scoped, tag = 'output window, operand 0']
    %13 = vsyncpa [#allocation5], 0
    %s14 = scalar_lea.sflag [#allocation5], 1
    %15 = vsyncpa %s14, 0
    %16 = vsyncpa [#allocation6], 0
    %s17 = scalar_lea.sflag [#allocation6], 1
    %18 = vsyncpa %s17, 0
    loop: start=0, step=1, limit=4
    $region2: #{tpu_custom_call.1} parent=1 // loop_pre_header
      _
    $region3: #{tpu_custom_call.1} parent=1 // loop_header
      %s20 = sphi 0, %s24
      %p21 = scmp.ge.s32.totalorder %s20, 4
      %s30 = sphi 0, %s32
      %s33 = sphi 0, %s30
      %s34 = sphi 0, %s33
      %s50 = sphi 0, %s34
      %s56 = sphi 0, %s58
      %s59 = sphi 0, %s56
      %s60 = sphi 0, %s59
      %s76 = sphi 0, %s60
      %s80 = sphi 0, %s80
      %s82 = sphi 0, %s80
      %s83 = sphi 0, %s82
      %s97 = sphi 0, %s83
      %s101 = sphi 0, %s101
      %s103 = sphi 0, %s101
      %s104 = sphi 0, %s103
      %s118 = sphi 0, %s104
      %s122 = sphi 0, %s122
      %s124 = sphi 0, %s122
      %s125 = sphi 0, %s124
      %s139 = sphi 0, %s125
      %s143 = sphi 0, %s143
      %s145 = sphi 0, %s143
      %s146 = sphi 0, %s145
      %s160 = sphi 0, %s146
      %s164 = sphi 0, %s164
      %s166 = sphi 0, %s164
      %s167 = sphi 0, %s166
      %s181 = sphi 0, %s167
      %s185 = sphi 0, %s185
      %s187 = sphi 0, %s185
      %s188 = sphi 0, %s187
      %s202 = sphi 0, %s188
      %s208 = sphi 0, %s210
      %s211 = sphi 0, %s208
      %s212 = sphi 0, %s211
      %s228 = sphi 0, %s212
    $region4: #{tpu_custom_call.1} parent=1 // loop_header_branch
      %23 = sbr.rel (%p21) target = $region8
    $region5: #{tpu_custom_call.1} parent=1 // loop_body
      %s25 = ssub.s32 %s20, 1
      %s26 = ssub.s32 %s20, 2
      %s27 = sadd.s32 %s20, 1
      %s28 = ssub.s32 %s20, %s27
      %p29 = scmp.eq.s32.totalorder %s28, 0
      %s31 = sadd.s32 %s30, 1
      %s32 = scalar_select %p29, %s30, %s31
      %p35 = pneg %p29
      %p36 = scmp.eq.s32.totalorder %s20, 1
      %p37 = por %p35, %p36
      %p38 = scmp.ne.s32.totalorder %s30, %s33
      %p39 = scmp.eq.s32.totalorder %s20, 0
      %p40 = por %p38, %p39
      %p41 = scmp.ne.s32.totalorder %s30, %s33
      %p42 = scmp.eq.s32.totalorder %s25, 1
      %p43 = por %p41, %p42
      %p44 = scmp.ne.s32.totalorder %s33, %s34
      %p45 = scmp.eq.s32.totalorder %s25, 0
      %p46 = por %p44, %p45
      %p47 = scmp.ne.s32.totalorder %s33, %s34
      %p48 = scmp.eq.s32.totalorder %s26, 1
      %p49 = por %p47, %p48
      %p51 = scmp.ne.s32.totalorder %s34, %s50
      %p52 = scmp.eq.s32.totalorder %s26, 0
      %p53 = por %p51, %p52
      %s54 = ssub.s32 %s20, %s27
      %p55 = scmp.eq.s32.totalorder %s54, 0
      %s57 = sadd.s32 %s56, 1
      %s58 = scalar_select %p55, %s56, %s57
      %p61 = pneg %p55
      %p62 = scmp.eq.s32.totalorder %s20, 1
      %p63 = por %p61, %p62
      %p64 = scmp.ne.s32.totalorder %s56, %s59
      %p65 = scmp.eq.s32.totalorder %s20, 0
      %p66 = por %p64, %p65
      %p67 = scmp.ne.s32.totalorder %s56, %s59
      %p68 = scmp.eq.s32.totalorder %s25, 1
      %p69 = por %p67, %p68
      %p70 = scmp.ne.s32.totalorder %s59, %s60
      %p71 = scmp.eq.s32.totalorder %s25, 0
      %p72 = por %p70, %p71
      %p73 = scmp.ne.s32.totalorder %s59, %s60
      %p74 = scmp.eq.s32.totalorder %s26, 1
      %p75 = por %p73, %p74
      %p77 = scmp.ne.s32.totalorder %s60, %s76
      %p78 = scmp.eq.s32.totalorder %s26, 0
      %p79 = por %p77, %p78
      %s81 = sadd.s32 %s80, 1
      %p84 = scmp.eq.s32.totalorder %s20, 1
      %p85 = scmp.ne.s32.totalorder %s80, %s82
      %p86 = scmp.eq.s32.totalorder %s20, 0
      %p87 = por %p85, %p86
      %p88 = scmp.ne.s32.totalorder %s80, %s82
      %p89 = scmp.eq.s32.totalorder %s25, 1
      %p90 = por %p88, %p89
      %p91 = scmp.ne.s32.totalorder %s82, %s83
      %p92 = scmp.eq.s32.totalorder %s25, 0
      %p93 = por %p91, %p92
      %p94 = scmp.ne.s32.totalorder %s82, %s83
      %p95 = scmp.eq.s32.totalorder %s26, 1
      %p96 = por %p94, %p95
      %p98 = scmp.ne.s32.totalorder %s83, %s97
      %p99 = scmp.eq.s32.totalorder %s26, 0
      %p100 = por %p98, %p99
      %s102 = sadd.s32 %s101, 1
      %p105 = scmp.eq.s32.totalorder %s20, 1
      %p106 = scmp.ne.s32.totalorder %s101, %s103
      %p107 = scmp.eq.s32.totalorder %s20, 0
      %p108 = por %p106, %p107
      %p109 = scmp.ne.s32.totalorder %s101, %s103
      %p110 = scmp.eq.s32.totalorder %s25, 1
      %p111 = por %p109, %p110
      %p112 = scmp.ne.s32.totalorder %s103, %s104
      %p113 = scmp.eq.s32.totalorder %s25, 0
      %p114 = por %p112, %p113
      %p115 = scmp.ne.s32.totalorder %s103, %s104
      %p116 = scmp.eq.s32.totalorder %s26, 1
      %p117 = por %p115, %p116
      %p119 = scmp.ne.s32.totalorder %s104, %s118
      %p120 = scmp.eq.s32.totalorder %s26, 0
      %p121 = por %p119, %p120
      %s123 = sadd.s32 %s122, 1
      %p126 = scmp.eq.s32.totalorder %s20, 1
      %p127 = scmp.ne.s32.totalorder %s122, %s124
      %p128 = scmp.eq.s32.totalorder %s20, 0
      %p129 = por %p127, %p128
      %p130 = scmp.ne.s32.totalorder %s122, %s124
      %p131 = scmp.eq.s32.totalorder %s25, 1
      %p132 = por %p130, %p131
      %p133 = scmp.ne.s32.totalorder %s124, %s125
      %p134 = scmp.eq.s32.totalorder %s25, 0
      %p135 = por %p133, %p134
      %p136 = scmp.ne.s32.totalorder %s124, %s125
      %p137 = scmp.eq.s32.totalorder %s26, 1
      %p138 = por %p136, %p137
      %p140 = scmp.ne.s32.totalorder %s125, %s139
      %p141 = scmp.eq.s32.totalorder %s26, 0
      %p142 = por %p140, %p141
      %s144 = sadd.s32 %s143, 1
      %p147 = scmp.eq.s32.totalorder %s20, 1
      %p148 = scmp.ne.s32.totalorder %s143, %s145
      %p149 = scmp.eq.s32.totalorder %s20, 0
      %p150 = por %p148, %p149
      %p151 = scmp.ne.s32.totalorder %s143, %s145
      %p152 = scmp.eq.s32.totalorder %s25, 1
      %p153 = por %p151, %p152
      %p154 = scmp.ne.s32.totalorder %s145, %s146
      %p155 = scmp.eq.s32.totalorder %s25, 0
      %p156 = por %p154, %p155
      %p157 = scmp.ne.s32.totalorder %s145, %s146
      %p158 = scmp.eq.s32.totalorder %s26, 1
      %p159 = por %p157, %p158
      %p161 = scmp.ne.s32.totalorder %s146, %s160
      %p162 = scmp.eq.s32.totalorder %s26, 0
      %p163 = por %p161, %p162
      %s165 = sadd.s32 %s164, 1
      %p168 = scmp.eq.s32.totalorder %s20, 1
      %p169 = scmp.ne.s32.totalorder %s164, %s166
      %p170 = scmp.eq.s32.totalorder %s20, 0
      %p171 = por %p169, %p170
      %p172 = scmp.ne.s32.totalorder %s164, %s166
      %p173 = scmp.eq.s32.totalorder %s25, 1
      %p174 = por %p172, %p173
      %p175 = scmp.ne.s32.totalorder %s166, %s167
      %p176 = scmp.eq.s32.totalorder %s25, 0
      %p177 = por %p175, %p176
      %p178 = scmp.ne.s32.totalorder %s166, %s167
      %p179 = scmp.eq.s32.totalorder %s26, 1
      %p180 = por %p178, %p179
      %p182 = scmp.ne.s32.totalorder %s167, %s181
      %p183 = scmp.eq.s32.totalorder %s26, 0
      %p184 = por %p182, %p183
      %s186 = sadd.s32 %s185, 1
      %p189 = scmp.eq.s32.totalorder %s20, 1
      %p190 = scmp.ne.s32.totalorder %s185, %s187
      %p191 = scmp.eq.s32.totalorder %s20, 0
      %p192 = por %p190, %p191
      %p193 = scmp.ne.s32.totalorder %s185, %s187
      %p194 = scmp.eq.s32.totalorder %s25, 1
      %p195 = por %p193, %p194
      %p196 = scmp.ne.s32.totalorder %s187, %s188
      %p197 = scmp.eq.s32.totalorder %s25, 0
      %p198 = por %p196, %p197
      %p199 = scmp.ne.s32.totalorder %s187, %s188
      %p200 = scmp.eq.s32.totalorder %s26, 1
      %p201 = por %p199, %p200
      %p203 = scmp.ne.s32.totalorder %s188, %s202
      %p204 = scmp.eq.s32.totalorder %s26, 0
      %p205 = por %p203, %p204
      %s206 = ssub.s32 %s20, %s27
      %p207 = scmp.eq.s32.totalorder %s206, 0
      %s209 = sadd.s32 %s208, 1
      %s210 = scalar_select %p207, %s208, %s209
      %p213 = pneg %p207
      %p214 = scmp.eq.s32.totalorder %s20, 1
      %p215 = por %p213, %p214
      %p216 = scmp.ne.s32.totalorder %s208, %s211
      %p217 = scmp.eq.s32.totalorder %s20, 0
      %p218 = por %p216, %p217
      %p219 = scmp.ne.s32.totalorder %s208, %s211
      %p220 = scmp.eq.s32.totalorder %s25, 1
      %p221 = por %p219, %p220
      %p222 = scmp.ne.s32.totalorder %s211, %s212
      %p223 = scmp.eq.s32.totalorder %s25, 0
      %p224 = por %p222, %p223
      %p225 = scmp.ne.s32.totalorder %s211, %s212
      %p226 = scmp.eq.s32.totalorder %s26, 1
      %p227 = por %p225, %p226
      %p229 = scmp.ne.s32.totalorder %s212, %s228
      %p230 = scmp.eq.s32.totalorder %s26, 0
      %p231 = por %p229, %p230
      %p232 = scmp.le.s32.totalorder 1, %s20
      %p233 = scmp.lt.s32.totalorder %s20, 3
      %p234 = pnand %p232, %p233
      %p235 = pneg %p234
      // Predicated region
      $region9: #{tpu_custom_call.1} parent=5 // pred_check
        _
      $region10: #{tpu_custom_call.1} parent=5 // pred_check_branch
        %237 = sbr.rel (%p234) target = $region12
      $region11: #{tpu_custom_call.1} parent=5 // pred_region
        %s238 = ssub.s32 %s20, 1
        // Predicated region
        $region13: #{tpu_custom_call.1} parent=11 // pred_check
          %p239 = pneg %p93
        $region14: #{tpu_custom_call.1} parent=11 // pred_check_branch
          %241 = sbr.rel (%p239) target = $region16
        $region15: #{tpu_custom_call.1} parent=11 // pred_region
          _
        $region16: #{tpu_custom_call.1} parent=11 // pred_fallthru
          _
        // Predicated region
        $region17: #{tpu_custom_call.1} parent=11 // pred_check
          %p242 = pneg %p114
        $region18: #{tpu_custom_call.1} parent=11 // pred_check_branch
          %244 = sbr.rel (%p242) target = $region20
        $region19: #{tpu_custom_call.1} parent=11 // pred_region
          _
        $region20: #{tpu_custom_call.1} parent=11 // pred_fallthru
          _
        // Predicated region
        $region21: #{tpu_custom_call.1} parent=11 // pred_check
          %p245 = pneg %p135
        $region22: #{tpu_custom_call.1} parent=11 // pred_check_branch
          %247 = sbr.rel (%p245) target = $region24
        $region23: #{tpu_custom_call.1} parent=11 // pred_region
          _
        $region24: #{tpu_custom_call.1} parent=11 // pred_fallthru
          _
        // Predicated region
        $region25: #{tpu_custom_call.1} parent=11 // pred_check
          %p248 = pneg %p156
        $region26: #{tpu_custom_call.1} parent=11 // pred_check_branch
          %250 = sbr.rel (%p248) target = $region28
        $region27: #{tpu_custom_call.1} parent=11 // pred_region
          _
        $region28: #{tpu_custom_call.1} parent=11 // pred_fallthru
          _
        // Predicated region
        $region29: #{tpu_custom_call.1} parent=11 // pred_check
          %p251 = pneg %p177
        $region30: #{tpu_custom_call.1} parent=11 // pred_check_branch
          %253 = sbr.rel (%p251) target = $region32
        $region31: #{tpu_custom_call.1} parent=11 // pred_region
          _
        $region32: #{tpu_custom_call.1} parent=11 // pred_fallthru
          _
        // Predicated region
        $region33: #{tpu_custom_call.1} parent=11 // pred_check
          %p254 = pneg %p198
        $region34: #{tpu_custom_call.1} parent=11 // pred_check_branch
          %256 = sbr.rel (%p254) target = $region36
        $region35: #{tpu_custom_call.1} parent=11 // pred_region
          _
        $region36: #{tpu_custom_call.1} parent=11 // pred_fallthru
          _
      $region12: #{tpu_custom_call.1} parent=5 // pred_fallthru
        _
      %p257 = scmp.lt.s32.totalorder %s20, 2
      // Predicated region
      $region37: #{tpu_custom_call.1} parent=5 // pred_check
        %p258 = pneg %p257
      $region38: #{tpu_custom_call.1} parent=5 // pred_check_branch
        %260 = sbr.rel (%p258) target = $region40
      $region39: #{tpu_custom_call.1} parent=5 // pred_region
        // Predicated region
        $region41: #{tpu_custom_call.1} parent=39 // pred_check
          %p261 = pneg %p40
        $region42: #{tpu_custom_call.1} parent=39 // pred_check_branch
          %263 = sbr.rel (%p261) target = $region44
        $region43: #{tpu_custom_call.1} parent=39 // pred_region
          %p264 = scmp.lt.s32.totalorder %s20, 1
          %s265 = scalar_select %p264, %s20, 1
          %s266 = smul.addr %s265, 32
          %s267 = smul.addr %s266, 8
          %s268 = scalar_lea.vmem %s0, %s267
        $region44: #{tpu_custom_call.1} parent=39 // pred_fallthru
          _
        // Predicated region
        $region45: #{tpu_custom_call.1} parent=39 // pred_check
          %p269 = pneg %p66
        $region46: #{tpu_custom_call.1} parent=39 // pred_check_branch
          %271 = sbr.rel (%p269) target = $region48
        $region47: #{tpu_custom_call.1} parent=39 // pred_region
          %s272 = sand.u32 %s56, 1
          %s273 = scalar_lea.sflag [#allocation5], %s272
          %s274 = sand.u32 %s56, 1
          %s275 = smul.addr %s274, 256
          %s276 = scalar_lea.vmem [#allocation4], %s275
          %278 = vsyncadd %s273, 0
          %s279 = smul.addr %s20, 32
          %s280 = smul.addr %s279, 8
          %s281 = scalar_lea.hbm %s1, %s280
          %s282 = sshll.u32 %s281, 4
          %s283 = int_to_ptr.hbm [resolvable:$true] %s282
          %s284 = sshll.u32 %s276, 4
          %s285 = int_to_ptr.vmem [resolvable:$true] %s284
          %290 = dma.hbm_to_vmem [thread:$0]  %s283, 4096, %s285, %s273, 128, 128, 8
        $region48: #{tpu_custom_call.1} parent=39 // pred_fallthru
          _
      $region40: #{tpu_custom_call.1} parent=5 // pred_fallthru
        _
      %p291 = scmp.le.s32.totalorder 1, %s20
      %p292 = scmp.lt.s32.totalorder %s20, 3
      %p293 = pnand %p291, %p292
      %p294 = pneg %p293
      // Predicated region
      $region49: #{tpu_custom_call.1} parent=5 // pred_check
        _
      $region50: #{tpu_custom_call.1} parent=5 // pred_check_branch
        %296 = sbr.rel (%p293) target = $region52
      $region51: #{tpu_custom_call.1} parent=5 // pred_region
        %s297 = ssub.s32 %s20, 1
        %s298 = sand.u32 %s59, 1
        %s299 = scalar_lea.sflag [#allocation5], %s298
        %s300 = sand.u32 %s59, 1
        %s301 = smul.addr %s300, 256
        %s302 = scalar_lea.vmem [#allocation4], %s301
        // Predicated region
        $region53: #{tpu_custom_call.1} parent=51 // pred_check
          %p303 = pneg %p72
        $region54: #{tpu_custom_call.1} parent=51 // pred_check_branch
          %305 = sbr.rel (%p303) target = $region56
        $region55: #{tpu_custom_call.1} parent=51 // pred_region
          %307 = dma.done %s299, 4096
        $region56: #{tpu_custom_call.1} parent=51 // pred_fallthru
          _
        %p308 = scmp.lt.s32.totalorder %s25, 1
        %s309 = scalar_select %p308, %s25, 1
        %s310 = smul.addr %s309, 32
        %s311 = smul.addr %s310, 8
        %s312 = scalar_lea.vmem %s0, %s311
        %p313 = pneg %p46
        %p314 = pneg %p43
        %s315 = sand.u32 %s59, 1
        %s316 = scalar_lea.sflag [#allocation5], %s315
        %s317 = sand.u32 %s59, 1
        %s318 = smul.addr %s317, 256
        %s319 = scalar_lea.vmem [#allocation4], %s318
        %p320 = pneg %p72
        %p321 = pneg %p69
        %p322 = pneg %p93
        %p323 = pneg %p90
        %p324 = pneg %p114
        %p325 = pneg %p111
        %p326 = pneg %p135
        %p327 = pneg %p132
        %p328 = pneg %p156
        %p329 = pneg %p153
        %p330 = pneg %p177
        %p331 = pneg %p174
        %p332 = pneg %p198
        %p333 = pneg %p195
        %p334 = pneg %p224
        %p335 = pneg %p221
        %s336 = sand.u32 %s211, 1
        %s337 = scalar_lea.sflag [#allocation6], %s336
        %s338 = sand.u32 %s211, 1
        %s339 = smul.addr %s338, 256
        %s340 = scalar_lea.vmem [#allocation7], %s339
        %p341 = scmp.lt.s32.totalorder %s25, 1
        %s342 = scalar_select %p341, %s25, 1
        %s343 = smul.addr %s342, 32
        %s344 = smul.addr %s343, 8
        %s345 = scalar_lea.vmem %s0, %s344
        %vm347 = vcmask 523264
        %348 = vst.msk [vmem:[#allocation2] sm:$0xff] %vm347, 0.0
        %349 = vst.msk [vmem:[#allocation2 + $0x8] sm:$0xff] %vm347, 0.0
        %350 = vst.msk [vmem:[#allocation2 + $0x10] sm:$0xff] %vm347, 0.0
        %351 = vst.msk [vmem:[#allocation2 + $0x18] sm:$0xff] %vm347, 0.0
        %s352 = scalar_lea.vmem [#allocation2], 544
        %353 = vst.msk [vmem:[%s352] sm:$0xff] %vm347, 0.0
        %354 = vst.msk [vmem:[%s352 + $0x8] sm:$0xff] %vm347, 0.0
        %355 = vst.msk [vmem:[%s352 + $0x10] sm:$0xff] %vm347, 0.0
        %356 = vst.msk [vmem:[%s352 + $0x18] sm:$0xff] %vm347, 0.0
        %vm357 = vcmask 516096
        %358 = vst.msk [vmem:[#allocation2 + $0x7] sm:$0x1] %vm357, 0.0
        %359 = vst.msk [vmem:[#allocation2 + $0x27] sm:$0x1] %vm357, 0.0
        %360 = vst.msk [vmem:[#allocation2 + $0x47] sm:$0x1] %vm357, 0.0
        %361 = vst.msk [vmem:[#allocation2 + $0x67] sm:$0x1] %vm357, 0.0
        %362 = vst.msk [vmem:[#allocation2 + $0x87] sm:$0x1] %vm357, 0.0
        %363 = vst.msk [vmem:[#allocation2 + $0xa7] sm:$0x1] %vm357, 0.0
        %364 = vst.msk [vmem:[#allocation2 + $0xc7] sm:$0x1] %vm357, 0.0
        %365 = vst.msk [vmem:[#allocation2 + $0xe7] sm:$0x1] %vm357, 0.0
        %366 = vst.msk [vmem:[#allocation2 + $0x107] sm:$0x1] %vm357, 0.0
        %367 = vst.msk [vmem:[#allocation2 + $0x127] sm:$0x1] %vm357, 0.0
        %368 = vst.msk [vmem:[#allocation2 + $0x147] sm:$0x1] %vm357, 0.0
        %369 = vst.msk [vmem:[#allocation2 + $0x167] sm:$0x1] %vm357, 0.0
        %370 = vst.msk [vmem:[#allocation2 + $0x187] sm:$0x1] %vm357, 0.0
        %371 = vst.msk [vmem:[#allocation2 + $0x1a7] sm:$0x1] %vm357, 0.0
        %372 = vst.msk [vmem:[#allocation2 + $0x1c7] sm:$0x1] %vm357, 0.0
        %373 = vst.msk [vmem:[#allocation2 + $0x1e7] sm:$0x1] %vm357, 0.0
        %374 = vst.msk [vmem:[#allocation2 + $0x207] sm:$0x1] %vm357, 0.0
        %375 = vst.msk [vmem:[#allocation2 + $0x227] sm:$0x1] %vm357, 0.0
        %376 = vst.msk [vmem:[#allocation2 + $0x18] sm:$0x1] %vm357, 0.0
        %377 = vst.msk [vmem:[#allocation2 + $0x38] sm:$0x1] %vm357, 0.0
        %378 = vst.msk [vmem:[#allocation2 + $0x58] sm:$0x1] %vm357, 0.0
        %379 = vst.msk [vmem:[#allocation2 + $0x78] sm:$0x1] %vm357, 0.0
        %380 = vst.msk [vmem:[#allocation2 + $0x98] sm:$0x1] %vm357, 0.0
        %381 = vst.msk [vmem:[#allocation2 + $0xb8] sm:$0x1] %vm357, 0.0
        %382 = vst.msk [vmem:[#allocation2 + $0xd8] sm:$0x1] %vm357, 0.0
        %383 = vst.msk [vmem:[#allocation2 + $0xf8] sm:$0x1] %vm357, 0.0
        %384 = vst.msk [vmem:[#allocation2 + $0x118] sm:$0x1] %vm357, 0.0
        %385 = vst.msk [vmem:[#allocation2 + $0x138] sm:$0x1] %vm357, 0.0
        %386 = vst.msk [vmem:[#allocation2 + $0x158] sm:$0x1] %vm357, 0.0
        %387 = vst.msk [vmem:[#allocation2 + $0x178] sm:$0x1] %vm357, 0.0
        %388 = vst.msk [vmem:[#allocation2 + $0x198] sm:$0x1] %vm357, 0.0
        %389 = vst.msk [vmem:[#allocation2 + $0x1b8] sm:$0x1] %vm357, 0.0
        %390 = vst.msk [vmem:[#allocation2 + $0x1d8] sm:$0x1] %vm357, 0.0
        %391 = vst.msk [vmem:[#allocation2 + $0x1f8] sm:$0x1] %vm357, 0.0
        %392 = vst.msk [vmem:[#allocation2 + $0x218] sm:$0x1] %vm357, 0.0
        %393 = vst.msk [vmem:[#allocation2 + $0x238] sm:$0x1] %vm357, 0.0
        %v394 = vld [vmem:[%s345] sm:$0xff]
        %v395 = vld [vmem:[%s345 + $0x8] sm:$0xff]
        %v396 = vld [vmem:[%s345 + $0x10] sm:$0xff]
        %v397 = vld [vmem:[%s345 + $0x18] sm:$0xff]
        %v398 = vld [vmem:[%s345 + $0x20] sm:$0xff]
        %v399 = vld [vmem:[%s345 + $0x28] sm:$0xff]
        %v400 = vld [vmem:[%s345 + $0x30] sm:$0xff]
        %v401 = vld [vmem:[%s345 + $0x38] sm:$0xff]
        %v402 = vld [vmem:[%s345 + $0x40] sm:$0xff]
        %v403 = vld [vmem:[%s345 + $0x48] sm:$0xff]
        %v404 = vld [vmem:[%s345 + $0x50] sm:$0xff]
        %v405 = vld [vmem:[%s345 + $0x58] sm:$0xff]
        %v406 = vld [vmem:[%s345 + $0x60] sm:$0xff]
        %v407 = vld [vmem:[%s345 + $0x68] sm:$0xff]
        %v408 = vld [vmem:[%s345 + $0x70] sm:$0xff]
        %v409 = vld [vmem:[%s345 + $0x78] sm:$0xff]
        %v410 = vld [vmem:[%s345 + $0x80] sm:$0xff]
        %v411 = vld [vmem:[%s345 + $0x88] sm:$0xff]
        %v412 = vld [vmem:[%s345 + $0x90] sm:$0xff]
        %v413 = vld [vmem:[%s345 + $0x98] sm:$0xff]
        %v414 = vld [vmem:[%s345 + $0xa0] sm:$0xff]
        %v415 = vld [vmem:[%s345 + $0xa8] sm:$0xff]
        %v416 = vld [vmem:[%s345 + $0xb0] sm:$0xff]
        %v417 = vld [vmem:[%s345 + $0xb8] sm:$0xff]
        %v418 = vld [vmem:[%s345 + $0xc0] sm:$0xff]
        %v419 = vld [vmem:[%s345 + $0xc8] sm:$0xff]
        %v420 = vld [vmem:[%s345 + $0xd0] sm:$0xff]
        %v421 = vld [vmem:[%s345 + $0xd8] sm:$0xff]
        %v422 = vld [vmem:[%s345 + $0xe0] sm:$0xff]
        %v423 = vld [vmem:[%s345 + $0xe8] sm:$0xff]
        %v424 = vld [vmem:[%s345 + $0xf0] sm:$0xff]
        %v425 = vld [vmem:[%s345 + $0xf8] sm:$0xff]
        %v426 = vld [vmem:[%s302] sm:$0xff]
        %v427 = vld [vmem:[%s302 + $0x8] sm:$0xff]
        %v428 = vld [vmem:[%s302 + $0x10] sm:$0xff]
        %v429 = vld [vmem:[%s302 + $0x18] sm:$0xff]
        %v430 = vld [vmem:[%s302 + $0x20] sm:$0xff]
        %v431 = vld [vmem:[%s302 + $0x28] sm:$0xff]
        %v432 = vld [vmem:[%s302 + $0x30] sm:$0xff]
        %v433 = vld [vmem:[%s302 + $0x38] sm:$0xff]
        %v434 = vld [vmem:[%s302 + $0x40] sm:$0xff]
        %v435 = vld [vmem:[%s302 + $0x48] sm:$0xff]
        %v436 = vld [vmem:[%s302 + $0x50] sm:$0xff]
        %v437 = vld [vmem:[%s302 + $0x58] sm:$0xff]
        %v438 = vld [vmem:[%s302 + $0x60] sm:$0xff]
        %v439 = vld [vmem:[%s302 + $0x68] sm:$0xff]
        %v440 = vld [vmem:[%s302 + $0x70] sm:$0xff]
        %v441 = vld [vmem:[%s302 + $0x78] sm:$0xff]
        %v442 = vld [vmem:[%s302 + $0x80] sm:$0xff]
        %v443 = vld [vmem:[%s302 + $0x88] sm:$0xff]
        %v444 = vld [vmem:[%s302 + $0x90] sm:$0xff]
        %v445 = vld [vmem:[%s302 + $0x98] sm:$0xff]
        %v446 = vld [vmem:[%s302 + $0xa0] sm:$0xff]
        %v447 = vld [vmem:[%s302 + $0xa8] sm:$0xff]
        %v448 = vld [vmem:[%s302 + $0xb0] sm:$0xff]
        %v449 = vld [vmem:[%s302 + $0xb8] sm:$0xff]
        %v450 = vld [vmem:[%s302 + $0xc0] sm:$0xff]
        %v451 = vld [vmem:[%s302 + $0xc8] sm:$0xff]
        %v452 = vld [vmem:[%s302 + $0xd0] sm:$0xff]
        %v453 = vld [vmem:[%s302 + $0xd8] sm:$0xff]
        %v454 = vld [vmem:[%s302 + $0xe0] sm:$0xff]
        %v455 = vld [vmem:[%s302 + $0xe8] sm:$0xff]
        %v456 = vld [vmem:[%s302 + $0xf0] sm:$0xff]
        %v457 = vld [vmem:[%s302 + $0xf8] sm:$0xff]
        %v458 = vpack.c.bf16 %v427, %v426
        %v459 = vpack.c.bf16 %v429, %v428
        %v460 = vpack.c.bf16 %v431, %v430
        %v461 = vpack.c.bf16 %v433, %v432
        %v462 = vpack.c.bf16 %v435, %v434
        %v463 = vpack.c.bf16 %v437, %v436
        %v464 = vpack.c.bf16 %v439, %v438
        %v465 = vpack.c.bf16 %v441, %v440
        %v466 = vpack.c.bf16 %v443, %v442
        %v467 = vpack.c.bf16 %v445, %v444
        %v468 = vpack.c.bf16 %v447, %v446
        %v469 = vpack.c.bf16 %v449, %v448
        %v470 = vpack.c.bf16 %v451, %v450
        %v471 = vpack.c.bf16 %v453, %v452
        %v472 = vpack.c.bf16 %v455, %v454
        %v473 = vpack.c.bf16 %v457, %v456
        %v474 = vld [vmem:[%s2] sm:$0xf]
        %v475 = vld [vmem:[%s2 + $0x4] sm:$0xf]
        %v476 = vld [vmem:[%s2 + $0x8] sm:$0xf]
        %v477 = vld [vmem:[%s2 + $0xc] sm:$0xf]
        %v478 = vld [vmem:[%s3] sm:$0x1]
        %v480 = vperm.slane %v478, 0
        %v486 = vunpack.c.l.b16 %v474
        %v487 = vunpack.c.l.b16 %v475
        %v488 = vunpack.c.l.b16 %v476
        %v489 = vunpack.c.l.b16 %v477
        %v490 = vpack.c.b16 %v487, %v486
        %v491 = vpack.c.b16 %v489, %v488
        %vm494 = vcmask 261120
        %v496 = vsel %vm494, %v458, 0
        %v499 = vsel %vm494, %v459, 0
        %v502 = vsel %vm494, %v460, 0
        %v505 = vsel %vm494, %v461, 0
        %v508 = vsel %vm494, %v462, 0
        %v511 = vsel %vm494, %v463, 0
        %v514 = vsel %vm494, %v464, 0
        %v517 = vsel %vm494, %v465, 0
        %v520 = vsel %vm494, %v466, 0
        %v523 = vsel %vm494, %v467, 0
        %v526 = vsel %vm494, %v468, 0
        %v529 = vsel %vm494, %v469, 0
        %v532 = vsel %vm494, %v470, 0
        %v535 = vsel %vm494, %v471, 0
        %v538 = vsel %vm494, %v472, 0
        %v541 = vsel %vm494, %v473, 0
        %543 = vmatpush.bf16.msra.mxu0 0
        %544 = vmatpush.bf16.msra.mxu0 0
        %545 = vmatpush.bf16.msra.mxu0 0
        %546 = vmatpush.bf16.msra.mxu0 0
        %547 = vmatpush.bf16.msra.mxu0 0
        %548 = vmatpush.bf16.msra.mxu0 0
        %549 = vmatpush.bf16.msra.mxu0 %v491
        %550 = vmatpush.bf16.msra.mxu0 %v490
        %551 = vmatmul.bf16.gmra.mxu0 %v496
        %v552 = vpop.f32.mrf.mxu0
        %v553 = vadd.f32 %v480, %v552
        %v554 = vpop.f32.mrf.mxu0
        %v555 = vadd.f32 %v480, %v554
        %556 = vmatmul.bf16.gmra.mxu0 %v499
        %v557 = vpop.f32.mrf.mxu0
        %v558 = vadd.f32 %v480, %v557
        %v559 = vpop.f32.mrf.mxu0
        %v560 = vadd.f32 %v480, %v559
        %561 = vmatmul.bf16.gmra.mxu0 %v502
        %v562 = vpop.f32.mrf.mxu0
        %v563 = vadd.f32 %v480, %v562
        %v564 = vpop.f32.mrf.mxu0
        %v565 = vadd.f32 %v480, %v564
        %566 = vmatmul.bf16.gmra.mxu0 %v505
        %v567 = vpop.f32.mrf.mxu0
        %v568 = vadd.f32 %v480, %v567
        %v569 = vpop.f32.mrf.mxu0
        %v570 = vadd.f32 %v480, %v569
        %571 = vmatmul.bf16.gmra.mxu0 %v508
        %v572 = vpop.f32.mrf.mxu0
        %v573 = vadd.f32 %v480, %v572
        %v574 = vpop.f32.mrf.mxu0
        %v575 = vadd.f32 %v480, %v574
        %576 = vmatmul.bf16.gmra.mxu0 %v511
        %v577 = vpop.f32.mrf.mxu0
        %v578 = vadd.f32 %v480, %v577
        %v579 = vpop.f32.mrf.mxu0
        %v580 = vadd.f32 %v480, %v579
        %581 = vmatmul.bf16.gmra.mxu0 %v514
        %v582 = vpop.f32.mrf.mxu0
        %v583 = vadd.f32 %v480, %v582
        %v584 = vpop.f32.mrf.mxu0
        %v585 = vadd.f32 %v480, %v584
        %586 = vmatmul.bf16.gmra.mxu0 %v517
        %v587 = vpop.f32.mrf.mxu0
        %v588 = vadd.f32 %v480, %v587
        %v589 = vpop.f32.mrf.mxu0
        %v590 = vadd.f32 %v480, %v589
        %591 = vmatmul.bf16.gmra.mxu0 %v520
        %v592 = vpop.f32.mrf.mxu0
        %v593 = vadd.f32 %v480, %v592
        %v594 = vpop.f32.mrf.mxu0
        %v595 = vadd.f32 %v480, %v594
        %596 = vmatmul.bf16.gmra.mxu0 %v523
        %v597 = vpop.f32.mrf.mxu0
        %v598 = vadd.f32 %v480, %v597
        %v599 = vpop.f32.mrf.mxu0
        %v600 = vadd.f32 %v480, %v599
        %601 = vmatmul.bf16.gmra.mxu0 %v526
        %v602 = vpop.f32.mrf.mxu0
        %v603 = vadd.f32 %v480, %v602
        %v604 = vpop.f32.mrf.mxu0
        %v605 = vadd.f32 %v480, %v604
        %606 = vmatmul.bf16.gmra.mxu0 %v529
        %v607 = vpop.f32.mrf.mxu0
        %v608 = vadd.f32 %v480, %v607
        %v609 = vpop.f32.mrf.mxu0
        %v610 = vadd.f32 %v480, %v609
        %611 = vmatmul.bf16.gmra.mxu0 %v532
        %v612 = vpop.f32.mrf.mxu0
        %v613 = vadd.f32 %v480, %v612
        %v614 = vpop.f32.mrf.mxu0
        %v615 = vadd.f32 %v480, %v614
        %616 = vmatmul.bf16.gmra.mxu0 %v535
        %v617 = vpop.f32.mrf.mxu0
        %v618 = vadd.f32 %v480, %v617
        %v619 = vpop.f32.mrf.mxu0
        %v620 = vadd.f32 %v480, %v619
        %621 = vmatmul.bf16.gmra.mxu0 %v538
        %v622 = vpop.f32.mrf.mxu0
        %v623 = vadd.f32 %v480, %v622
        %v624 = vpop.f32.mrf.mxu0
        %v625 = vadd.f32 %v480, %v624
        %626 = vmatmul.bf16.gmra.mxu0 %v541
        %v627 = vpop.f32.mrf.mxu0
        %v628 = vadd.f32 %v480, %v627
        %v629 = vpop.f32.mrf.mxu0
        %v630 = vadd.f32 %v480, %v629
        %631 = vdwg.mxu0
        %vm632 = vcmp.gt.f32.partialorder %v553, 0.0
        %vm633 = vcmp.gt.f32.partialorder %v555, 0.0
        %vm634 = vcmp.gt.f32.partialorder %v558, 0.0
        %vm635 = vcmp.gt.f32.partialorder %v560, 0.0
        %vm636 = vcmp.gt.f32.partialorder %v563, 0.0
        %vm637 = vcmp.gt.f32.partialorder %v565, 0.0
        %vm638 = vcmp.gt.f32.partialorder %v568, 0.0
        %vm639 = vcmp.gt.f32.partialorder %v570, 0.0
        %vm640 = vcmp.gt.f32.partialorder %v573, 0.0
        %vm641 = vcmp.gt.f32.partialorder %v575, 0.0
        %vm642 = vcmp.gt.f32.partialorder %v578, 0.0
        %vm643 = vcmp.gt.f32.partialorder %v580, 0.0
        %vm644 = vcmp.gt.f32.partialorder %v583, 0.0
        %vm645 = vcmp.gt.f32.partialorder %v585, 0.0
        %vm646 = vcmp.gt.f32.partialorder %v588, 0.0
        %vm647 = vcmp.gt.f32.partialorder %v590, 0.0
        %vm648 = vcmp.gt.f32.partialorder %v593, 0.0
        %vm649 = vcmp.gt.f32.partialorder %v595, 0.0
        %vm650 = vcmp.gt.f32.partialorder %v598, 0.0
        %vm651 = vcmp.gt.f32.partialorder %v600, 0.0
        %vm652 = vcmp.gt.f32.partialorder %v603, 0.0
        %vm653 = vcmp.gt.f32.partialorder %v605, 0.0
        %vm654 = vcmp.gt.f32.partialorder %v608, 0.0
        %vm655 = vcmp.gt.f32.partialorder %v610, 0.0
        %vm656 = vcmp.gt.f32.partialorder %v613, 0.0
        %vm657 = vcmp.gt.f32.partialorder %v615, 0.0
        %vm658 = vcmp.gt.f32.partialorder %v618, 0.0
        %vm659 = vcmp.gt.f32.partialorder %v620, 0.0
        %vm660 = vcmp.gt.f32.partialorder %v623, 0.0
        %vm661 = vcmp.gt.f32.partialorder %v625, 0.0
        %vm662 = vcmp.gt.f32.partialorder %v628, 0.0
        %vm663 = vcmp.gt.f32.partialorder %v630, 0.0
        %v664 = vmul.f32 %v553, 0.1
        %v665 = vmul.f32 %v555, 0.1
        %v666 = vmul.f32 %v558, 0.1
        %v667 = vmul.f32 %v560, 0.1
        %v668 = vmul.f32 %v563, 0.1
        %v669 = vmul.f32 %v565, 0.1
        %v670 = vmul.f32 %v568, 0.1
        %v671 = vmul.f32 %v570, 0.1
        %v672 = vmul.f32 %v573, 0.1
        %v673 = vmul.f32 %v575, 0.1
        %v674 = vmul.f32 %v578, 0.1
        %v675 = vmul.f32 %v580, 0.1
        %v676 = vmul.f32 %v583, 0.1
        %v677 = vmul.f32 %v585, 0.1
        %v678 = vmul.f32 %v588, 0.1
        %v679 = vmul.f32 %v590, 0.1
        %v680 = vmul.f32 %v593, 0.1
        %v681 = vmul.f32 %v595, 0.1
        %v682 = vmul.f32 %v598, 0.1
        %v683 = vmul.f32 %v600, 0.1
        %v684 = vmul.f32 %v603, 0.1
        %v685 = vmul.f32 %v605, 0.1
        %v686 = vmul.f32 %v608, 0.1
        %v687 = vmul.f32 %v610, 0.1
        %v688 = vmul.f32 %v613, 0.1
        %v689 = vmul.f32 %v615, 0.1
        %v690 = vmul.f32 %v618, 0.1
        %v691 = vmul.f32 %v620, 0.1
        %v692 = vmul.f32 %v623, 0.1
        %v693 = vmul.f32 %v625, 0.1
        %v694 = vmul.f32 %v628, 0.1
        %v695 = vmul.f32 %v630, 0.1
        %v696 = vsel %vm632, %v553, %v664
        %v697 = vsel %vm633, %v555, %v665
        %v698 = vsel %vm634, %v558, %v666
        %v699 = vsel %vm635, %v560, %v667
        %v700 = vsel %vm636, %v563, %v668
        %v701 = vsel %vm637, %v565, %v669
        %v702 = vsel %vm638, %v568, %v670
        %v703 = vsel %vm639, %v570, %v671
        %v704 = vsel %vm640, %v573, %v672
        %v705 = vsel %vm641, %v575, %v673
        %v706 = vsel %vm642, %v578, %v674
        %v707 = vsel %vm643, %v580, %v675
        %v708 = vsel %vm644, %v583, %v676
        %v709 = vsel %vm645, %v585, %v677
        %v710 = vsel %vm646, %v588, %v678
        %v711 = vsel %vm647, %v590, %v679
        %v712 = vsel %vm648, %v593, %v680
        %v713 = vsel %vm649, %v595, %v681
        %v714 = vsel %vm650, %v598, %v682
        %v715 = vsel %vm651, %v600, %v683
        %v716 = vsel %vm652, %v603, %v684
        %v717 = vsel %vm653, %v605, %v685
        %v718 = vsel %vm654, %v608, %v686
        %v719 = vsel %vm655, %v610, %v687
        %v720 = vsel %vm656, %v613, %v688
        %v721 = vsel %vm657, %v615, %v689
        %v722 = vsel %vm658, %v618, %v690
        %v723 = vsel %vm659, %v620, %v691
        %v724 = vsel %vm660, %v623, %v692
        %v725 = vsel %vm661, %v625, %v693
        %v726 = vsel %vm662, %v628, %v694
        %v727 = vsel %vm663, %v630, %v695
        %v728 = vpack.c.bf16 %v697, %v696
        %v729 = vpack.c.bf16 %v699, %v698
        %v730 = vpack.c.bf16 %v701, %v700
        %v731 = vpack.c.bf16 %v703, %v702
        %v732 = vpack.c.bf16 %v705, %v704
        %v733 = vpack.c.bf16 %v707, %v706
        %v734 = vpack.c.bf16 %v709, %v708
        %v735 = vpack.c.bf16 %v711, %v710
        %v736 = vpack.c.bf16 %v713, %v712
        %v737 = vpack.c.bf16 %v715, %v714
        %v738 = vpack.c.bf16 %v717, %v716
        %v739 = vpack.c.bf16 %v719, %v718
        %v740 = vpack.c.bf16 %v721, %v720
        %v741 = vpack.c.bf16 %v723, %v722
        %v742 = vpack.c.bf16 %v725, %v724
        %v743 = vpack.c.bf16 %v727, %v726
        %v744 = vld [vmem:[%s4] sm:$0xf]
        %v745 = vld [vmem:[%s4 + $0x4] sm:$0xf]
        %v746 = vld [vmem:[%s4 + $0x8] sm:$0xf]
        %v747 = vld [vmem:[%s4 + $0xc] sm:$0xf]
        %v748 = vld [vmem:[%s4 + $0x10] sm:$0xf]
        %v749 = vld [vmem:[%s4 + $0x14] sm:$0xf]
        %v750 = vld [vmem:[%s4 + $0x18] sm:$0xf]
        %v751 = vld [vmem:[%s4 + $0x1c] sm:$0xf]
        %v752 = vld [vmem:[%s5] sm:$0x1]
        %v754 = vperm.slane %v752, 0
        %v764 = vunpack.c.l.b16 %v744
        %v765 = vunpack.c.l.b16 %v745
        %v766 = vunpack.c.l.b16 %v746
        %v767 = vunpack.c.l.b16 %v747
        %v768 = vunpack.c.l.b16 %v748
        %v769 = vunpack.c.l.b16 %v749
        %v770 = vunpack.c.l.b16 %v750
        %v771 = vunpack.c.l.b16 %v751
        %v772 = vpack.c.b16 %v765, %v764
        %v773 = vpack.c.b16 %v767, %v766
        %v774 = vpack.c.b16 %v769, %v768
        %v775 = vpack.c.b16 %v771, %v770
        %v781 = vsel %vm347, %v728, 0
        %v784 = vsel %vm347, %v729, 0
        %v787 = vsel %vm347, %v730, 0
        %v790 = vsel %vm347, %v731, 0
        %v793 = vsel %vm347, %v732, 0
        %v796 = vsel %vm347, %v733, 0
        %v799 = vsel %vm347, %v734, 0
        %v802 = vsel %vm347, %v735, 0
        %v805 = vsel %vm347, %v736, 0
        %v808 = vsel %vm347, %v737, 0
        %v811 = vsel %vm347, %v738, 0
        %v814 = vsel %vm347, %v739, 0
        %v817 = vsel %vm347, %v740, 0
        %v820 = vsel %vm347, %v741, 0
        %v823 = vsel %vm347, %v742, 0
        %v826 = vsel %vm347, %v743, 0
        %828 = vmatpush.bf16.msra.mxu0 0
        %829 = vmatpush.bf16.msra.mxu0 0
        %830 = vmatpush.bf16.msra.mxu0 0
        %831 = vmatpush.bf16.msra.mxu0 0
        %832 = vmatpush.bf16.msra.mxu0 %v775
        %833 = vmatpush.bf16.msra.mxu0 %v774
        %834 = vmatpush.bf16.msra.mxu0 %v773
        %835 = vmatpush.bf16.msra.mxu0 %v772
        %836 = vmatmul.bf16.gmra.mxu0 %v781
        %v837 = vpop.f32.mrf.mxu0
        %v838 = vadd.f32 %v754, %v837
        %v839 = vpop.f32.mrf.mxu0
        %v840 = vadd.f32 %v754, %v839
        %841 = vmatmul.bf16.gmra.mxu0 %v784
        %v842 = vpop.f32.mrf.mxu0
        %v843 = vadd.f32 %v754, %v842
        %v844 = vpop.f32.mrf.mxu0
        %v845 = vadd.f32 %v754, %v844
        %846 = vmatmul.bf16.gmra.mxu0 %v787
        %v847 = vpop.f32.mrf.mxu0
        %v848 = vadd.f32 %v754, %v847
        %v849 = vpop.f32.mrf.mxu0
        %v850 = vadd.f32 %v754, %v849
        %851 = vmatmul.bf16.gmra.mxu0 %v790
        %v852 = vpop.f32.mrf.mxu0
        %v853 = vadd.f32 %v754, %v852
        %v854 = vpop.f32.mrf.mxu0
        %v855 = vadd.f32 %v754, %v854
        %856 = vmatmul.bf16.gmra.mxu0 %v793
        %v857 = vpop.f32.mrf.mxu0
        %v858 = vadd.f32 %v754, %v857
        %v859 = vpop.f32.mrf.mxu0
        %v860 = vadd.f32 %v754, %v859
        %861 = vmatmul.bf16.gmra.mxu0 %v796
        %v862 = vpop.f32.mrf.mxu0
        %v863 = vadd.f32 %v754, %v862
        %v864 = vpop.f32.mrf.mxu0
        %v865 = vadd.f32 %v754, %v864
        %866 = vmatmul.bf16.gmra.mxu0 %v799
        %v867 = vpop.f32.mrf.mxu0
        %v868 = vadd.f32 %v754, %v867
        %v869 = vpop.f32.mrf.mxu0
        %v870 = vadd.f32 %v754, %v869
        %871 = vmatmul.bf16.gmra.mxu0 %v802
        %v872 = vpop.f32.mrf.mxu0
        %v873 = vadd.f32 %v754, %v872
        %v874 = vpop.f32.mrf.mxu0
        %v875 = vadd.f32 %v754, %v874
        %876 = vmatmul.bf16.gmra.mxu0 %v805
        %v877 = vpop.f32.mrf.mxu0
        %v878 = vadd.f32 %v754, %v877
        %v879 = vpop.f32.mrf.mxu0
        %v880 = vadd.f32 %v754, %v879
        %881 = vmatmul.bf16.gmra.mxu0 %v808
        %v882 = vpop.f32.mrf.mxu0
        %v883 = vadd.f32 %v754, %v882
        %v884 = vpop.f32.mrf.mxu0
        %v885 = vadd.f32 %v754, %v884
        %886 = vmatmul.bf16.gmra.mxu0 %v811
        %v887 = vpop.f32.mrf.mxu0
        %v888 = vadd.f32 %v754, %v887
        %v889 = vpop.f32.mrf.mxu0
        %v890 = vadd.f32 %v754, %v889
        %891 = vmatmul.bf16.gmra.mxu0 %v814
        %v892 = vpop.f32.mrf.mxu0
        %v893 = vadd.f32 %v754, %v892
        %v894 = vpop.f32.mrf.mxu0
        %v895 = vadd.f32 %v754, %v894
        %896 = vmatmul.bf16.gmra.mxu0 %v817
        %v897 = vpop.f32.mrf.mxu0
        %v898 = vadd.f32 %v754, %v897
        %v899 = vpop.f32.mrf.mxu0
        %v900 = vadd.f32 %v754, %v899
        %901 = vmatmul.bf16.gmra.mxu0 %v820
        %v902 = vpop.f32.mrf.mxu0
        %v903 = vadd.f32 %v754, %v902
        %v904 = vpop.f32.mrf.mxu0
        %v905 = vadd.f32 %v754, %v904
        %906 = vmatmul.bf16.gmra.mxu0 %v823
        %v907 = vpop.f32.mrf.mxu0
        %v908 = vadd.f32 %v754, %v907
        %v909 = vpop.f32.mrf.mxu0
        %v910 = vadd.f32 %v754, %v909
        %911 = vmatmul.bf16.gmra.mxu0 %v826
        %v912 = vpop.f32.mrf.mxu0
        %v913 = vadd.f32 %v754, %v912
        %v914 = vpop.f32.mrf.mxu0
        %v915 = vadd.f32 %v754, %v914
        %916 = vdwg.mxu0
        %v917 = vadd.f32 %v838, 1.0
        %v918 = vadd.f32 %v840, 1.0
        %v919 = vadd.f32 %v843, 1.0
        %v920 = vadd.f32 %v845, 1.0
        %v921 = vadd.f32 %v848, 1.0
        %v922 = vadd.f32 %v850, 1.0
        %v923 = vadd.f32 %v853, 1.0
        %v924 = vadd.f32 %v855, 1.0
        %v925 = vadd.f32 %v858, 1.0
        %v926 = vadd.f32 %v860, 1.0
        %v927 = vadd.f32 %v863, 1.0
        %v928 = vadd.f32 %v865, 1.0
        %v929 = vadd.f32 %v868, 1.0
        %v930 = vadd.f32 %v870, 1.0
        %v931 = vadd.f32 %v873, 1.0
        %v932 = vadd.f32 %v875, 1.0
        %v933 = vadd.f32 %v878, 1.0
        %v934 = vadd.f32 %v880, 1.0
        %v935 = vadd.f32 %v883, 1.0
        %v936 = vadd.f32 %v885, 1.0
        %v937 = vadd.f32 %v888, 1.0
        %v938 = vadd.f32 %v890, 1.0
        %v939 = vadd.f32 %v893, 1.0
        %v940 = vadd.f32 %v895, 1.0
        %v941 = vadd.f32 %v898, 1.0
        %v942 = vadd.f32 %v900, 1.0
        %v943 = vadd.f32 %v903, 1.0
        %v944 = vadd.f32 %v905, 1.0
        %v945 = vadd.f32 %v908, 1.0
        %v946 = vadd.f32 %v910, 1.0
        %v947 = vadd.f32 %v913, 1.0
        %v948 = vadd.f32 %v915, 1.0
        %v949 = vmul.f32 %v394, %v917
        %v950 = vmul.f32 %v395, %v918
        %v951 = vmul.f32 %v396, %v919
        %v952 = vmul.f32 %v397, %v920
        %v953 = vmul.f32 %v398, %v921
        %v954 = vmul.f32 %v399, %v922
        %v955 = vmul.f32 %v400, %v923
        %v956 = vmul.f32 %v401, %v924
        %v957 = vmul.f32 %v402, %v925
        %v958 = vmul.f32 %v403, %v926
        %v959 = vmul.f32 %v404, %v927
        %v960 = vmul.f32 %v405, %v928
        %v961 = vmul.f32 %v406, %v929
        %v962 = vmul.f32 %v407, %v930
        %v963 = vmul.f32 %v408, %v931
        %v964 = vmul.f32 %v409, %v932
        %v965 = vmul.f32 %v410, %v933
        %v966 = vmul.f32 %v411, %v934
        %v967 = vmul.f32 %v412, %v935
        %v968 = vmul.f32 %v413, %v936
        %v969 = vmul.f32 %v414, %v937
        %v970 = vmul.f32 %v415, %v938
        %v971 = vmul.f32 %v416, %v939
        %v972 = vmul.f32 %v417, %v940
        %v973 = vmul.f32 %v418, %v941
        %v974 = vmul.f32 %v419, %v942
        %v975 = vmul.f32 %v420, %v943
        %v976 = vmul.f32 %v421, %v944
        %v977 = vmul.f32 %v422, %v945
        %v978 = vmul.f32 %v423, %v946
        %v979 = vmul.f32 %v424, %v947
        %v980 = vmul.f32 %v425, %v948
        %1013 = vrot.lane.b32.xlu0 %v838, 64
        %v1014 = vpop.permute.xlu0 %1013
        %1015 = vrot.lane.b32.xlu0 %v840, 64
        %v1016 = vpop.permute.xlu0 %1015
        %1017 = vrot.lane.b32.xlu0 %v843, 64
        %v1018 = vpop.permute.xlu0 %1017
        %1019 = vrot.lane.b32.xlu0 %v845, 64
        %v1020 = vpop.permute.xlu0 %1019
        %1021 = vrot.lane.b32.xlu0 %v848, 64
        %v1022 = vpop.permute.xlu0 %1021
        %1023 = vrot.lane.b32.xlu0 %v850, 64
        %v1024 = vpop.permute.xlu0 %1023
        %1025 = vrot.lane.b32.xlu0 %v853, 64
        %v1026 = vpop.permute.xlu0 %1025
        %1027 = vrot.lane.b32.xlu0 %v855, 64
        %v1028 = vpop.permute.xlu0 %1027
        %1029 = vrot.lane.b32.xlu0 %v858, 64
        %v1030 = vpop.permute.xlu0 %1029
        %1031 = vrot.lane.b32.xlu0 %v860, 64
        %v1032 = vpop.permute.xlu0 %1031
        %1033 = vrot.lane.b32.xlu0 %v863, 64
        %v1034 = vpop.permute.xlu0 %1033
        %1035 = vrot.lane.b32.xlu0 %v865, 64
        %v1036 = vpop.permute.xlu0 %1035
        %1037 = vrot.lane.b32.xlu0 %v868, 64
        %v1038 = vpop.permute.xlu0 %1037
        %1039 = vrot.lane.b32.xlu0 %v870, 64
        %v1040 = vpop.permute.xlu0 %1039
        %1041 = vrot.lane.b32.xlu0 %v873, 64
        %v1042 = vpop.permute.xlu0 %1041
        %1043 = vrot.lane.b32.xlu0 %v875, 64
        %v1044 = vpop.permute.xlu0 %1043
        %1045 = vrot.lane.b32.xlu0 %v878, 64
        %v1046 = vpop.permute.xlu0 %1045
        %1047 = vrot.lane.b32.xlu0 %v880, 64
        %v1048 = vpop.permute.xlu0 %1047
        %1049 = vrot.lane.b32.xlu0 %v883, 64
        %v1050 = vpop.permute.xlu0 %1049
        %1051 = vrot.lane.b32.xlu0 %v885, 64
        %v1052 = vpop.permute.xlu0 %1051
        %1053 = vrot.lane.b32.xlu0 %v888, 64
        %v1054 = vpop.permute.xlu0 %1053
        %1055 = vrot.lane.b32.xlu0 %v890, 64
        %v1056 = vpop.permute.xlu0 %1055
        %1057 = vrot.lane.b32.xlu0 %v893, 64
        %v1058 = vpop.permute.xlu0 %1057
        %1059 = vrot.lane.b32.xlu0 %v895, 64
        %v1060 = vpop.permute.xlu0 %1059
        %1061 = vrot.lane.b32.xlu0 %v898, 64
        %v1062 = vpop.permute.xlu0 %1061
        %1063 = vrot.lane.b32.xlu0 %v900, 64
        %v1064 = vpop.permute.xlu0 %1063
        %1065 = vrot.lane.b32.xlu0 %v903, 64
        %v1066 = vpop.permute.xlu0 %1065
        %1067 = vrot.lane.b32.xlu0 %v905, 64
        %v1068 = vpop.permute.xlu0 %1067
        %1069 = vrot.lane.b32.xlu0 %v908, 64
        %v1070 = vpop.permute.xlu0 %1069
        %1071 = vrot.lane.b32.xlu0 %v910, 64
        %v1072 = vpop.permute.xlu0 %1071
        %1073 = vrot.lane.b32.xlu0 %v913, 64
        %v1074 = vpop.permute.xlu0 %1073
        %1075 = vrot.lane.b32.xlu0 %v915, 64
        %v1076 = vpop.permute.xlu0 %1075
        %v1109 = vadd.f32 %v949, %v1014
        %v1110 = vadd.f32 %v950, %v1016
        %v1111 = vadd.f32 %v951, %v1018
        %v1112 = vadd.f32 %v952, %v1020
        %v1113 = vadd.f32 %v953, %v1022
        %v1114 = vadd.f32 %v954, %v1024
        %v1115 = vadd.f32 %v955, %v1026
        %v1116 = vadd.f32 %v956, %v1028
        %v1117 = vadd.f32 %v957, %v1030
        %v1118 = vadd.f32 %v958, %v1032
        %v1119 = vadd.f32 %v959, %v1034
        %v1120 = vadd.f32 %v960, %v1036
        %v1121 = vadd.f32 %v961, %v1038
        %v1122 = vadd.f32 %v962, %v1040
        %v1123 = vadd.f32 %v963, %v1042
        %v1124 = vadd.f32 %v964, %v1044
        %v1125 = vadd.f32 %v965, %v1046
        %v1126 = vadd.f32 %v966, %v1048
        %v1127 = vadd.f32 %v967, %v1050
        %v1128 = vadd.f32 %v968, %v1052
        %v1129 = vadd.f32 %v969, %v1054
        %v1130 = vadd.f32 %v970, %v1056
        %v1131 = vadd.f32 %v971, %v1058
        %v1132 = vadd.f32 %v972, %v1060
        %v1133 = vadd.f32 %v973, %v1062
        %v1134 = vadd.f32 %v974, %v1064
        %v1135 = vadd.f32 %v975, %v1066
        %v1136 = vadd.f32 %v976, %v1068
        %v1137 = vadd.f32 %v977, %v1070
        %v1138 = vadd.f32 %v978, %v1072
        %v1139 = vadd.f32 %v979, %v1074
        %v1140 = vadd.f32 %v980, %v1076
        %s1141 = scalar_lea.vmem [#allocation2], 32
        %1142 = vst.msk [vmem:[%s1141 + $0x8] sm:$0xff] %vm347, %v1109
        %1143 = vst.msk [vmem:[%s1141 + $0x10] sm:$0xff] %vm347, %v1110
        %1144 = vst.msk [vmem:[%s1141 + $0x28] sm:$0xff] %vm347, %v1111
        %1145 = vst.msk [vmem:[%s1141 + $0x30] sm:$0xff] %vm347, %v1112
        %1146 = vst.msk [vmem:[%s1141 + $0x48] sm:$0xff] %vm347, %v1113
        %1147 = vst.msk [vmem:[%s1141 + $0x50] sm:$0xff] %vm347, %v1114
        %1148 = vst.msk [vmem:[%s1141 + $0x68] sm:$0xff] %vm347, %v1115
        %1149 = vst.msk [vmem:[%s1141 + $0x70] sm:$0xff] %vm347, %v1116
        %1150 = vst.msk [vmem:[%s1141 + $0x88] sm:$0xff] %vm347, %v1117
        %1151 = vst.msk [vmem:[%s1141 + $0x90] sm:$0xff] %vm347, %v1118
        %1152 = vst.msk [vmem:[%s1141 + $0xa8] sm:$0xff] %vm347, %v1119
        %1153 = vst.msk [vmem:[%s1141 + $0xb0] sm:$0xff] %vm347, %v1120
        %1154 = vst.msk [vmem:[%s1141 + $0xc8] sm:$0xff] %vm347, %v1121
        %1155 = vst.msk [vmem:[%s1141 + $0xd0] sm:$0xff] %vm347, %v1122
        %1156 = vst.msk [vmem:[%s1141 + $0xe8] sm:$0xff] %vm347, %v1123
        %1157 = vst.msk [vmem:[%s1141 + $0xf0] sm:$0xff] %vm347, %v1124
        %1158 = vst.msk [vmem:[%s1141 + $0x108] sm:$0xff] %vm347, %v1125
        %1159 = vst.msk [vmem:[%s1141 + $0x110] sm:$0xff] %vm347, %v1126
        %1160 = vst.msk [vmem:[%s1141 + $0x128] sm:$0xff] %vm347, %v1127
        %1161 = vst.msk [vmem:[%s1141 + $0x130] sm:$0xff] %vm347, %v1128
        %1162 = vst.msk [vmem:[%s1141 + $0x148] sm:$0xff] %vm347, %v1129
        %1163 = vst.msk [vmem:[%s1141 + $0x150] sm:$0xff] %vm347, %v1130
        %1164 = vst.msk [vmem:[%s1141 + $0x168] sm:$0xff] %vm347, %v1131
        %1165 = vst.msk [vmem:[%s1141 + $0x170] sm:$0xff] %vm347, %v1132
        %1166 = vst.msk [vmem:[%s1141 + $0x188] sm:$0xff] %vm347, %v1133
        %1167 = vst.msk [vmem:[%s1141 + $0x190] sm:$0xff] %vm347, %v1134
        %1168 = vst.msk [vmem:[%s1141 + $0x1a8] sm:$0xff] %vm347, %v1135
        %1169 = vst.msk [vmem:[%s1141 + $0x1b0] sm:$0xff] %vm347, %v1136
        %1170 = vst.msk [vmem:[%s1141 + $0x1c8] sm:$0xff] %vm347, %v1137
        %1171 = vst.msk [vmem:[%s1141 + $0x1d0] sm:$0xff] %vm347, %v1138
        %1172 = vst.msk [vmem:[%s1141 + $0x1e8] sm:$0xff] %vm347, %v1139
        %1173 = vst.msk [vmem:[%s1141 + $0x1f0] sm:$0xff] %vm347, %v1140
        %v1174 = vld [vmem:[#allocation2 + $0x7] sm:$0xff]
        %v1175 = vld [vmem:[#allocation2 + $0xf] sm:$0xff]
        %v1176 = vld [vmem:[#allocation2 + $0x27] sm:$0xff]
        %v1177 = vld [vmem:[#allocation2 + $0x2f] sm:$0xff]
        %v1178 = vld [vmem:[#allocation2 + $0x47] sm:$0xff]
        %v1179 = vld [vmem:[#allocation2 + $0x4f] sm:$0xff]
        %v1180 = vld [vmem:[#allocation2 + $0x67] sm:$0xff]
        %v1181 = vld [vmem:[#allocation2 + $0x6f] sm:$0xff]
        %v1182 = vld [vmem:[#allocation2 + $0x87] sm:$0xff]
        %v1183 = vld [vmem:[#allocation2 + $0x8f] sm:$0xff]
        %v1184 = vld [vmem:[#allocation2 + $0xa7] sm:$0xff]
        %v1185 = vld [vmem:[#allocation2 + $0xaf] sm:$0xff]
        %v1186 = vld [vmem:[#allocation2 + $0xc7] sm:$0xff]
        %v1187 = vld [vmem:[#allocation2 + $0xcf] sm:$0xff]
        %v1188 = vld [vmem:[#allocation2 + $0xe7] sm:$0xff]
        %v1189 = vld [vmem:[#allocation2 + $0xef] sm:$0xff]
        %v1190 = vld [vmem:[#allocation2 + $0x107] sm:$0xff]
        %v1191 = vld [vmem:[#allocation2 + $0x10f] sm:$0xff]
        %v1192 = vld [vmem:[#allocation2 + $0x127] sm:$0xff]
        %v1193 = vld [vmem:[#allocation2 + $0x12f] sm:$0xff]
        %v1194 = vld [vmem:[#allocation2 + $0x147] sm:$0xff]
        %v1195 = vld [vmem:[#allocation2 + $0x14f] sm:$0xff]
        %v1196 = vld [vmem:[#allocation2 + $0x167] sm:$0xff]
        %v1197 = vld [vmem:[#allocation2 + $0x16f] sm:$0xff]
        %v1198 = vld [vmem:[#allocation2 + $0x187] sm:$0xff]
        %v1199 = vld [vmem:[#allocation2 + $0x18f] sm:$0xff]
        %v1200 = vld [vmem:[#allocation2 + $0x1a7] sm:$0xff]
        %v1201 = vld [vmem:[#allocation2 + $0x1af] sm:$0xff]
        %v1202 = vld [vmem:[#allocation2 + $0x1c7] sm:$0xff]
        %v1203 = vld [vmem:[#allocation2 + $0x1cf] sm:$0xff]
        %v1204 = vld [vmem:[#allocation2 + $0x1e7] sm:$0xff]
        %v1205 = vld [vmem:[#allocation2 + $0x1ef] sm:$0xff]
        %v1206 = vpack.c.bf16 %v1174, %v1174
        %v1207 = vpack.c.bf16 %v1175, %v1175
        %v1208 = vpack.c.bf16 %v1176, %v1176
        %v1209 = vpack.c.bf16 %v1177, %v1177
        %v1210 = vpack.c.bf16 %v1178, %v1178
        %v1211 = vpack.c.bf16 %v1179, %v1179
        %v1212 = vpack.c.bf16 %v1180, %v1180
        %v1213 = vpack.c.bf16 %v1181, %v1181
        %v1214 = vpack.c.bf16 %v1182, %v1182
        %v1215 = vpack.c.bf16 %v1183, %v1183
        %v1216 = vpack.c.bf16 %v1184, %v1184
        %v1217 = vpack.c.bf16 %v1185, %v1185
        %v1218 = vpack.c.bf16 %v1186, %v1186
        %v1219 = vpack.c.bf16 %v1187, %v1187
        %v1220 = vpack.c.bf16 %v1188, %v1188
        %v1221 = vpack.c.bf16 %v1189, %v1189
        %v1222 = vpack.c.bf16 %v1190, %v1190
        %v1223 = vpack.c.bf16 %v1191, %v1191
        %v1224 = vpack.c.bf16 %v1192, %v1192
        %v1225 = vpack.c.bf16 %v1193, %v1193
        %v1226 = vpack.c.bf16 %v1194, %v1194
        %v1227 = vpack.c.bf16 %v1195, %v1195
        %v1228 = vpack.c.bf16 %v1196, %v1196
        %v1229 = vpack.c.bf16 %v1197, %v1197
        %v1230 = vpack.c.bf16 %v1198, %v1198
        %v1231 = vpack.c.bf16 %v1199, %v1199
        %v1232 = vpack.c.bf16 %v1200, %v1200
        %v1233 = vpack.c.bf16 %v1201, %v1201
        %v1234 = vpack.c.bf16 %v1202, %v1202
        %v1235 = vpack.c.bf16 %v1203, %v1203
        %v1236 = vpack.c.bf16 %v1204, %v1204
        %v1237 = vpack.c.bf16 %v1205, %v1205
        %vm1238 = vcmask 519168
        %1239 = vst.msk [vmem:[#allocation3] sm:$0xf] %vm1238, %v1206
        %1240 = vst.msk [vmem:[#allocation3 + $0x14] sm:$0xf] %vm1238, %v1207
        %1241 = vst.msk [vmem:[#allocation3 + $0x28] sm:$0xf] %vm1238, %v1208
        %1242 = vst.msk [vmem:[#allocation3 + $0x3c] sm:$0xf] %vm1238, %v1209
        %1243 = vst.msk [vmem:[#allocation3 + $0x50] sm:$0xf] %vm1238, %v1210
        %1244 = vst.msk [vmem:[#allocation3 + $0x64] sm:$0xf] %vm1238, %v1211
        %1245 = vst.msk [vmem:[#allocation3 + $0x78] sm:$0xf] %vm1238, %v1212
        %1246 = vst.msk [vmem:[#allocation3 + $0x8c] sm:$0xf] %vm1238, %v1213
        %1247 = vst.msk [vmem:[#allocation3 + $0xa0] sm:$0xf] %vm1238, %v1214
        %1248 = vst.msk [vmem:[#allocation3 + $0xb4] sm:$0xf] %vm1238, %v1215
        %1249 = vst.msk [vmem:[#allocation3 + $0xc8] sm:$0xf] %vm1238, %v1216
        %1250 = vst.msk [vmem:[#allocation3 + $0xdc] sm:$0xf] %vm1238, %v1217
        %1251 = vst.msk [vmem:[#allocation3 + $0xf0] sm:$0xf] %vm1238, %v1218
        %1252 = vst.msk [vmem:[#allocation3 + $0x104] sm:$0xf] %vm1238, %v1219
        %1253 = vst.msk [vmem:[#allocation3 + $0x118] sm:$0xf] %vm1238, %v1220
        %1254 = vst.msk [vmem:[#allocation3 + $0x12c] sm:$0xf] %vm1238, %v1221
        %1255 = vst.msk [vmem:[#allocation3 + $0x140] sm:$0xf] %vm1238, %v1222
        %1256 = vst.msk [vmem:[#allocation3 + $0x154] sm:$0xf] %vm1238, %v1223
        %1257 = vst.msk [vmem:[#allocation3 + $0x168] sm:$0xf] %vm1238, %v1224
        %1258 = vst.msk [vmem:[#allocation3 + $0x17c] sm:$0xf] %vm1238, %v1225
        %1259 = vst.msk [vmem:[#allocation3 + $0x190] sm:$0xf] %vm1238, %v1226
        %1260 = vst.msk [vmem:[#allocation3 + $0x1a4] sm:$0xf] %vm1238, %v1227
        %1261 = vst.msk [vmem:[#allocation3 + $0x1b8] sm:$0xf] %vm1238, %v1228
        %1262 = vst.msk [vmem:[#allocation3 + $0x1cc] sm:$0xf] %vm1238, %v1229
        %1263 = vst.msk [vmem:[#allocation3 + $0x1e0] sm:$0xf] %vm1238, %v1230
        %1264 = vst.msk [vmem:[#allocation3 + $0x1f4] sm:$0xf] %vm1238, %v1231
        %1265 = vst.msk [vmem:[#allocation3 + $0x208] sm:$0xf] %vm1238, %v1232
        %1266 = vst.msk [vmem:[#allocation3 + $0x21c] sm:$0xf] %vm1238, %v1233
        %1267 = vst.msk [vmem:[#allocation3 + $0x230] sm:$0xf] %vm1238, %v1234
        %1268 = vst.msk [vmem:[#allocation3 + $0x244] sm:$0xf] %vm1238, %v1235
        %1269 = vst.msk [vmem:[#allocation3 + $0x258] sm:$0xf] %vm1238, %v1236
        %1270 = vst.msk [vmem:[#allocation3 + $0x26c] sm:$0xf] %vm1238, %v1237
        %v1271 = vld [vmem:[#allocation2 + $0x8] sm:$0xff]
        %v1272 = vld [vmem:[#allocation2 + $0x10] sm:$0xff]
        %v1273 = vld [vmem:[#allocation2 + $0x28] sm:$0xff]
        %v1274 = vld [vmem:[#allocation2 + $0x30] sm:$0xff]
        %v1275 = vld [vmem:[#allocation2 + $0x48] sm:$0xff]
        %v1276 = vld [vmem:[#allocation2 + $0x50] sm:$0xff]
        %v1277 = vld [vmem:[#allocation2 + $0x68] sm:$0xff]
        %v1278 = vld [vmem:[#allocation2 + $0x70] sm:$0xff]
        %v1279 = vld [vmem:[#allocation2 + $0x88] sm:$0xff]
        %v1280 = vld [vmem:[#allocation2 + $0x90] sm:$0xff]
        %v1281 = vld [vmem:[#allocation2 + $0xa8] sm:$0xff]
        %v1282 = vld [vmem:[#allocation2 + $0xb0] sm:$0xff]
        %v1283 = vld [vmem:[#allocation2 + $0xc8] sm:$0xff]
        %v1284 = vld [vmem:[#allocation2 + $0xd0] sm:$0xff]
        %v1285 = vld [vmem:[#allocation2 + $0xe8] sm:$0xff]
        %v1286 = vld [vmem:[#allocation2 + $0xf0] sm:$0xff]
        %v1287 = vld [vmem:[#allocation2 + $0x108] sm:$0xff]
        %v1288 = vld [vmem:[#allocation2 + $0x110] sm:$0xff]
        %v1289 = vld [vmem:[#allocation2 + $0x128] sm:$0xff]
        %v1290 = vld [vmem:[#allocation2 + $0x130] sm:$0xff]
        %v1291 = vld [vmem:[#allocation2 + $0x148] sm:$0xff]
        %v1292 = vld [vmem:[#allocation2 + $0x150] sm:$0xff]
        %v1293 = vld [vmem:[#allocation2 + $0x168] sm:$0xff]
        %v1294 = vld [vmem:[#allocation2 + $0x170] sm:$0xff]
        %v1295 = vld [vmem:[#allocation2 + $0x188] sm:$0xff]
        %v1296 = vld [vmem:[#allocation2 + $0x190] sm:$0xff]
        %v1297 = vld [vmem:[#allocation2 + $0x1a8] sm:$0xff]
        %v1298 = vld [vmem:[#allocation2 + $0x1b0] sm:$0xff]
        %v1299 = vld [vmem:[#allocation2 + $0x1c8] sm:$0xff]
        %v1300 = vld [vmem:[#allocation2 + $0x1d0] sm:$0xff]
        %v1301 = vld [vmem:[#allocation2 + $0x1e8] sm:$0xff]
        %v1302 = vld [vmem:[#allocation2 + $0x1f0] sm:$0xff]
        %v1303 = vpack.c.bf16 %v1271, %v1271
        %v1304 = vpack.c.bf16 %v1272, %v1272
        %v1305 = vpack.c.bf16 %v1273, %v1273
        %v1306 = vpack.c.bf16 %v1274, %v1274
        %v1307 = vpack.c.bf16 %v1275, %v1275
        %v1308 = vpack.c.bf16 %v1276, %v1276
        %v1309 = vpack.c.bf16 %v1277, %v1277
        %v1310 = vpack.c.bf16 %v1278, %v1278
        %v1311 = vpack.c.bf16 %v1279, %v1279
        %v1312 = vpack.c.bf16 %v1280, %v1280
        %v1313 = vpack.c.bf16 %v1281, %v1281
        %v1314 = vpack.c.bf16 %v1282, %v1282
        %v1315 = vpack.c.bf16 %v1283, %v1283
        %v1316 = vpack.c.bf16 %v1284, %v1284
        %v1317 = vpack.c.bf16 %v1285, %v1285
        %v1318 = vpack.c.bf16 %v1286, %v1286
        %v1319 = vpack.c.bf16 %v1287, %v1287
        %v1320 = vpack.c.bf16 %v1288, %v1288
        %v1321 = vpack.c.bf16 %v1289, %v1289
        %v1322 = vpack.c.bf16 %v1290, %v1290
        %v1323 = vpack.c.bf16 %v1291, %v1291
        %v1324 = vpack.c.bf16 %v1292, %v1292
        %v1325 = vpack.c.bf16 %v1293, %v1293
        %v1326 = vpack.c.bf16 %v1294, %v1294
        %v1327 = vpack.c.bf16 %v1295, %v1295
        %v1328 = vpack.c.bf16 %v1296, %v1296
        %v1329 = vpack.c.bf16 %v1297, %v1297
        %v1330 = vpack.c.bf16 %v1298, %v1298
        %v1331 = vpack.c.bf16 %v1299, %v1299
        %v1332 = vpack.c.bf16 %v1300, %v1300
        %v1333 = vpack.c.bf16 %v1301, %v1301
        %v1334 = vpack.c.bf16 %v1302, %v1302
        %1367 = vrot.lane.b32.xlu0 %v1303, 64
        %v1368 = vpop.permute.xlu0 %1367
        %1369 = vrot.lane.b32.xlu0 %v1304, 64
        %v1370 = vpop.permute.xlu0 %1369
        %1371 = vrot.lane.b32.xlu0 %v1305, 64
        %v1372 = vpop.permute.xlu0 %1371
        %1373 = vrot.lane.b32.xlu0 %v1306, 64
        %v1374 = vpop.permute.xlu0 %1373
        %1375 = vrot.lane.b32.xlu0 %v1307, 64
        %v1376 = vpop.permute.xlu0 %1375
        %1377 = vrot.lane.b32.xlu0 %v1308, 64
        %v1378 = vpop.permute.xlu0 %1377
        %1379 = vrot.lane.b32.xlu0 %v1309, 64
        %v1380 = vpop.permute.xlu0 %1379
        %1381 = vrot.lane.b32.xlu0 %v1310, 64
        %v1382 = vpop.permute.xlu0 %1381
        %1383 = vrot.lane.b32.xlu0 %v1311, 64
        %v1384 = vpop.permute.xlu0 %1383
        %1385 = vrot.lane.b32.xlu0 %v1312, 64
        %v1386 = vpop.permute.xlu0 %1385
        %1387 = vrot.lane.b32.xlu0 %v1313, 64
        %v1388 = vpop.permute.xlu0 %1387
        %1389 = vrot.lane.b32.xlu0 %v1314, 64
        %v1390 = vpop.permute.xlu0 %1389
        %1391 = vrot.lane.b32.xlu0 %v1315, 64
        %v1392 = vpop.permute.xlu0 %1391
        %1393 = vrot.lane.b32.xlu0 %v1316, 64
        %v1394 = vpop.permute.xlu0 %1393
        %1395 = vrot.lane.b32.xlu0 %v1317, 64
        %v1396 = vpop.permute.xlu0 %1395
        %1397 = vrot.lane.b32.xlu0 %v1318, 64
        %v1398 = vpop.permute.xlu0 %1397
        %1399 = vrot.lane.b32.xlu0 %v1319, 64
        %v1400 = vpop.permute.xlu0 %1399
        %1401 = vrot.lane.b32.xlu0 %v1320, 64
        %v1402 = vpop.permute.xlu0 %1401
        %1403 = vrot.lane.b32.xlu0 %v1321, 64
        %v1404 = vpop.permute.xlu0 %1403
        %1405 = vrot.lane.b32.xlu0 %v1322, 64
        %v1406 = vpop.permute.xlu0 %1405
        %1407 = vrot.lane.b32.xlu0 %v1323, 64
        %v1408 = vpop.permute.xlu0 %1407
        %1409 = vrot.lane.b32.xlu0 %v1324, 64
        %v1410 = vpop.permute.xlu0 %1409
        %1411 = vrot.lane.b32.xlu0 %v1325, 64
        %v1412 = vpop.permute.xlu0 %1411
        %1413 = vrot.lane.b32.xlu0 %v1326, 64
        %v1414 = vpop.permute.xlu0 %1413
        %1415 = vrot.lane.b32.xlu0 %v1327, 64
        %v1416 = vpop.permute.xlu0 %1415
        %1417 = vrot.lane.b32.xlu0 %v1328, 64
        %v1418 = vpop.permute.xlu0 %1417
        %1419 = vrot.lane.b32.xlu0 %v1329, 64
        %v1420 = vpop.permute.xlu0 %1419
        %1421 = vrot.lane.b32.xlu0 %v1330, 64
        %v1422 = vpop.permute.xlu0 %1421
        %1423 = vrot.lane.b32.xlu0 %v1331, 64
        %v1424 = vpop.permute.xlu0 %1423
        %1425 = vrot.lane.b32.xlu0 %v1332, 64
        %v1426 = vpop.permute.xlu0 %1425
        %1427 = vrot.lane.b32.xlu0 %v1333, 64
        %v1428 = vpop.permute.xlu0 %1427
        %1429 = vrot.lane.b32.xlu0 %v1334, 64
        %v1430 = vpop.permute.xlu0 %1429
        %vm1463 = vcmask 1043968
        %1464 = vst.msk [vmem:[#allocation3] sm:$0xf] %vm1463, %v1368
        %1465 = vst.msk [vmem:[#allocation3 + $0x14] sm:$0xf] %vm1463, %v1370
        %1466 = vst.msk [vmem:[#allocation3 + $0x28] sm:$0xf] %vm1463, %v1372
        %1467 = vst.msk [vmem:[#allocation3 + $0x3c] sm:$0xf] %vm1463, %v1374
        %1468 = vst.msk [vmem:[#allocation3 + $0x50] sm:$0xf] %vm1463, %v1376
        %1469 = vst.msk [vmem:[#allocation3 + $0x64] sm:$0xf] %vm1463, %v1378
        %1470 = vst.msk [vmem:[#allocation3 + $0x78] sm:$0xf] %vm1463, %v1380
        %1471 = vst.msk [vmem:[#allocation3 + $0x8c] sm:$0xf] %vm1463, %v1382
        %1472 = vst.msk [vmem:[#allocation3 + $0xa0] sm:$0xf] %vm1463, %v1384
        %1473 = vst.msk [vmem:[#allocation3 + $0xb4] sm:$0xf] %vm1463, %v1386
        %1474 = vst.msk [vmem:[#allocation3 + $0xc8] sm:$0xf] %vm1463, %v1388
        %1475 = vst.msk [vmem:[#allocation3 + $0xdc] sm:$0xf] %vm1463, %v1390
        %1476 = vst.msk [vmem:[#allocation3 + $0xf0] sm:$0xf] %vm1463, %v1392
        %1477 = vst.msk [vmem:[#allocation3 + $0x104] sm:$0xf] %vm1463, %v1394
        %1478 = vst.msk [vmem:[#allocation3 + $0x118] sm:$0xf] %vm1463, %v1396
        %1479 = vst.msk [vmem:[#allocation3 + $0x12c] sm:$0xf] %vm1463, %v1398
        %1480 = vst.msk [vmem:[#allocation3 + $0x140] sm:$0xf] %vm1463, %v1400
        %1481 = vst.msk [vmem:[#allocation3 + $0x154] sm:$0xf] %vm1463, %v1402
        %1482 = vst.msk [vmem:[#allocation3 + $0x168] sm:$0xf] %vm1463, %v1404
        %1483 = vst.msk [vmem:[#allocation3 + $0x17c] sm:$0xf] %vm1463, %v1406
        %1484 = vst.msk [vmem:[#allocation3 + $0x190] sm:$0xf] %vm1463, %v1408
        %1485 = vst.msk [vmem:[#allocation3 + $0x1a4] sm:$0xf] %vm1463, %v1410
        %1486 = vst.msk [vmem:[#allocation3 + $0x1b8] sm:$0xf] %vm1463, %v1412
        %1487 = vst.msk [vmem:[#allocation3 + $0x1cc] sm:$0xf] %vm1463, %v1414
        %1488 = vst.msk [vmem:[#allocation3 + $0x1e0] sm:$0xf] %vm1463, %v1416
        %1489 = vst.msk [vmem:[#allocation3 + $0x1f4] sm:$0xf] %vm1463, %v1418
        %1490 = vst.msk [vmem:[#allocation3 + $0x208] sm:$0xf] %vm1463, %v1420
        %1491 = vst.msk [vmem:[#allocation3 + $0x21c] sm:$0xf] %vm1463, %v1422
        %1492 = vst.msk [vmem:[#allocation3 + $0x230] sm:$0xf] %vm1463, %v1424
        %1493 = vst.msk [vmem:[#allocation3 + $0x244] sm:$0xf] %vm1463, %v1426
        %1494 = vst.msk [vmem:[#allocation3 + $0x258] sm:$0xf] %vm1463, %v1428
        %1495 = vst.msk [vmem:[#allocation3 + $0x26c] sm:$0xf] %vm1463, %v1430
        %v1496 = vld [vmem:[#allocation2 + $0x9] sm:$0xff]
        %v1497 = vld [vmem:[#allocation2 + $0x11] sm:$0xff]
        %v1498 = vld [vmem:[#allocation2 + $0x29] sm:$0xff]
        %v1499 = vld [vmem:[#allocation2 + $0x31] sm:$0xff]
        %v1500 = vld [vmem:[#allocation2 + $0x49] sm:$0xff]
        %v1501 = vld [vmem:[#allocation2 + $0x51] sm:$0xff]
        %v1502 = vld [vmem:[#allocation2 + $0x69] sm:$0xff]
        %v1503 = vld [vmem:[#allocation2 + $0x71] sm:$0xff]
        %v1504 = vld [vmem:[#allocation2 + $0x89] sm:$0xff]
        %v1505 = vld [vmem:[#allocation2 + $0x91] sm:$0xff]
        %v1506 = vld [vmem:[#allocation2 + $0xa9] sm:$0xff]
        %v1507 = vld [vmem:[#allocation2 + $0xb1] sm:$0xff]
        %v1508 = vld [vmem:[#allocation2 + $0xc9] sm:$0xff]
        %v1509 = vld [vmem:[#allocation2 + $0xd1] sm:$0xff]
        %v1510 = vld [vmem:[#allocation2 + $0xe9] sm:$0xff]
        %v1511 = vld [vmem:[#allocation2 + $0xf1] sm:$0xff]
        %v1512 = vld [vmem:[#allocation2 + $0x109] sm:$0xff]
        %v1513 = vld [vmem:[#allocation2 + $0x111] sm:$0xff]
        %v1514 = vld [vmem:[#allocation2 + $0x129] sm:$0xff]
        %v1515 = vld [vmem:[#allocation2 + $0x131] sm:$0xff]
        %v1516 = vld [vmem:[#allocation2 + $0x149] sm:$0xff]
        %v1517 = vld [vmem:[#allocation2 + $0x151] sm:$0xff]
        %v1518 = vld [vmem:[#allocation2 + $0x169] sm:$0xff]
        %v1519 = vld [vmem:[#allocation2 + $0x171] sm:$0xff]
        %v1520 = vld [vmem:[#allocation2 + $0x189] sm:$0xff]
        %v1521 = vld [vmem:[#allocation2 + $0x191] sm:$0xff]
        %v1522 = vld [vmem:[#allocation2 + $0x1a9] sm:$0xff]
        %v1523 = vld [vmem:[#allocation2 + $0x1b1] sm:$0xff]
        %v1524 = vld [vmem:[#allocation2 + $0x1c9] sm:$0xff]
        %v1525 = vld [vmem:[#allocation2 + $0x1d1] sm:$0xff]
        %v1526 = vld [vmem:[#allocation2 + $0x1e9] sm:$0xff]
        %v1527 = vld [vmem:[#allocation2 + $0x1f1] sm:$0xff]
        %v1528 = vpack.c.bf16 %v1496, %v1496
        %v1529 = vpack.c.bf16 %v1497, %v1497
        %v1530 = vpack.c.bf16 %v1498, %v1498
        %v1531 = vpack.c.bf16 %v1499, %v1499
        %v1532 = vpack.c.bf16 %v1500, %v1500
        %v1533 = vpack.c.bf16 %v1501, %v1501
        %v1534 = vpack.c.bf16 %v1502, %v1502
        %v1535 = vpack.c.bf16 %v1503, %v1503
        %v1536 = vpack.c.bf16 %v1504, %v1504
        %v1537 = vpack.c.bf16 %v1505, %v1505
        %v1538 = vpack.c.bf16 %v1506, %v1506
        %v1539 = vpack.c.bf16 %v1507, %v1507
        %v1540 = vpack.c.bf16 %v1508, %v1508
        %v1541 = vpack.c.bf16 %v1509, %v1509
        %v1542 = vpack.c.bf16 %v1510, %v1510
        %v1543 = vpack.c.bf16 %v1511, %v1511
        %v1544 = vpack.c.bf16 %v1512, %v1512
        %v1545 = vpack.c.bf16 %v1513, %v1513
        %v1546 = vpack.c.bf16 %v1514, %v1514
        %v1547 = vpack.c.bf16 %v1515, %v1515
        %v1548 = vpack.c.bf16 %v1516, %v1516
        %v1549 = vpack.c.bf16 %v1517, %v1517
        %v1550 = vpack.c.bf16 %v1518, %v1518
        %v1551 = vpack.c.bf16 %v1519, %v1519
        %v1552 = vpack.c.bf16 %v1520, %v1520
        %v1553 = vpack.c.bf16 %v1521, %v1521
        %v1554 = vpack.c.bf16 %v1522, %v1522
        %v1555 = vpack.c.bf16 %v1523, %v1523
        %v1556 = vpack.c.bf16 %v1524, %v1524
        %v1557 = vpack.c.bf16 %v1525, %v1525
        %v1558 = vpack.c.bf16 %v1526, %v1526
        %v1559 = vpack.c.bf16 %v1527, %v1527
        %1560 = vst.msk [vmem:[#allocation3 + $0x4] sm:$0xf] %vm1238, %v1528
        %1561 = vst.msk [vmem:[#allocation3 + $0x18] sm:$0xf] %vm1238, %v1529
        %1562 = vst.msk [vmem:[#allocation3 + $0x2c] sm:$0xf] %vm1238, %v1530
        %1563 = vst.msk [vmem:[#allocation3 + $0x40] sm:$0xf] %vm1238, %v1531
        %1564 = vst.msk [vmem:[#allocation3 + $0x54] sm:$0xf] %vm1238, %v1532
        %1565 = vst.msk [vmem:[#allocation3 + $0x68] sm:$0xf] %vm1238, %v1533
        %1566 = vst.msk [vmem:[#allocation3 + $0x7c] sm:$0xf] %vm1238, %v1534
        %1567 = vst.msk [vmem:[#allocation3 + $0x90] sm:$0xf] %vm1238, %v1535
        %1568 = vst.msk [vmem:[#allocation3 + $0xa4] sm:$0xf] %vm1238, %v1536
        %1569 = vst.msk [vmem:[#allocation3 + $0xb8] sm:$0xf] %vm1238, %v1537
        %1570 = vst.msk [vmem:[#allocation3 + $0xcc] sm:$0xf] %vm1238, %v1538
        %1571 = vst.msk [vmem:[#allocation3 + $0xe0] sm:$0xf] %vm1238, %v1539
        %1572 = vst.msk [vmem:[#allocation3 + $0xf4] sm:$0xf] %vm1238, %v1540
        %1573 = vst.msk [vmem:[#allocation3 + $0x108] sm:$0xf] %vm1238, %v1541
        %1574 = vst.msk [vmem:[#allocation3 + $0x11c] sm:$0xf] %vm1238, %v1542
        %1575 = vst.msk [vmem:[#allocation3 + $0x130] sm:$0xf] %vm1238, %v1543
        %1576 = vst.msk [vmem:[#allocation3 + $0x144] sm:$0xf] %vm1238, %v1544
        %1577 = vst.msk [vmem:[#allocation3 + $0x158] sm:$0xf] %vm1238, %v1545
        %1578 = vst.msk [vmem:[#allocation3 + $0x16c] sm:$0xf] %vm1238, %v1546
        %1579 = vst.msk [vmem:[#allocation3 + $0x180] sm:$0xf] %vm1238, %v1547
        %1580 = vst.msk [vmem:[#allocation3 + $0x194] sm:$0xf] %vm1238, %v1548
        %1581 = vst.msk [vmem:[#allocation3 + $0x1a8] sm:$0xf] %vm1238, %v1549
        %1582 = vst.msk [vmem:[#allocation3 + $0x1bc] sm:$0xf] %vm1238, %v1550
        %1583 = vst.msk [vmem:[#allocation3 + $0x1d0] sm:$0xf] %vm1238, %v1551
        %1584 = vst.msk [vmem:[#allocation3 + $0x1e4] sm:$0xf] %vm1238, %v1552
        %1585 = vst.msk [vmem:[#allocation3 + $0x1f8] sm:$0xf] %vm1238, %v1553
        %1586 = vst.msk [vmem:[#allocation3 + $0x20c] sm:$0xf] %vm1238, %v1554
        %1587 = vst.msk [vmem:[#allocation3 + $0x220] sm:$0xf] %vm1238, %v1555
        %1588 = vst.msk [vmem:[#allocation3 + $0x234] sm:$0xf] %vm1238, %v1556
        %1589 = vst.msk [vmem:[#allocation3 + $0x248] sm:$0xf] %vm1238, %v1557
        %1590 = vst.msk [vmem:[#allocation3 + $0x25c] sm:$0xf] %vm1238, %v1558
        %1591 = vst.msk [vmem:[#allocation3 + $0x270] sm:$0xf] %vm1238, %v1559
        %v1592 = vld [vmem:[%s1141 + $0x7] sm:$0xff]
        %v1593 = vld [vmem:[%s1141 + $0xf] sm:$0xff]
        %v1594 = vld [vmem:[%s1141 + $0x27] sm:$0xff]
        %v1595 = vld [vmem:[%s1141 + $0x2f] sm:$0xff]
        %v1596 = vld [vmem:[%s1141 + $0x47] sm:$0xff]
        %v1597 = vld [vmem:[%s1141 + $0x4f] sm:$0xff]
        %v1598 = vld [vmem:[%s1141 + $0x67] sm:$0xff]
        %v1599 = vld [vmem:[%s1141 + $0x6f] sm:$0xff]
        %v1600 = vld [vmem:[%s1141 + $0x87] sm:$0xff]
        %v1601 = vld [vmem:[%s1141 + $0x8f] sm:$0xff]
        %v1602 = vld [vmem:[%s1141 + $0xa7] sm:$0xff]
        %v1603 = vld [vmem:[%s1141 + $0xaf] sm:$0xff]
        %v1604 = vld [vmem:[%s1141 + $0xc7] sm:$0xff]
        %v1605 = vld [vmem:[%s1141 + $0xcf] sm:$0xff]
        %v1606 = vld [vmem:[%s1141 + $0xe7] sm:$0xff]
        %v1607 = vld [vmem:[%s1141 + $0xef] sm:$0xff]
        %v1608 = vld [vmem:[%s1141 + $0x107] sm:$0xff]
        %v1609 = vld [vmem:[%s1141 + $0x10f] sm:$0xff]
        %v1610 = vld [vmem:[%s1141 + $0x127] sm:$0xff]
        %v1611 = vld [vmem:[%s1141 + $0x12f] sm:$0xff]
        %v1612 = vld [vmem:[%s1141 + $0x147] sm:$0xff]
        %v1613 = vld [vmem:[%s1141 + $0x14f] sm:$0xff]
        %v1614 = vld [vmem:[%s1141 + $0x167] sm:$0xff]
        %v1615 = vld [vmem:[%s1141 + $0x16f] sm:$0xff]
        %v1616 = vld [vmem:[%s1141 + $0x187] sm:$0xff]
        %v1617 = vld [vmem:[%s1141 + $0x18f] sm:$0xff]
        %v1618 = vld [vmem:[%s1141 + $0x1a7] sm:$0xff]
        %v1619 = vld [vmem:[%s1141 + $0x1af] sm:$0xff]
        %v1620 = vld [vmem:[%s1141 + $0x1c7] sm:$0xff]
        %v1621 = vld [vmem:[%s1141 + $0x1cf] sm:$0xff]
        %v1622 = vld [vmem:[%s1141 + $0x1e7] sm:$0xff]
        %v1623 = vld [vmem:[%s1141 + $0x1ef] sm:$0xff]
        %v1624 = vpack.c.bf16 %v1592, %v1592
        %v1625 = vpack.c.bf16 %v1593, %v1593
        %v1626 = vpack.c.bf16 %v1594, %v1594
        %v1627 = vpack.c.bf16 %v1595, %v1595
        %v1628 = vpack.c.bf16 %v1596, %v1596
        %v1629 = vpack.c.bf16 %v1597, %v1597
        %v1630 = vpack.c.bf16 %v1598, %v1598
        %v1631 = vpack.c.bf16 %v1599, %v1599
        %v1632 = vpack.c.bf16 %v1600, %v1600
        %v1633 = vpack.c.bf16 %v1601, %v1601
        %v1634 = vpack.c.bf16 %v1602, %v1602
        %v1635 = vpack.c.bf16 %v1603, %v1603
        %v1636 = vpack.c.bf16 %v1604, %v1604
        %v1637 = vpack.c.bf16 %v1605, %v1605
        %v1638 = vpack.c.bf16 %v1606, %v1606
        %v1639 = vpack.c.bf16 %v1607, %v1607
        %v1640 = vpack.c.bf16 %v1608, %v1608
        %v1641 = vpack.c.bf16 %v1609, %v1609
        %v1642 = vpack.c.bf16 %v1610, %v1610
        %v1643 = vpack.c.bf16 %v1611, %v1611
        %v1644 = vpack.c.bf16 %v1612, %v1612
        %v1645 = vpack.c.bf16 %v1613, %v1613
        %v1646 = vpack.c.bf16 %v1614, %v1614
        %v1647 = vpack.c.bf16 %v1615, %v1615
        %v1648 = vpack.c.bf16 %v1616, %v1616
        %v1649 = vpack.c.bf16 %v1617, %v1617
        %v1650 = vpack.c.bf16 %v1618, %v1618
        %v1651 = vpack.c.bf16 %v1619, %v1619
        %v1652 = vpack.c.bf16 %v1620, %v1620
        %v1653 = vpack.c.bf16 %v1621, %v1621
        %v1654 = vpack.c.bf16 %v1622, %v1622
        %v1655 = vpack.c.bf16 %v1623, %v1623
        %1688 = vrot.lane.b32.xlu0 %v1624, 64
        %v1689 = vpop.permute.xlu0 %1688
        %1690 = vrot.lane.b32.xlu0 %v1625, 64
        %v1691 = vpop.permute.xlu0 %1690
        %1692 = vrot.lane.b32.xlu0 %v1626, 64
        %v1693 = vpop.permute.xlu0 %1692
        %1694 = vrot.lane.b32.xlu0 %v1627, 64
        %v1695 = vpop.permute.xlu0 %1694
        %1696 = vrot.lane.b32.xlu0 %v1628, 64
        %v1697 = vpop.permute.xlu0 %1696
        %1698 = vrot.lane.b32.xlu0 %v1629, 64
        %v1699 = vpop.permute.xlu0 %1698
        %1700 = vrot.lane.b32.xlu0 %v1630, 64
        %v1701 = vpop.permute.xlu0 %1700
        %1702 = vrot.lane.b32.xlu0 %v1631, 64
        %v1703 = vpop.permute.xlu0 %1702
        %1704 = vrot.lane.b32.xlu0 %v1632, 64
        %v1705 = vpop.permute.xlu0 %1704
        %1706 = vrot.lane.b32.xlu0 %v1633, 64
        %v1707 = vpop.permute.xlu0 %1706
        %1708 = vrot.lane.b32.xlu0 %v1634, 64
        %v1709 = vpop.permute.xlu0 %1708
        %1710 = vrot.lane.b32.xlu0 %v1635, 64
        %v1711 = vpop.permute.xlu0 %1710
        %1712 = vrot.lane.b32.xlu0 %v1636, 64
        %v1713 = vpop.permute.xlu0 %1712
        %1714 = vrot.lane.b32.xlu0 %v1637, 64
        %v1715 = vpop.permute.xlu0 %1714
        %1716 = vrot.lane.b32.xlu0 %v1638, 64
        %v1717 = vpop.permute.xlu0 %1716
        %1718 = vrot.lane.b32.xlu0 %v1639, 64
        %v1719 = vpop.permute.xlu0 %1718
        %1720 = vrot.lane.b32.xlu0 %v1640, 64
        %v1721 = vpop.permute.xlu0 %1720
        %1722 = vrot.lane.b32.xlu0 %v1641, 64
        %v1723 = vpop.permute.xlu0 %1722
        %1724 = vrot.lane.b32.xlu0 %v1642, 64
        %v1725 = vpop.permute.xlu0 %1724
        %1726 = vrot.lane.b32.xlu0 %v1643, 64
        %v1727 = vpop.permute.xlu0 %1726
        %1728 = vrot.lane.b32.xlu0 %v1644, 64
        %v1729 = vpop.permute.xlu0 %1728
        %1730 = vrot.lane.b32.xlu0 %v1645, 64
        %v1731 = vpop.permute.xlu0 %1730
        %1732 = vrot.lane.b32.xlu0 %v1646, 64
        %v1733 = vpop.permute.xlu0 %1732
        %1734 = vrot.lane.b32.xlu0 %v1647, 64
        %v1735 = vpop.permute.xlu0 %1734
        %1736 = vrot.lane.b32.xlu0 %v1648, 64
        %v1737 = vpop.permute.xlu0 %1736
        %1738 = vrot.lane.b32.xlu0 %v1649, 64
        %v1739 = vpop.permute.xlu0 %1738
        %1740 = vrot.lane.b32.xlu0 %v1650, 64
        %v1741 = vpop.permute.xlu0 %1740
        %1742 = vrot.lane.b32.xlu0 %v1651, 64
        %v1743 = vpop.permute.xlu0 %1742
        %1744 = vrot.lane.b32.xlu0 %v1652, 64
        %v1745 = vpop.permute.xlu0 %1744
        %1746 = vrot.lane.b32.xlu0 %v1653, 64
        %v1747 = vpop.permute.xlu0 %1746
        %1748 = vrot.lane.b32.xlu0 %v1654, 64
        %v1749 = vpop.permute.xlu0 %1748
        %1750 = vrot.lane.b32.xlu0 %v1655, 64
        %v1751 = vpop.permute.xlu0 %1750
        %1784 = vst.msk [vmem:[#allocation3 + $0x4] sm:$0xf] %vm1463, %v1689
        %1785 = vst.msk [vmem:[#allocation3 + $0x18] sm:$0xf] %vm1463, %v1691
        %1786 = vst.msk [vmem:[#allocation3 + $0x2c] sm:$0xf] %vm1463, %v1693
        %1787 = vst.msk [vmem:[#allocation3 + $0x40] sm:$0xf] %vm1463, %v1695
        %1788 = vst.msk [vmem:[#allocation3 + $0x54] sm:$0xf] %vm1463, %v1697
        %1789 = vst.msk [vmem:[#allocation3 + $0x68] sm:$0xf] %vm1463, %v1699
        %1790 = vst.msk [vmem:[#allocation3 + $0x7c] sm:$0xf] %vm1463, %v1701
        %1791 = vst.msk [vmem:[#allocation3 + $0x90] sm:$0xf] %vm1463, %v1703
        %1792 = vst.msk [vmem:[#allocation3 + $0xa4] sm:$0xf] %vm1463, %v1705
        %1793 = vst.msk [vmem:[#allocation3 + $0xb8] sm:$0xf] %vm1463, %v1707
        %1794 = vst.msk [vmem:[#allocation3 + $0xcc] sm:$0xf] %vm1463, %v1709
        %1795 = vst.msk [vmem:[#allocation3 + $0xe0] sm:$0xf] %vm1463, %v1711
        %1796 = vst.msk [vmem:[#allocation3 + $0xf4] sm:$0xf] %vm1463, %v1713
        %1797 = vst.msk [vmem:[#allocation3 + $0x108] sm:$0xf] %vm1463, %v1715
        %1798 = vst.msk [vmem:[#allocation3 + $0x11c] sm:$0xf] %vm1463, %v1717
        %1799 = vst.msk [vmem:[#allocation3 + $0x130] sm:$0xf] %vm1463, %v1719
        %1800 = vst.msk [vmem:[#allocation3 + $0x144] sm:$0xf] %vm1463, %v1721
        %1801 = vst.msk [vmem:[#allocation3 + $0x158] sm:$0xf] %vm1463, %v1723
        %1802 = vst.msk [vmem:[#allocation3 + $0x16c] sm:$0xf] %vm1463, %v1725
        %1803 = vst.msk [vmem:[#allocation3 + $0x180] sm:$0xf] %vm1463, %v1727
        %1804 = vst.msk [vmem:[#allocation3 + $0x194] sm:$0xf] %vm1463, %v1729
        %1805 = vst.msk [vmem:[#allocation3 + $0x1a8] sm:$0xf] %vm1463, %v1731
        %1806 = vst.msk [vmem:[#allocation3 + $0x1bc] sm:$0xf] %vm1463, %v1733
        %1807 = vst.msk [vmem:[#allocation3 + $0x1d0] sm:$0xf] %vm1463, %v1735
        %1808 = vst.msk [vmem:[#allocation3 + $0x1e4] sm:$0xf] %vm1463, %v1737
        %1809 = vst.msk [vmem:[#allocation3 + $0x1f8] sm:$0xf] %vm1463, %v1739
        %1810 = vst.msk [vmem:[#allocation3 + $0x20c] sm:$0xf] %vm1463, %v1741
        %1811 = vst.msk [vmem:[#allocation3 + $0x220] sm:$0xf] %vm1463, %v1743
        %1812 = vst.msk [vmem:[#allocation3 + $0x234] sm:$0xf] %vm1463, %v1745
        %1813 = vst.msk [vmem:[#allocation3 + $0x248] sm:$0xf] %vm1463, %v1747
        %1814 = vst.msk [vmem:[#allocation3 + $0x25c] sm:$0xf] %vm1463, %v1749
        %1815 = vst.msk [vmem:[#allocation3 + $0x270] sm:$0xf] %vm1463, %v1751
        %v1816 = vld [vmem:[%s1141 + $0x8] sm:$0xff]
        %v1817 = vld [vmem:[%s1141 + $0x10] sm:$0xff]
        %v1818 = vld [vmem:[%s1141 + $0x28] sm:$0xff]
        %v1819 = vld [vmem:[%s1141 + $0x30] sm:$0xff]
        %v1820 = vld [vmem:[%s1141 + $0x48] sm:$0xff]
        %v1821 = vld [vmem:[%s1141 + $0x50] sm:$0xff]
        %v1822 = vld [vmem:[%s1141 + $0x68] sm:$0xff]
        %v1823 = vld [vmem:[%s1141 + $0x70] sm:$0xff]
        %v1824 = vld [vmem:[%s1141 + $0x88] sm:$0xff]
        %v1825 = vld [vmem:[%s1141 + $0x90] sm:$0xff]
        %v1826 = vld [vmem:[%s1141 + $0xa8] sm:$0xff]
        %v1827 = vld [vmem:[%s1141 + $0xb0] sm:$0xff]
        %v1828 = vld [vmem:[%s1141 + $0xc8] sm:$0xff]
        %v1829 = vld [vmem:[%s1141 + $0xd0] sm:$0xff]
        %v1830 = vld [vmem:[%s1141 + $0xe8] sm:$0xff]
        %v1831 = vld [vmem:[%s1141 + $0xf0] sm:$0xff]
        %v1832 = vld [vmem:[%s1141 + $0x108] sm:$0xff]
        %v1833 = vld [vmem:[%s1141 + $0x110] sm:$0xff]
        %v1834 = vld [vmem:[%s1141 + $0x128] sm:$0xff]
        %v1835 = vld [vmem:[%s1141 + $0x130] sm:$0xff]
        %v1836 = vld [vmem:[%s1141 + $0x148] sm:$0xff]
        %v1837 = vld [vmem:[%s1141 + $0x150] sm:$0xff]
        %v1838 = vld [vmem:[%s1141 + $0x168] sm:$0xff]
        %v1839 = vld [vmem:[%s1141 + $0x170] sm:$0xff]
        %v1840 = vld [vmem:[%s1141 + $0x188] sm:$0xff]
        %v1841 = vld [vmem:[%s1141 + $0x190] sm:$0xff]
        %v1842 = vld [vmem:[%s1141 + $0x1a8] sm:$0xff]
        %v1843 = vld [vmem:[%s1141 + $0x1b0] sm:$0xff]
        %v1844 = vld [vmem:[%s1141 + $0x1c8] sm:$0xff]
        %v1845 = vld [vmem:[%s1141 + $0x1d0] sm:$0xff]
        %v1846 = vld [vmem:[%s1141 + $0x1e8] sm:$0xff]
        %v1847 = vld [vmem:[%s1141 + $0x1f0] sm:$0xff]
        %v1848 = vpack.c.bf16 %v1816, %v1816
        %v1849 = vpack.c.bf16 %v1817, %v1817
        %v1850 = vpack.c.bf16 %v1818, %v1818
        %v1851 = vpack.c.bf16 %v1819, %v1819
        %v1852 = vpack.c.bf16 %v1820, %v1820
        %v1853 = vpack.c.bf16 %v1821, %v1821
        %v1854 = vpack.c.bf16 %v1822, %v1822
        %v1855 = vpack.c.bf16 %v1823, %v1823
        %v1856 = vpack.c.bf16 %v1824, %v1824
        %v1857 = vpack.c.bf16 %v1825, %v1825
        %v1858 = vpack.c.bf16 %v1826, %v1826
        %v1859 = vpack.c.bf16 %v1827, %v1827
        %v1860 = vpack.c.bf16 %v1828, %v1828
        %v1861 = vpack.c.bf16 %v1829, %v1829
        %v1862 = vpack.c.bf16 %v1830, %v1830
        %v1863 = vpack.c.bf16 %v1831, %v1831
        %v1864 = vpack.c.bf16 %v1832, %v1832
        %v1865 = vpack.c.bf16 %v1833, %v1833
        %v1866 = vpack.c.bf16 %v1834, %v1834
        %v1867 = vpack.c.bf16 %v1835, %v1835
        %v1868 = vpack.c.bf16 %v1836, %v1836
        %v1869 = vpack.c.bf16 %v1837, %v1837
        %v1870 = vpack.c.bf16 %v1838, %v1838
        %v1871 = vpack.c.bf16 %v1839, %v1839
        %v1872 = vpack.c.bf16 %v1840, %v1840
        %v1873 = vpack.c.bf16 %v1841, %v1841
        %v1874 = vpack.c.bf16 %v1842, %v1842
        %v1875 = vpack.c.bf16 %v1843, %v1843
        %v1876 = vpack.c.bf16 %v1844, %v1844
        %v1877 = vpack.c.bf16 %v1845, %v1845
        %v1878 = vpack.c.bf16 %v1846, %v1846
        %v1879 = vpack.c.bf16 %v1847, %v1847
        %1880 = vst.msk [vmem:[#allocation3 + $0x8] sm:$0xf] %vm1238, %v1848
        %1881 = vst.msk [vmem:[#allocation3 + $0x1c] sm:$0xf] %vm1238, %v1849
        %1882 = vst.msk [vmem:[#allocation3 + $0x30] sm:$0xf] %vm1238, %v1850
        %1883 = vst.msk [vmem:[#allocation3 + $0x44] sm:$0xf] %vm1238, %v1851
        %1884 = vst.msk [vmem:[#allocation3 + $0x58] sm:$0xf] %vm1238, %v1852
        %1885 = vst.msk [vmem:[#allocation3 + $0x6c] sm:$0xf] %vm1238, %v1853
        %1886 = vst.msk [vmem:[#allocation3 + $0x80] sm:$0xf] %vm1238, %v1854
        %1887 = vst.msk [vmem:[#allocation3 + $0x94] sm:$0xf] %vm1238, %v1855
        %1888 = vst.msk [vmem:[#allocation3 + $0xa8] sm:$0xf] %vm1238, %v1856
        %1889 = vst.msk [vmem:[#allocation3 + $0xbc] sm:$0xf] %vm1238, %v1857
        %1890 = vst.msk [vmem:[#allocation3 + $0xd0] sm:$0xf] %vm1238, %v1858
        %1891 = vst.msk [vmem:[#allocation3 + $0xe4] sm:$0xf] %vm1238, %v1859
        %1892 = vst.msk [vmem:[#allocation3 + $0xf8] sm:$0xf] %vm1238, %v1860
        %1893 = vst.msk [vmem:[#allocation3 + $0x10c] sm:$0xf] %vm1238, %v1861
        %1894 = vst.msk [vmem:[#allocation3 + $0x120] sm:$0xf] %vm1238, %v1862
        %1895 = vst.msk [vmem:[#allocation3 + $0x134] sm:$0xf] %vm1238, %v1863
        %1896 = vst.msk [vmem:[#allocation3 + $0x148] sm:$0xf] %vm1238, %v1864
        %1897 = vst.msk [vmem:[#allocation3 + $0x15c] sm:$0xf] %vm1238, %v1865
        %1898 = vst.msk [vmem:[#allocation3 + $0x170] sm:$0xf] %vm1238, %v1866
        %1899 = vst.msk [vmem:[#allocation3 + $0x184] sm:$0xf] %vm1238, %v1867
        %1900 = vst.msk [vmem:[#allocation3 + $0x198] sm:$0xf] %vm1238, %v1868
        %1901 = vst.msk [vmem:[#allocation3 + $0x1ac] sm:$0xf] %vm1238, %v1869
        %1902 = vst.msk [vmem:[#allocation3 + $0x1c0] sm:$0xf] %vm1238, %v1870
        %1903 = vst.msk [vmem:[#allocation3 + $0x1d4] sm:$0xf] %vm1238, %v1871
        %1904 = vst.msk [vmem:[#allocation3 + $0x1e8] sm:$0xf] %vm1238, %v1872
        %1905 = vst.msk [vmem:[#allocation3 + $0x1fc] sm:$0xf] %vm1238, %v1873
        %1906 = vst.msk [vmem:[#allocation3 + $0x210] sm:$0xf] %vm1238, %v1874
        %1907 = vst.msk [vmem:[#allocation3 + $0x224] sm:$0xf] %vm1238, %v1875
        %1908 = vst.msk [vmem:[#allocation3 + $0x238] sm:$0xf] %vm1238, %v1876
        %1909 = vst.msk [vmem:[#allocation3 + $0x24c] sm:$0xf] %vm1238, %v1877
        %1910 = vst.msk [vmem:[#allocation3 + $0x260] sm:$0xf] %vm1238, %v1878
        %1911 = vst.msk [vmem:[#allocation3 + $0x274] sm:$0xf] %vm1238, %v1879
        %v1912 = vld [vmem:[%s1141 + $0x9] sm:$0xff]
        %v1913 = vld [vmem:[%s1141 + $0x11] sm:$0xff]
        %v1914 = vld [vmem:[%s1141 + $0x29] sm:$0xff]
        %v1915 = vld [vmem:[%s1141 + $0x31] sm:$0xff]
        %v1916 = vld [vmem:[%s1141 + $0x49] sm:$0xff]
        %v1917 = vld [vmem:[%s1141 + $0x51] sm:$0xff]
        %v1918 = vld [vmem:[%s1141 + $0x69] sm:$0xff]
        %v1919 = vld [vmem:[%s1141 + $0x71] sm:$0xff]
        %v1920 = vld [vmem:[%s1141 + $0x89] sm:$0xff]
        %v1921 = vld [vmem:[%s1141 + $0x91] sm:$0xff]
        %v1922 = vld [vmem:[%s1141 + $0xa9] sm:$0xff]
        %v1923 = vld [vmem:[%s1141 + $0xb1] sm:$0xff]
        %v1924 = vld [vmem:[%s1141 + $0xc9] sm:$0xff]
        %v1925 = vld [vmem:[%s1141 + $0xd1] sm:$0xff]
        %v1926 = vld [vmem:[%s1141 + $0xe9] sm:$0xff]
        %v1927 = vld [vmem:[%s1141 + $0xf1] sm:$0xff]
        %v1928 = vld [vmem:[%s1141 + $0x109] sm:$0xff]
        %v1929 = vld [vmem:[%s1141 + $0x111] sm:$0xff]
        %v1930 = vld [vmem:[%s1141 + $0x129] sm:$0xff]
        %v1931 = vld [vmem:[%s1141 + $0x131] sm:$0xff]
        %v1932 = vld [vmem:[%s1141 + $0x149] sm:$0xff]
        %v1933 = vld [vmem:[%s1141 + $0x151] sm:$0xff]
        %v1934 = vld [vmem:[%s1141 + $0x169] sm:$0xff]
        %v1935 = vld [vmem:[%s1141 + $0x171] sm:$0xff]
        %v1936 = vld [vmem:[%s1141 + $0x189] sm:$0xff]
        %v1937 = vld [vmem:[%s1141 + $0x191] sm:$0xff]
        %v1938 = vld [vmem:[%s1141 + $0x1a9] sm:$0xff]
        %v1939 = vld [vmem:[%s1141 + $0x1b1] sm:$0xff]
        %v1940 = vld [vmem:[%s1141 + $0x1c9] sm:$0xff]
        %v1941 = vld [vmem:[%s1141 + $0x1d1] sm:$0xff]
        %v1942 = vld [vmem:[%s1141 + $0x1e9] sm:$0xff]
        %v1943 = vld [vmem:[%s1141 + $0x1f1] sm:$0xff]
        %v1944 = vpack.c.bf16 %v1912, %v1912
        %v1945 = vpack.c.bf16 %v1913, %v1913
        %v1946 = vpack.c.bf16 %v1914, %v1914
        %v1947 = vpack.c.bf16 %v1915, %v1915
        %v1948 = vpack.c.bf16 %v1916, %v1916
        %v1949 = vpack.c.bf16 %v1917, %v1917
        %v1950 = vpack.c.bf16 %v1918, %v1918
        %v1951 = vpack.c.bf16 %v1919, %v1919
        %v1952 = vpack.c.bf16 %v1920, %v1920
        %v1953 = vpack.c.bf16 %v1921, %v1921
        %v1954 = vpack.c.bf16 %v1922, %v1922
        %v1955 = vpack.c.bf16 %v1923, %v1923
        %v1956 = vpack.c.bf16 %v1924, %v1924
        %v1957 = vpack.c.bf16 %v1925, %v1925
        %v1958 = vpack.c.bf16 %v1926, %v1926
        %v1959 = vpack.c.bf16 %v1927, %v1927
        %v1960 = vpack.c.bf16 %v1928, %v1928
        %v1961 = vpack.c.bf16 %v1929, %v1929
        %v1962 = vpack.c.bf16 %v1930, %v1930
        %v1963 = vpack.c.bf16 %v1931, %v1931
        %v1964 = vpack.c.bf16 %v1932, %v1932
        %v1965 = vpack.c.bf16 %v1933, %v1933
        %v1966 = vpack.c.bf16 %v1934, %v1934
        %v1967 = vpack.c.bf16 %v1935, %v1935
        %v1968 = vpack.c.bf16 %v1936, %v1936
        %v1969 = vpack.c.bf16 %v1937, %v1937
        %v1970 = vpack.c.bf16 %v1938, %v1938
        %v1971 = vpack.c.bf16 %v1939, %v1939
        %v1972 = vpack.c.bf16 %v1940, %v1940
        %v1973 = vpack.c.bf16 %v1941, %v1941
        %v1974 = vpack.c.bf16 %v1942, %v1942
        %v1975 = vpack.c.bf16 %v1943, %v1943
        %2008 = vrot.lane.b32.xlu0 %v1944, 64
        %v2009 = vpop.permute.xlu0 %2008
        %2010 = vrot.lane.b32.xlu0 %v1945, 64
        %v2011 = vpop.permute.xlu0 %2010
        %2012 = vrot.lane.b32.xlu0 %v1946, 64
        %v2013 = vpop.permute.xlu0 %2012
        %2014 = vrot.lane.b32.xlu0 %v1947, 64
        %v2015 = vpop.permute.xlu0 %2014
        %2016 = vrot.lane.b32.xlu0 %v1948, 64
        %v2017 = vpop.permute.xlu0 %2016
        %2018 = vrot.lane.b32.xlu0 %v1949, 64
        %v2019 = vpop.permute.xlu0 %2018
        %2020 = vrot.lane.b32.xlu0 %v1950, 64
        %v2021 = vpop.permute.xlu0 %2020
        %2022 = vrot.lane.b32.xlu0 %v1951, 64
        %v2023 = vpop.permute.xlu0 %2022
        %2024 = vrot.lane.b32.xlu0 %v1952, 64
        %v2025 = vpop.permute.xlu0 %2024
        %2026 = vrot.lane.b32.xlu0 %v1953, 64
        %v2027 = vpop.permute.xlu0 %2026
        %2028 = vrot.lane.b32.xlu0 %v1954, 64
        %v2029 = vpop.permute.xlu0 %2028
        %2030 = vrot.lane.b32.xlu0 %v1955, 64
        %v2031 = vpop.permute.xlu0 %2030
        %2032 = vrot.lane.b32.xlu0 %v1956, 64
        %v2033 = vpop.permute.xlu0 %2032
        %2034 = vrot.lane.b32.xlu0 %v1957, 64
        %v2035 = vpop.permute.xlu0 %2034
        %2036 = vrot.lane.b32.xlu0 %v1958, 64
        %v2037 = vpop.permute.xlu0 %2036
        %2038 = vrot.lane.b32.xlu0 %v1959, 64
        %v2039 = vpop.permute.xlu0 %2038
        %2040 = vrot.lane.b32.xlu0 %v1960, 64
        %v2041 = vpop.permute.xlu0 %2040
        %2042 = vrot.lane.b32.xlu0 %v1961, 64
        %v2043 = vpop.permute.xlu0 %2042
        %2044 = vrot.lane.b32.xlu0 %v1962, 64
        %v2045 = vpop.permute.xlu0 %2044
        %2046 = vrot.lane.b32.xlu0 %v1963, 64
        %v2047 = vpop.permute.xlu0 %2046
        %2048 = vrot.lane.b32.xlu0 %v1964, 64
        %v2049 = vpop.permute.xlu0 %2048
        %2050 = vrot.lane.b32.xlu0 %v1965, 64
        %v2051 = vpop.permute.xlu0 %2050
        %2052 = vrot.lane.b32.xlu0 %v1966, 64
        %v2053 = vpop.permute.xlu0 %2052
        %2054 = vrot.lane.b32.xlu0 %v1967, 64
        %v2055 = vpop.permute.xlu0 %2054
        %2056 = vrot.lane.b32.xlu0 %v1968, 64
        %v2057 = vpop.permute.xlu0 %2056
        %2058 = vrot.lane.b32.xlu0 %v1969, 64
        %v2059 = vpop.permute.xlu0 %2058
        %2060 = vrot.lane.b32.xlu0 %v1970, 64
        %v2061 = vpop.permute.xlu0 %2060
        %2062 = vrot.lane.b32.xlu0 %v1971, 64
        %v2063 = vpop.permute.xlu0 %2062
        %2064 = vrot.lane.b32.xlu0 %v1972, 64
        %v2065 = vpop.permute.xlu0 %2064
        %2066 = vrot.lane.b32.xlu0 %v1973, 64
        %v2067 = vpop.permute.xlu0 %2066
        %2068 = vrot.lane.b32.xlu0 %v1974, 64
        %v2069 = vpop.permute.xlu0 %2068
        %2070 = vrot.lane.b32.xlu0 %v1975, 64
        %v2071 = vpop.permute.xlu0 %2070
        %2104 = vst.msk [vmem:[#allocation3 + $0x8] sm:$0xf] %vm1463, %v2009
        %2105 = vst.msk [vmem:[#allocation3 + $0x1c] sm:$0xf] %vm1463, %v2011
        %2106 = vst.msk [vmem:[#allocation3 + $0x30] sm:$0xf] %vm1463, %v2013
        %2107 = vst.msk [vmem:[#allocation3 + $0x44] sm:$0xf] %vm1463, %v2015
        %2108 = vst.msk [vmem:[#allocation3 + $0x58] sm:$0xf] %vm1463, %v2017
        %2109 = vst.msk [vmem:[#allocation3 + $0x6c] sm:$0xf] %vm1463, %v2019
        %2110 = vst.msk [vmem:[#allocation3 + $0x80] sm:$0xf] %vm1463, %v2021
        %2111 = vst.msk [vmem:[#allocation3 + $0x94] sm:$0xf] %vm1463, %v2023
        %2112 = vst.msk [vmem:[#allocation3 + $0xa8] sm:$0xf] %vm1463, %v2025
        %2113 = vst.msk [vmem:[#allocation3 + $0xbc] sm:$0xf] %vm1463, %v2027
        %2114 = vst.msk [vmem:[#allocation3 + $0xd0] sm:$0xf] %vm1463, %v2029
        %2115 = vst.msk [vmem:[#allocation3 + $0xe4] sm:$0xf] %vm1463, %v2031
        %2116 = vst.msk [vmem:[#allocation3 + $0xf8] sm:$0xf] %vm1463, %v2033
        %2117 = vst.msk [vmem:[#allocation3 + $0x10c] sm:$0xf] %vm1463, %v2035
        %2118 = vst.msk [vmem:[#allocation3 + $0x120] sm:$0xf] %vm1463, %v2037
        %2119 = vst.msk [vmem:[#allocation3 + $0x134] sm:$0xf] %vm1463, %v2039
        %2120 = vst.msk [vmem:[#allocation3 + $0x148] sm:$0xf] %vm1463, %v2041
        %2121 = vst.msk [vmem:[#allocation3 + $0x15c] sm:$0xf] %vm1463, %v2043
        %2122 = vst.msk [vmem:[#allocation3 + $0x170] sm:$0xf] %vm1463, %v2045
        %2123 = vst.msk [vmem:[#allocation3 + $0x184] sm:$0xf] %vm1463, %v2047
        %2124 = vst.msk [vmem:[#allocation3 + $0x198] sm:$0xf] %vm1463, %v2049
        %2125 = vst.msk [vmem:[#allocation3 + $0x1ac] sm:$0xf] %vm1463, %v2051
        %2126 = vst.msk [vmem:[#allocation3 + $0x1c0] sm:$0xf] %vm1463, %v2053
        %2127 = vst.msk [vmem:[#allocation3 + $0x1d4] sm:$0xf] %vm1463, %v2055
        %2128 = vst.msk [vmem:[#allocation3 + $0x1e8] sm:$0xf] %vm1463, %v2057
        %2129 = vst.msk [vmem:[#allocation3 + $0x1fc] sm:$0xf] %vm1463, %v2059
        %2130 = vst.msk [vmem:[#allocation3 + $0x210] sm:$0xf] %vm1463, %v2061
        %2131 = vst.msk [vmem:[#allocation3 + $0x224] sm:$0xf] %vm1463, %v2063
        %2132 = vst.msk [vmem:[#allocation3 + $0x238] sm:$0xf] %vm1463, %v2065
        %2133 = vst.msk [vmem:[#allocation3 + $0x24c] sm:$0xf] %vm1463, %v2067
        %2134 = vst.msk [vmem:[#allocation3 + $0x260] sm:$0xf] %vm1463, %v2069
        %2135 = vst.msk [vmem:[#allocation3 + $0x274] sm:$0xf] %vm1463, %v2071
        %s2136 = scalar_lea.vmem [#allocation2], 64
        %v2137 = vld [vmem:[%s2136 + $0x7] sm:$0xff]
        %v2138 = vld [vmem:[%s2136 + $0xf] sm:$0xff]
        %v2139 = vld [vmem:[%s2136 + $0x27] sm:$0xff]
        %v2140 = vld [vmem:[%s2136 + $0x2f] sm:$0xff]
        %v2141 = vld [vmem:[%s2136 + $0x47] sm:$0xff]
        %v2142 = vld [vmem:[%s2136 + $0x4f] sm:$0xff]
        %v2143 = vld [vmem:[%s2136 + $0x67] sm:$0xff]
        %v2144 = vld [vmem:[%s2136 + $0x6f] sm:$0xff]
        %v2145 = vld [vmem:[%s2136 + $0x87] sm:$0xff]
        %v2146 = vld [vmem:[%s2136 + $0x8f] sm:$0xff]
        %v2147 = vld [vmem:[%s2136 + $0xa7] sm:$0xff]
        %v2148 = vld [vmem:[%s2136 + $0xaf] sm:$0xff]
        %v2149 = vld [vmem:[%s2136 + $0xc7] sm:$0xff]
        %v2150 = vld [vmem:[%s2136 + $0xcf] sm:$0xff]
        %v2151 = vld [vmem:[%s2136 + $0xe7] sm:$0xff]
        %v2152 = vld [vmem:[%s2136 + $0xef] sm:$0xff]
        %v2153 = vld [vmem:[%s2136 + $0x107] sm:$0xff]
        %v2154 = vld [vmem:[%s2136 + $0x10f] sm:$0xff]
        %v2155 = vld [vmem:[%s2136 + $0x127] sm:$0xff]
        %v2156 = vld [vmem:[%s2136 + $0x12f] sm:$0xff]
        %v2157 = vld [vmem:[%s2136 + $0x147] sm:$0xff]
        %v2158 = vld [vmem:[%s2136 + $0x14f] sm:$0xff]
        %v2159 = vld [vmem:[%s2136 + $0x167] sm:$0xff]
        %v2160 = vld [vmem:[%s2136 + $0x16f] sm:$0xff]
        %v2161 = vld [vmem:[%s2136 + $0x187] sm:$0xff]
        %v2162 = vld [vmem:[%s2136 + $0x18f] sm:$0xff]
        %v2163 = vld [vmem:[%s2136 + $0x1a7] sm:$0xff]
        %v2164 = vld [vmem:[%s2136 + $0x1af] sm:$0xff]
        %v2165 = vld [vmem:[%s2136 + $0x1c7] sm:$0xff]
        %v2166 = vld [vmem:[%s2136 + $0x1cf] sm:$0xff]
        %v2167 = vld [vmem:[%s2136 + $0x1e7] sm:$0xff]
        %v2168 = vld [vmem:[%s2136 + $0x1ef] sm:$0xff]
        %v2169 = vpack.c.bf16 %v2137, %v2137
        %v2170 = vpack.c.bf16 %v2138, %v2138
        %v2171 = vpack.c.bf16 %v2139, %v2139
        %v2172 = vpack.c.bf16 %v2140, %v2140
        %v2173 = vpack.c.bf16 %v2141, %v2141
        %v2174 = vpack.c.bf16 %v2142, %v2142
        %v2175 = vpack.c.bf16 %v2143, %v2143
        %v2176 = vpack.c.bf16 %v2144, %v2144
        %v2177 = vpack.c.bf16 %v2145, %v2145
        %v2178 = vpack.c.bf16 %v2146, %v2146
        %v2179 = vpack.c.bf16 %v2147, %v2147
        %v2180 = vpack.c.bf16 %v2148, %v2148
        %v2181 = vpack.c.bf16 %v2149, %v2149
        %v2182 = vpack.c.bf16 %v2150, %v2150
        %v2183 = vpack.c.bf16 %v2151, %v2151
        %v2184 = vpack.c.bf16 %v2152, %v2152
        %v2185 = vpack.c.bf16 %v2153, %v2153
        %v2186 = vpack.c.bf16 %v2154, %v2154
        %v2187 = vpack.c.bf16 %v2155, %v2155
        %v2188 = vpack.c.bf16 %v2156, %v2156
        %v2189 = vpack.c.bf16 %v2157, %v2157
        %v2190 = vpack.c.bf16 %v2158, %v2158
        %v2191 = vpack.c.bf16 %v2159, %v2159
        %v2192 = vpack.c.bf16 %v2160, %v2160
        %v2193 = vpack.c.bf16 %v2161, %v2161
        %v2194 = vpack.c.bf16 %v2162, %v2162
        %v2195 = vpack.c.bf16 %v2163, %v2163
        %v2196 = vpack.c.bf16 %v2164, %v2164
        %v2197 = vpack.c.bf16 %v2165, %v2165
        %v2198 = vpack.c.bf16 %v2166, %v2166
        %v2199 = vpack.c.bf16 %v2167, %v2167
        %v2200 = vpack.c.bf16 %v2168, %v2168
        %2201 = vst.msk [vmem:[#allocation3 + $0xc] sm:$0xf] %vm1238, %v2169
        %2202 = vst.msk [vmem:[#allocation3 + $0x20] sm:$0xf] %vm1238, %v2170
        %2203 = vst.msk [vmem:[#allocation3 + $0x34] sm:$0xf] %vm1238, %v2171
        %2204 = vst.msk [vmem:[#allocation3 + $0x48] sm:$0xf] %vm1238, %v2172
        %2205 = vst.msk [vmem:[#allocation3 + $0x5c] sm:$0xf] %vm1238, %v2173
        %2206 = vst.msk [vmem:[#allocation3 + $0x70] sm:$0xf] %vm1238, %v2174
        %2207 = vst.msk [vmem:[#allocation3 + $0x84] sm:$0xf] %vm1238, %v2175
        %2208 = vst.msk [vmem:[#allocation3 + $0x98] sm:$0xf] %vm1238, %v2176
        %2209 = vst.msk [vmem:[#allocation3 + $0xac] sm:$0xf] %vm1238, %v2177
        %2210 = vst.msk [vmem:[#allocation3 + $0xc0] sm:$0xf] %vm1238, %v2178
        %2211 = vst.msk [vmem:[#allocation3 + $0xd4] sm:$0xf] %vm1238, %v2179
        %2212 = vst.msk [vmem:[#allocation3 + $0xe8] sm:$0xf] %vm1238, %v2180
        %2213 = vst.msk [vmem:[#allocation3 + $0xfc] sm:$0xf] %vm1238, %v2181
        %2214 = vst.msk [vmem:[#allocation3 + $0x110] sm:$0xf] %vm1238, %v2182
        %2215 = vst.msk [vmem:[#allocation3 + $0x124] sm:$0xf] %vm1238, %v2183
        %2216 = vst.msk [vmem:[#allocation3 + $0x138] sm:$0xf] %vm1238, %v2184
        %2217 = vst.msk [vmem:[#allocation3 + $0x14c] sm:$0xf] %vm1238, %v2185
        %2218 = vst.msk [vmem:[#allocation3 + $0x160] sm:$0xf] %vm1238, %v2186
        %2219 = vst.msk [vmem:[#allocation3 + $0x174] sm:$0xf] %vm1238, %v2187
        %2220 = vst.msk [vmem:[#allocation3 + $0x188] sm:$0xf] %vm1238, %v2188
        %2221 = vst.msk [vmem:[#allocation3 + $0x19c] sm:$0xf] %vm1238, %v2189
        %2222 = vst.msk [vmem:[#allocation3 + $0x1b0] sm:$0xf] %vm1238, %v2190
        %2223 = vst.msk [vmem:[#allocation3 + $0x1c4] sm:$0xf] %vm1238, %v2191
        %2224 = vst.msk [vmem:[#allocation3 + $0x1d8] sm:$0xf] %vm1238, %v2192
        %2225 = vst.msk [vmem:[#allocation3 + $0x1ec] sm:$0xf] %vm1238, %v2193
        %2226 = vst.msk [vmem:[#allocation3 + $0x200] sm:$0xf] %vm1238, %v2194
        %2227 = vst.msk [vmem:[#allocation3 + $0x214] sm:$0xf] %vm1238, %v2195
        %2228 = vst.msk [vmem:[#allocation3 + $0x228] sm:$0xf] %vm1238, %v2196
        %2229 = vst.msk [vmem:[#allocation3 + $0x23c] sm:$0xf] %vm1238, %v2197
        %2230 = vst.msk [vmem:[#allocation3 + $0x250] sm:$0xf] %vm1238, %v2198
        %2231 = vst.msk [vmem:[#allocation3 + $0x264] sm:$0xf] %vm1238, %v2199
        %2232 = vst.msk [vmem:[#allocation3 + $0x278] sm:$0xf] %vm1238, %v2200
        %v2233 = vld [vmem:[%s2136 + $0x8] sm:$0xff]
        %v2234 = vld [vmem:[%s2136 + $0x10] sm:$0xff]
        %v2235 = vld [vmem:[%s2136 + $0x28] sm:$0xff]
        %v2236 = vld [vmem:[%s2136 + $0x30] sm:$0xff]
        %v2237 = vld [vmem:[%s2136 + $0x48] sm:$0xff]
        %v2238 = vld [vmem:[%s2136 + $0x50] sm:$0xff]
        %v2239 = vld [vmem:[%s2136 + $0x68] sm:$0xff]
        %v2240 = vld [vmem:[%s2136 + $0x70] sm:$0xff]
        %v2241 = vld [vmem:[%s2136 + $0x88] sm:$0xff]
        %v2242 = vld [vmem:[%s2136 + $0x90] sm:$0xff]
        %v2243 = vld [vmem:[%s2136 + $0xa8] sm:$0xff]
        %v2244 = vld [vmem:[%s2136 + $0xb0] sm:$0xff]
        %v2245 = vld [vmem:[%s2136 + $0xc8] sm:$0xff]
        %v2246 = vld [vmem:[%s2136 + $0xd0] sm:$0xff]
        %v2247 = vld [vmem:[%s2136 + $0xe8] sm:$0xff]
        %v2248 = vld [vmem:[%s2136 + $0xf0] sm:$0xff]
        %v2249 = vld [vmem:[%s2136 + $0x108] sm:$0xff]
        %v2250 = vld [vmem:[%s2136 + $0x110] sm:$0xff]
        %v2251 = vld [vmem:[%s2136 + $0x128] sm:$0xff]
        %v2252 = vld [vmem:[%s2136 + $0x130] sm:$0xff]
        %v2253 = vld [vmem:[%s2136 + $0x148] sm:$0xff]
        %v2254 = vld [vmem:[%s2136 + $0x150] sm:$0xff]
        %v2255 = vld [vmem:[%s2136 + $0x168] sm:$0xff]
        %v2256 = vld [vmem:[%s2136 + $0x170] sm:$0xff]
        %v2257 = vld [vmem:[%s2136 + $0x188] sm:$0xff]
        %v2258 = vld [vmem:[%s2136 + $0x190] sm:$0xff]
        %v2259 = vld [vmem:[%s2136 + $0x1a8] sm:$0xff]
        %v2260 = vld [vmem:[%s2136 + $0x1b0] sm:$0xff]
        %v2261 = vld [vmem:[%s2136 + $0x1c8] sm:$0xff]
        %v2262 = vld [vmem:[%s2136 + $0x1d0] sm:$0xff]
        %v2263 = vld [vmem:[%s2136 + $0x1e8] sm:$0xff]
        %v2264 = vld [vmem:[%s2136 + $0x1f0] sm:$0xff]
        %v2265 = vpack.c.bf16 %v2233, %v2233
        %v2266 = vpack.c.bf16 %v2234, %v2234
        %v2267 = vpack.c.bf16 %v2235, %v2235
        %v2268 = vpack.c.bf16 %v2236, %v2236
        %v2269 = vpack.c.bf16 %v2237, %v2237
        %v2270 = vpack.c.bf16 %v2238, %v2238
        %v2271 = vpack.c.bf16 %v2239, %v2239
        %v2272 = vpack.c.bf16 %v2240, %v2240
        %v2273 = vpack.c.bf16 %v2241, %v2241
        %v2274 = vpack.c.bf16 %v2242, %v2242
        %v2275 = vpack.c.bf16 %v2243, %v2243
        %v2276 = vpack.c.bf16 %v2244, %v2244
        %v2277 = vpack.c.bf16 %v2245, %v2245
        %v2278 = vpack.c.bf16 %v2246, %v2246
        %v2279 = vpack.c.bf16 %v2247, %v2247
        %v2280 = vpack.c.bf16 %v2248, %v2248
        %v2281 = vpack.c.bf16 %v2249, %v2249
        %v2282 = vpack.c.bf16 %v2250, %v2250
        %v2283 = vpack.c.bf16 %v2251, %v2251
        %v2284 = vpack.c.bf16 %v2252, %v2252
        %v2285 = vpack.c.bf16 %v2253, %v2253
        %v2286 = vpack.c.bf16 %v2254, %v2254
        %v2287 = vpack.c.bf16 %v2255, %v2255
        %v2288 = vpack.c.bf16 %v2256, %v2256
        %v2289 = vpack.c.bf16 %v2257, %v2257
        %v2290 = vpack.c.bf16 %v2258, %v2258
        %v2291 = vpack.c.bf16 %v2259, %v2259
        %v2292 = vpack.c.bf16 %v2260, %v2260
        %v2293 = vpack.c.bf16 %v2261, %v2261
        %v2294 = vpack.c.bf16 %v2262, %v2262
        %v2295 = vpack.c.bf16 %v2263, %v2263
        %v2296 = vpack.c.bf16 %v2264, %v2264
        %2329 = vrot.lane.b32.xlu0 %v2265, 64
        %v2330 = vpop.permute.xlu0 %2329
        %2331 = vrot.lane.b32.xlu0 %v2266, 64
        %v2332 = vpop.permute.xlu0 %2331
        %2333 = vrot.lane.b32.xlu0 %v2267, 64
        %v2334 = vpop.permute.xlu0 %2333
        %2335 = vrot.lane.b32.xlu0 %v2268, 64
        %v2336 = vpop.permute.xlu0 %2335
        %2337 = vrot.lane.b32.xlu0 %v2269, 64
        %v2338 = vpop.permute.xlu0 %2337
        %2339 = vrot.lane.b32.xlu0 %v2270, 64
        %v2340 = vpop.permute.xlu0 %2339
        %2341 = vrot.lane.b32.xlu0 %v2271, 64
        %v2342 = vpop.permute.xlu0 %2341
        %2343 = vrot.lane.b32.xlu0 %v2272, 64
        %v2344 = vpop.permute.xlu0 %2343
        %2345 = vrot.lane.b32.xlu0 %v2273, 64
        %v2346 = vpop.permute.xlu0 %2345
        %2347 = vrot.lane.b32.xlu0 %v2274, 64
        %v2348 = vpop.permute.xlu0 %2347
        %2349 = vrot.lane.b32.xlu0 %v2275, 64
        %v2350 = vpop.permute.xlu0 %2349
        %2351 = vrot.lane.b32.xlu0 %v2276, 64
        %v2352 = vpop.permute.xlu0 %2351
        %2353 = vrot.lane.b32.xlu0 %v2277, 64
        %v2354 = vpop.permute.xlu0 %2353
        %2355 = vrot.lane.b32.xlu0 %v2278, 64
        %v2356 = vpop.permute.xlu0 %2355
        %2357 = vrot.lane.b32.xlu0 %v2279, 64
        %v2358 = vpop.permute.xlu0 %2357
        %2359 = vrot.lane.b32.xlu0 %v2280, 64
        %v2360 = vpop.permute.xlu0 %2359
        %2361 = vrot.lane.b32.xlu0 %v2281, 64
        %v2362 = vpop.permute.xlu0 %2361
        %2363 = vrot.lane.b32.xlu0 %v2282, 64
        %v2364 = vpop.permute.xlu0 %2363
        %2365 = vrot.lane.b32.xlu0 %v2283, 64
        %v2366 = vpop.permute.xlu0 %2365
        %2367 = vrot.lane.b32.xlu0 %v2284, 64
        %v2368 = vpop.permute.xlu0 %2367
        %2369 = vrot.lane.b32.xlu0 %v2285, 64
        %v2370 = vpop.permute.xlu0 %2369
        %2371 = vrot.lane.b32.xlu0 %v2286, 64
        %v2372 = vpop.permute.xlu0 %2371
        %2373 = vrot.lane.b32.xlu0 %v2287, 64
        %v2374 = vpop.permute.xlu0 %2373
        %2375 = vrot.lane.b32.xlu0 %v2288, 64
        %v2376 = vpop.permute.xlu0 %2375
        %2377 = vrot.lane.b32.xlu0 %v2289, 64
        %v2378 = vpop.permute.xlu0 %2377
        %2379 = vrot.lane.b32.xlu0 %v2290, 64
        %v2380 = vpop.permute.xlu0 %2379
        %2381 = vrot.lane.b32.xlu0 %v2291, 64
        %v2382 = vpop.permute.xlu0 %2381
        %2383 = vrot.lane.b32.xlu0 %v2292, 64
        %v2384 = vpop.permute.xlu0 %2383
        %2385 = vrot.lane.b32.xlu0 %v2293, 64
        %v2386 = vpop.permute.xlu0 %2385
        %2387 = vrot.lane.b32.xlu0 %v2294, 64
        %v2388 = vpop.permute.xlu0 %2387
        %2389 = vrot.lane.b32.xlu0 %v2295, 64
        %v2390 = vpop.permute.xlu0 %2389
        %2391 = vrot.lane.b32.xlu0 %v2296, 64
        %v2392 = vpop.permute.xlu0 %2391
        %2425 = vst.msk [vmem:[#allocation3 + $0xc] sm:$0xf] %vm1463, %v2330
        %2426 = vst.msk [vmem:[#allocation3 + $0x20] sm:$0xf] %vm1463, %v2332
        %2427 = vst.msk [vmem:[#allocation3 + $0x34] sm:$0xf] %vm1463, %v2334
        %2428 = vst.msk [vmem:[#allocation3 + $0x48] sm:$0xf] %vm1463, %v2336
        %2429 = vst.msk [vmem:[#allocation3 + $0x5c] sm:$0xf] %vm1463, %v2338
        %2430 = vst.msk [vmem:[#allocation3 + $0x70] sm:$0xf] %vm1463, %v2340
        %2431 = vst.msk [vmem:[#allocation3 + $0x84] sm:$0xf] %vm1463, %v2342
        %2432 = vst.msk [vmem:[#allocation3 + $0x98] sm:$0xf] %vm1463, %v2344
        %2433 = vst.msk [vmem:[#allocation3 + $0xac] sm:$0xf] %vm1463, %v2346
        %2434 = vst.msk [vmem:[#allocation3 + $0xc0] sm:$0xf] %vm1463, %v2348
        %2435 = vst.msk [vmem:[#allocation3 + $0xd4] sm:$0xf] %vm1463, %v2350
        %2436 = vst.msk [vmem:[#allocation3 + $0xe8] sm:$0xf] %vm1463, %v2352
        %2437 = vst.msk [vmem:[#allocation3 + $0xfc] sm:$0xf] %vm1463, %v2354
        %2438 = vst.msk [vmem:[#allocation3 + $0x110] sm:$0xf] %vm1463, %v2356
        %2439 = vst.msk [vmem:[#allocation3 + $0x124] sm:$0xf] %vm1463, %v2358
        %2440 = vst.msk [vmem:[#allocation3 + $0x138] sm:$0xf] %vm1463, %v2360
        %2441 = vst.msk [vmem:[#allocation3 + $0x14c] sm:$0xf] %vm1463, %v2362
        %2442 = vst.msk [vmem:[#allocation3 + $0x160] sm:$0xf] %vm1463, %v2364
        %2443 = vst.msk [vmem:[#allocation3 + $0x174] sm:$0xf] %vm1463, %v2366
        %2444 = vst.msk [vmem:[#allocation3 + $0x188] sm:$0xf] %vm1463, %v2368
        %2445 = vst.msk [vmem:[#allocation3 + $0x19c] sm:$0xf] %vm1463, %v2370
        %2446 = vst.msk [vmem:[#allocation3 + $0x1b0] sm:$0xf] %vm1463, %v2372
        %2447 = vst.msk [vmem:[#allocation3 + $0x1c4] sm:$0xf] %vm1463, %v2374
        %2448 = vst.msk [vmem:[#allocation3 + $0x1d8] sm:$0xf] %vm1463, %v2376
        %2449 = vst.msk [vmem:[#allocation3 + $0x1ec] sm:$0xf] %vm1463, %v2378
        %2450 = vst.msk [vmem:[#allocation3 + $0x200] sm:$0xf] %vm1463, %v2380
        %2451 = vst.msk [vmem:[#allocation3 + $0x214] sm:$0xf] %vm1463, %v2382
        %2452 = vst.msk [vmem:[#allocation3 + $0x228] sm:$0xf] %vm1463, %v2384
        %2453 = vst.msk [vmem:[#allocation3 + $0x23c] sm:$0xf] %vm1463, %v2386
        %2454 = vst.msk [vmem:[#allocation3 + $0x250] sm:$0xf] %vm1463, %v2388
        %2455 = vst.msk [vmem:[#allocation3 + $0x264] sm:$0xf] %vm1463, %v2390
        %2456 = vst.msk [vmem:[#allocation3 + $0x278] sm:$0xf] %vm1463, %v2392
        %v2457 = vld [vmem:[%s2136 + $0x9] sm:$0xff]
        %v2458 = vld [vmem:[%s2136 + $0x11] sm:$0xff]
        %v2459 = vld [vmem:[%s2136 + $0x29] sm:$0xff]
        %v2460 = vld [vmem:[%s2136 + $0x31] sm:$0xff]
        %v2461 = vld [vmem:[%s2136 + $0x49] sm:$0xff]
        %v2462 = vld [vmem:[%s2136 + $0x51] sm:$0xff]
        %v2463 = vld [vmem:[%s2136 + $0x69] sm:$0xff]
        %v2464 = vld [vmem:[%s2136 + $0x71] sm:$0xff]
        %v2465 = vld [vmem:[%s2136 + $0x89] sm:$0xff]
        %v2466 = vld [vmem:[%s2136 + $0x91] sm:$0xff]
        %v2467 = vld [vmem:[%s2136 + $0xa9] sm:$0xff]
        %v2468 = vld [vmem:[%s2136 + $0xb1] sm:$0xff]
        %v2469 = vld [vmem:[%s2136 + $0xc9] sm:$0xff]
        %v2470 = vld [vmem:[%s2136 + $0xd1] sm:$0xff]
        %v2471 = vld [vmem:[%s2136 + $0xe9] sm:$0xff]
        %v2472 = vld [vmem:[%s2136 + $0xf1] sm:$0xff]
        %v2473 = vld [vmem:[%s2136 + $0x109] sm:$0xff]
        %v2474 = vld [vmem:[%s2136 + $0x111] sm:$0xff]
        %v2475 = vld [vmem:[%s2136 + $0x129] sm:$0xff]
        %v2476 = vld [vmem:[%s2136 + $0x131] sm:$0xff]
        %v2477 = vld [vmem:[%s2136 + $0x149] sm:$0xff]
        %v2478 = vld [vmem:[%s2136 + $0x151] sm:$0xff]
        %v2479 = vld [vmem:[%s2136 + $0x169] sm:$0xff]
        %v2480 = vld [vmem:[%s2136 + $0x171] sm:$0xff]
        %v2481 = vld [vmem:[%s2136 + $0x189] sm:$0xff]
        %v2482 = vld [vmem:[%s2136 + $0x191] sm:$0xff]
        %v2483 = vld [vmem:[%s2136 + $0x1a9] sm:$0xff]
        %v2484 = vld [vmem:[%s2136 + $0x1b1] sm:$0xff]
        %v2485 = vld [vmem:[%s2136 + $0x1c9] sm:$0xff]
        %v2486 = vld [vmem:[%s2136 + $0x1d1] sm:$0xff]
        %v2487 = vld [vmem:[%s2136 + $0x1e9] sm:$0xff]
        %v2488 = vld [vmem:[%s2136 + $0x1f1] sm:$0xff]
        %v2489 = vpack.c.bf16 %v2457, %v2457
        %v2490 = vpack.c.bf16 %v2458, %v2458
        %v2491 = vpack.c.bf16 %v2459, %v2459
        %v2492 = vpack.c.bf16 %v2460, %v2460
        %v2493 = vpack.c.bf16 %v2461, %v2461
        %v2494 = vpack.c.bf16 %v2462, %v2462
        %v2495 = vpack.c.bf16 %v2463, %v2463
        %v2496 = vpack.c.bf16 %v2464, %v2464
        %v2497 = vpack.c.bf16 %v2465, %v2465
        %v2498 = vpack.c.bf16 %v2466, %v2466
        %v2499 = vpack.c.bf16 %v2467, %v2467
        %v2500 = vpack.c.bf16 %v2468, %v2468
        %v2501 = vpack.c.bf16 %v2469, %v2469
        %v2502 = vpack.c.bf16 %v2470, %v2470
        %v2503 = vpack.c.bf16 %v2471, %v2471
        %v2504 = vpack.c.bf16 %v2472, %v2472
        %v2505 = vpack.c.bf16 %v2473, %v2473
        %v2506 = vpack.c.bf16 %v2474, %v2474
        %v2507 = vpack.c.bf16 %v2475, %v2475
        %v2508 = vpack.c.bf16 %v2476, %v2476
        %v2509 = vpack.c.bf16 %v2477, %v2477
        %v2510 = vpack.c.bf16 %v2478, %v2478
        %v2511 = vpack.c.bf16 %v2479, %v2479
        %v2512 = vpack.c.bf16 %v2480, %v2480
        %v2513 = vpack.c.bf16 %v2481, %v2481
        %v2514 = vpack.c.bf16 %v2482, %v2482
        %v2515 = vpack.c.bf16 %v2483, %v2483
        %v2516 = vpack.c.bf16 %v2484, %v2484
        %v2517 = vpack.c.bf16 %v2485, %v2485
        %v2518 = vpack.c.bf16 %v2486, %v2486
        %v2519 = vpack.c.bf16 %v2487, %v2487
        %v2520 = vpack.c.bf16 %v2488, %v2488
        %2521 = vst.msk [vmem:[#allocation3 + $0x10] sm:$0xf] %vm1238, %v2489
        %2522 = vst.msk [vmem:[#allocation3 + $0x24] sm:$0xf] %vm1238, %v2490
        %2523 = vst.msk [vmem:[#allocation3 + $0x38] sm:$0xf] %vm1238, %v2491
        %2524 = vst.msk [vmem:[#allocation3 + $0x4c] sm:$0xf] %vm1238, %v2492
        %2525 = vst.msk [vmem:[#allocation3 + $0x60] sm:$0xf] %vm1238, %v2493
        %2526 = vst.msk [vmem:[#allocation3 + $0x74] sm:$0xf] %vm1238, %v2494
        %2527 = vst.msk [vmem:[#allocation3 + $0x88] sm:$0xf] %vm1238, %v2495
        %2528 = vst.msk [vmem:[#allocation3 + $0x9c] sm:$0xf] %vm1238, %v2496
        %2529 = vst.msk [vmem:[#allocation3 + $0xb0] sm:$0xf] %vm1238, %v2497
        %2530 = vst.msk [vmem:[#allocation3 + $0xc4] sm:$0xf] %vm1238, %v2498
        %2531 = vst.msk [vmem:[#allocation3 + $0xd8] sm:$0xf] %vm1238, %v2499
        %2532 = vst.msk [vmem:[#allocation3 + $0xec] sm:$0xf] %vm1238, %v2500
        %2533 = vst.msk [vmem:[#allocation3 + $0x100] sm:$0xf] %vm1238, %v2501
        %2534 = vst.msk [vmem:[#allocation3 + $0x114] sm:$0xf] %vm1238, %v2502
        %2535 = vst.msk [vmem:[#allocation3 + $0x128] sm:$0xf] %vm1238, %v2503
        %2536 = vst.msk [vmem:[#allocation3 + $0x13c] sm:$0xf] %vm1238, %v2504
        %2537 = vst.msk [vmem:[#allocation3 + $0x150] sm:$0xf] %vm1238, %v2505
        %2538 = vst.msk [vmem:[#allocation3 + $0x164] sm:$0xf] %vm1238, %v2506
        %2539 = vst.msk [vmem:[#allocation3 + $0x178] sm:$0xf] %vm1238, %v2507
        %2540 = vst.msk [vmem:[#allocation3 + $0x18c] sm:$0xf] %vm1238, %v2508
        %2541 = vst.msk [vmem:[#allocation3 + $0x1a0] sm:$0xf] %vm1238, %v2509
        %2542 = vst.msk [vmem:[#allocation3 + $0x1b4] sm:$0xf] %vm1238, %v2510
        %2543 = vst.msk [vmem:[#allocation3 + $0x1c8] sm:$0xf] %vm1238, %v2511
        %2544 = vst.msk [vmem:[#allocation3 + $0x1dc] sm:$0xf] %vm1238, %v2512
        %2545 = vst.msk [vmem:[#allocation3 + $0x1f0] sm:$0xf] %vm1238, %v2513
        %2546 = vst.msk [vmem:[#allocation3 + $0x204] sm:$0xf] %vm1238, %v2514
        %2547 = vst.msk [vmem:[#allocation3 + $0x218] sm:$0xf] %vm1238, %v2515
        %2548 = vst.msk [vmem:[#allocation3 + $0x22c] sm:$0xf] %vm1238, %v2516
        %2549 = vst.msk [vmem:[#allocation3 + $0x240] sm:$0xf] %vm1238, %v2517
        %2550 = vst.msk [vmem:[#allocation3 + $0x254] sm:$0xf] %vm1238, %v2518
        %2551 = vst.msk [vmem:[#allocation3 + $0x268] sm:$0xf] %vm1238, %v2519
        %2552 = vst.msk [vmem:[#allocation3 + $0x27c] sm:$0xf] %vm1238, %v2520
        %v2553 = vld [vmem:[#allocation3] sm:$0xff]
        %v2554 = vld [vmem:[#allocation3 + $0x8] sm:$0xff]
        %v2555 = vld [vmem:[#allocation3 + $0x10] sm:$0xf]
        %v2556 = vld [vmem:[#allocation3 + $0x14] sm:$0xff]
        %v2557 = vld [vmem:[#allocation3 + $0x1c] sm:$0xff]
        %v2558 = vld [vmem:[#allocation3 + $0x24] sm:$0xf]
        %v2559 = vld [vmem:[#allocation3 + $0x28] sm:$0xff]
        %v2560 = vld [vmem:[#allocation3 + $0x30] sm:$0xff]
        %v2561 = vld [vmem:[#allocation3 + $0x38] sm:$0xf]
        %v2562 = vld [vmem:[#allocation3 + $0x3c] sm:$0xff]
        %v2563 = vld [vmem:[#allocation3 + $0x44] sm:$0xff]
        %v2564 = vld [vmem:[#allocation3 + $0x4c] sm:$0xf]
        %v2565 = vld [vmem:[#allocation3 + $0x50] sm:$0xff]
        %v2566 = vld [vmem:[#allocation3 + $0x58] sm:$0xff]
        %v2567 = vld [vmem:[#allocation3 + $0x60] sm:$0xf]
        %v2568 = vld [vmem:[#allocation3 + $0x64] sm:$0xff]
        %v2569 = vld [vmem:[#allocation3 + $0x6c] sm:$0xff]
        %v2570 = vld [vmem:[#allocation3 + $0x74] sm:$0xf]
        %v2571 = vld [vmem:[#allocation3 + $0x78] sm:$0xff]
        %v2572 = vld [vmem:[#allocation3 + $0x80] sm:$0xff]
        %v2573 = vld [vmem:[#allocation3 + $0x88] sm:$0xf]
        %v2574 = vld [vmem:[#allocation3 + $0x8c] sm:$0xff]
        %v2575 = vld [vmem:[#allocation3 + $0x94] sm:$0xff]
        %v2576 = vld [vmem:[#allocation3 + $0x9c] sm:$0xf]
        %v2577 = vld [vmem:[#allocation3 + $0xa0] sm:$0xff]
        %v2578 = vld [vmem:[#allocation3 + $0xa8] sm:$0xff]
        %v2579 = vld [vmem:[#allocation3 + $0xb0] sm:$0xf]
        %v2580 = vld [vmem:[#allocation3 + $0xb4] sm:$0xff]
        %v2581 = vld [vmem:[#allocation3 + $0xbc] sm:$0xff]
        %v2582 = vld [vmem:[#allocation3 + $0xc4] sm:$0xf]
        %v2583 = vld [vmem:[#allocation3 + $0xc8] sm:$0xff]
        %v2584 = vld [vmem:[#allocation3 + $0xd0] sm:$0xff]
        %v2585 = vld [vmem:[#allocation3 + $0xd8] sm:$0xf]
        %v2586 = vld [vmem:[#allocation3 + $0xdc] sm:$0xff]
        %v2587 = vld [vmem:[#allocation3 + $0xe4] sm:$0xff]
        %v2588 = vld [vmem:[#allocation3 + $0xec] sm:$0xf]
        %v2589 = vld [vmem:[#allocation3 + $0xf0] sm:$0xff]
        %v2590 = vld [vmem:[#allocation3 + $0xf8] sm:$0xff]
        %v2591 = vld [vmem:[#allocation3 + $0x100] sm:$0xf]
        %v2592 = vld [vmem:[#allocation3 + $0x104] sm:$0xff]
        %v2593 = vld [vmem:[#allocation3 + $0x10c] sm:$0xff]
        %v2594 = vld [vmem:[#allocation3 + $0x114] sm:$0xf]
        %v2595 = vld [vmem:[#allocation3 + $0x118] sm:$0xff]
        %v2596 = vld [vmem:[#allocation3 + $0x120] sm:$0xff]
        %v2597 = vld [vmem:[#allocation3 + $0x128] sm:$0xf]
        %v2598 = vld [vmem:[#allocation3 + $0x12c] sm:$0xff]
        %v2599 = vld [vmem:[#allocation3 + $0x134] sm:$0xff]
        %v2600 = vld [vmem:[#allocation3 + $0x13c] sm:$0xf]
        %v2601 = vld [vmem:[#allocation3 + $0x140] sm:$0xff]
        %v2602 = vld [vmem:[#allocation3 + $0x148] sm:$0xff]
        %v2603 = vld [vmem:[#allocation3 + $0x150] sm:$0xf]
        %v2604 = vld [vmem:[#allocation3 + $0x154] sm:$0xff]
        %v2605 = vld [vmem:[#allocation3 + $0x15c] sm:$0xff]
        %v2606 = vld [vmem:[#allocation3 + $0x164] sm:$0xf]
        %v2607 = vld [vmem:[#allocation3 + $0x168] sm:$0xff]
        %v2608 = vld [vmem:[#allocation3 + $0x170] sm:$0xff]
        %v2609 = vld [vmem:[#allocation3 + $0x178] sm:$0xf]
        %v2610 = vld [vmem:[#allocation3 + $0x17c] sm:$0xff]
        %v2611 = vld [vmem:[#allocation3 + $0x184] sm:$0xff]
        %v2612 = vld [vmem:[#allocation3 + $0x18c] sm:$0xf]
        %v2613 = vld [vmem:[#allocation3 + $0x190] sm:$0xff]
        %v2614 = vld [vmem:[#allocation3 + $0x198] sm:$0xff]
        %v2615 = vld [vmem:[#allocation3 + $0x1a0] sm:$0xf]
        %v2616 = vld [vmem:[#allocation3 + $0x1a4] sm:$0xff]
        %v2617 = vld [vmem:[#allocation3 + $0x1ac] sm:$0xff]
        %v2618 = vld [vmem:[#allocation3 + $0x1b4] sm:$0xf]
        %v2619 = vld [vmem:[#allocation3 + $0x1b8] sm:$0xff]
        %v2620 = vld [vmem:[#allocation3 + $0x1c0] sm:$0xff]
        %v2621 = vld [vmem:[#allocation3 + $0x1c8] sm:$0xf]
        %v2622 = vld [vmem:[#allocation3 + $0x1cc] sm:$0xff]
        %v2623 = vld [vmem:[#allocation3 + $0x1d4] sm:$0xff]
        %v2624 = vld [vmem:[#allocation3 + $0x1dc] sm:$0xf]
        %v2625 = vld [vmem:[#allocation3 + $0x1e0] sm:$0xff]
        %v2626 = vld [vmem:[#allocation3 + $0x1e8] sm:$0xff]
        %v2627 = vld [vmem:[#allocation3 + $0x1f0] sm:$0xf]
        %v2628 = vld [vmem:[#allocation3 + $0x1f4] sm:$0xff]
        %v2629 = vld [vmem:[#allocation3 + $0x1fc] sm:$0xff]
        %v2630 = vld [vmem:[#allocation3 + $0x204] sm:$0xf]
        %v2631 = vld [vmem:[#allocation3 + $0x208] sm:$0xff]
        %v2632 = vld [vmem:[#allocation3 + $0x210] sm:$0xff]
        %v2633 = vld [vmem:[#allocation3 + $0x218] sm:$0xf]
        %v2634 = vld [vmem:[#allocation3 + $0x21c] sm:$0xff]
        %v2635 = vld [vmem:[#allocation3 + $0x224] sm:$0xff]
        %v2636 = vld [vmem:[#allocation3 + $0x22c] sm:$0xf]
        %v2637 = vld [vmem:[#allocation3 + $0x230] sm:$0xff]
        %v2638 = vld [vmem:[#allocation3 + $0x238] sm:$0xff]
        %v2639 = vld [vmem:[#allocation3 + $0x240] sm:$0xf]
        %v2640 = vld [vmem:[#allocation3 + $0x244] sm:$0xff]
        %v2641 = vld [vmem:[#allocation3 + $0x24c] sm:$0xff]
        %v2642 = vld [vmem:[#allocation3 + $0x254] sm:$0xf]
        %v2643 = vld [vmem:[#allocation3 + $0x258] sm:$0xff]
        %v2644 = vld [vmem:[#allocation3 + $0x260] sm:$0xff]
        %v2645 = vld [vmem:[#allocation3 + $0x268] sm:$0xf]
        %v2646 = vld [vmem:[#allocation3 + $0x26c] sm:$0xff]
        %v2647 = vld [vmem:[#allocation3 + $0x274] sm:$0xff]
        %v2648 = vld [vmem:[#allocation3 + $0x27c] sm:$0xf]
        %v2649 = vld [vmem:[%s6] sm:$0xf]
        %v2650 = vld [vmem:[%s6 + $0x4] sm:$0xf]
        %v2651 = vld [vmem:[%s6 + $0x8] sm:$0xf]
        %v2652 = vld [vmem:[%s6 + $0xc] sm:$0xf]
        %v2653 = vld [vmem:[%s6 + $0x10] sm:$0xf]
        %v2654 = vld [vmem:[%s6 + $0x14] sm:$0xf]
        %v2655 = vld [vmem:[%s6 + $0x18] sm:$0xf]
        %v2656 = vld [vmem:[%s6 + $0x1c] sm:$0xf]
        %v2657 = vld [vmem:[%s6 + $0x20] sm:$0xf]
        %v2658 = vld [vmem:[%s6 + $0x24] sm:$0xf]
        %v2659 = vld [vmem:[%s6 + $0x28] sm:$0xf]
        %v2660 = vld [vmem:[%s6 + $0x2c] sm:$0xf]
        %v2661 = vld [vmem:[%s6 + $0x30] sm:$0xf]
        %v2662 = vld [vmem:[%s6 + $0x34] sm:$0xf]
        %v2663 = vld [vmem:[%s6 + $0x38] sm:$0xf]
        %v2664 = vld [vmem:[%s6 + $0x3c] sm:$0xf]
        %v2665 = vld [vmem:[%s6 + $0x40] sm:$0xf]
        %v2666 = vld [vmem:[%s6 + $0x44] sm:$0xf]
        %v2667 = vld [vmem:[%s6 + $0x48] sm:$0xf]
        %v2668 = vld [vmem:[%s6 + $0x4c] sm:$0xf]
        %v2669 = vld [vmem:[%s6 + $0x50] sm:$0xf]
        %v2670 = vld [vmem:[%s6 + $0x54] sm:$0xf]
        %v2671 = vld [vmem:[%s6 + $0x58] sm:$0xf]
        %v2672 = vld [vmem:[%s6 + $0x5c] sm:$0xf]
        %v2673 = vld [vmem:[%s6 + $0x60] sm:$0xf]
        %v2674 = vld [vmem:[%s6 + $0x64] sm:$0xf]
        %v2675 = vld [vmem:[%s6 + $0x68] sm:$0xf]
        %v2676 = vld [vmem:[%s6 + $0x6c] sm:$0xf]
        %v2677 = vld [vmem:[%s6 + $0x70] sm:$0xf]
        %v2678 = vld [vmem:[%s6 + $0x74] sm:$0xf]
        %v2679 = vld [vmem:[%s6 + $0x78] sm:$0xf]
        %v2680 = vld [vmem:[%s6 + $0x7c] sm:$0xf]
        %v2681 = vld [vmem:[%s6 + $0x80] sm:$0xf]
        %v2682 = vld [vmem:[%s6 + $0x84] sm:$0xf]
        %v2683 = vld [vmem:[%s6 + $0x88] sm:$0xf]
        %v2684 = vld [vmem:[%s6 + $0x8c] sm:$0xf]
        %v2685 = vld [vmem:[%s6 + $0x90] sm:$0xf]
        %v2686 = vld [vmem:[%s6 + $0x94] sm:$0xf]
        %v2687 = vld [vmem:[%s6 + $0x98] sm:$0xf]
        %v2688 = vld [vmem:[%s6 + $0x9c] sm:$0xf]
        %v2689 = vld [vmem:[%s6 + $0xa0] sm:$0xf]
        %v2690 = vld [vmem:[%s6 + $0xa4] sm:$0xf]
        %v2691 = vld [vmem:[%s6 + $0xa8] sm:$0xf]
        %v2692 = vld [vmem:[%s6 + $0xac] sm:$0xf]
        %v2693 = vld [vmem:[%s6 + $0xb0] sm:$0xf]
        %v2694 = vld [vmem:[%s6 + $0xb4] sm:$0xf]
        %v2695 = vld [vmem:[%s6 + $0xb8] sm:$0xf]
        %v2696 = vld [vmem:[%s6 + $0xbc] sm:$0xf]
        %v2697 = vld [vmem:[%s6 + $0xc0] sm:$0xf]
        %v2698 = vld [vmem:[%s6 + $0xc4] sm:$0xf]
        %v2699 = vld [vmem:[%s6 + $0xc8] sm:$0xf]
        %v2700 = vld [vmem:[%s6 + $0xcc] sm:$0xf]
        %v2701 = vld [vmem:[%s6 + $0xd0] sm:$0xf]
        %v2702 = vld [vmem:[%s6 + $0xd4] sm:$0xf]
        %v2703 = vld [vmem:[%s6 + $0xd8] sm:$0xf]
        %v2704 = vld [vmem:[%s6 + $0xdc] sm:$0xf]
        %v2705 = vld [vmem:[%s6 + $0xe0] sm:$0xf]
        %v2706 = vld [vmem:[%s6 + $0xe4] sm:$0xf]
        %v2707 = vld [vmem:[%s6 + $0xe8] sm:$0xf]
        %v2708 = vld [vmem:[%s6 + $0xec] sm:$0xf]
        %v2709 = vld [vmem:[%s6 + $0xf0] sm:$0xf]
        %v2710 = vld [vmem:[%s6 + $0xf4] sm:$0xf]
        %v2711 = vld [vmem:[%s6 + $0xf8] sm:$0xf]
        %v2712 = vld [vmem:[%s6 + $0xfc] sm:$0xf]
        %v2713 = vld [vmem:[%s6 + $0x100] sm:$0xf]
        %v2714 = vld [vmem:[%s6 + $0x104] sm:$0xf]
        %v2715 = vld [vmem:[%s6 + $0x108] sm:$0xf]
        %v2716 = vld [vmem:[%s6 + $0x10c] sm:$0xf]
        %v2717 = vld [vmem:[%s6 + $0x110] sm:$0xf]
        %v2718 = vld [vmem:[%s6 + $0x114] sm:$0xf]
        %v2719 = vld [vmem:[%s6 + $0x118] sm:$0xf]
        %v2720 = vld [vmem:[%s6 + $0x11c] sm:$0xf]
        %v2721 = vld [vmem:[%s7] sm:$0x1]
        %v2723 = vperm.slane %v2721, 0
        %v2821 = vunpack.c.l.b16 %v2553
        %v2822 = vunpack.c.h.b16 %v2553
        %v2823 = vunpack.c.l.b16 %v2554
        %v2824 = vunpack.c.h.b16 %v2554
        %v2825 = vunpack.c.l.b16 %v2555
        %v2826 = vunpack.c.l.b16 %v2556
        %v2827 = vunpack.c.h.b16 %v2556
        %v2828 = vunpack.c.l.b16 %v2557
        %v2829 = vunpack.c.h.b16 %v2557
        %v2830 = vunpack.c.l.b16 %v2558
        %v2831 = vunpack.c.l.b16 %v2559
        %v2832 = vunpack.c.h.b16 %v2559
        %v2833 = vunpack.c.l.b16 %v2560
        %v2834 = vunpack.c.h.b16 %v2560
        %v2835 = vunpack.c.l.b16 %v2561
        %v2836 = vunpack.c.l.b16 %v2562
        %v2837 = vunpack.c.h.b16 %v2562
        %v2838 = vunpack.c.l.b16 %v2563
        %v2839 = vunpack.c.h.b16 %v2563
        %v2840 = vunpack.c.l.b16 %v2564
        %v2841 = vunpack.c.l.b16 %v2565
        %v2842 = vunpack.c.h.b16 %v2565
        %v2843 = vunpack.c.l.b16 %v2566
        %v2844 = vunpack.c.h.b16 %v2566
        %v2845 = vunpack.c.l.b16 %v2567
        %v2846 = vunpack.c.l.b16 %v2568
        %v2847 = vunpack.c.h.b16 %v2568
        %v2848 = vunpack.c.l.b16 %v2569
        %v2849 = vunpack.c.h.b16 %v2569
        %v2850 = vunpack.c.l.b16 %v2570
        %v2851 = vunpack.c.l.b16 %v2571
        %v2852 = vunpack.c.h.b16 %v2571
        %v2853 = vunpack.c.l.b16 %v2572
        %v2854 = vunpack.c.h.b16 %v2572
        %v2855 = vunpack.c.l.b16 %v2573
        %v2856 = vunpack.c.l.b16 %v2574
        %v2857 = vunpack.c.h.b16 %v2574
        %v2858 = vunpack.c.l.b16 %v2575
        %v2859 = vunpack.c.h.b16 %v2575
        %v2860 = vunpack.c.l.b16 %v2576
        %v2861 = vunpack.c.l.b16 %v2577
        %v2862 = vunpack.c.h.b16 %v2577
        %v2863 = vunpack.c.l.b16 %v2578
        %v2864 = vunpack.c.h.b16 %v2578
        %v2865 = vunpack.c.l.b16 %v2579
        %v2866 = vunpack.c.l.b16 %v2580
        %v2867 = vunpack.c.h.b16 %v2580
        %v2868 = vunpack.c.l.b16 %v2581
        %v2869 = vunpack.c.h.b16 %v2581
        %v2870 = vunpack.c.l.b16 %v2582
        %v2871 = vunpack.c.l.b16 %v2583
        %v2872 = vunpack.c.h.b16 %v2583
        %v2873 = vunpack.c.l.b16 %v2584
        %v2874 = vunpack.c.h.b16 %v2584
        %v2875 = vunpack.c.l.b16 %v2585
        %v2876 = vunpack.c.l.b16 %v2586
        %v2877 = vunpack.c.h.b16 %v2586
        %v2878 = vunpack.c.l.b16 %v2587
        %v2879 = vunpack.c.h.b16 %v2587
        %v2880 = vunpack.c.l.b16 %v2588
        %v2881 = vunpack.c.l.b16 %v2589
        %v2882 = vunpack.c.h.b16 %v2589
        %v2883 = vunpack.c.l.b16 %v2590
        %v2884 = vunpack.c.h.b16 %v2590
        %v2885 = vunpack.c.l.b16 %v2591
        %v2886 = vunpack.c.l.b16 %v2592
        %v2887 = vunpack.c.h.b16 %v2592
        %v2888 = vunpack.c.l.b16 %v2593
        %v2889 = vunpack.c.h.b16 %v2593
        %v2890 = vunpack.c.l.b16 %v2594
        %v2891 = vunpack.c.l.b16 %v2595
        %v2892 = vunpack.c.h.b16 %v2595
        %v2893 = vunpack.c.l.b16 %v2596
        %v2894 = vunpack.c.h.b16 %v2596
        %v2895 = vunpack.c.l.b16 %v2597
        %v2896 = vunpack.c.l.b16 %v2598
        %v2897 = vunpack.c.h.b16 %v2598
        %v2898 = vunpack.c.l.b16 %v2599
        %v2899 = vunpack.c.h.b16 %v2599
        %v2900 = vunpack.c.l.b16 %v2600
        %v2901 = vunpack.c.l.b16 %v2601
        %v2902 = vunpack.c.h.b16 %v2601
        %v2903 = vunpack.c.l.b16 %v2602
        %v2904 = vunpack.c.h.b16 %v2602
        %v2905 = vunpack.c.l.b16 %v2603
        %v2906 = vunpack.c.l.b16 %v2604
        %v2907 = vunpack.c.h.b16 %v2604
        %v2908 = vunpack.c.l.b16 %v2605
        %v2909 = vunpack.c.h.b16 %v2605
        %v2910 = vunpack.c.l.b16 %v2606
        %v2911 = vunpack.c.l.b16 %v2607
        %v2912 = vunpack.c.h.b16 %v2607
        %v2913 = vunpack.c.l.b16 %v2608
        %v2914 = vunpack.c.h.b16 %v2608
        %v2915 = vunpack.c.l.b16 %v2609
        %v2916 = vunpack.c.l.b16 %v2610
        %v2917 = vunpack.c.h.b16 %v2610
        %v2918 = vunpack.c.l.b16 %v2611
        %v2919 = vunpack.c.h.b16 %v2611
        %v2920 = vunpack.c.l.b16 %v2612
        %v2921 = vunpack.c.l.b16 %v2613
        %v2922 = vunpack.c.h.b16 %v2613
        %v2923 = vunpack.c.l.b16 %v2614
        %v2924 = vunpack.c.h.b16 %v2614
        %v2925 = vunpack.c.l.b16 %v2615
        %v2926 = vunpack.c.l.b16 %v2616
        %v2927 = vunpack.c.h.b16 %v2616
        %v2928 = vunpack.c.l.b16 %v2617
        %v2929 = vunpack.c.h.b16 %v2617
        %v2930 = vunpack.c.l.b16 %v2618
        %v2931 = vunpack.c.l.b16 %v2619
        %v2932 = vunpack.c.h.b16 %v2619
        %v2933 = vunpack.c.l.b16 %v2620
        %v2934 = vunpack.c.h.b16 %v2620
        %v2935 = vunpack.c.l.b16 %v2621
        %v2936 = vunpack.c.l.b16 %v2622
        %v2937 = vunpack.c.h.b16 %v2622
        %v2938 = vunpack.c.l.b16 %v2623
        %v2939 = vunpack.c.h.b16 %v2623
        %v2940 = vunpack.c.l.b16 %v2624
        %v2941 = vunpack.c.l.b16 %v2625
        %v2942 = vunpack.c.h.b16 %v2625
        %v2943 = vunpack.c.l.b16 %v2626
        %v2944 = vunpack.c.h.b16 %v2626
        %v2945 = vunpack.c.l.b16 %v2627
        %v2946 = vunpack.c.l.b16 %v2628
        %v2947 = vunpack.c.h.b16 %v2628
        %v2948 = vunpack.c.l.b16 %v2629
        %v2949 = vunpack.c.h.b16 %v2629
        %v2950 = vunpack.c.l.b16 %v2630
        %v2951 = vunpack.c.l.b16 %v2631
        %v2952 = vunpack.c.h.b16 %v2631
        %v2953 = vunpack.c.l.b16 %v2632
        %v2954 = vunpack.c.h.b16 %v2632
        %v2955 = vunpack.c.l.b16 %v2633
        %v2956 = vunpack.c.l.b16 %v2634
        %v2957 = vunpack.c.h.b16 %v2634
        %v2958 = vunpack.c.l.b16 %v2635
        %v2959 = vunpack.c.h.b16 %v2635
        %v2960 = vunpack.c.l.b16 %v2636
        %v2961 = vunpack.c.l.b16 %v2637
        %v2962 = vunpack.c.h.b16 %v2637
        %v2963 = vunpack.c.l.b16 %v2638
        %v2964 = vunpack.c.h.b16 %v2638
        %v2965 = vunpack.c.l.b16 %v2639
        %v2966 = vunpack.c.l.b16 %v2640
        %v2967 = vunpack.c.h.b16 %v2640
        %v2968 = vunpack.c.l.b16 %v2641
        %v2969 = vunpack.c.h.b16 %v2641
        %v2970 = vunpack.c.l.b16 %v2642
        %v2971 = vunpack.c.l.b16 %v2643
        %v2972 = vunpack.c.h.b16 %v2643
        %v2973 = vunpack.c.l.b16 %v2644
        %v2974 = vunpack.c.h.b16 %v2644
        %v2975 = vunpack.c.l.b16 %v2645
        %v2976 = vunpack.c.l.b16 %v2646
        %v2977 = vunpack.c.h.b16 %v2646
        %v2978 = vunpack.c.l.b16 %v2647
        %v2979 = vunpack.c.h.b16 %v2647
        %v2980 = vunpack.c.l.b16 %v2648
        %v2981 = vpack.c.b16 %v2826, %v2821
        %v2982 = vpack.c.b16 %v2827, %v2822
        %v2983 = vpack.c.b16 %v2828, %v2823
        %v2984 = vpack.c.b16 %v2829, %v2824
        %v2985 = vpack.c.b16 %v2830, %v2825
        %v2986 = vpack.c.b16 %v2836, %v2831
        %v2987 = vpack.c.b16 %v2837, %v2832
        %v2988 = vpack.c.b16 %v2838, %v2833
        %v2989 = vpack.c.b16 %v2839, %v2834
        %v2990 = vpack.c.b16 %v2840, %v2835
        %v2991 = vpack.c.b16 %v2846, %v2841
        %v2992 = vpack.c.b16 %v2847, %v2842
        %v2993 = vpack.c.b16 %v2848, %v2843
        %v2994 = vpack.c.b16 %v2849, %v2844
        %v2995 = vpack.c.b16 %v2850, %v2845
        %v2996 = vpack.c.b16 %v2856, %v2851
        %v2997 = vpack.c.b16 %v2857, %v2852
        %v2998 = vpack.c.b16 %v2858, %v2853
        %v2999 = vpack.c.b16 %v2859, %v2854
        %v3000 = vpack.c.b16 %v2860, %v2855
        %v3001 = vpack.c.b16 %v2866, %v2861
        %v3002 = vpack.c.b16 %v2867, %v2862
        %v3003 = vpack.c.b16 %v2868, %v2863
        %v3004 = vpack.c.b16 %v2869, %v2864
        %v3005 = vpack.c.b16 %v2870, %v2865
        %v3006 = vpack.c.b16 %v2876, %v2871
        %v3007 = vpack.c.b16 %v2877, %v2872
        %v3008 = vpack.c.b16 %v2878, %v2873
        %v3009 = vpack.c.b16 %v2879, %v2874
        %v3010 = vpack.c.b16 %v2880, %v2875
        %v3011 = vpack.c.b16 %v2886, %v2881
        %v3012 = vpack.c.b16 %v2887, %v2882
        %v3013 = vpack.c.b16 %v2888, %v2883
        %v3014 = vpack.c.b16 %v2889, %v2884
        %v3015 = vpack.c.b16 %v2890, %v2885
        %v3016 = vpack.c.b16 %v2896, %v2891
        %v3017 = vpack.c.b16 %v2897, %v2892
        %v3018 = vpack.c.b16 %v2898, %v2893
        %v3019 = vpack.c.b16 %v2899, %v2894
        %v3020 = vpack.c.b16 %v2900, %v2895
        %v3021 = vpack.c.b16 %v2906, %v2901
        %v3022 = vpack.c.b16 %v2907, %v2902
        %v3023 = vpack.c.b16 %v2908, %v2903
        %v3024 = vpack.c.b16 %v2909, %v2904
        %v3025 = vpack.c.b16 %v2910, %v2905
        %v3026 = vpack.c.b16 %v2916, %v2911
        %v3027 = vpack.c.b16 %v2917, %v2912
        %v3028 = vpack.c.b16 %v2918, %v2913
        %v3029 = vpack.c.b16 %v2919, %v2914
        %v3030 = vpack.c.b16 %v2920, %v2915
        %v3031 = vpack.c.b16 %v2926, %v2921
        %v3032 = vpack.c.b16 %v2927, %v2922
        %v3033 = vpack.c.b16 %v2928, %v2923
        %v3034 = vpack.c.b16 %v2929, %v2924
        %v3035 = vpack.c.b16 %v2930, %v2925
        %v3036 = vpack.c.b16 %v2936, %v2931
        %v3037 = vpack.c.b16 %v2937, %v2932
        %v3038 = vpack.c.b16 %v2938, %v2933
        %v3039 = vpack.c.b16 %v2939, %v2934
        %v3040 = vpack.c.b16 %v2940, %v2935
        %v3041 = vpack.c.b16 %v2946, %v2941
        %v3042 = vpack.c.b16 %v2947, %v2942
        %v3043 = vpack.c.b16 %v2948, %v2943
        %v3044 = vpack.c.b16 %v2949, %v2944
        %v3045 = vpack.c.b16 %v2950, %v2945
        %v3046 = vpack.c.b16 %v2956, %v2951
        %v3047 = vpack.c.b16 %v2957, %v2952
        %v3048 = vpack.c.b16 %v2958, %v2953
        %v3049 = vpack.c.b16 %v2959, %v2954
        %v3050 = vpack.c.b16 %v2960, %v2955
        %v3051 = vpack.c.b16 %v2966, %v2961
        %v3052 = vpack.c.b16 %v2967, %v2962
        %v3053 = vpack.c.b16 %v2968, %v2963
        %v3054 = vpack.c.b16 %v2969, %v2964
        %v3055 = vpack.c.b16 %v2970, %v2965
        %v3056 = vpack.c.b16 %v2976, %v2971
        %v3057 = vpack.c.b16 %v2977, %v2972
        %v3058 = vpack.c.b16 %v2978, %v2973
        %v3059 = vpack.c.b16 %v2979, %v2974
        %v3060 = vpack.c.b16 %v2980, %v2975
        %v3197 = vunpack.c.l.b16 %v2649
        %v3198 = vunpack.c.l.b16 %v2650
        %v3199 = vunpack.c.l.b16 %v2651
        %v3200 = vunpack.c.l.b16 %v2652
        %v3201 = vunpack.c.l.b16 %v2653
        %v3202 = vunpack.c.l.b16 %v2654
        %v3203 = vunpack.c.l.b16 %v2655
        %v3204 = vunpack.c.l.b16 %v2656
        %v3205 = vunpack.c.l.b16 %v2657
        %v3206 = vunpack.c.l.b16 %v2658
        %v3207 = vunpack.c.l.b16 %v2659
        %v3208 = vunpack.c.l.b16 %v2660
        %v3209 = vunpack.c.l.b16 %v2661
        %v3210 = vunpack.c.l.b16 %v2662
        %v3211 = vunpack.c.l.b16 %v2663
        %v3212 = vunpack.c.l.b16 %v2664
        %v3213 = vunpack.c.l.b16 %v2665
        %v3214 = vunpack.c.l.b16 %v2666
        %v3215 = vunpack.c.l.b16 %v2667
        %v3216 = vunpack.c.l.b16 %v2668
        %v3217 = vunpack.c.l.b16 %v2669
        %v3218 = vunpack.c.l.b16 %v2670
        %v3219 = vunpack.c.l.b16 %v2671
        %v3220 = vunpack.c.l.b16 %v2672
        %v3221 = vunpack.c.l.b16 %v2673
        %v3222 = vunpack.c.l.b16 %v2674
        %v3223 = vunpack.c.l.b16 %v2675
        %v3224 = vunpack.c.l.b16 %v2676
        %v3225 = vunpack.c.l.b16 %v2677
        %v3226 = vunpack.c.l.b16 %v2678
        %v3227 = vunpack.c.l.b16 %v2679
        %v3228 = vunpack.c.l.b16 %v2680
        %v3229 = vunpack.c.l.b16 %v2681
        %v3230 = vunpack.c.l.b16 %v2682
        %v3231 = vunpack.c.l.b16 %v2683
        %v3232 = vunpack.c.l.b16 %v2684
        %v3233 = vunpack.c.l.b16 %v2685
        %v3234 = vunpack.c.l.b16 %v2686
        %v3235 = vunpack.c.l.b16 %v2687
        %v3236 = vunpack.c.l.b16 %v2688
        %v3237 = vunpack.c.l.b16 %v2689
        %v3238 = vunpack.c.l.b16 %v2690
        %v3239 = vunpack.c.l.b16 %v2691
        %v3240 = vunpack.c.l.b16 %v2692
        %v3241 = vunpack.c.l.b16 %v2693
        %v3242 = vunpack.c.l.b16 %v2694
        %v3243 = vunpack.c.l.b16 %v2695
        %v3244 = vunpack.c.l.b16 %v2696
        %v3245 = vunpack.c.l.b16 %v2697
        %v3246 = vunpack.c.l.b16 %v2698
        %v3247 = vunpack.c.l.b16 %v2699
        %v3248 = vunpack.c.l.b16 %v2700
        %v3249 = vunpack.c.l.b16 %v2701
        %v3250 = vunpack.c.l.b16 %v2702
        %v3251 = vunpack.c.l.b16 %v2703
        %v3252 = vunpack.c.l.b16 %v2704
        %v3253 = vunpack.c.l.b16 %v2705
        %v3254 = vunpack.c.l.b16 %v2706
        %v3255 = vunpack.c.l.b16 %v2707
        %v3256 = vunpack.c.l.b16 %v2708
        %v3257 = vunpack.c.l.b16 %v2709
        %v3258 = vunpack.c.l.b16 %v2710
        %v3259 = vunpack.c.l.b16 %v2711
        %v3260 = vunpack.c.l.b16 %v2712
        %v3261 = vunpack.c.l.b16 %v2713
        %v3262 = vunpack.c.l.b16 %v2714
        %v3263 = vunpack.c.l.b16 %v2715
        %v3264 = vunpack.c.l.b16 %v2716
        %v3265 = vunpack.c.l.b16 %v2717
        %v3266 = vunpack.c.l.b16 %v2718
        %v3267 = vunpack.c.l.b16 %v2719
        %v3268 = vunpack.c.l.b16 %v2720
        %v3269 = vpack.c.b16 %v3198, %v3197
        %v3270 = vpack.c.b16 %v3200, %v3199
        %v3271 = vpack.c.b16 %v3202, %v3201
        %v3272 = vpack.c.b16 %v3204, %v3203
        %v3273 = vpack.c.b16 %v3206, %v3205
        %v3274 = vpack.c.b16 %v3208, %v3207
        %v3275 = vpack.c.b16 %v3210, %v3209
        %v3276 = vpack.c.b16 %v3212, %v3211
        %v3277 = vpack.c.b16 %v3214, %v3213
        %v3278 = vpack.c.b16 %v3216, %v3215
        %v3279 = vpack.c.b16 %v3218, %v3217
        %v3280 = vpack.c.b16 %v3220, %v3219
        %v3281 = vpack.c.b16 %v3222, %v3221
        %v3282 = vpack.c.b16 %v3224, %v3223
        %v3283 = vpack.c.b16 %v3226, %v3225
        %v3284 = vpack.c.b16 %v3228, %v3227
        %v3285 = vpack.c.b16 %v3230, %v3229
        %v3286 = vpack.c.b16 %v3232, %v3231
        %v3287 = vpack.c.b16 %v3234, %v3233
        %v3288 = vpack.c.b16 %v3236, %v3235
        %v3289 = vpack.c.b16 %v3238, %v3237
        %v3290 = vpack.c.b16 %v3240, %v3239
        %v3291 = vpack.c.b16 %v3242, %v3241
        %v3292 = vpack.c.b16 %v3244, %v3243
        %v3293 = vpack.c.b16 %v3246, %v3245
        %v3294 = vpack.c.b16 %v3248, %v3247
        %v3295 = vpack.c.b16 %v3250, %v3249
        %v3296 = vpack.c.b16 %v3252, %v3251
        %v3297 = vpack.c.b16 %v3254, %v3253
        %v3298 = vpack.c.b16 %v3256, %v3255
        %v3299 = vpack.c.b16 %v3258, %v3257
        %v3300 = vpack.c.b16 %v3260, %v3259
        %v3301 = vpack.c.b16 %v3262, %v3261
        %v3302 = vpack.c.b16 %v3264, %v3263
        %v3303 = vpack.c.b16 %v3266, %v3265
        %v3304 = vpack.c.b16 %v3268, %v3267
        %v3342 = vsel %vm347, %v2985, 0
        %v3345 = vsel %vm347, %v2990, 0
        %v3348 = vsel %vm347, %v2995, 0
        %v3351 = vsel %vm347, %v3000, 0
        %v3354 = vsel %vm347, %v3005, 0
        %v3357 = vsel %vm347, %v3010, 0
        %v3360 = vsel %vm347, %v3015, 0
        %v3363 = vsel %vm347, %v3020, 0
        %v3366 = vsel %vm347, %v3025, 0
        %v3369 = vsel %vm347, %v3030, 0
        %v3372 = vsel %vm347, %v3035, 0
        %v3375 = vsel %vm347, %v3040, 0
        %v3378 = vsel %vm347, %v3045, 0
        %v3381 = vsel %vm347, %v3050, 0
        %v3384 = vsel %vm347, %v3055, 0
        %v3387 = vsel %vm347, %v3060, 0
        %3389 = vmatpush.bf16.msra.mxu0 %v3276
        %3390 = vmatpush.bf16.msra.mxu0 %v3275
        %3391 = vmatpush.bf16.msra.mxu0 %v3274
        %3392 = vmatpush.bf16.msra.mxu0 %v3273
        %3393 = vmatpush.bf16.msra.mxu0 %v3272
        %3394 = vmatpush.bf16.msra.mxu0 %v3271
        %3395 = vmatpush.bf16.msra.mxu0 %v3270
        %3396 = vmatpush.bf16.msra.mxu0 %v3269
        %3397 = vmatmul.bf16.gmra.mxu0 %v2981
        %v3398 = vpop.f32.mrf.mxu0
        %v3399 = vadd.f32 %v2723, %v3398
        %v3400 = vpop.f32.mrf.mxu0
        %v3401 = vadd.f32 %v2723, %v3400
        %3402 = vmatmul.bf16.gmra.mxu0 %v2986
        %v3403 = vpop.f32.mrf.mxu0
        %v3404 = vadd.f32 %v2723, %v3403
        %v3405 = vpop.f32.mrf.mxu0
        %v3406 = vadd.f32 %v2723, %v3405
        %3407 = vmatmul.bf16.gmra.mxu0 %v2991
        %v3408 = vpop.f32.mrf.mxu0
        %v3409 = vadd.f32 %v2723, %v3408
        %v3410 = vpop.f32.mrf.mxu0
        %v3411 = vadd.f32 %v2723, %v3410
        %3412 = vmatmul.bf16.gmra.mxu0 %v2996
        %v3413 = vpop.f32.mrf.mxu0
        %v3414 = vadd.f32 %v2723, %v3413
        %v3415 = vpop.f32.mrf.mxu0
        %v3416 = vadd.f32 %v2723, %v3415
        %3417 = vmatmul.bf16.gmra.mxu0 %v3001
        %v3418 = vpop.f32.mrf.mxu0
        %v3419 = vadd.f32 %v2723, %v3418
        %v3420 = vpop.f32.mrf.mxu0
        %v3421 = vadd.f32 %v2723, %v3420
        %3422 = vmatmul.bf16.gmra.mxu0 %v3006
        %v3423 = vpop.f32.mrf.mxu0
        %v3424 = vadd.f32 %v2723, %v3423
        %v3425 = vpop.f32.mrf.mxu0
        %v3426 = vadd.f32 %v2723, %v3425
        %3427 = vmatmul.bf16.gmra.mxu0 %v3011
        %v3428 = vpop.f32.mrf.mxu0
        %v3429 = vadd.f32 %v2723, %v3428
        %v3430 = vpop.f32.mrf.mxu0
        %v3431 = vadd.f32 %v2723, %v3430
        %3432 = vmatmul.bf16.gmra.mxu0 %v3016
        %v3433 = vpop.f32.mrf.mxu0
        %v3434 = vadd.f32 %v2723, %v3433
        %v3435 = vpop.f32.mrf.mxu0
        %v3436 = vadd.f32 %v2723, %v3435
        %3437 = vmatmul.bf16.gmra.mxu0 %v3021
        %v3438 = vpop.f32.mrf.mxu0
        %v3439 = vadd.f32 %v2723, %v3438
        %v3440 = vpop.f32.mrf.mxu0
        %v3441 = vadd.f32 %v2723, %v3440
        %3442 = vmatmul.bf16.gmra.mxu0 %v3026
        %v3443 = vpop.f32.mrf.mxu0
        %v3444 = vadd.f32 %v2723, %v3443
        %v3445 = vpop.f32.mrf.mxu0
        %v3446 = vadd.f32 %v2723, %v3445
        %3447 = vmatmul.bf16.gmra.mxu0 %v3031
        %v3448 = vpop.f32.mrf.mxu0
        %v3449 = vadd.f32 %v2723, %v3448
        %v3450 = vpop.f32.mrf.mxu0
        %v3451 = vadd.f32 %v2723, %v3450
        %3452 = vmatmul.bf16.gmra.mxu0 %v3036
        %v3453 = vpop.f32.mrf.mxu0
        %v3454 = vadd.f32 %v2723, %v3453
        %v3455 = vpop.f32.mrf.mxu0
        %v3456 = vadd.f32 %v2723, %v3455
        %3457 = vmatmul.bf16.gmra.mxu0 %v3041
        %v3458 = vpop.f32.mrf.mxu0
        %v3459 = vadd.f32 %v2723, %v3458
        %v3460 = vpop.f32.mrf.mxu0
        %v3461 = vadd.f32 %v2723, %v3460
        %3462 = vmatmul.bf16.gmra.mxu0 %v3046
        %v3463 = vpop.f32.mrf.mxu0
        %v3464 = vadd.f32 %v2723, %v3463
        %v3465 = vpop.f32.mrf.mxu0
        %v3466 = vadd.f32 %v2723, %v3465
        %3467 = vmatmul.bf16.gmra.mxu0 %v3051
        %v3468 = vpop.f32.mrf.mxu0
        %v3469 = vadd.f32 %v2723, %v3468
        %v3470 = vpop.f32.mrf.mxu0
        %v3471 = vadd.f32 %v2723, %v3470
        %3472 = vmatmul.bf16.gmra.mxu0 %v3056
        %v3473 = vpop.f32.mrf.mxu0
        %v3474 = vadd.f32 %v2723, %v3473
        %v3475 = vpop.f32.mrf.mxu0
        %v3476 = vadd.f32 %v2723, %v3475
        %3477 = vdwg.mxu0
        %3478 = vmatpush.bf16.msra.mxu0 %v3284
        %3479 = vmatpush.bf16.msra.mxu0 %v3283
        %3480 = vmatpush.bf16.msra.mxu0 %v3282
        %3481 = vmatpush.bf16.msra.mxu0 %v3281
        %3482 = vmatpush.bf16.msra.mxu0 %v3280
        %3483 = vmatpush.bf16.msra.mxu0 %v3279
        %3484 = vmatpush.bf16.msra.mxu0 %v3278
        %3485 = vmatpush.bf16.msra.mxu0 %v3277
        %3486 = vmatmul.bf16.gmra.mxu0 %v2982
        %v3487 = vpop.f32.mrf.mxu0
        %v3488 = vadd.f32 %v3399, %v3487
        %v3489 = vpop.f32.mrf.mxu0
        %v3490 = vadd.f32 %v3401, %v3489
        %3491 = vmatmul.bf16.gmra.mxu0 %v2987
        %v3492 = vpop.f32.mrf.mxu0
        %v3493 = vadd.f32 %v3404, %v3492
        %v3494 = vpop.f32.mrf.mxu0
        %v3495 = vadd.f32 %v3406, %v3494
        %3496 = vmatmul.bf16.gmra.mxu0 %v2992
        %v3497 = vpop.f32.mrf.mxu0
        %v3498 = vadd.f32 %v3409, %v3497
        %v3499 = vpop.f32.mrf.mxu0
        %v3500 = vadd.f32 %v3411, %v3499
        %3501 = vmatmul.bf16.gmra.mxu0 %v2997
        %v3502 = vpop.f32.mrf.mxu0
        %v3503 = vadd.f32 %v3414, %v3502
        %v3504 = vpop.f32.mrf.mxu0
        %v3505 = vadd.f32 %v3416, %v3504
        %3506 = vmatmul.bf16.gmra.mxu0 %v3002
        %v3507 = vpop.f32.mrf.mxu0
        %v3508 = vadd.f32 %v3419, %v3507
        %v3509 = vpop.f32.mrf.mxu0
        %v3510 = vadd.f32 %v3421, %v3509
        %3511 = vmatmul.bf16.gmra.mxu0 %v3007
        %v3512 = vpop.f32.mrf.mxu0
        %v3513 = vadd.f32 %v3424, %v3512
        %v3514 = vpop.f32.mrf.mxu0
        %v3515 = vadd.f32 %v3426, %v3514
        %3516 = vmatmul.bf16.gmra.mxu0 %v3012
        %v3517 = vpop.f32.mrf.mxu0
        %v3518 = vadd.f32 %v3429, %v3517
        %v3519 = vpop.f32.mrf.mxu0
        %v3520 = vadd.f32 %v3431, %v3519
        %3521 = vmatmul.bf16.gmra.mxu0 %v3017
        %v3522 = vpop.f32.mrf.mxu0
        %v3523 = vadd.f32 %v3434, %v3522
        %v3524 = vpop.f32.mrf.mxu0
        %v3525 = vadd.f32 %v3436, %v3524
        %3526 = vmatmul.bf16.gmra.mxu0 %v3022
        %v3527 = vpop.f32.mrf.mxu0
        %v3528 = vadd.f32 %v3439, %v3527
        %v3529 = vpop.f32.mrf.mxu0
        %v3530 = vadd.f32 %v3441, %v3529
        %3531 = vmatmul.bf16.gmra.mxu0 %v3027
        %v3532 = vpop.f32.mrf.mxu0
        %v3533 = vadd.f32 %v3444, %v3532
        %v3534 = vpop.f32.mrf.mxu0
        %v3535 = vadd.f32 %v3446, %v3534
        %3536 = vmatmul.bf16.gmra.mxu0 %v3032
        %v3537 = vpop.f32.mrf.mxu0
        %v3538 = vadd.f32 %v3449, %v3537
        %v3539 = vpop.f32.mrf.mxu0
        %v3540 = vadd.f32 %v3451, %v3539
        %3541 = vmatmul.bf16.gmra.mxu0 %v3037
        %v3542 = vpop.f32.mrf.mxu0
        %v3543 = vadd.f32 %v3454, %v3542
        %v3544 = vpop.f32.mrf.mxu0
        %v3545 = vadd.f32 %v3456, %v3544
        %3546 = vmatmul.bf16.gmra.mxu0 %v3042
        %v3547 = vpop.f32.mrf.mxu0
        %v3548 = vadd.f32 %v3459, %v3547
        %v3549 = vpop.f32.mrf.mxu0
        %v3550 = vadd.f32 %v3461, %v3549
        %3551 = vmatmul.bf16.gmra.mxu0 %v3047
        %v3552 = vpop.f32.mrf.mxu0
        %v3553 = vadd.f32 %v3464, %v3552
        %v3554 = vpop.f32.mrf.mxu0
        %v3555 = vadd.f32 %v3466, %v3554
        %3556 = vmatmul.bf16.gmra.mxu0 %v3052
        %v3557 = vpop.f32.mrf.mxu0
        %v3558 = vadd.f32 %v3469, %v3557
        %v3559 = vpop.f32.mrf.mxu0
        %v3560 = vadd.f32 %v3471, %v3559
        %3561 = vmatmul.bf16.gmra.mxu0 %v3057
        %v3562 = vpop.f32.mrf.mxu0
        %v3563 = vadd.f32 %v3474, %v3562
        %v3564 = vpop.f32.mrf.mxu0
        %v3565 = vadd.f32 %v3476, %v3564
        %3566 = vdwg.mxu0
        %3567 = vmatpush.bf16.msra.mxu0 %v3292
        %3568 = vmatpush.bf16.msra.mxu0 %v3291
        %3569 = vmatpush.bf16.msra.mxu0 %v3290
        %3570 = vmatpush.bf16.msra.mxu0 %v3289
        %3571 = vmatpush.bf16.msra.mxu0 %v3288
        %3572 = vmatpush.bf16.msra.mxu0 %v3287
        %3573 = vmatpush.bf16.msra.mxu0 %v3286
        %3574 = vmatpush.bf16.msra.mxu0 %v3285
        %3575 = vmatmul.bf16.gmra.mxu0 %v2983
        %v3576 = vpop.f32.mrf.mxu0
        %v3577 = vadd.f32 %v3488, %v3576
        %v3578 = vpop.f32.mrf.mxu0
        %v3579 = vadd.f32 %v3490, %v3578
        %3580 = vmatmul.bf16.gmra.mxu0 %v2988
        %v3581 = vpop.f32.mrf.mxu0
        %v3582 = vadd.f32 %v3493, %v3581
        %v3583 = vpop.f32.mrf.mxu0
        %v3584 = vadd.f32 %v3495, %v3583
        %3585 = vmatmul.bf16.gmra.mxu0 %v2993
        %v3586 = vpop.f32.mrf.mxu0
        %v3587 = vadd.f32 %v3498, %v3586
        %v3588 = vpop.f32.mrf.mxu0
        %v3589 = vadd.f32 %v3500, %v3588
        %3590 = vmatmul.bf16.gmra.mxu0 %v2998
        %v3591 = vpop.f32.mrf.mxu0
        %v3592 = vadd.f32 %v3503, %v3591
        %v3593 = vpop.f32.mrf.mxu0
        %v3594 = vadd.f32 %v3505, %v3593
        %3595 = vmatmul.bf16.gmra.mxu0 %v3003
        %v3596 = vpop.f32.mrf.mxu0
        %v3597 = vadd.f32 %v3508, %v3596
        %v3598 = vpop.f32.mrf.mxu0
        %v3599 = vadd.f32 %v3510, %v3598
        %3600 = vmatmul.bf16.gmra.mxu0 %v3008
        %v3601 = vpop.f32.mrf.mxu0
        %v3602 = vadd.f32 %v3513, %v3601
        %v3603 = vpop.f32.mrf.mxu0
        %v3604 = vadd.f32 %v3515, %v3603
        %3605 = vmatmul.bf16.gmra.mxu0 %v3013
        %v3606 = vpop.f32.mrf.mxu0
        %v3607 = vadd.f32 %v3518, %v3606
        %v3608 = vpop.f32.mrf.mxu0
        %v3609 = vadd.f32 %v3520, %v3608
        %3610 = vmatmul.bf16.gmra.mxu0 %v3018
        %v3611 = vpop.f32.mrf.mxu0
        %v3612 = vadd.f32 %v3523, %v3611
        %v3613 = vpop.f32.mrf.mxu0
        %v3614 = vadd.f32 %v3525, %v3613
        %3615 = vmatmul.bf16.gmra.mxu0 %v3023
        %v3616 = vpop.f32.mrf.mxu0
        %v3617 = vadd.f32 %v3528, %v3616
        %v3618 = vpop.f32.mrf.mxu0
        %v3619 = vadd.f32 %v3530, %v3618
        %3620 = vmatmul.bf16.gmra.mxu0 %v3028
        %v3621 = vpop.f32.mrf.mxu0
        %v3622 = vadd.f32 %v3533, %v3621
        %v3623 = vpop.f32.mrf.mxu0
        %v3624 = vadd.f32 %v3535, %v3623
        %3625 = vmatmul.bf16.gmra.mxu0 %v3033
        %v3626 = vpop.f32.mrf.mxu0
        %v3627 = vadd.f32 %v3538, %v3626
        %v3628 = vpop.f32.mrf.mxu0
        %v3629 = vadd.f32 %v3540, %v3628
        %3630 = vmatmul.bf16.gmra.mxu0 %v3038
        %v3631 = vpop.f32.mrf.mxu0
        %v3632 = vadd.f32 %v3543, %v3631
        %v3633 = vpop.f32.mrf.mxu0
        %v3634 = vadd.f32 %v3545, %v3633
        %3635 = vmatmul.bf16.gmra.mxu0 %v3043
        %v3636 = vpop.f32.mrf.mxu0
        %v3637 = vadd.f32 %v3548, %v3636
        %v3638 = vpop.f32.mrf.mxu0
        %v3639 = vadd.f32 %v3550, %v3638
        %3640 = vmatmul.bf16.gmra.mxu0 %v3048
        %v3641 = vpop.f32.mrf.mxu0
        %v3642 = vadd.f32 %v3553, %v3641
        %v3643 = vpop.f32.mrf.mxu0
        %v3644 = vadd.f32 %v3555, %v3643
        %3645 = vmatmul.bf16.gmra.mxu0 %v3053
        %v3646 = vpop.f32.mrf.mxu0
        %v3647 = vadd.f32 %v3558, %v3646
        %v3648 = vpop.f32.mrf.mxu0
        %v3649 = vadd.f32 %v3560, %v3648
        %3650 = vmatmul.bf16.gmra.mxu0 %v3058
        %v3651 = vpop.f32.mrf.mxu0
        %v3652 = vadd.f32 %v3563, %v3651
        %v3653 = vpop.f32.mrf.mxu0
        %v3654 = vadd.f32 %v3565, %v3653
        %3655 = vdwg.mxu0
        %3656 = vmatpush.bf16.msra.mxu0 %v3300
        %3657 = vmatpush.bf16.msra.mxu0 %v3299
        %3658 = vmatpush.bf16.msra.mxu0 %v3298
        %3659 = vmatpush.bf16.msra.mxu0 %v3297
        %3660 = vmatpush.bf16.msra.mxu0 %v3296
        %3661 = vmatpush.bf16.msra.mxu0 %v3295
        %3662 = vmatpush.bf16.msra.mxu0 %v3294
        %3663 = vmatpush.bf16.msra.mxu0 %v3293
        %3664 = vmatmul.bf16.gmra.mxu0 %v2984
        %v3665 = vpop.f32.mrf.mxu0
        %v3666 = vadd.f32 %v3577, %v3665
        %v3667 = vpop.f32.mrf.mxu0
        %v3668 = vadd.f32 %v3579, %v3667
        %3669 = vmatmul.bf16.gmra.mxu0 %v2989
        %v3670 = vpop.f32.mrf.mxu0
        %v3671 = vadd.f32 %v3582, %v3670
        %v3672 = vpop.f32.mrf.mxu0
        %v3673 = vadd.f32 %v3584, %v3672
        %3674 = vmatmul.bf16.gmra.mxu0 %v2994
        %v3675 = vpop.f32.mrf.mxu0
        %v3676 = vadd.f32 %v3587, %v3675
        %v3677 = vpop.f32.mrf.mxu0
        %v3678 = vadd.f32 %v3589, %v3677
        %3679 = vmatmul.bf16.gmra.mxu0 %v2999
        %v3680 = vpop.f32.mrf.mxu0
        %v3681 = vadd.f32 %v3592, %v3680
        %v3682 = vpop.f32.mrf.mxu0
        %v3683 = vadd.f32 %v3594, %v3682
        %3684 = vmatmul.bf16.gmra.mxu0 %v3004
        %v3685 = vpop.f32.mrf.mxu0
        %v3686 = vadd.f32 %v3597, %v3685
        %v3687 = vpop.f32.mrf.mxu0
        %v3688 = vadd.f32 %v3599, %v3687
        %3689 = vmatmul.bf16.gmra.mxu0 %v3009
        %v3690 = vpop.f32.mrf.mxu0
        %v3691 = vadd.f32 %v3602, %v3690
        %v3692 = vpop.f32.mrf.mxu0
        %v3693 = vadd.f32 %v3604, %v3692
        %3694 = vmatmul.bf16.gmra.mxu0 %v3014
        %v3695 = vpop.f32.mrf.mxu0
        %v3696 = vadd.f32 %v3607, %v3695
        %v3697 = vpop.f32.mrf.mxu0
        %v3698 = vadd.f32 %v3609, %v3697
        %3699 = vmatmul.bf16.gmra.mxu0 %v3019
        %v3700 = vpop.f32.mrf.mxu0
        %v3701 = vadd.f32 %v3612, %v3700
        %v3702 = vpop.f32.mrf.mxu0
        %v3703 = vadd.f32 %v3614, %v3702
        %3704 = vmatmul.bf16.gmra.mxu0 %v3024
        %v3705 = vpop.f32.mrf.mxu0
        %v3706 = vadd.f32 %v3617, %v3705
        %v3707 = vpop.f32.mrf.mxu0
        %v3708 = vadd.f32 %v3619, %v3707
        %3709 = vmatmul.bf16.gmra.mxu0 %v3029
        %v3710 = vpop.f32.mrf.mxu0
        %v3711 = vadd.f32 %v3622, %v3710
        %v3712 = vpop.f32.mrf.mxu0
        %v3713 = vadd.f32 %v3624, %v3712
        %3714 = vmatmul.bf16.gmra.mxu0 %v3034
        %v3715 = vpop.f32.mrf.mxu0
        %v3716 = vadd.f32 %v3627, %v3715
        %v3717 = vpop.f32.mrf.mxu0
        %v3718 = vadd.f32 %v3629, %v3717
        %3719 = vmatmul.bf16.gmra.mxu0 %v3039
        %v3720 = vpop.f32.mrf.mxu0
        %v3721 = vadd.f32 %v3632, %v3720
        %v3722 = vpop.f32.mrf.mxu0
        %v3723 = vadd.f32 %v3634, %v3722
        %3724 = vmatmul.bf16.gmra.mxu0 %v3044
        %v3725 = vpop.f32.mrf.mxu0
        %v3726 = vadd.f32 %v3637, %v3725
        %v3727 = vpop.f32.mrf.mxu0
        %v3728 = vadd.f32 %v3639, %v3727
        %3729 = vmatmul.bf16.gmra.mxu0 %v3049
        %v3730 = vpop.f32.mrf.mxu0
        %v3731 = vadd.f32 %v3642, %v3730
        %v3732 = vpop.f32.mrf.mxu0
        %v3733 = vadd.f32 %v3644, %v3732
        %3734 = vmatmul.bf16.gmra.mxu0 %v3054
        %v3735 = vpop.f32.mrf.mxu0
        %v3736 = vadd.f32 %v3647, %v3735
        %v3737 = vpop.f32.mrf.mxu0
        %v3738 = vadd.f32 %v3649, %v3737
        %3739 = vmatmul.bf16.gmra.mxu0 %v3059
        %v3740 = vpop.f32.mrf.mxu0
        %v3741 = vadd.f32 %v3652, %v3740
        %v3742 = vpop.f32.mrf.mxu0
        %v3743 = vadd.f32 %v3654, %v3742
        %3744 = vdwg.mxu0
        %3745 = vmatpush.bf16.msra.mxu0 0
        %3746 = vmatpush.bf16.msra.mxu0 0
        %3747 = vmatpush.bf16.msra.mxu0 0
        %3748 = vmatpush.bf16.msra.mxu0 0
        %3749 = vmatpush.bf16.msra.mxu0 %v3304
        %3750 = vmatpush.bf16.msra.mxu0 %v3303
        %3751 = vmatpush.bf16.msra.mxu0 %v3302
        %3752 = vmatpush.bf16.msra.mxu0 %v3301
        %3753 = vmatmul.bf16.gmra.mxu0 %v3342
        %v3754 = vpop.f32.mrf.mxu0
        %v3755 = vadd.f32 %v3666, %v3754
        %v3756 = vpop.f32.mrf.mxu0
        %v3757 = vadd.f32 %v3668, %v3756
        %3758 = vmatmul.bf16.gmra.mxu0 %v3345
        %v3759 = vpop.f32.mrf.mxu0
        %v3760 = vadd.f32 %v3671, %v3759
        %v3761 = vpop.f32.mrf.mxu0
        %v3762 = vadd.f32 %v3673, %v3761
        %3763 = vmatmul.bf16.gmra.mxu0 %v3348
        %v3764 = vpop.f32.mrf.mxu0
        %v3765 = vadd.f32 %v3676, %v3764
        %v3766 = vpop.f32.mrf.mxu0
        %v3767 = vadd.f32 %v3678, %v3766
        %3768 = vmatmul.bf16.gmra.mxu0 %v3351
        %v3769 = vpop.f32.mrf.mxu0
        %v3770 = vadd.f32 %v3681, %v3769
        %v3771 = vpop.f32.mrf.mxu0
        %v3772 = vadd.f32 %v3683, %v3771
        %3773 = vmatmul.bf16.gmra.mxu0 %v3354
        %v3774 = vpop.f32.mrf.mxu0
        %v3775 = vadd.f32 %v3686, %v3774
        %v3776 = vpop.f32.mrf.mxu0
        %v3777 = vadd.f32 %v3688, %v3776
        %3778 = vmatmul.bf16.gmra.mxu0 %v3357
        %v3779 = vpop.f32.mrf.mxu0
        %v3780 = vadd.f32 %v3691, %v3779
        %v3781 = vpop.f32.mrf.mxu0
        %v3782 = vadd.f32 %v3693, %v3781
        %3783 = vmatmul.bf16.gmra.mxu0 %v3360
        %v3784 = vpop.f32.mrf.mxu0
        %v3785 = vadd.f32 %v3696, %v3784
        %v3786 = vpop.f32.mrf.mxu0
        %v3787 = vadd.f32 %v3698, %v3786
        %3788 = vmatmul.bf16.gmra.mxu0 %v3363
        %v3789 = vpop.f32.mrf.mxu0
        %v3790 = vadd.f32 %v3701, %v3789
        %v3791 = vpop.f32.mrf.mxu0
        %v3792 = vadd.f32 %v3703, %v3791
        %3793 = vmatmul.bf16.gmra.mxu0 %v3366
        %v3794 = vpop.f32.mrf.mxu0
        %v3795 = vadd.f32 %v3706, %v3794
        %v3796 = vpop.f32.mrf.mxu0
        %v3797 = vadd.f32 %v3708, %v3796
        %3798 = vmatmul.bf16.gmra.mxu0 %v3369
        %v3799 = vpop.f32.mrf.mxu0
        %v3800 = vadd.f32 %v3711, %v3799
        %v3801 = vpop.f32.mrf.mxu0
        %v3802 = vadd.f32 %v3713, %v3801
        %3803 = vmatmul.bf16.gmra.mxu0 %v3372
        %v3804 = vpop.f32.mrf.mxu0
        %v3805 = vadd.f32 %v3716, %v3804
        %v3806 = vpop.f32.mrf.mxu0
        %v3807 = vadd.f32 %v3718, %v3806
        %3808 = vmatmul.bf16.gmra.mxu0 %v3375
        %v3809 = vpop.f32.mrf.mxu0
        %v3810 = vadd.f32 %v3721, %v3809
        %v3811 = vpop.f32.mrf.mxu0
        %v3812 = vadd.f32 %v3723, %v3811
        %3813 = vmatmul.bf16.gmra.mxu0 %v3378
        %v3814 = vpop.f32.mrf.mxu0
        %v3815 = vadd.f32 %v3726, %v3814
        %v3816 = vpop.f32.mrf.mxu0
        %v3817 = vadd.f32 %v3728, %v3816
        %3818 = vmatmul.bf16.gmra.mxu0 %v3381
        %v3819 = vpop.f32.mrf.mxu0
        %v3820 = vadd.f32 %v3731, %v3819
        %v3821 = vpop.f32.mrf.mxu0
        %v3822 = vadd.f32 %v3733, %v3821
        %3823 = vmatmul.bf16.gmra.mxu0 %v3384
        %v3824 = vpop.f32.mrf.mxu0
        %v3825 = vadd.f32 %v3736, %v3824
        %v3826 = vpop.f32.mrf.mxu0
        %v3827 = vadd.f32 %v3738, %v3826
        %3828 = vmatmul.bf16.gmra.mxu0 %v3387
        %v3829 = vpop.f32.mrf.mxu0
        %v3830 = vadd.f32 %v3741, %v3829
        %v3831 = vpop.f32.mrf.mxu0
        %v3832 = vadd.f32 %v3743, %v3831
        %3833 = vdwg.mxu0
        %v3834 = vmax.f32 %v3755, 0.0
        %v3835 = vmax.f32 %v3757, 0.0
        %v3836 = vmax.f32 %v3760, 0.0
        %v3837 = vmax.f32 %v3762, 0.0
        %v3838 = vmax.f32 %v3765, 0.0
        %v3839 = vmax.f32 %v3767, 0.0
        %v3840 = vmax.f32 %v3770, 0.0
        %v3841 = vmax.f32 %v3772, 0.0
        %v3842 = vmax.f32 %v3775, 0.0
        %v3843 = vmax.f32 %v3777, 0.0
        %v3844 = vmax.f32 %v3780, 0.0
        %v3845 = vmax.f32 %v3782, 0.0
        %v3846 = vmax.f32 %v3785, 0.0
        %v3847 = vmax.f32 %v3787, 0.0
        %v3848 = vmax.f32 %v3790, 0.0
        %v3849 = vmax.f32 %v3792, 0.0
        %v3850 = vmax.f32 %v3795, 0.0
        %v3851 = vmax.f32 %v3797, 0.0
        %v3852 = vmax.f32 %v3800, 0.0
        %v3853 = vmax.f32 %v3802, 0.0
        %v3854 = vmax.f32 %v3805, 0.0
        %v3855 = vmax.f32 %v3807, 0.0
        %v3856 = vmax.f32 %v3810, 0.0
        %v3857 = vmax.f32 %v3812, 0.0
        %v3858 = vmax.f32 %v3815, 0.0
        %v3859 = vmax.f32 %v3817, 0.0
        %v3860 = vmax.f32 %v3820, 0.0
        %v3861 = vmax.f32 %v3822, 0.0
        %v3862 = vmax.f32 %v3825, 0.0
        %v3863 = vmax.f32 %v3827, 0.0
        %v3864 = vmax.f32 %v3830, 0.0
        %v3865 = vmax.f32 %v3832, 0.0
        %s3866 = scalar_lea.vmem %s2, 16
        %v3867 = vld [vmem:[%s3866] sm:$0xf]
        %v3868 = vld [vmem:[%s3866 + $0x4] sm:$0xf]
        %v3869 = vld [vmem:[%s3866 + $0x8] sm:$0xf]
        %v3870 = vld [vmem:[%s3866 + $0xc] sm:$0xf]
        %s3871 = scalar_lea.vmem %s3, 1
        %v3872 = vld [vmem:[%s3871] sm:$0x1]
        %v3874 = vperm.slane %v3872, 0
        %v3880 = vunpack.c.l.b16 %v3867
        %v3881 = vunpack.c.l.b16 %v3868
        %v3882 = vunpack.c.l.b16 %v3869
        %v3883 = vunpack.c.l.b16 %v3870
        %v3884 = vpack.c.b16 %v3881, %v3880
        %v3885 = vpack.c.b16 %v3883, %v3882
        %3888 = vmatpush.bf16.msra.mxu0 0
        %3889 = vmatpush.bf16.msra.mxu0 0
        %3890 = vmatpush.bf16.msra.mxu0 0
        %3891 = vmatpush.bf16.msra.mxu0 0
        %3892 = vmatpush.bf16.msra.mxu0 0
        %3893 = vmatpush.bf16.msra.mxu0 0
        %3894 = vmatpush.bf16.msra.mxu0 %v3885
        %3895 = vmatpush.bf16.msra.mxu0 %v3884
        %3896 = vmatmul.bf16.gmra.mxu0 %v496
        %v3897 = vpop.f32.mrf.mxu0
        %v3898 = vadd.f32 %v3874, %v3897
        %v3899 = vpop.f32.mrf.mxu0
        %v3900 = vadd.f32 %v3874, %v3899
        %3901 = vmatmul.bf16.gmra.mxu0 %v499
        %v3902 = vpop.f32.mrf.mxu0
        %v3903 = vadd.f32 %v3874, %v3902
        %v3904 = vpop.f32.mrf.mxu0
        %v3905 = vadd.f32 %v3874, %v3904
        %3906 = vmatmul.bf16.gmra.mxu0 %v502
        %v3907 = vpop.f32.mrf.mxu0
        %v3908 = vadd.f32 %v3874, %v3907
        %v3909 = vpop.f32.mrf.mxu0
        %v3910 = vadd.f32 %v3874, %v3909
        %3911 = vmatmul.bf16.gmra.mxu0 %v505
        %v3912 = vpop.f32.mrf.mxu0
        %v3913 = vadd.f32 %v3874, %v3912
        %v3914 = vpop.f32.mrf.mxu0
        %v3915 = vadd.f32 %v3874, %v3914
        %3916 = vmatmul.bf16.gmra.mxu0 %v508
        %v3917 = vpop.f32.mrf.mxu0
        %v3918 = vadd.f32 %v3874, %v3917
        %v3919 = vpop.f32.mrf.mxu0
        %v3920 = vadd.f32 %v3874, %v3919
        %3921 = vmatmul.bf16.gmra.mxu0 %v511
        %v3922 = vpop.f32.mrf.mxu0
        %v3923 = vadd.f32 %v3874, %v3922
        %v3924 = vpop.f32.mrf.mxu0
        %v3925 = vadd.f32 %v3874, %v3924
        %3926 = vmatmul.bf16.gmra.mxu0 %v514
        %v3927 = vpop.f32.mrf.mxu0
        %v3928 = vadd.f32 %v3874, %v3927
        %v3929 = vpop.f32.mrf.mxu0
        %v3930 = vadd.f32 %v3874, %v3929
        %3931 = vmatmul.bf16.gmra.mxu0 %v517
        %v3932 = vpop.f32.mrf.mxu0
        %v3933 = vadd.f32 %v3874, %v3932
        %v3934 = vpop.f32.mrf.mxu0
        %v3935 = vadd.f32 %v3874, %v3934
        %3936 = vmatmul.bf16.gmra.mxu0 %v520
        %v3937 = vpop.f32.mrf.mxu0
        %v3938 = vadd.f32 %v3874, %v3937
        %v3939 = vpop.f32.mrf.mxu0
        %v3940 = vadd.f32 %v3874, %v3939
        %3941 = vmatmul.bf16.gmra.mxu0 %v523
        %v3942 = vpop.f32.mrf.mxu0
        %v3943 = vadd.f32 %v3874, %v3942
        %v3944 = vpop.f32.mrf.mxu0
        %v3945 = vadd.f32 %v3874, %v3944
        %3946 = vmatmul.bf16.gmra.mxu0 %v526
        %v3947 = vpop.f32.mrf.mxu0
        %v3948 = vadd.f32 %v3874, %v3947
        %v3949 = vpop.f32.mrf.mxu0
        %v3950 = vadd.f32 %v3874, %v3949
        %3951 = vmatmul.bf16.gmra.mxu0 %v529
        %v3952 = vpop.f32.mrf.mxu0
        %v3953 = vadd.f32 %v3874, %v3952
        %v3954 = vpop.f32.mrf.mxu0
        %v3955 = vadd.f32 %v3874, %v3954
        %3956 = vmatmul.bf16.gmra.mxu0 %v532
        %v3957 = vpop.f32.mrf.mxu0
        %v3958 = vadd.f32 %v3874, %v3957
        %v3959 = vpop.f32.mrf.mxu0
        %v3960 = vadd.f32 %v3874, %v3959
        %3961 = vmatmul.bf16.gmra.mxu0 %v535
        %v3962 = vpop.f32.mrf.mxu0
        %v3963 = vadd.f32 %v3874, %v3962
        %v3964 = vpop.f32.mrf.mxu0
        %v3965 = vadd.f32 %v3874, %v3964
        %3966 = vmatmul.bf16.gmra.mxu0 %v538
        %v3967 = vpop.f32.mrf.mxu0
        %v3968 = vadd.f32 %v3874, %v3967
        %v3969 = vpop.f32.mrf.mxu0
        %v3970 = vadd.f32 %v3874, %v3969
        %3971 = vmatmul.bf16.gmra.mxu0 %v541
        %v3972 = vpop.f32.mrf.mxu0
        %v3973 = vadd.f32 %v3874, %v3972
        %v3974 = vpop.f32.mrf.mxu0
        %v3975 = vadd.f32 %v3874, %v3974
        %3976 = vdwg.mxu0
        %vm3977 = vcmp.gt.f32.partialorder %v3898, 0.0
        %vm3978 = vcmp.gt.f32.partialorder %v3900, 0.0
        %vm3979 = vcmp.gt.f32.partialorder %v3903, 0.0
        %vm3980 = vcmp.gt.f32.partialorder %v3905, 0.0
        %vm3981 = vcmp.gt.f32.partialorder %v3908, 0.0
        %vm3982 = vcmp.gt.f32.partialorder %v3910, 0.0
        %vm3983 = vcmp.gt.f32.partialorder %v3913, 0.0
        %vm3984 = vcmp.gt.f32.partialorder %v3915, 0.0
        %vm3985 = vcmp.gt.f32.partialorder %v3918, 0.0
        %vm3986 = vcmp.gt.f32.partialorder %v3920, 0.0
        %vm3987 = vcmp.gt.f32.partialorder %v3923, 0.0
        %vm3988 = vcmp.gt.f32.partialorder %v3925, 0.0
        %vm3989 = vcmp.gt.f32.partialorder %v3928, 0.0
        %vm3990 = vcmp.gt.f32.partialorder %v3930, 0.0
        %vm3991 = vcmp.gt.f32.partialorder %v3933, 0.0
        %vm3992 = vcmp.gt.f32.partialorder %v3935, 0.0
        %vm3993 = vcmp.gt.f32.partialorder %v3938, 0.0
        %vm3994 = vcmp.gt.f32.partialorder %v3940, 0.0
        %vm3995 = vcmp.gt.f32.partialorder %v3943, 0.0
        %vm3996 = vcmp.gt.f32.partialorder %v3945, 0.0
        %vm3997 = vcmp.gt.f32.partialorder %v3948, 0.0
        %vm3998 = vcmp.gt.f32.partialorder %v3950, 0.0
        %vm3999 = vcmp.gt.f32.partialorder %v3953, 0.0
        %vm4000 = vcmp.gt.f32.partialorder %v3955, 0.0
        %vm4001 = vcmp.gt.f32.partialorder %v3958, 0.0
        %vm4002 = vcmp.gt.f32.partialorder %v3960, 0.0
        %vm4003 = vcmp.gt.f32.partialorder %v3963, 0.0
        %vm4004 = vcmp.gt.f32.partialorder %v3965, 0.0
        %vm4005 = vcmp.gt.f32.partialorder %v3968, 0.0
        %vm4006 = vcmp.gt.f32.partialorder %v3970, 0.0
        %vm4007 = vcmp.gt.f32.partialorder %v3973, 0.0
        %vm4008 = vcmp.gt.f32.partialorder %v3975, 0.0
        %v4009 = vmul.f32 %v3898, 0.1
        %v4010 = vmul.f32 %v3900, 0.1
        %v4011 = vmul.f32 %v3903, 0.1
        %v4012 = vmul.f32 %v3905, 0.1
        %v4013 = vmul.f32 %v3908, 0.1
        %v4014 = vmul.f32 %v3910, 0.1
        %v4015 = vmul.f32 %v3913, 0.1
        %v4016 = vmul.f32 %v3915, 0.1
        %v4017 = vmul.f32 %v3918, 0.1
        %v4018 = vmul.f32 %v3920, 0.1
        %v4019 = vmul.f32 %v3923, 0.1
        %v4020 = vmul.f32 %v3925, 0.1
        %v4021 = vmul.f32 %v3928, 0.1
        %v4022 = vmul.f32 %v3930, 0.1
        %v4023 = vmul.f32 %v3933, 0.1
        %v4024 = vmul.f32 %v3935, 0.1
        %v4025 = vmul.f32 %v3938, 0.1
        %v4026 = vmul.f32 %v3940, 0.1
        %v4027 = vmul.f32 %v3943, 0.1
        %v4028 = vmul.f32 %v3945, 0.1
        %v4029 = vmul.f32 %v3948, 0.1
        %v4030 = vmul.f32 %v3950, 0.1
        %v4031 = vmul.f32 %v3953, 0.1
        %v4032 = vmul.f32 %v3955, 0.1
        %v4033 = vmul.f32 %v3958, 0.1
        %v4034 = vmul.f32 %v3960, 0.1
        %v4035 = vmul.f32 %v3963, 0.1
        %v4036 = vmul.f32 %v3965, 0.1
        %v4037 = vmul.f32 %v3968, 0.1
        %v4038 = vmul.f32 %v3970, 0.1
        %v4039 = vmul.f32 %v3973, 0.1
        %v4040 = vmul.f32 %v3975, 0.1
        %v4041 = vsel %vm3977, %v3898, %v4009
        %v4042 = vsel %vm3978, %v3900, %v4010
        %v4043 = vsel %vm3979, %v3903, %v4011
        %v4044 = vsel %vm3980, %v3905, %v4012
        %v4045 = vsel %vm3981, %v3908, %v4013
        %v4046 = vsel %vm3982, %v3910, %v4014
        %v4047 = vsel %vm3983, %v3913, %v4015
        %v4048 = vsel %vm3984, %v3915, %v4016
        %v4049 = vsel %vm3985, %v3918, %v4017
        %v4050 = vsel %vm3986, %v3920, %v4018
        %v4051 = vsel %vm3987, %v3923, %v4019
        %v4052 = vsel %vm3988, %v3925, %v4020
        %v4053 = vsel %vm3989, %v3928, %v4021
        %v4054 = vsel %vm3990, %v3930, %v4022
        %v4055 = vsel %vm3991, %v3933, %v4023
        %v4056 = vsel %vm3992, %v3935, %v4024
        %v4057 = vsel %vm3993, %v3938, %v4025
        %v4058 = vsel %vm3994, %v3940, %v4026
        %v4059 = vsel %vm3995, %v3943, %v4027
        %v4060 = vsel %vm3996, %v3945, %v4028
        %v4061 = vsel %vm3997, %v3948, %v4029
        %v4062 = vsel %vm3998, %v3950, %v4030
        %v4063 = vsel %vm3999, %v3953, %v4031
        %v4064 = vsel %vm4000, %v3955, %v4032
        %v4065 = vsel %vm4001, %v3958, %v4033
        %v4066 = vsel %vm4002, %v3960, %v4034
        %v4067 = vsel %vm4003, %v3963, %v4035
        %v4068 = vsel %vm4004, %v3965, %v4036
        %v4069 = vsel %vm4005, %v3968, %v4037
        %v4070 = vsel %vm4006, %v3970, %v4038
        %v4071 = vsel %vm4007, %v3973, %v4039
        %v4072 = vsel %vm4008, %v3975, %v4040
        %v4073 = vpack.c.bf16 %v4042, %v4041
        %v4074 = vpack.c.bf16 %v4044, %v4043
        %v4075 = vpack.c.bf16 %v4046, %v4045
        %v4076 = vpack.c.bf16 %v4048, %v4047
        %v4077 = vpack.c.bf16 %v4050, %v4049
        %v4078 = vpack.c.bf16 %v4052, %v4051
        %v4079 = vpack.c.bf16 %v4054, %v4053
        %v4080 = vpack.c.bf16 %v4056, %v4055
        %v4081 = vpack.c.bf16 %v4058, %v4057
        %v4082 = vpack.c.bf16 %v4060, %v4059
        %v4083 = vpack.c.bf16 %v4062, %v4061
        %v4084 = vpack.c.bf16 %v4064, %v4063
        %v4085 = vpack.c.bf16 %v4066, %v4065
        %v4086 = vpack.c.bf16 %v4068, %v4067
        %v4087 = vpack.c.bf16 %v4070, %v4069
        %v4088 = vpack.c.bf16 %v4072, %v4071
        %s4089 = scalar_lea.vmem %s4, 32
        %v4090 = vld [vmem:[%s4089] sm:$0xf]
        %v4091 = vld [vmem:[%s4089 + $0x4] sm:$0xf]
        %v4092 = vld [vmem:[%s4089 + $0x8] sm:$0xf]
        %v4093 = vld [vmem:[%s4089 + $0xc] sm:$0xf]
        %v4094 = vld [vmem:[%s4089 + $0x10] sm:$0xf]
        %v4095 = vld [vmem:[%s4089 + $0x14] sm:$0xf]
        %v4096 = vld [vmem:[%s4089 + $0x18] sm:$0xf]
        %v4097 = vld [vmem:[%s4089 + $0x1c] sm:$0xf]
        %s4098 = scalar_lea.vmem %s5, 1
        %v4099 = vld [vmem:[%s4098] sm:$0x1]
        %v4101 = vperm.slane %v4099, 0
        %v4111 = vunpack.c.l.b16 %v4090
        %v4112 = vunpack.c.l.b16 %v4091
        %v4113 = vunpack.c.l.b16 %v4092
        %v4114 = vunpack.c.l.b16 %v4093
        %v4115 = vunpack.c.l.b16 %v4094
        %v4116 = vunpack.c.l.b16 %v4095
        %v4117 = vunpack.c.l.b16 %v4096
        %v4118 = vunpack.c.l.b16 %v4097
        %v4119 = vpack.c.b16 %v4112, %v4111
        %v4120 = vpack.c.b16 %v4114, %v4113
        %v4121 = vpack.c.b16 %v4116, %v4115
        %v4122 = vpack.c.b16 %v4118, %v4117
        %v4128 = vsel %vm347, %v4073, 0
        %v4131 = vsel %vm347, %v4074, 0
        %v4134 = vsel %vm347, %v4075, 0
        %v4137 = vsel %vm347, %v4076, 0
        %v4140 = vsel %vm347, %v4077, 0
        %v4143 = vsel %vm347, %v4078, 0
        %v4146 = vsel %vm347, %v4079, 0
        %v4149 = vsel %vm347, %v4080, 0
        %v4152 = vsel %vm347, %v4081, 0
        %v4155 = vsel %vm347, %v4082, 0
        %v4158 = vsel %vm347, %v4083, 0
        %v4161 = vsel %vm347, %v4084, 0
        %v4164 = vsel %vm347, %v4085, 0
        %v4167 = vsel %vm347, %v4086, 0
        %v4170 = vsel %vm347, %v4087, 0
        %v4173 = vsel %vm347, %v4088, 0
        %4175 = vmatpush.bf16.msra.mxu0 0
        %4176 = vmatpush.bf16.msra.mxu0 0
        %4177 = vmatpush.bf16.msra.mxu0 0
        %4178 = vmatpush.bf16.msra.mxu0 0
        %4179 = vmatpush.bf16.msra.mxu0 %v4122
        %4180 = vmatpush.bf16.msra.mxu0 %v4121
        %4181 = vmatpush.bf16.msra.mxu0 %v4120
        %4182 = vmatpush.bf16.msra.mxu0 %v4119
        %4183 = vmatmul.bf16.gmra.mxu0 %v4128
        %v4184 = vpop.f32.mrf.mxu0
        %v4185 = vadd.f32 %v4101, %v4184
        %v4186 = vpop.f32.mrf.mxu0
        %v4187 = vadd.f32 %v4101, %v4186
        %4188 = vmatmul.bf16.gmra.mxu0 %v4131
        %v4189 = vpop.f32.mrf.mxu0
        %v4190 = vadd.f32 %v4101, %v4189
        %v4191 = vpop.f32.mrf.mxu0
        %v4192 = vadd.f32 %v4101, %v4191
        %4193 = vmatmul.bf16.gmra.mxu0 %v4134
        %v4194 = vpop.f32.mrf.mxu0
        %v4195 = vadd.f32 %v4101, %v4194
        %v4196 = vpop.f32.mrf.mxu0
        %v4197 = vadd.f32 %v4101, %v4196
        %4198 = vmatmul.bf16.gmra.mxu0 %v4137
        %v4199 = vpop.f32.mrf.mxu0
        %v4200 = vadd.f32 %v4101, %v4199
        %v4201 = vpop.f32.mrf.mxu0
        %v4202 = vadd.f32 %v4101, %v4201
        %4203 = vmatmul.bf16.gmra.mxu0 %v4140
        %v4204 = vpop.f32.mrf.mxu0
        %v4205 = vadd.f32 %v4101, %v4204
        %v4206 = vpop.f32.mrf.mxu0
        %v4207 = vadd.f32 %v4101, %v4206
        %4208 = vmatmul.bf16.gmra.mxu0 %v4143
        %v4209 = vpop.f32.mrf.mxu0
        %v4210 = vadd.f32 %v4101, %v4209
        %v4211 = vpop.f32.mrf.mxu0
        %v4212 = vadd.f32 %v4101, %v4211
        %4213 = vmatmul.bf16.gmra.mxu0 %v4146
        %v4214 = vpop.f32.mrf.mxu0
        %v4215 = vadd.f32 %v4101, %v4214
        %v4216 = vpop.f32.mrf.mxu0
        %v4217 = vadd.f32 %v4101, %v4216
        %4218 = vmatmul.bf16.gmra.mxu0 %v4149
        %v4219 = vpop.f32.mrf.mxu0
        %v4220 = vadd.f32 %v4101, %v4219
        %v4221 = vpop.f32.mrf.mxu0
        %v4222 = vadd.f32 %v4101, %v4221
        %4223 = vmatmul.bf16.gmra.mxu0 %v4152
        %v4224 = vpop.f32.mrf.mxu0
        %v4225 = vadd.f32 %v4101, %v4224
        %v4226 = vpop.f32.mrf.mxu0
        %v4227 = vadd.f32 %v4101, %v4226
        %4228 = vmatmul.bf16.gmra.mxu0 %v4155
        %v4229 = vpop.f32.mrf.mxu0
        %v4230 = vadd.f32 %v4101, %v4229
        %v4231 = vpop.f32.mrf.mxu0
        %v4232 = vadd.f32 %v4101, %v4231
        %4233 = vmatmul.bf16.gmra.mxu0 %v4158
        %v4234 = vpop.f32.mrf.mxu0
        %v4235 = vadd.f32 %v4101, %v4234
        %v4236 = vpop.f32.mrf.mxu0
        %v4237 = vadd.f32 %v4101, %v4236
        %4238 = vmatmul.bf16.gmra.mxu0 %v4161
        %v4239 = vpop.f32.mrf.mxu0
        %v4240 = vadd.f32 %v4101, %v4239
        %v4241 = vpop.f32.mrf.mxu0
        %v4242 = vadd.f32 %v4101, %v4241
        %4243 = vmatmul.bf16.gmra.mxu0 %v4164
        %v4244 = vpop.f32.mrf.mxu0
        %v4245 = vadd.f32 %v4101, %v4244
        %v4246 = vpop.f32.mrf.mxu0
        %v4247 = vadd.f32 %v4101, %v4246
        %4248 = vmatmul.bf16.gmra.mxu0 %v4167
        %v4249 = vpop.f32.mrf.mxu0
        %v4250 = vadd.f32 %v4101, %v4249
        %v4251 = vpop.f32.mrf.mxu0
        %v4252 = vadd.f32 %v4101, %v4251
        %4253 = vmatmul.bf16.gmra.mxu0 %v4170
        %v4254 = vpop.f32.mrf.mxu0
        %v4255 = vadd.f32 %v4101, %v4254
        %v4256 = vpop.f32.mrf.mxu0
        %v4257 = vadd.f32 %v4101, %v4256
        %4258 = vmatmul.bf16.gmra.mxu0 %v4173
        %v4259 = vpop.f32.mrf.mxu0
        %v4260 = vadd.f32 %v4101, %v4259
        %v4261 = vpop.f32.mrf.mxu0
        %v4262 = vadd.f32 %v4101, %v4261
        %4263 = vdwg.mxu0
        %v4264 = vadd.f32 %v4185, 1.0
        %v4265 = vadd.f32 %v4187, 1.0
        %v4266 = vadd.f32 %v4190, 1.0
        %v4267 = vadd.f32 %v4192, 1.0
        %v4268 = vadd.f32 %v4195, 1.0
        %v4269 = vadd.f32 %v4197, 1.0
        %v4270 = vadd.f32 %v4200, 1.0
        %v4271 = vadd.f32 %v4202, 1.0
        %v4272 = vadd.f32 %v4205, 1.0
        %v4273 = vadd.f32 %v4207, 1.0
        %v4274 = vadd.f32 %v4210, 1.0
        %v4275 = vadd.f32 %v4212, 1.0
        %v4276 = vadd.f32 %v4215, 1.0
        %v4277 = vadd.f32 %v4217, 1.0
        %v4278 = vadd.f32 %v4220, 1.0
        %v4279 = vadd.f32 %v4222, 1.0
        %v4280 = vadd.f32 %v4225, 1.0
        %v4281 = vadd.f32 %v4227, 1.0
        %v4282 = vadd.f32 %v4230, 1.0
        %v4283 = vadd.f32 %v4232, 1.0
        %v4284 = vadd.f32 %v4235, 1.0
        %v4285 = vadd.f32 %v4237, 1.0
        %v4286 = vadd.f32 %v4240, 1.0
        %v4287 = vadd.f32 %v4242, 1.0
        %v4288 = vadd.f32 %v4245, 1.0
        %v4289 = vadd.f32 %v4247, 1.0
        %v4290 = vadd.f32 %v4250, 1.0
        %v4291 = vadd.f32 %v4252, 1.0
        %v4292 = vadd.f32 %v4255, 1.0
        %v4293 = vadd.f32 %v4257, 1.0
        %v4294 = vadd.f32 %v4260, 1.0
        %v4295 = vadd.f32 %v4262, 1.0
        %v4296 = vmul.f32 %v3834, %v4264
        %v4297 = vmul.f32 %v3835, %v4265
        %v4298 = vmul.f32 %v3836, %v4266
        %v4299 = vmul.f32 %v3837, %v4267
        %v4300 = vmul.f32 %v3838, %v4268
        %v4301 = vmul.f32 %v3839, %v4269
        %v4302 = vmul.f32 %v3840, %v4270
        %v4303 = vmul.f32 %v3841, %v4271
        %v4304 = vmul.f32 %v3842, %v4272
        %v4305 = vmul.f32 %v3843, %v4273
        %v4306 = vmul.f32 %v3844, %v4274
        %v4307 = vmul.f32 %v3845, %v4275
        %v4308 = vmul.f32 %v3846, %v4276
        %v4309 = vmul.f32 %v3847, %v4277
        %v4310 = vmul.f32 %v3848, %v4278
        %v4311 = vmul.f32 %v3849, %v4279
        %v4312 = vmul.f32 %v3850, %v4280
        %v4313 = vmul.f32 %v3851, %v4281
        %v4314 = vmul.f32 %v3852, %v4282
        %v4315 = vmul.f32 %v3853, %v4283
        %v4316 = vmul.f32 %v3854, %v4284
        %v4317 = vmul.f32 %v3855, %v4285
        %v4318 = vmul.f32 %v3856, %v4286
        %v4319 = vmul.f32 %v3857, %v4287
        %v4320 = vmul.f32 %v3858, %v4288
        %v4321 = vmul.f32 %v3859, %v4289
        %v4322 = vmul.f32 %v3860, %v4290
        %v4323 = vmul.f32 %v3861, %v4291
        %v4324 = vmul.f32 %v3862, %v4292
        %v4325 = vmul.f32 %v3863, %v4293
        %v4326 = vmul.f32 %v3864, %v4294
        %v4327 = vmul.f32 %v3865, %v4295
        %4360 = vrot.lane.b32.xlu0 %v4185, 64
        %v4361 = vpop.permute.xlu0 %4360
        %4362 = vrot.lane.b32.xlu0 %v4187, 64
        %v4363 = vpop.permute.xlu0 %4362
        %4364 = vrot.lane.b32.xlu0 %v4190, 64
        %v4365 = vpop.permute.xlu0 %4364
        %4366 = vrot.lane.b32.xlu0 %v4192, 64
        %v4367 = vpop.permute.xlu0 %4366
        %4368 = vrot.lane.b32.xlu0 %v4195, 64
        %v4369 = vpop.permute.xlu0 %4368
        %4370 = vrot.lane.b32.xlu0 %v4197, 64
        %v4371 = vpop.permute.xlu0 %4370
        %4372 = vrot.lane.b32.xlu0 %v4200, 64
        %v4373 = vpop.permute.xlu0 %4372
        %4374 = vrot.lane.b32.xlu0 %v4202, 64
        %v4375 = vpop.permute.xlu0 %4374
        %4376 = vrot.lane.b32.xlu0 %v4205, 64
        %v4377 = vpop.permute.xlu0 %4376
        %4378 = vrot.lane.b32.xlu0 %v4207, 64
        %v4379 = vpop.permute.xlu0 %4378
        %4380 = vrot.lane.b32.xlu0 %v4210, 64
        %v4381 = vpop.permute.xlu0 %4380
        %4382 = vrot.lane.b32.xlu0 %v4212, 64
        %v4383 = vpop.permute.xlu0 %4382
        %4384 = vrot.lane.b32.xlu0 %v4215, 64
        %v4385 = vpop.permute.xlu0 %4384
        %4386 = vrot.lane.b32.xlu0 %v4217, 64
        %v4387 = vpop.permute.xlu0 %4386
        %4388 = vrot.lane.b32.xlu0 %v4220, 64
        %v4389 = vpop.permute.xlu0 %4388
        %4390 = vrot.lane.b32.xlu0 %v4222, 64
        %v4391 = vpop.permute.xlu0 %4390
        %4392 = vrot.lane.b32.xlu0 %v4225, 64
        %v4393 = vpop.permute.xlu0 %4392
        %4394 = vrot.lane.b32.xlu0 %v4227, 64
        %v4395 = vpop.permute.xlu0 %4394
        %4396 = vrot.lane.b32.xlu0 %v4230, 64
        %v4397 = vpop.permute.xlu0 %4396
        %4398 = vrot.lane.b32.xlu0 %v4232, 64
        %v4399 = vpop.permute.xlu0 %4398
        %4400 = vrot.lane.b32.xlu0 %v4235, 64
        %v4401 = vpop.permute.xlu0 %4400
        %4402 = vrot.lane.b32.xlu0 %v4237, 64
        %v4403 = vpop.permute.xlu0 %4402
        %4404 = vrot.lane.b32.xlu0 %v4240, 64
        %v4405 = vpop.permute.xlu0 %4404
        %4406 = vrot.lane.b32.xlu0 %v4242, 64
        %v4407 = vpop.permute.xlu0 %4406
        %4408 = vrot.lane.b32.xlu0 %v4245, 64
        %v4409 = vpop.permute.xlu0 %4408
        %4410 = vrot.lane.b32.xlu0 %v4247, 64
        %v4411 = vpop.permute.xlu0 %4410
        %4412 = vrot.lane.b32.xlu0 %v4250, 64
        %v4413 = vpop.permute.xlu0 %4412
        %4414 = vrot.lane.b32.xlu0 %v4252, 64
        %v4415 = vpop.permute.xlu0 %4414
        %4416 = vrot.lane.b32.xlu0 %v4255, 64
        %v4417 = vpop.permute.xlu0 %4416
        %4418 = vrot.lane.b32.xlu0 %v4257, 64
        %v4419 = vpop.permute.xlu0 %4418
        %4420 = vrot.lane.b32.xlu0 %v4260, 64
        %v4421 = vpop.permute.xlu0 %4420
        %4422 = vrot.lane.b32.xlu0 %v4262, 64
        %v4423 = vpop.permute.xlu0 %4422
        %v4456 = vadd.f32 %v4296, %v4361
        %v4457 = vadd.f32 %v4297, %v4363
        %v4458 = vadd.f32 %v4298, %v4365
        %v4459 = vadd.f32 %v4299, %v4367
        %v4460 = vadd.f32 %v4300, %v4369
        %v4461 = vadd.f32 %v4301, %v4371
        %v4462 = vadd.f32 %v4302, %v4373
        %v4463 = vadd.f32 %v4303, %v4375
        %v4464 = vadd.f32 %v4304, %v4377
        %v4465 = vadd.f32 %v4305, %v4379
        %v4466 = vadd.f32 %v4306, %v4381
        %v4467 = vadd.f32 %v4307, %v4383
        %v4468 = vadd.f32 %v4308, %v4385
        %v4469 = vadd.f32 %v4309, %v4387
        %v4470 = vadd.f32 %v4310, %v4389
        %v4471 = vadd.f32 %v4311, %v4391
        %v4472 = vadd.f32 %v4312, %v4393
        %v4473 = vadd.f32 %v4313, %v4395
        %v4474 = vadd.f32 %v4314, %v4397
        %v4475 = vadd.f32 %v4315, %v4399
        %v4476 = vadd.f32 %v4316, %v4401
        %v4477 = vadd.f32 %v4317, %v4403
        %v4478 = vadd.f32 %v4318, %v4405
        %v4479 = vadd.f32 %v4319, %v4407
        %v4480 = vadd.f32 %v4320, %v4409
        %v4481 = vadd.f32 %v4321, %v4411
        %v4482 = vadd.f32 %v4322, %v4413
        %v4483 = vadd.f32 %v4323, %v4415
        %v4484 = vadd.f32 %v4324, %v4417
        %v4485 = vadd.f32 %v4325, %v4419
        %v4486 = vadd.f32 %v4326, %v4421
        %v4487 = vadd.f32 %v4327, %v4423
        %4488 = vst.msk [vmem:[%s1141 + $0x8] sm:$0xff] %vm347, %v4456
        %4489 = vst.msk [vmem:[%s1141 + $0x10] sm:$0xff] %vm347, %v4457
        %4490 = vst.msk [vmem:[%s1141 + $0x28] sm:$0xff] %vm347, %v4458
        %4491 = vst.msk [vmem:[%s1141 + $0x30] sm:$0xff] %vm347, %v4459
        %4492 = vst.msk [vmem:[%s1141 + $0x48] sm:$0xff] %vm347, %v4460
        %4493 = vst.msk [vmem:[%s1141 + $0x50] sm:$0xff] %vm347, %v4461
        %4494 = vst.msk [vmem:[%s1141 + $0x68] sm:$0xff] %vm347, %v4462
        %4495 = vst.msk [vmem:[%s1141 + $0x70] sm:$0xff] %vm347, %v4463
        %4496 = vst.msk [vmem:[%s1141 + $0x88] sm:$0xff] %vm347, %v4464
        %4497 = vst.msk [vmem:[%s1141 + $0x90] sm:$0xff] %vm347, %v4465
        %4498 = vst.msk [vmem:[%s1141 + $0xa8] sm:$0xff] %vm347, %v4466
        %4499 = vst.msk [vmem:[%s1141 + $0xb0] sm:$0xff] %vm347, %v4467
        %4500 = vst.msk [vmem:[%s1141 + $0xc8] sm:$0xff] %vm347, %v4468
        %4501 = vst.msk [vmem:[%s1141 + $0xd0] sm:$0xff] %vm347, %v4469
        %4502 = vst.msk [vmem:[%s1141 + $0xe8] sm:$0xff] %vm347, %v4470
        %4503 = vst.msk [vmem:[%s1141 + $0xf0] sm:$0xff] %vm347, %v4471
        %4504 = vst.msk [vmem:[%s1141 + $0x108] sm:$0xff] %vm347, %v4472
        %4505 = vst.msk [vmem:[%s1141 + $0x110] sm:$0xff] %vm347, %v4473
        %4506 = vst.msk [vmem:[%s1141 + $0x128] sm:$0xff] %vm347, %v4474
        %4507 = vst.msk [vmem:[%s1141 + $0x130] sm:$0xff] %vm347, %v4475
        %4508 = vst.msk [vmem:[%s1141 + $0x148] sm:$0xff] %vm347, %v4476
        %4509 = vst.msk [vmem:[%s1141 + $0x150] sm:$0xff] %vm347, %v4477
        %4510 = vst.msk [vmem:[%s1141 + $0x168] sm:$0xff] %vm347, %v4478
        %4511 = vst.msk [vmem:[%s1141 + $0x170] sm:$0xff] %vm347, %v4479
        %4512 = vst.msk [vmem:[%s1141 + $0x188] sm:$0xff] %vm347, %v4480
        %4513 = vst.msk [vmem:[%s1141 + $0x190] sm:$0xff] %vm347, %v4481
        %4514 = vst.msk [vmem:[%s1141 + $0x1a8] sm:$0xff] %vm347, %v4482
        %4515 = vst.msk [vmem:[%s1141 + $0x1b0] sm:$0xff] %vm347, %v4483
        %4516 = vst.msk [vmem:[%s1141 + $0x1c8] sm:$0xff] %vm347, %v4484
        %4517 = vst.msk [vmem:[%s1141 + $0x1d0] sm:$0xff] %vm347, %v4485
        %4518 = vst.msk [vmem:[%s1141 + $0x1e8] sm:$0xff] %vm347, %v4486
        %4519 = vst.msk [vmem:[%s1141 + $0x1f0] sm:$0xff] %vm347, %v4487
        %v4520 = vld [vmem:[#allocation2 + $0x7] sm:$0xff]
        %v4521 = vld [vmem:[#allocation2 + $0xf] sm:$0xff]
        %v4522 = vld [vmem:[#allocation2 + $0x27] sm:$0xff]
        %v4523 = vld [vmem:[#allocation2 + $0x2f] sm:$0xff]
        %v4524 = vld [vmem:[#allocation2 + $0x47] sm:$0xff]
        %v4525 = vld [vmem:[#allocation2 + $0x4f] sm:$0xff]
        %v4526 = vld [vmem:[#allocation2 + $0x67] sm:$0xff]
        %v4527 = vld [vmem:[#allocation2 + $0x6f] sm:$0xff]
        %v4528 = vld [vmem:[#allocation2 + $0x87] sm:$0xff]
        %v4529 = vld [vmem:[#allocation2 + $0x8f] sm:$0xff]
        %v4530 = vld [vmem:[#allocation2 + $0xa7] sm:$0xff]
        %v4531 = vld [vmem:[#allocation2 + $0xaf] sm:$0xff]
        %v4532 = vld [vmem:[#allocation2 + $0xc7] sm:$0xff]
        %v4533 = vld [vmem:[#allocation2 + $0xcf] sm:$0xff]
        %v4534 = vld [vmem:[#allocation2 + $0xe7] sm:$0xff]
        %v4535 = vld [vmem:[#allocation2 + $0xef] sm:$0xff]
        %v4536 = vld [vmem:[#allocation2 + $0x107] sm:$0xff]
        %v4537 = vld [vmem:[#allocation2 + $0x10f] sm:$0xff]
        %v4538 = vld [vmem:[#allocation2 + $0x127] sm:$0xff]
        %v4539 = vld [vmem:[#allocation2 + $0x12f] sm:$0xff]
        %v4540 = vld [vmem:[#allocation2 + $0x147] sm:$0xff]
        %v4541 = vld [vmem:[#allocation2 + $0x14f] sm:$0xff]
        %v4542 = vld [vmem:[#allocation2 + $0x167] sm:$0xff]
        %v4543 = vld [vmem:[#allocation2 + $0x16f] sm:$0xff]
        %v4544 = vld [vmem:[#allocation2 + $0x187] sm:$0xff]
        %v4545 = vld [vmem:[#allocation2 + $0x18f] sm:$0xff]
        %v4546 = vld [vmem:[#allocation2 + $0x1a7] sm:$0xff]
        %v4547 = vld [vmem:[#allocation2 + $0x1af] sm:$0xff]
        %v4548 = vld [vmem:[#allocation2 + $0x1c7] sm:$0xff]
        %v4549 = vld [vmem:[#allocation2 + $0x1cf] sm:$0xff]
        %v4550 = vld [vmem:[#allocation2 + $0x1e7] sm:$0xff]
        %v4551 = vld [vmem:[#allocation2 + $0x1ef] sm:$0xff]
        %v4552 = vpack.c.bf16 %v4520, %v4520
        %v4553 = vpack.c.bf16 %v4521, %v4521
        %v4554 = vpack.c.bf16 %v4522, %v4522
        %v4555 = vpack.c.bf16 %v4523, %v4523
        %v4556 = vpack.c.bf16 %v4524, %v4524
        %v4557 = vpack.c.bf16 %v4525, %v4525
        %v4558 = vpack.c.bf16 %v4526, %v4526
        %v4559 = vpack.c.bf16 %v4527, %v4527
        %v4560 = vpack.c.bf16 %v4528, %v4528
        %v4561 = vpack.c.bf16 %v4529, %v4529
        %v4562 = vpack.c.bf16 %v4530, %v4530
        %v4563 = vpack.c.bf16 %v4531, %v4531
        %v4564 = vpack.c.bf16 %v4532, %v4532
        %v4565 = vpack.c.bf16 %v4533, %v4533
        %v4566 = vpack.c.bf16 %v4534, %v4534
        %v4567 = vpack.c.bf16 %v4535, %v4535
        %v4568 = vpack.c.bf16 %v4536, %v4536
        %v4569 = vpack.c.bf16 %v4537, %v4537
        %v4570 = vpack.c.bf16 %v4538, %v4538
        %v4571 = vpack.c.bf16 %v4539, %v4539
        %v4572 = vpack.c.bf16 %v4540, %v4540
        %v4573 = vpack.c.bf16 %v4541, %v4541
        %v4574 = vpack.c.bf16 %v4542, %v4542
        %v4575 = vpack.c.bf16 %v4543, %v4543
        %v4576 = vpack.c.bf16 %v4544, %v4544
        %v4577 = vpack.c.bf16 %v4545, %v4545
        %v4578 = vpack.c.bf16 %v4546, %v4546
        %v4579 = vpack.c.bf16 %v4547, %v4547
        %v4580 = vpack.c.bf16 %v4548, %v4548
        %v4581 = vpack.c.bf16 %v4549, %v4549
        %v4582 = vpack.c.bf16 %v4550, %v4550
        %v4583 = vpack.c.bf16 %v4551, %v4551
        %4584 = vst.msk [vmem:[#allocation3] sm:$0xf] %vm1238, %v4552
        %4585 = vst.msk [vmem:[#allocation3 + $0x14] sm:$0xf] %vm1238, %v4553
        %4586 = vst.msk [vmem:[#allocation3 + $0x28] sm:$0xf] %vm1238, %v4554
        %4587 = vst.msk [vmem:[#allocation3 + $0x3c] sm:$0xf] %vm1238, %v4555
        %4588 = vst.msk [vmem:[#allocation3 + $0x50] sm:$0xf] %vm1238, %v4556
        %4589 = vst.msk [vmem:[#allocation3 + $0x64] sm:$0xf] %vm1238, %v4557
        %4590 = vst.msk [vmem:[#allocation3 + $0x78] sm:$0xf] %vm1238, %v4558
        %4591 = vst.msk [vmem:[#allocation3 + $0x8c] sm:$0xf] %vm1238, %v4559
        %4592 = vst.msk [vmem:[#allocation3 + $0xa0] sm:$0xf] %vm1238, %v4560
        %4593 = vst.msk [vmem:[#allocation3 + $0xb4] sm:$0xf] %vm1238, %v4561
        %4594 = vst.msk [vmem:[#allocation3 + $0xc8] sm:$0xf] %vm1238, %v4562
        %4595 = vst.msk [vmem:[#allocation3 + $0xdc] sm:$0xf] %vm1238, %v4563
        %4596 = vst.msk [vmem:[#allocation3 + $0xf0] sm:$0xf] %vm1238, %v4564
        %4597 = vst.msk [vmem:[#allocation3 + $0x104] sm:$0xf] %vm1238, %v4565
        %4598 = vst.msk [vmem:[#allocation3 + $0x118] sm:$0xf] %vm1238, %v4566
        %4599 = vst.msk [vmem:[#allocation3 + $0x12c] sm:$0xf] %vm1238, %v4567
        %4600 = vst.msk [vmem:[#allocation3 + $0x140] sm:$0xf] %vm1238, %v4568
        %4601 = vst.msk [vmem:[#allocation3 + $0x154] sm:$0xf] %vm1238, %v4569
        %4602 = vst.msk [vmem:[#allocation3 + $0x168] sm:$0xf] %vm1238, %v4570
        %4603 = vst.msk [vmem:[#allocation3 + $0x17c] sm:$0xf] %vm1238, %v4571
        %4604 = vst.msk [vmem:[#allocation3 + $0x190] sm:$0xf] %vm1238, %v4572
        %4605 = vst.msk [vmem:[#allocation3 + $0x1a4] sm:$0xf] %vm1238, %v4573
        %4606 = vst.msk [vmem:[#allocation3 + $0x1b8] sm:$0xf] %vm1238, %v4574
        %4607 = vst.msk [vmem:[#allocation3 + $0x1cc] sm:$0xf] %vm1238, %v4575
        %4608 = vst.msk [vmem:[#allocation3 + $0x1e0] sm:$0xf] %vm1238, %v4576
        %4609 = vst.msk [vmem:[#allocation3 + $0x1f4] sm:$0xf] %vm1238, %v4577
        %4610 = vst.msk [vmem:[#allocation3 + $0x208] sm:$0xf] %vm1238, %v4578
        %4611 = vst.msk [vmem:[#allocation3 + $0x21c] sm:$0xf] %vm1238, %v4579
        %4612 = vst.msk [vmem:[#allocation3 + $0x230] sm:$0xf] %vm1238, %v4580
        %4613 = vst.msk [vmem:[#allocation3 + $0x244] sm:$0xf] %vm1238, %v4581
        %4614 = vst.msk [vmem:[#allocation3 + $0x258] sm:$0xf] %vm1238, %v4582
        %4615 = vst.msk [vmem:[#allocation3 + $0x26c] sm:$0xf] %vm1238, %v4583
        %v4616 = vld [vmem:[#allocation2 + $0x8] sm:$0xff]
        %v4617 = vld [vmem:[#allocation2 + $0x10] sm:$0xff]
        %v4618 = vld [vmem:[#allocation2 + $0x28] sm:$0xff]
        %v4619 = vld [vmem:[#allocation2 + $0x30] sm:$0xff]
        %v4620 = vld [vmem:[#allocation2 + $0x48] sm:$0xff]
        %v4621 = vld [vmem:[#allocation2 + $0x50] sm:$0xff]
        %v4622 = vld [vmem:[#allocation2 + $0x68] sm:$0xff]
        %v4623 = vld [vmem:[#allocation2 + $0x70] sm:$0xff]
        %v4624 = vld [vmem:[#allocation2 + $0x88] sm:$0xff]
        %v4625 = vld [vmem:[#allocation2 + $0x90] sm:$0xff]
        %v4626 = vld [vmem:[#allocation2 + $0xa8] sm:$0xff]
        %v4627 = vld [vmem:[#allocation2 + $0xb0] sm:$0xff]
        %v4628 = vld [vmem:[#allocation2 + $0xc8] sm:$0xff]
        %v4629 = vld [vmem:[#allocation2 + $0xd0] sm:$0xff]
        %v4630 = vld [vmem:[#allocation2 + $0xe8] sm:$0xff]
        %v4631 = vld [vmem:[#allocation2 + $0xf0] sm:$0xff]
        %v4632 = vld [vmem:[#allocation2 + $0x108] sm:$0xff]
        %v4633 = vld [vmem:[#allocation2 + $0x110] sm:$0xff]
        %v4634 = vld [vmem:[#allocation2 + $0x128] sm:$0xff]
        %v4635 = vld [vmem:[#allocation2 + $0x130] sm:$0xff]
        %v4636 = vld [vmem:[#allocation2 + $0x148] sm:$0xff]
        %v4637 = vld [vmem:[#allocation2 + $0x150] sm:$0xff]
        %v4638 = vld [vmem:[#allocation2 + $0x168] sm:$0xff]
        %v4639 = vld [vmem:[#allocation2 + $0x170] sm:$0xff]
        %v4640 = vld [vmem:[#allocation2 + $0x188] sm:$0xff]
        %v4641 = vld [vmem:[#allocation2 + $0x190] sm:$0xff]
        %v4642 = vld [vmem:[#allocation2 + $0x1a8] sm:$0xff]
        %v4643 = vld [vmem:[#allocation2 + $0x1b0] sm:$0xff]
        %v4644 = vld [vmem:[#allocation2 + $0x1c8] sm:$0xff]
        %v4645 = vld [vmem:[#allocation2 + $0x1d0] sm:$0xff]
        %v4646 = vld [vmem:[#allocation2 + $0x1e8] sm:$0xff]
        %v4647 = vld [vmem:[#allocation2 + $0x1f0] sm:$0xff]
        %v4648 = vpack.c.bf16 %v4616, %v4616
        %v4649 = vpack.c.bf16 %v4617, %v4617
        %v4650 = vpack.c.bf16 %v4618, %v4618
        %v4651 = vpack.c.bf16 %v4619, %v4619
        %v4652 = vpack.c.bf16 %v4620, %v4620
        %v4653 = vpack.c.bf16 %v4621, %v4621
        %v4654 = vpack.c.bf16 %v4622, %v4622
        %v4655 = vpack.c.bf16 %v4623, %v4623
        %v4656 = vpack.c.bf16 %v4624, %v4624
        %v4657 = vpack.c.bf16 %v4625, %v4625
        %v4658 = vpack.c.bf16 %v4626, %v4626
        %v4659 = vpack.c.bf16 %v4627, %v4627
        %v4660 = vpack.c.bf16 %v4628, %v4628
        %v4661 = vpack.c.bf16 %v4629, %v4629
        %v4662 = vpack.c.bf16 %v4630, %v4630
        %v4663 = vpack.c.bf16 %v4631, %v4631
        %v4664 = vpack.c.bf16 %v4632, %v4632
        %v4665 = vpack.c.bf16 %v4633, %v4633
        %v4666 = vpack.c.bf16 %v4634, %v4634
        %v4667 = vpack.c.bf16 %v4635, %v4635
        %v4668 = vpack.c.bf16 %v4636, %v4636
        %v4669 = vpack.c.bf16 %v4637, %v4637
        %v4670 = vpack.c.bf16 %v4638, %v4638
        %v4671 = vpack.c.bf16 %v4639, %v4639
        %v4672 = vpack.c.bf16 %v4640, %v4640
        %v4673 = vpack.c.bf16 %v4641, %v4641
        %v4674 = vpack.c.bf16 %v4642, %v4642
        %v4675 = vpack.c.bf16 %v4643, %v4643
        %v4676 = vpack.c.bf16 %v4644, %v4644
        %v4677 = vpack.c.bf16 %v4645, %v4645
        %v4678 = vpack.c.bf16 %v4646, %v4646
        %v4679 = vpack.c.bf16 %v4647, %v4647
        %4712 = vrot.lane.b32.xlu0 %v4648, 64
        %v4713 = vpop.permute.xlu0 %4712
        %4714 = vrot.lane.b32.xlu0 %v4649, 64
        %v4715 = vpop.permute.xlu0 %4714
        %4716 = vrot.lane.b32.xlu0 %v4650, 64
        %v4717 = vpop.permute.xlu0 %4716
        %4718 = vrot.lane.b32.xlu0 %v4651, 64
        %v4719 = vpop.permute.xlu0 %4718
        %4720 = vrot.lane.b32.xlu0 %v4652, 64
        %v4721 = vpop.permute.xlu0 %4720
        %4722 = vrot.lane.b32.xlu0 %v4653, 64
        %v4723 = vpop.permute.xlu0 %4722
        %4724 = vrot.lane.b32.xlu0 %v4654, 64
        %v4725 = vpop.permute.xlu0 %4724
        %4726 = vrot.lane.b32.xlu0 %v4655, 64
        %v4727 = vpop.permute.xlu0 %4726
        %4728 = vrot.lane.b32.xlu0 %v4656, 64
        %v4729 = vpop.permute.xlu0 %4728
        %4730 = vrot.lane.b32.xlu0 %v4657, 64
        %v4731 = vpop.permute.xlu0 %4730
        %4732 = vrot.lane.b32.xlu0 %v4658, 64
        %v4733 = vpop.permute.xlu0 %4732
        %4734 = vrot.lane.b32.xlu0 %v4659, 64
        %v4735 = vpop.permute.xlu0 %4734
        %4736 = vrot.lane.b32.xlu0 %v4660, 64
        %v4737 = vpop.permute.xlu0 %4736
        %4738 = vrot.lane.b32.xlu0 %v4661, 64
        %v4739 = vpop.permute.xlu0 %4738
        %4740 = vrot.lane.b32.xlu0 %v4662, 64
        %v4741 = vpop.permute.xlu0 %4740
        %4742 = vrot.lane.b32.xlu0 %v4663, 64
        %v4743 = vpop.permute.xlu0 %4742
        %4744 = vrot.lane.b32.xlu0 %v4664, 64
        %v4745 = vpop.permute.xlu0 %4744
        %4746 = vrot.lane.b32.xlu0 %v4665, 64
        %v4747 = vpop.permute.xlu0 %4746
        %4748 = vrot.lane.b32.xlu0 %v4666, 64
        %v4749 = vpop.permute.xlu0 %4748
        %4750 = vrot.lane.b32.xlu0 %v4667, 64
        %v4751 = vpop.permute.xlu0 %4750
        %4752 = vrot.lane.b32.xlu0 %v4668, 64
        %v4753 = vpop.permute.xlu0 %4752
        %4754 = vrot.lane.b32.xlu0 %v4669, 64
        %v4755 = vpop.permute.xlu0 %4754
        %4756 = vrot.lane.b32.xlu0 %v4670, 64
        %v4757 = vpop.permute.xlu0 %4756
        %4758 = vrot.lane.b32.xlu0 %v4671, 64
        %v4759 = vpop.permute.xlu0 %4758
        %4760 = vrot.lane.b32.xlu0 %v4672, 64
        %v4761 = vpop.permute.xlu0 %4760
        %4762 = vrot.lane.b32.xlu0 %v4673, 64
        %v4763 = vpop.permute.xlu0 %4762
        %4764 = vrot.lane.b32.xlu0 %v4674, 64
        %v4765 = vpop.permute.xlu0 %4764
        %4766 = vrot.lane.b32.xlu0 %v4675, 64
        %v4767 = vpop.permute.xlu0 %4766
        %4768 = vrot.lane.b32.xlu0 %v4676, 64
        %v4769 = vpop.permute.xlu0 %4768
        %4770 = vrot.lane.b32.xlu0 %v4677, 64
        %v4771 = vpop.permute.xlu0 %4770
        %4772 = vrot.lane.b32.xlu0 %v4678, 64
        %v4773 = vpop.permute.xlu0 %4772
        %4774 = vrot.lane.b32.xlu0 %v4679, 64
        %v4775 = vpop.permute.xlu0 %4774
        %4808 = vst.msk [vmem:[#allocation3] sm:$0xf] %vm1463, %v4713
        %4809 = vst.msk [vmem:[#allocation3 + $0x14] sm:$0xf] %vm1463, %v4715
        %4810 = vst.msk [vmem:[#allocation3 + $0x28] sm:$0xf] %vm1463, %v4717
        %4811 = vst.msk [vmem:[#allocation3 + $0x3c] sm:$0xf] %vm1463, %v4719
        %4812 = vst.msk [vmem:[#allocation3 + $0x50] sm:$0xf] %vm1463, %v4721
        %4813 = vst.msk [vmem:[#allocation3 + $0x64] sm:$0xf] %vm1463, %v4723
        %4814 = vst.msk [vmem:[#allocation3 + $0x78] sm:$0xf] %vm1463, %v4725
        %4815 = vst.msk [vmem:[#allocation3 + $0x8c] sm:$0xf] %vm1463, %v4727
        %4816 = vst.msk [vmem:[#allocation3 + $0xa0] sm:$0xf] %vm1463, %v4729
        %4817 = vst.msk [vmem:[#allocation3 + $0xb4] sm:$0xf] %vm1463, %v4731
        %4818 = vst.msk [vmem:[#allocation3 + $0xc8] sm:$0xf] %vm1463, %v4733
        %4819 = vst.msk [vmem:[#allocation3 + $0xdc] sm:$0xf] %vm1463, %v4735
        %4820 = vst.msk [vmem:[#allocation3 + $0xf0] sm:$0xf] %vm1463, %v4737
        %4821 = vst.msk [vmem:[#allocation3 + $0x104] sm:$0xf] %vm1463, %v4739
        %4822 = vst.msk [vmem:[#allocation3 + $0x118] sm:$0xf] %vm1463, %v4741
        %4823 = vst.msk [vmem:[#allocation3 + $0x12c] sm:$0xf] %vm1463, %v4743
        %4824 = vst.msk [vmem:[#allocation3 + $0x140] sm:$0xf] %vm1463, %v4745
        %4825 = vst.msk [vmem:[#allocation3 + $0x154] sm:$0xf] %vm1463, %v4747
        %4826 = vst.msk [vmem:[#allocation3 + $0x168] sm:$0xf] %vm1463, %v4749
        %4827 = vst.msk [vmem:[#allocation3 + $0x17c] sm:$0xf] %vm1463, %v4751
        %4828 = vst.msk [vmem:[#allocation3 + $0x190] sm:$0xf] %vm1463, %v4753
        %4829 = vst.msk [vmem:[#allocation3 + $0x1a4] sm:$0xf] %vm1463, %v4755
        %4830 = vst.msk [vmem:[#allocation3 + $0x1b8] sm:$0xf] %vm1463, %v4757
        %4831 = vst.msk [vmem:[#allocation3 + $0x1cc] sm:$0xf] %vm1463, %v4759
        %4832 = vst.msk [vmem:[#allocation3 + $0x1e0] sm:$0xf] %vm1463, %v4761
        %4833 = vst.msk [vmem:[#allocation3 + $0x1f4] sm:$0xf] %vm1463, %v4763
        %4834 = vst.msk [vmem:[#allocation3 + $0x208] sm:$0xf] %vm1463, %v4765
        %4835 = vst.msk [vmem:[#allocation3 + $0x21c] sm:$0xf] %vm1463, %v4767
        %4836 = vst.msk [vmem:[#allocation3 + $0x230] sm:$0xf] %vm1463, %v4769
        %4837 = vst.msk [vmem:[#allocation3 + $0x244] sm:$0xf] %vm1463, %v4771
        %4838 = vst.msk [vmem:[#allocation3 + $0x258] sm:$0xf] %vm1463, %v4773
        %4839 = vst.msk [vmem:[#allocation3 + $0x26c] sm:$0xf] %vm1463, %v4775
        %v4840 = vld [vmem:[#allocation2 + $0x9] sm:$0xff]
        %v4841 = vld [vmem:[#allocation2 + $0x11] sm:$0xff]
        %v4842 = vld [vmem:[#allocation2 + $0x29] sm:$0xff]
        %v4843 = vld [vmem:[#allocation2 + $0x31] sm:$0xff]
        %v4844 = vld [vmem:[#allocation2 + $0x49] sm:$0xff]
        %v4845 = vld [vmem:[#allocation2 + $0x51] sm:$0xff]
        %v4846 = vld [vmem:[#allocation2 + $0x69] sm:$0xff]
        %v4847 = vld [vmem:[#allocation2 + $0x71] sm:$0xff]
        %v4848 = vld [vmem:[#allocation2 + $0x89] sm:$0xff]
        %v4849 = vld [vmem:[#allocation2 + $0x91] sm:$0xff]
        %v4850 = vld [vmem:[#allocation2 + $0xa9] sm:$0xff]
        %v4851 = vld [vmem:[#allocation2 + $0xb1] sm:$0xff]
        %v4852 = vld [vmem:[#allocation2 + $0xc9] sm:$0xff]
        %v4853 = vld [vmem:[#allocation2 + $0xd1] sm:$0xff]
        %v4854 = vld [vmem:[#allocation2 + $0xe9] sm:$0xff]
        %v4855 = vld [vmem:[#allocation2 + $0xf1] sm:$0xff]
        %v4856 = vld [vmem:[#allocation2 + $0x109] sm:$0xff]
        %v4857 = vld [vmem:[#allocation2 + $0x111] sm:$0xff]
        %v4858 = vld [vmem:[#allocation2 + $0x129] sm:$0xff]
        %v4859 = vld [vmem:[#allocation2 + $0x131] sm:$0xff]
        %v4860 = vld [vmem:[#allocation2 + $0x149] sm:$0xff]
        %v4861 = vld [vmem:[#allocation2 + $0x151] sm:$0xff]
        %v4862 = vld [vmem:[#allocation2 + $0x169] sm:$0xff]
        %v4863 = vld [vmem:[#allocation2 + $0x171] sm:$0xff]
        %v4864 = vld [vmem:[#allocation2 + $0x189] sm:$0xff]
        %v4865 = vld [vmem:[#allocation2 + $0x191] sm:$0xff]
        %v4866 = vld [vmem:[#allocation2 + $0x1a9] sm:$0xff]
        %v4867 = vld [vmem:[#allocation2 + $0x1b1] sm:$0xff]
        %v4868 = vld [vmem:[#allocation2 + $0x1c9] sm:$0xff]
        %v4869 = vld [vmem:[#allocation2 + $0x1d1] sm:$0xff]
        %v4870 = vld [vmem:[#allocation2 + $0x1e9] sm:$0xff]
        %v4871 = vld [vmem:[#allocation2 + $0x1f1] sm:$0xff]
        %v4872 = vpack.c.bf16 %v4840, %v4840
        %v4873 = vpack.c.bf16 %v4841, %v4841
        %v4874 = vpack.c.bf16 %v4842, %v4842
        %v4875 = vpack.c.bf16 %v4843, %v4843
        %v4876 = vpack.c.bf16 %v4844, %v4844
        %v4877 = vpack.c.bf16 %v4845, %v4845
        %v4878 = vpack.c.bf16 %v4846, %v4846
        %v4879 = vpack.c.bf16 %v4847, %v4847
        %v4880 = vpack.c.bf16 %v4848, %v4848
        %v4881 = vpack.c.bf16 %v4849, %v4849
        %v4882 = vpack.c.bf16 %v4850, %v4850
        %v4883 = vpack.c.bf16 %v4851, %v4851
        %v4884 = vpack.c.bf16 %v4852, %v4852
        %v4885 = vpack.c.bf16 %v4853, %v4853
        %v4886 = vpack.c.bf16 %v4854, %v4854
        %v4887 = vpack.c.bf16 %v4855, %v4855
        %v4888 = vpack.c.bf16 %v4856, %v4856
        %v4889 = vpack.c.bf16 %v4857, %v4857
        %v4890 = vpack.c.bf16 %v4858, %v4858
        %v4891 = vpack.c.bf16 %v4859, %v4859
        %v4892 = vpack.c.bf16 %v4860, %v4860
        %v4893 = vpack.c.bf16 %v4861, %v4861
        %v4894 = vpack.c.bf16 %v4862, %v4862
        %v4895 = vpack.c.bf16 %v4863, %v4863
        %v4896 = vpack.c.bf16 %v4864, %v4864
        %v4897 = vpack.c.bf16 %v4865, %v4865
        %v4898 = vpack.c.bf16 %v4866, %v4866
        %v4899 = vpack.c.bf16 %v4867, %v4867
        %v4900 = vpack.c.bf16 %v4868, %v4868
        %v4901 = vpack.c.bf16 %v4869, %v4869
        %v4902 = vpack.c.bf16 %v4870, %v4870
        %v4903 = vpack.c.bf16 %v4871, %v4871
        %4904 = vst.msk [vmem:[#allocation3 + $0x4] sm:$0xf] %vm1238, %v4872
        %4905 = vst.msk [vmem:[#allocation3 + $0x18] sm:$0xf] %vm1238, %v4873
        %4906 = vst.msk [vmem:[#allocation3 + $0x2c] sm:$0xf] %vm1238, %v4874
        %4907 = vst.msk [vmem:[#allocation3 + $0x40] sm:$0xf] %vm1238, %v4875
        %4908 = vst.msk [vmem:[#allocation3 + $0x54] sm:$0xf] %vm1238, %v4876
        %4909 = vst.msk [vmem:[#allocation3 + $0x68] sm:$0xf] %vm1238, %v4877
        %4910 = vst.msk [vmem:[#allocation3 + $0x7c] sm:$0xf] %vm1238, %v4878
        %4911 = vst.msk [vmem:[#allocation3 + $0x90] sm:$0xf] %vm1238, %v4879
        %4912 = vst.msk [vmem:[#allocation3 + $0xa4] sm:$0xf] %vm1238, %v4880
        %4913 = vst.msk [vmem:[#allocation3 + $0xb8] sm:$0xf] %vm1238, %v4881
        %4914 = vst.msk [vmem:[#allocation3 + $0xcc] sm:$0xf] %vm1238, %v4882
        %4915 = vst.msk [vmem:[#allocation3 + $0xe0] sm:$0xf] %vm1238, %v4883
        %4916 = vst.msk [vmem:[#allocation3 + $0xf4] sm:$0xf] %vm1238, %v4884
        %4917 = vst.msk [vmem:[#allocation3 + $0x108] sm:$0xf] %vm1238, %v4885
        %4918 = vst.msk [vmem:[#allocation3 + $0x11c] sm:$0xf] %vm1238, %v4886
        %4919 = vst.msk [vmem:[#allocation3 + $0x130] sm:$0xf] %vm1238, %v4887
        %4920 = vst.msk [vmem:[#allocation3 + $0x144] sm:$0xf] %vm1238, %v4888
        %4921 = vst.msk [vmem:[#allocation3 + $0x158] sm:$0xf] %vm1238, %v4889
        %4922 = vst.msk [vmem:[#allocation3 + $0x16c] sm:$0xf] %vm1238, %v4890
        %4923 = vst.msk [vmem:[#allocation3 + $0x180] sm:$0xf] %vm1238, %v4891
        %4924 = vst.msk [vmem:[#allocation3 + $0x194] sm:$0xf] %vm1238, %v4892
        %4925 = vst.msk [vmem:[#allocation3 + $0x1a8] sm:$0xf] %vm1238, %v4893
        %4926 = vst.msk [vmem:[#allocation3 + $0x1bc] sm:$0xf] %vm1238, %v4894
        %4927 = vst.msk [vmem:[#allocation3 + $0x1d0] sm:$0xf] %vm1238, %v4895
        %4928 = vst.msk [vmem:[#allocation3 + $0x1e4] sm:$0xf] %vm1238, %v4896
        %4929 = vst.msk [vmem:[#allocation3 + $0x1f8] sm:$0xf] %vm1238, %v4897
        %4930 = vst.msk [vmem:[#allocation3 + $0x20c] sm:$0xf] %vm1238, %v4898
        %4931 = vst.msk [vmem:[#allocation3 + $0x220] sm:$0xf] %vm1238, %v4899
        %4932 = vst.msk [vmem:[#allocation3 + $0x234] sm:$0xf] %vm1238, %v4900
        %4933 = vst.msk [vmem:[#allocation3 + $0x248] sm:$0xf] %vm1238, %v4901
        %4934 = vst.msk [vmem:[#allocation3 + $0x25c] sm:$0xf] %vm1238, %v4902
        %4935 = vst.msk [vmem:[#allocation3 + $0x270] sm:$0xf] %vm1238, %v4903
        %v4936 = vld [vmem:[%s1141 + $0x7] sm:$0xff]
        %v4937 = vld [vmem:[%s1141 + $0xf] sm:$0xff]
        %v4938 = vld [vmem:[%s1141 + $0x27] sm:$0xff]
        %v4939 = vld [vmem:[%s1141 + $0x2f] sm:$0xff]
        %v4940 = vld [vmem:[%s1141 + $0x47] sm:$0xff]
        %v4941 = vld [vmem:[%s1141 + $0x4f] sm:$0xff]
        %v4942 = vld [vmem:[%s1141 + $0x67] sm:$0xff]
        %v4943 = vld [vmem:[%s1141 + $0x6f] sm:$0xff]
        %v4944 = vld [vmem:[%s1141 + $0x87] sm:$0xff]
        %v4945 = vld [vmem:[%s1141 + $0x8f] sm:$0xff]
        %v4946 = vld [vmem:[%s1141 + $0xa7] sm:$0xff]
        %v4947 = vld [vmem:[%s1141 + $0xaf] sm:$0xff]
        %v4948 = vld [vmem:[%s1141 + $0xc7] sm:$0xff]
        %v4949 = vld [vmem:[%s1141 + $0xcf] sm:$0xff]
        %v4950 = vld [vmem:[%s1141 + $0xe7] sm:$0xff]
        %v4951 = vld [vmem:[%s1141 + $0xef] sm:$0xff]
        %v4952 = vld [vmem:[%s1141 + $0x107] sm:$0xff]
        %v4953 = vld [vmem:[%s1141 + $0x10f] sm:$0xff]
        %v4954 = vld [vmem:[%s1141 + $0x127] sm:$0xff]
        %v4955 = vld [vmem:[%s1141 + $0x12f] sm:$0xff]
        %v4956 = vld [vmem:[%s1141 + $0x147] sm:$0xff]
        %v4957 = vld [vmem:[%s1141 + $0x14f] sm:$0xff]
        %v4958 = vld [vmem:[%s1141 + $0x167] sm:$0xff]
        %v4959 = vld [vmem:[%s1141 + $0x16f] sm:$0xff]
        %v4960 = vld [vmem:[%s1141 + $0x187] sm:$0xff]
        %v4961 = vld [vmem:[%s1141 + $0x18f] sm:$0xff]
        %v4962 = vld [vmem:[%s1141 + $0x1a7] sm:$0xff]
        %v4963 = vld [vmem:[%s1141 + $0x1af] sm:$0xff]
        %v4964 = vld [vmem:[%s1141 + $0x1c7] sm:$0xff]
        %v4965 = vld [vmem:[%s1141 + $0x1cf] sm:$0xff]
        %v4966 = vld [vmem:[%s1141 + $0x1e7] sm:$0xff]
        %v4967 = vld [vmem:[%s1141 + $0x1ef] sm:$0xff]
        %v4968 = vpack.c.bf16 %v4936, %v4936
        %v4969 = vpack.c.bf16 %v4937, %v4937
        %v4970 = vpack.c.bf16 %v4938, %v4938
        %v4971 = vpack.c.bf16 %v4939, %v4939
        %v4972 = vpack.c.bf16 %v4940, %v4940
        %v4973 = vpack.c.bf16 %v4941, %v4941
        %v4974 = vpack.c.bf16 %v4942, %v4942
        %v4975 = vpack.c.bf16 %v4943, %v4943
        %v4976 = vpack.c.bf16 %v4944, %v4944
        %v4977 = vpack.c.bf16 %v4945, %v4945
        %v4978 = vpack.c.bf16 %v4946, %v4946
        %v4979 = vpack.c.bf16 %v4947, %v4947
        %v4980 = vpack.c.bf16 %v4948, %v4948
        %v4981 = vpack.c.bf16 %v4949, %v4949
        %v4982 = vpack.c.bf16 %v4950, %v4950
        %v4983 = vpack.c.bf16 %v4951, %v4951
        %v4984 = vpack.c.bf16 %v4952, %v4952
        %v4985 = vpack.c.bf16 %v4953, %v4953
        %v4986 = vpack.c.bf16 %v4954, %v4954
        %v4987 = vpack.c.bf16 %v4955, %v4955
        %v4988 = vpack.c.bf16 %v4956, %v4956
        %v4989 = vpack.c.bf16 %v4957, %v4957
        %v4990 = vpack.c.bf16 %v4958, %v4958
        %v4991 = vpack.c.bf16 %v4959, %v4959
        %v4992 = vpack.c.bf16 %v4960, %v4960
        %v4993 = vpack.c.bf16 %v4961, %v4961
        %v4994 = vpack.c.bf16 %v4962, %v4962
        %v4995 = vpack.c.bf16 %v4963, %v4963
        %v4996 = vpack.c.bf16 %v4964, %v4964
        %v4997 = vpack.c.bf16 %v4965, %v4965
        %v4998 = vpack.c.bf16 %v4966, %v4966
        %v4999 = vpack.c.bf16 %v4967, %v4967
        %5032 = vrot.lane.b32.xlu0 %v4968, 64
        %v5033 = vpop.permute.xlu0 %5032
        %5034 = vrot.lane.b32.xlu0 %v4969, 64
        %v5035 = vpop.permute.xlu0 %5034
        %5036 = vrot.lane.b32.xlu0 %v4970, 64
        %v5037 = vpop.permute.xlu0 %5036
        %5038 = vrot.lane.b32.xlu0 %v4971, 64
        %v5039 = vpop.permute.xlu0 %5038
        %5040 = vrot.lane.b32.xlu0 %v4972, 64
        %v5041 = vpop.permute.xlu0 %5040
        %5042 = vrot.lane.b32.xlu0 %v4973, 64
        %v5043 = vpop.permute.xlu0 %5042
        %5044 = vrot.lane.b32.xlu0 %v4974, 64
        %v5045 = vpop.permute.xlu0 %5044
        %5046 = vrot.lane.b32.xlu0 %v4975, 64
        %v5047 = vpop.permute.xlu0 %5046
        %5048 = vrot.lane.b32.xlu0 %v4976, 64
        %v5049 = vpop.permute.xlu0 %5048
        %5050 = vrot.lane.b32.xlu0 %v4977, 64
        %v5051 = vpop.permute.xlu0 %5050
        %5052 = vrot.lane.b32.xlu0 %v4978, 64
        %v5053 = vpop.permute.xlu0 %5052
        %5054 = vrot.lane.b32.xlu0 %v4979, 64
        %v5055 = vpop.permute.xlu0 %5054
        %5056 = vrot.lane.b32.xlu0 %v4980, 64
        %v5057 = vpop.permute.xlu0 %5056
        %5058 = vrot.lane.b32.xlu0 %v4981, 64
        %v5059 = vpop.permute.xlu0 %5058
        %5060 = vrot.lane.b32.xlu0 %v4982, 64
        %v5061 = vpop.permute.xlu0 %5060
        %5062 = vrot.lane.b32.xlu0 %v4983, 64
        %v5063 = vpop.permute.xlu0 %5062
        %5064 = vrot.lane.b32.xlu0 %v4984, 64
        %v5065 = vpop.permute.xlu0 %5064
        %5066 = vrot.lane.b32.xlu0 %v4985, 64
        %v5067 = vpop.permute.xlu0 %5066
        %5068 = vrot.lane.b32.xlu0 %v4986, 64
        %v5069 = vpop.permute.xlu0 %5068
        %5070 = vrot.lane.b32.xlu0 %v4987, 64
        %v5071 = vpop.permute.xlu0 %5070
        %5072 = vrot.lane.b32.xlu0 %v4988, 64
        %v5073 = vpop.permute.xlu0 %5072
        %5074 = vrot.lane.b32.xlu0 %v4989, 64
        %v5075 = vpop.permute.xlu0 %5074
        %5076 = vrot.lane.b32.xlu0 %v4990, 64
        %v5077 = vpop.permute.xlu0 %5076
        %5078 = vrot.lane.b32.xlu0 %v4991, 64
        %v5079 = vpop.permute.xlu0 %5078
        %5080 = vrot.lane.b32.xlu0 %v4992, 64
        %v5081 = vpop.permute.xlu0 %5080
        %5082 = vrot.lane.b32.xlu0 %v4993, 64
        %v5083 = vpop.permute.xlu0 %5082
        %5084 = vrot.lane.b32.xlu0 %v4994, 64
        %v5085 = vpop.permute.xlu0 %5084
        %5086 = vrot.lane.b32.xlu0 %v4995, 64
        %v5087 = vpop.permute.xlu0 %5086
        %5088 = vrot.lane.b32.xlu0 %v4996, 64
        %v5089 = vpop.permute.xlu0 %5088
        %5090 = vrot.lane.b32.xlu0 %v4997, 64
        %v5091 = vpop.permute.xlu0 %5090
        %5092 = vrot.lane.b32.xlu0 %v4998, 64
        %v5093 = vpop.permute.xlu0 %5092
        %5094 = vrot.lane.b32.xlu0 %v4999, 64
        %v5095 = vpop.permute.xlu0 %5094
        %5128 = vst.msk [vmem:[#allocation3 + $0x4] sm:$0xf] %vm1463, %v5033
        %5129 = vst.msk [vmem:[#allocation3 + $0x18] sm:$0xf] %vm1463, %v5035
        %5130 = vst.msk [vmem:[#allocation3 + $0x2c] sm:$0xf] %vm1463, %v5037
        %5131 = vst.msk [vmem:[#allocation3 + $0x40] sm:$0xf] %vm1463, %v5039
        %5132 = vst.msk [vmem:[#allocation3 + $0x54] sm:$0xf] %vm1463, %v5041
        %5133 = vst.msk [vmem:[#allocation3 + $0x68] sm:$0xf] %vm1463, %v5043
        %5134 = vst.msk [vmem:[#allocation3 + $0x7c] sm:$0xf] %vm1463, %v5045
        %5135 = vst.msk [vmem:[#allocation3 + $0x90] sm:$0xf] %vm1463, %v5047
        %5136 = vst.msk [vmem:[#allocation3 + $0xa4] sm:$0xf] %vm1463, %v5049
        %5137 = vst.msk [vmem:[#allocation3 + $0xb8] sm:$0xf] %vm1463, %v5051
        %5138 = vst.msk [vmem:[#allocation3 + $0xcc] sm:$0xf] %vm1463, %v5053
        %5139 = vst.msk [vmem:[#allocation3 + $0xe0] sm:$0xf] %vm1463, %v5055
        %5140 = vst.msk [vmem:[#allocation3 + $0xf4] sm:$0xf] %vm1463, %v5057
        %5141 = vst.msk [vmem:[#allocation3 + $0x108] sm:$0xf] %vm1463, %v5059
        %5142 = vst.msk [vmem:[#allocation3 + $0x11c] sm:$0xf] %vm1463, %v5061
        %5143 = vst.msk [vmem:[#allocation3 + $0x130] sm:$0xf] %vm1463, %v5063
        %5144 = vst.msk [vmem:[#allocation3 + $0x144] sm:$0xf] %vm1463, %v5065
        %5145 = vst.msk [vmem:[#allocation3 + $0x158] sm:$0xf] %vm1463, %v5067
        %5146 = vst.msk [vmem:[#allocation3 + $0x16c] sm:$0xf] %vm1463, %v5069
        %5147 = vst.msk [vmem:[#allocation3 + $0x180] sm:$0xf] %vm1463, %v5071
        %5148 = vst.msk [vmem:[#allocation3 + $0x194] sm:$0xf] %vm1463, %v5073
        %5149 = vst.msk [vmem:[#allocation3 + $0x1a8] sm:$0xf] %vm1463, %v5075
        %5150 = vst.msk [vmem:[#allocation3 + $0x1bc] sm:$0xf] %vm1463, %v5077
        %5151 = vst.msk [vmem:[#allocation3 + $0x1d0] sm:$0xf] %vm1463, %v5079
        %5152 = vst.msk [vmem:[#allocation3 + $0x1e4] sm:$0xf] %vm1463, %v5081
        %5153 = vst.msk [vmem:[#allocation3 + $0x1f8] sm:$0xf] %vm1463, %v5083
        %5154 = vst.msk [vmem:[#allocation3 + $0x20c] sm:$0xf] %vm1463, %v5085
        %5155 = vst.msk [vmem:[#allocation3 + $0x220] sm:$0xf] %vm1463, %v5087
        %5156 = vst.msk [vmem:[#allocation3 + $0x234] sm:$0xf] %vm1463, %v5089
        %5157 = vst.msk [vmem:[#allocation3 + $0x248] sm:$0xf] %vm1463, %v5091
        %5158 = vst.msk [vmem:[#allocation3 + $0x25c] sm:$0xf] %vm1463, %v5093
        %5159 = vst.msk [vmem:[#allocation3 + $0x270] sm:$0xf] %vm1463, %v5095
        %v5160 = vld [vmem:[%s1141 + $0x8] sm:$0xff]
        %v5161 = vld [vmem:[%s1141 + $0x10] sm:$0xff]
        %v5162 = vld [vmem:[%s1141 + $0x28] sm:$0xff]
        %v5163 = vld [vmem:[%s1141 + $0x30] sm:$0xff]
        %v5164 = vld [vmem:[%s1141 + $0x48] sm:$0xff]
        %v5165 = vld [vmem:[%s1141 + $0x50] sm:$0xff]
        %v5166 = vld [vmem:[%s1141 + $0x68] sm:$0xff]
        %v5167 = vld [vmem:[%s1141 + $0x70] sm:$0xff]
        %v5168 = vld [vmem:[%s1141 + $0x88] sm:$0xff]
        %v5169 = vld [vmem:[%s1141 + $0x90] sm:$0xff]
        %v5170 = vld [vmem:[%s1141 + $0xa8] sm:$0xff]
        %v5171 = vld [vmem:[%s1141 + $0xb0] sm:$0xff]
        %v5172 = vld [vmem:[%s1141 + $0xc8] sm:$0xff]
        %v5173 = vld [vmem:[%s1141 + $0xd0] sm:$0xff]
        %v5174 = vld [vmem:[%s1141 + $0xe8] sm:$0xff]
        %v5175 = vld [vmem:[%s1141 + $0xf0] sm:$0xff]
        %v5176 = vld [vmem:[%s1141 + $0x108] sm:$0xff]
        %v5177 = vld [vmem:[%s1141 + $0x110] sm:$0xff]
        %v5178 = vld [vmem:[%s1141 + $0x128] sm:$0xff]
        %v5179 = vld [vmem:[%s1141 + $0x130] sm:$0xff]
        %v5180 = vld [vmem:[%s1141 + $0x148] sm:$0xff]
        %v5181 = vld [vmem:[%s1141 + $0x150] sm:$0xff]
        %v5182 = vld [vmem:[%s1141 + $0x168] sm:$0xff]
        %v5183 = vld [vmem:[%s1141 + $0x170] sm:$0xff]
        %v5184 = vld [vmem:[%s1141 + $0x188] sm:$0xff]
        %v5185 = vld [vmem:[%s1141 + $0x190] sm:$0xff]
        %v5186 = vld [vmem:[%s1141 + $0x1a8] sm:$0xff]
        %v5187 = vld [vmem:[%s1141 + $0x1b0] sm:$0xff]
        %v5188 = vld [vmem:[%s1141 + $0x1c8] sm:$0xff]
        %v5189 = vld [vmem:[%s1141 + $0x1d0] sm:$0xff]
        %v5190 = vld [vmem:[%s1141 + $0x1e8] sm:$0xff]
        %v5191 = vld [vmem:[%s1141 + $0x1f0] sm:$0xff]
        %v5192 = vpack.c.bf16 %v5160, %v5160
        %v5193 = vpack.c.bf16 %v5161, %v5161
        %v5194 = vpack.c.bf16 %v5162, %v5162
        %v5195 = vpack.c.bf16 %v5163, %v5163
        %v5196 = vpack.c.bf16 %v5164, %v5164
        %v5197 = vpack.c.bf16 %v5165, %v5165
        %v5198 = vpack.c.bf16 %v5166, %v5166
        %v5199 = vpack.c.bf16 %v5167, %v5167
        %v5200 = vpack.c.bf16 %v5168, %v5168
        %v5201 = vpack.c.bf16 %v5169, %v5169
        %v5202 = vpack.c.bf16 %v5170, %v5170
        %v5203 = vpack.c.bf16 %v5171, %v5171
        %v5204 = vpack.c.bf16 %v5172, %v5172
        %v5205 = vpack.c.bf16 %v5173, %v5173
        %v5206 = vpack.c.bf16 %v5174, %v5174
        %v5207 = vpack.c.bf16 %v5175, %v5175
        %v5208 = vpack.c.bf16 %v5176, %v5176
        %v5209 = vpack.c.bf16 %v5177, %v5177
        %v5210 = vpack.c.bf16 %v5178, %v5178
        %v5211 = vpack.c.bf16 %v5179, %v5179
        %v5212 = vpack.c.bf16 %v5180, %v5180
        %v5213 = vpack.c.bf16 %v5181, %v5181
        %v5214 = vpack.c.bf16 %v5182, %v5182
        %v5215 = vpack.c.bf16 %v5183, %v5183
        %v5216 = vpack.c.bf16 %v5184, %v5184
        %v5217 = vpack.c.bf16 %v5185, %v5185
        %v5218 = vpack.c.bf16 %v5186, %v5186
        %v5219 = vpack.c.bf16 %v5187, %v5187
        %v5220 = vpack.c.bf16 %v5188, %v5188
        %v5221 = vpack.c.bf16 %v5189, %v5189
        %v5222 = vpack.c.bf16 %v5190, %v5190
        %v5223 = vpack.c.bf16 %v5191, %v5191
        %5224 = vst.msk [vmem:[#allocation3 + $0x8] sm:$0xf] %vm1238, %v5192
        %5225 = vst.msk [vmem:[#allocation3 + $0x1c] sm:$0xf] %vm1238, %v5193
        %5226 = vst.msk [vmem:[#allocation3 + $0x30] sm:$0xf] %vm1238, %v5194
        %5227 = vst.msk [vmem:[#allocation3 + $0x44] sm:$0xf] %vm1238, %v5195
        %5228 = vst.msk [vmem:[#allocation3 + $0x58] sm:$0xf] %vm1238, %v5196
        %5229 = vst.msk [vmem:[#allocation3 + $0x6c] sm:$0xf] %vm1238, %v5197
        %5230 = vst.msk [vmem:[#allocation3 + $0x80] sm:$0xf] %vm1238, %v5198
        %5231 = vst.msk [vmem:[#allocation3 + $0x94] sm:$0xf] %vm1238, %v5199
        %5232 = vst.msk [vmem:[#allocation3 + $0xa8] sm:$0xf] %vm1238, %v5200
        %5233 = vst.msk [vmem:[#allocation3 + $0xbc] sm:$0xf] %vm1238, %v5201
        %5234 = vst.msk [vmem:[#allocation3 + $0xd0] sm:$0xf] %vm1238, %v5202
        %5235 = vst.msk [vmem:[#allocation3 + $0xe4] sm:$0xf] %vm1238, %v5203
        %5236 = vst.msk [vmem:[#allocation3 + $0xf8] sm:$0xf] %vm1238, %v5204
        %5237 = vst.msk [vmem:[#allocation3 + $0x10c] sm:$0xf] %vm1238, %v5205
        %5238 = vst.msk [vmem:[#allocation3 + $0x120] sm:$0xf] %vm1238, %v5206
        %5239 = vst.msk [vmem:[#allocation3 + $0x134] sm:$0xf] %vm1238, %v5207
        %5240 = vst.msk [vmem:[#allocation3 + $0x148] sm:$0xf] %vm1238, %v5208
        %5241 = vst.msk [vmem:[#allocation3 + $0x15c] sm:$0xf] %vm1238, %v5209
        %5242 = vst.msk [vmem:[#allocation3 + $0x170] sm:$0xf] %vm1238, %v5210
        %5243 = vst.msk [vmem:[#allocation3 + $0x184] sm:$0xf] %vm1238, %v5211
        %5244 = vst.msk [vmem:[#allocation3 + $0x198] sm:$0xf] %vm1238, %v5212
        %5245 = vst.msk [vmem:[#allocation3 + $0x1ac] sm:$0xf] %vm1238, %v5213
        %5246 = vst.msk [vmem:[#allocation3 + $0x1c0] sm:$0xf] %vm1238, %v5214
        %5247 = vst.msk [vmem:[#allocation3 + $0x1d4] sm:$0xf] %vm1238, %v5215
        %5248 = vst.msk [vmem:[#allocation3 + $0x1e8] sm:$0xf] %vm1238, %v5216
        %5249 = vst.msk [vmem:[#allocation3 + $0x1fc] sm:$0xf] %vm1238, %v5217
        %5250 = vst.msk [vmem:[#allocation3 + $0x210] sm:$0xf] %vm1238, %v5218
        %5251 = vst.msk [vmem:[#allocation3 + $0x224] sm:$0xf] %vm1238, %v5219
        %5252 = vst.msk [vmem:[#allocation3 + $0x238] sm:$0xf] %vm1238, %v5220
        %5253 = vst.msk [vmem:[#allocation3 + $0x24c] sm:$0xf] %vm1238, %v5221
        %5254 = vst.msk [vmem:[#allocation3 + $0x260] sm:$0xf] %vm1238, %v5222
        %5255 = vst.msk [vmem:[#allocation3 + $0x274] sm:$0xf] %vm1238, %v5223
        %v5256 = vld [vmem:[%s1141 + $0x9] sm:$0xff]
        %v5257 = vld [vmem:[%s1141 + $0x11] sm:$0xff]
        %v5258 = vld [vmem:[%s1141 + $0x29] sm:$0xff]
        %v5259 = vld [vmem:[%s1141 + $0x31] sm:$0xff]
        %v5260 = vld [vmem:[%s1141 + $0x49] sm:$0xff]
        %v5261 = vld [vmem:[%s1141 + $0x51] sm:$0xff]
        %v5262 = vld [vmem:[%s1141 + $0x69] sm:$0xff]
        %v5263 = vld [vmem:[%s1141 + $0x71] sm:$0xff]
        %v5264 = vld [vmem:[%s1141 + $0x89] sm:$0xff]
        %v5265 = vld [vmem:[%s1141 + $0x91] sm:$0xff]
        %v5266 = vld [vmem:[%s1141 + $0xa9] sm:$0xff]
        %v5267 = vld [vmem:[%s1141 + $0xb1] sm:$0xff]
        %v5268 = vld [vmem:[%s1141 + $0xc9] sm:$0xff]
        %v5269 = vld [vmem:[%s1141 + $0xd1] sm:$0xff]
        %v5270 = vld [vmem:[%s1141 + $0xe9] sm:$0xff]
        %v5271 = vld [vmem:[%s1141 + $0xf1] sm:$0xff]
        %v5272 = vld [vmem:[%s1141 + $0x109] sm:$0xff]
        %v5273 = vld [vmem:[%s1141 + $0x111] sm:$0xff]
        %v5274 = vld [vmem:[%s1141 + $0x129] sm:$0xff]
        %v5275 = vld [vmem:[%s1141 + $0x131] sm:$0xff]
        %v5276 = vld [vmem:[%s1141 + $0x149] sm:$0xff]
        %v5277 = vld [vmem:[%s1141 + $0x151] sm:$0xff]
        %v5278 = vld [vmem:[%s1141 + $0x169] sm:$0xff]
        %v5279 = vld [vmem:[%s1141 + $0x171] sm:$0xff]
        %v5280 = vld [vmem:[%s1141 + $0x189] sm:$0xff]
        %v5281 = vld [vmem:[%s1141 + $0x191] sm:$0xff]
        %v5282 = vld [vmem:[%s1141 + $0x1a9] sm:$0xff]
        %v5283 = vld [vmem:[%s1141 + $0x1b1] sm:$0xff]
        %v5284 = vld [vmem:[%s1141 + $0x1c9] sm:$0xff]
        %v5285 = vld [vmem:[%s1141 + $0x1d1] sm:$0xff]
        %v5286 = vld [vmem:[%s1141 + $0x1e9] sm:$0xff]
        %v5287 = vld [vmem:[%s1141 + $0x1f1] sm:$0xff]
        %v5288 = vpack.c.bf16 %v5256, %v5256
        %v5289 = vpack.c.bf16 %v5257, %v5257
        %v5290 = vpack.c.bf16 %v5258, %v5258
        %v5291 = vpack.c.bf16 %v5259, %v5259
        %v5292 = vpack.c.bf16 %v5260, %v5260
        %v5293 = vpack.c.bf16 %v5261, %v5261
        %v5294 = vpack.c.bf16 %v5262, %v5262
        %v5295 = vpack.c.bf16 %v5263, %v5263
        %v5296 = vpack.c.bf16 %v5264, %v5264
        %v5297 = vpack.c.bf16 %v5265, %v5265
        %v5298 = vpack.c.bf16 %v5266, %v5266
        %v5299 = vpack.c.bf16 %v5267, %v5267
        %v5300 = vpack.c.bf16 %v5268, %v5268
        %v5301 = vpack.c.bf16 %v5269, %v5269
        %v5302 = vpack.c.bf16 %v5270, %v5270
        %v5303 = vpack.c.bf16 %v5271, %v5271
        %v5304 = vpack.c.bf16 %v5272, %v5272
        %v5305 = vpack.c.bf16 %v5273, %v5273
        %v5306 = vpack.c.bf16 %v5274, %v5274
        %v5307 = vpack.c.bf16 %v5275, %v5275
        %v5308 = vpack.c.bf16 %v5276, %v5276
        %v5309 = vpack.c.bf16 %v5277, %v5277
        %v5310 = vpack.c.bf16 %v5278, %v5278
        %v5311 = vpack.c.bf16 %v5279, %v5279
        %v5312 = vpack.c.bf16 %v5280, %v5280
        %v5313 = vpack.c.bf16 %v5281, %v5281
        %v5314 = vpack.c.bf16 %v5282, %v5282
        %v5315 = vpack.c.bf16 %v5283, %v5283
        %v5316 = vpack.c.bf16 %v5284, %v5284
        %v5317 = vpack.c.bf16 %v5285, %v5285
        %v5318 = vpack.c.bf16 %v5286, %v5286
        %v5319 = vpack.c.bf16 %v5287, %v5287
        %5352 = vrot.lane.b32.xlu0 %v5288, 64
        %v5353 = vpop.permute.xlu0 %5352
        %5354 = vrot.lane.b32.xlu0 %v5289, 64
        %v5355 = vpop.permute.xlu0 %5354
        %5356 = vrot.lane.b32.xlu0 %v5290, 64
        %v5357 = vpop.permute.xlu0 %5356
        %5358 = vrot.lane.b32.xlu0 %v5291, 64
        %v5359 = vpop.permute.xlu0 %5358
        %5360 = vrot.lane.b32.xlu0 %v5292, 64
        %v5361 = vpop.permute.xlu0 %5360
        %5362 = vrot.lane.b32.xlu0 %v5293, 64
        %v5363 = vpop.permute.xlu0 %5362
        %5364 = vrot.lane.b32.xlu0 %v5294, 64
        %v5365 = vpop.permute.xlu0 %5364
        %5366 = vrot.lane.b32.xlu0 %v5295, 64
        %v5367 = vpop.permute.xlu0 %5366
        %5368 = vrot.lane.b32.xlu0 %v5296, 64
        %v5369 = vpop.permute.xlu0 %5368
        %5370 = vrot.lane.b32.xlu0 %v5297, 64
        %v5371 = vpop.permute.xlu0 %5370
        %5372 = vrot.lane.b32.xlu0 %v5298, 64
        %v5373 = vpop.permute.xlu0 %5372
        %5374 = vrot.lane.b32.xlu0 %v5299, 64
        %v5375 = vpop.permute.xlu0 %5374
        %5376 = vrot.lane.b32.xlu0 %v5300, 64
        %v5377 = vpop.permute.xlu0 %5376
        %5378 = vrot.lane.b32.xlu0 %v5301, 64
        %v5379 = vpop.permute.xlu0 %5378
        %5380 = vrot.lane.b32.xlu0 %v5302, 64
        %v5381 = vpop.permute.xlu0 %5380
        %5382 = vrot.lane.b32.xlu0 %v5303, 64
        %v5383 = vpop.permute.xlu0 %5382
        %5384 = vrot.lane.b32.xlu0 %v5304, 64
        %v5385 = vpop.permute.xlu0 %5384
        %5386 = vrot.lane.b32.xlu0 %v5305, 64
        %v5387 = vpop.permute.xlu0 %5386
        %5388 = vrot.lane.b32.xlu0 %v5306, 64
        %v5389 = vpop.permute.xlu0 %5388
        %5390 = vrot.lane.b32.xlu0 %v5307, 64
        %v5391 = vpop.permute.xlu0 %5390
        %5392 = vrot.lane.b32.xlu0 %v5308, 64
        %v5393 = vpop.permute.xlu0 %5392
        %5394 = vrot.lane.b32.xlu0 %v5309, 64
        %v5395 = vpop.permute.xlu0 %5394
        %5396 = vrot.lane.b32.xlu0 %v5310, 64
        %v5397 = vpop.permute.xlu0 %5396
        %5398 = vrot.lane.b32.xlu0 %v5311, 64
        %v5399 = vpop.permute.xlu0 %5398
        %5400 = vrot.lane.b32.xlu0 %v5312, 64
        %v5401 = vpop.permute.xlu0 %5400
        %5402 = vrot.lane.b32.xlu0 %v5313, 64
        %v5403 = vpop.permute.xlu0 %5402
        %5404 = vrot.lane.b32.xlu0 %v5314, 64
        %v5405 = vpop.permute.xlu0 %5404
        %5406 = vrot.lane.b32.xlu0 %v5315, 64
        %v5407 = vpop.permute.xlu0 %5406
        %5408 = vrot.lane.b32.xlu0 %v5316, 64
        %v5409 = vpop.permute.xlu0 %5408
        %5410 = vrot.lane.b32.xlu0 %v5317, 64
        %v5411 = vpop.permute.xlu0 %5410
        %5412 = vrot.lane.b32.xlu0 %v5318, 64
        %v5413 = vpop.permute.xlu0 %5412
        %5414 = vrot.lane.b32.xlu0 %v5319, 64
        %v5415 = vpop.permute.xlu0 %5414
        %5448 = vst.msk [vmem:[#allocation3 + $0x8] sm:$0xf] %vm1463, %v5353
        %5449 = vst.msk [vmem:[#allocation3 + $0x1c] sm:$0xf] %vm1463, %v5355
        %5450 = vst.msk [vmem:[#allocation3 + $0x30] sm:$0xf] %vm1463, %v5357
        %5451 = vst.msk [vmem:[#allocation3 + $0x44] sm:$0xf] %vm1463, %v5359
        %5452 = vst.msk [vmem:[#allocation3 + $0x58] sm:$0xf] %vm1463, %v5361
        %5453 = vst.msk [vmem:[#allocation3 + $0x6c] sm:$0xf] %vm1463, %v5363
        %5454 = vst.msk [vmem:[#allocation3 + $0x80] sm:$0xf] %vm1463, %v5365
        %5455 = vst.msk [vmem:[#allocation3 + $0x94] sm:$0xf] %vm1463, %v5367
        %5456 = vst.msk [vmem:[#allocation3 + $0xa8] sm:$0xf] %vm1463, %v5369
        %5457 = vst.msk [vmem:[#allocation3 + $0xbc] sm:$0xf] %vm1463, %v5371
        %5458 = vst.msk [vmem:[#allocation3 + $0xd0] sm:$0xf] %vm1463, %v5373
        %5459 = vst.msk [vmem:[#allocation3 + $0xe4] sm:$0xf] %vm1463, %v5375
        %5460 = vst.msk [vmem:[#allocation3 + $0xf8] sm:$0xf] %vm1463, %v5377
        %5461 = vst.msk [vmem:[#allocation3 + $0x10c] sm:$0xf] %vm1463, %v5379
        %5462 = vst.msk [vmem:[#allocation3 + $0x120] sm:$0xf] %vm1463, %v5381
        %5463 = vst.msk [vmem:[#allocation3 + $0x134] sm:$0xf] %vm1463, %v5383
        %5464 = vst.msk [vmem:[#allocation3 + $0x148] sm:$0xf] %vm1463, %v5385
        %5465 = vst.msk [vmem:[#allocation3 + $0x15c] sm:$0xf] %vm1463, %v5387
        %5466 = vst.msk [vmem:[#allocation3 + $0x170] sm:$0xf] %vm1463, %v5389
        %5467 = vst.msk [vmem:[#allocation3 + $0x184] sm:$0xf] %vm1463, %v5391
        %5468 = vst.msk [vmem:[#allocation3 + $0x198] sm:$0xf] %vm1463, %v5393
        %5469 = vst.msk [vmem:[#allocation3 + $0x1ac] sm:$0xf] %vm1463, %v5395
        %5470 = vst.msk [vmem:[#allocation3 + $0x1c0] sm:$0xf] %vm1463, %v5397
        %5471 = vst.msk [vmem:[#allocation3 + $0x1d4] sm:$0xf] %vm1463, %v5399
        %5472 = vst.msk [vmem:[#allocation3 + $0x1e8] sm:$0xf] %vm1463, %v5401
        %5473 = vst.msk [vmem:[#allocation3 + $0x1fc] sm:$0xf] %vm1463, %v5403
        %5474 = vst.msk [vmem:[#allocation3 + $0x210] sm:$0xf] %vm1463, %v5405
        %5475 = vst.msk [vmem:[#allocation3 + $0x224] sm:$0xf] %vm1463, %v5407
        %5476 = vst.msk [vmem:[#allocation3 + $0x238] sm:$0xf] %vm1463, %v5409
        %5477 = vst.msk [vmem:[#allocation3 + $0x24c] sm:$0xf] %vm1463, %v5411
        %5478 = vst.msk [vmem:[#allocation3 + $0x260] sm:$0xf] %vm1463, %v5413
        %5479 = vst.msk [vmem:[#allocation3 + $0x274] sm:$0xf] %vm1463, %v5415
        %v5480 = vld [vmem:[%s2136 + $0x7] sm:$0xff]
        %v5481 = vld [vmem:[%s2136 + $0xf] sm:$0xff]
        %v5482 = vld [vmem:[%s2136 + $0x27] sm:$0xff]
        %v5483 = vld [vmem:[%s2136 + $0x2f] sm:$0xff]
        %v5484 = vld [vmem:[%s2136 + $0x47] sm:$0xff]
        %v5485 = vld [vmem:[%s2136 + $0x4f] sm:$0xff]
        %v5486 = vld [vmem:[%s2136 + $0x67] sm:$0xff]
        %v5487 = vld [vmem:[%s2136 + $0x6f] sm:$0xff]
        %v5488 = vld [vmem:[%s2136 + $0x87] sm:$0xff]
        %v5489 = vld [vmem:[%s2136 + $0x8f] sm:$0xff]
        %v5490 = vld [vmem:[%s2136 + $0xa7] sm:$0xff]
        %v5491 = vld [vmem:[%s2136 + $0xaf] sm:$0xff]
        %v5492 = vld [vmem:[%s2136 + $0xc7] sm:$0xff]
        %v5493 = vld [vmem:[%s2136 + $0xcf] sm:$0xff]
        %v5494 = vld [vmem:[%s2136 + $0xe7] sm:$0xff]
        %v5495 = vld [vmem:[%s2136 + $0xef] sm:$0xff]
        %v5496 = vld [vmem:[%s2136 + $0x107] sm:$0xff]
        %v5497 = vld [vmem:[%s2136 + $0x10f] sm:$0xff]
        %v5498 = vld [vmem:[%s2136 + $0x127] sm:$0xff]
        %v5499 = vld [vmem:[%s2136 + $0x12f] sm:$0xff]
        %v5500 = vld [vmem:[%s2136 + $0x147] sm:$0xff]
        %v5501 = vld [vmem:[%s2136 + $0x14f] sm:$0xff]
        %v5502 = vld [vmem:[%s2136 + $0x167] sm:$0xff]
        %v5503 = vld [vmem:[%s2136 + $0x16f] sm:$0xff]
        %v5504 = vld [vmem:[%s2136 + $0x187] sm:$0xff]
        %v5505 = vld [vmem:[%s2136 + $0x18f] sm:$0xff]
        %v5506 = vld [vmem:[%s2136 + $0x1a7] sm:$0xff]
        %v5507 = vld [vmem:[%s2136 + $0x1af] sm:$0xff]
        %v5508 = vld [vmem:[%s2136 + $0x1c7] sm:$0xff]
        %v5509 = vld [vmem:[%s2136 + $0x1cf] sm:$0xff]
        %v5510 = vld [vmem:[%s2136 + $0x1e7] sm:$0xff]
        %v5511 = vld [vmem:[%s2136 + $0x1ef] sm:$0xff]
        %v5512 = vpack.c.bf16 %v5480, %v5480
        %v5513 = vpack.c.bf16 %v5481, %v5481
        %v5514 = vpack.c.bf16 %v5482, %v5482
        %v5515 = vpack.c.bf16 %v5483, %v5483
        %v5516 = vpack.c.bf16 %v5484, %v5484
        %v5517 = vpack.c.bf16 %v5485, %v5485
        %v5518 = vpack.c.bf16 %v5486, %v5486
        %v5519 = vpack.c.bf16 %v5487, %v5487
        %v5520 = vpack.c.bf16 %v5488, %v5488
        %v5521 = vpack.c.bf16 %v5489, %v5489
        %v5522 = vpack.c.bf16 %v5490, %v5490
        %v5523 = vpack.c.bf16 %v5491, %v5491
        %v5524 = vpack.c.bf16 %v5492, %v5492
        %v5525 = vpack.c.bf16 %v5493, %v5493
        %v5526 = vpack.c.bf16 %v5494, %v5494
        %v5527 = vpack.c.bf16 %v5495, %v5495
        %v5528 = vpack.c.bf16 %v5496, %v5496
        %v5529 = vpack.c.bf16 %v5497, %v5497
        %v5530 = vpack.c.bf16 %v5498, %v5498
        %v5531 = vpack.c.bf16 %v5499, %v5499
        %v5532 = vpack.c.bf16 %v5500, %v5500
        %v5533 = vpack.c.bf16 %v5501, %v5501
        %v5534 = vpack.c.bf16 %v5502, %v5502
        %v5535 = vpack.c.bf16 %v5503, %v5503
        %v5536 = vpack.c.bf16 %v5504, %v5504
        %v5537 = vpack.c.bf16 %v5505, %v5505
        %v5538 = vpack.c.bf16 %v5506, %v5506
        %v5539 = vpack.c.bf16 %v5507, %v5507
        %v5540 = vpack.c.bf16 %v5508, %v5508
        %v5541 = vpack.c.bf16 %v5509, %v5509
        %v5542 = vpack.c.bf16 %v5510, %v5510
        %v5543 = vpack.c.bf16 %v5511, %v5511
        %5544 = vst.msk [vmem:[#allocation3 + $0xc] sm:$0xf] %vm1238, %v5512
        %5545 = vst.msk [vmem:[#allocation3 + $0x20] sm:$0xf] %vm1238, %v5513
        %5546 = vst.msk [vmem:[#allocation3 + $0x34] sm:$0xf] %vm1238, %v5514
        %5547 = vst.msk [vmem:[#allocation3 + $0x48] sm:$0xf] %vm1238, %v5515
        %5548 = vst.msk [vmem:[#allocation3 + $0x5c] sm:$0xf] %vm1238, %v5516
        %5549 = vst.msk [vmem:[#allocation3 + $0x70] sm:$0xf] %vm1238, %v5517
        %5550 = vst.msk [vmem:[#allocation3 + $0x84] sm:$0xf] %vm1238, %v5518
        %5551 = vst.msk [vmem:[#allocation3 + $0x98] sm:$0xf] %vm1238, %v5519
        %5552 = vst.msk [vmem:[#allocation3 + $0xac] sm:$0xf] %vm1238, %v5520
        %5553 = vst.msk [vmem:[#allocation3 + $0xc0] sm:$0xf] %vm1238, %v5521
        %5554 = vst.msk [vmem:[#allocation3 + $0xd4] sm:$0xf] %vm1238, %v5522
        %5555 = vst.msk [vmem:[#allocation3 + $0xe8] sm:$0xf] %vm1238, %v5523
        %5556 = vst.msk [vmem:[#allocation3 + $0xfc] sm:$0xf] %vm1238, %v5524
        %5557 = vst.msk [vmem:[#allocation3 + $0x110] sm:$0xf] %vm1238, %v5525
        %5558 = vst.msk [vmem:[#allocation3 + $0x124] sm:$0xf] %vm1238, %v5526
        %5559 = vst.msk [vmem:[#allocation3 + $0x138] sm:$0xf] %vm1238, %v5527
        %5560 = vst.msk [vmem:[#allocation3 + $0x14c] sm:$0xf] %vm1238, %v5528
        %5561 = vst.msk [vmem:[#allocation3 + $0x160] sm:$0xf] %vm1238, %v5529
        %5562 = vst.msk [vmem:[#allocation3 + $0x174] sm:$0xf] %vm1238, %v5530
        %5563 = vst.msk [vmem:[#allocation3 + $0x188] sm:$0xf] %vm1238, %v5531
        %5564 = vst.msk [vmem:[#allocation3 + $0x19c] sm:$0xf] %vm1238, %v5532
        %5565 = vst.msk [vmem:[#allocation3 + $0x1b0] sm:$0xf] %vm1238, %v5533
        %5566 = vst.msk [vmem:[#allocation3 + $0x1c4] sm:$0xf] %vm1238, %v5534
        %5567 = vst.msk [vmem:[#allocation3 + $0x1d8] sm:$0xf] %vm1238, %v5535
        %5568 = vst.msk [vmem:[#allocation3 + $0x1ec] sm:$0xf] %vm1238, %v5536
        %5569 = vst.msk [vmem:[#allocation3 + $0x200] sm:$0xf] %vm1238, %v5537
        %5570 = vst.msk [vmem:[#allocation3 + $0x214] sm:$0xf] %vm1238, %v5538
        %5571 = vst.msk [vmem:[#allocation3 + $0x228] sm:$0xf] %vm1238, %v5539
        %5572 = vst.msk [vmem:[#allocation3 + $0x23c] sm:$0xf] %vm1238, %v5540
        %5573 = vst.msk [vmem:[#allocation3 + $0x250] sm:$0xf] %vm1238, %v5541
        %5574 = vst.msk [vmem:[#allocation3 + $0x264] sm:$0xf] %vm1238, %v5542
        %5575 = vst.msk [vmem:[#allocation3 + $0x278] sm:$0xf] %vm1238, %v5543
        %v5576 = vld [vmem:[%s2136 + $0x8] sm:$0xff]
        %v5577 = vld [vmem:[%s2136 + $0x10] sm:$0xff]
        %v5578 = vld [vmem:[%s2136 + $0x28] sm:$0xff]
        %v5579 = vld [vmem:[%s2136 + $0x30] sm:$0xff]
        %v5580 = vld [vmem:[%s2136 + $0x48] sm:$0xff]
        %v5581 = vld [vmem:[%s2136 + $0x50] sm:$0xff]
        %v5582 = vld [vmem:[%s2136 + $0x68] sm:$0xff]
        %v5583 = vld [vmem:[%s2136 + $0x70] sm:$0xff]
        %v5584 = vld [vmem:[%s2136 + $0x88] sm:$0xff]
        %v5585 = vld [vmem:[%s2136 + $0x90] sm:$0xff]
        %v5586 = vld [vmem:[%s2136 + $0xa8] sm:$0xff]
        %v5587 = vld [vmem:[%s2136 + $0xb0] sm:$0xff]
        %v5588 = vld [vmem:[%s2136 + $0xc8] sm:$0xff]
        %v5589 = vld [vmem:[%s2136 + $0xd0] sm:$0xff]
        %v5590 = vld [vmem:[%s2136 + $0xe8] sm:$0xff]
        %v5591 = vld [vmem:[%s2136 + $0xf0] sm:$0xff]
        %v5592 = vld [vmem:[%s2136 + $0x108] sm:$0xff]
        %v5593 = vld [vmem:[%s2136 + $0x110] sm:$0xff]
        %v5594 = vld [vmem:[%s2136 + $0x128] sm:$0xff]
        %v5595 = vld [vmem:[%s2136 + $0x130] sm:$0xff]
        %v5596 = vld [vmem:[%s2136 + $0x148] sm:$0xff]
        %v5597 = vld [vmem:[%s2136 + $0x150] sm:$0xff]
        %v5598 = vld [vmem:[%s2136 + $0x168] sm:$0xff]
        %v5599 = vld [vmem:[%s2136 + $0x170] sm:$0xff]
        %v5600 = vld [vmem:[%s2136 + $0x188] sm:$0xff]
        %v5601 = vld [vmem:[%s2136 + $0x190] sm:$0xff]
        %v5602 = vld [vmem:[%s2136 + $0x1a8] sm:$0xff]
        %v5603 = vld [vmem:[%s2136 + $0x1b0] sm:$0xff]
        %v5604 = vld [vmem:[%s2136 + $0x1c8] sm:$0xff]
        %v5605 = vld [vmem:[%s2136 + $0x1d0] sm:$0xff]
        %v5606 = vld [vmem:[%s2136 + $0x1e8] sm:$0xff]
        %v5607 = vld [vmem:[%s2136 + $0x1f0] sm:$0xff]
        %v5608 = vpack.c.bf16 %v5576, %v5576
        %v5609 = vpack.c.bf16 %v5577, %v5577
        %v5610 = vpack.c.bf16 %v5578, %v5578
        %v5611 = vpack.c.bf16 %v5579, %v5579
        %v5612 = vpack.c.bf16 %v5580, %v5580
        %v5613 = vpack.c.bf16 %v5581, %v5581
        %v5614 = vpack.c.bf16 %v5582, %v5582
        %v5615 = vpack.c.bf16 %v5583, %v5583
        %v5616 = vpack.c.bf16 %v5584, %v5584
        %v5617 = vpack.c.bf16 %v5585, %v5585
        %v5618 = vpack.c.bf16 %v5586, %v5586
        %v5619 = vpack.c.bf16 %v5587, %v5587
        %v5620 = vpack.c.bf16 %v5588, %v5588
        %v5621 = vpack.c.bf16 %v5589, %v5589
        %v5622 = vpack.c.bf16 %v5590, %v5590
        %v5623 = vpack.c.bf16 %v5591, %v5591
        %v5624 = vpack.c.bf16 %v5592, %v5592
        %v5625 = vpack.c.bf16 %v5593, %v5593
        %v5626 = vpack.c.bf16 %v5594, %v5594
        %v5627 = vpack.c.bf16 %v5595, %v5595
        %v5628 = vpack.c.bf16 %v5596, %v5596
        %v5629 = vpack.c.bf16 %v5597, %v5597
        %v5630 = vpack.c.bf16 %v5598, %v5598
        %v5631 = vpack.c.bf16 %v5599, %v5599
        %v5632 = vpack.c.bf16 %v5600, %v5600
        %v5633 = vpack.c.bf16 %v5601, %v5601
        %v5634 = vpack.c.bf16 %v5602, %v5602
        %v5635 = vpack.c.bf16 %v5603, %v5603
        %v5636 = vpack.c.bf16 %v5604, %v5604
        %v5637 = vpack.c.bf16 %v5605, %v5605
        %v5638 = vpack.c.bf16 %v5606, %v5606
        %v5639 = vpack.c.bf16 %v5607, %v5607
        %5672 = vrot.lane.b32.xlu0 %v5608, 64
        %v5673 = vpop.permute.xlu0 %5672
        %5674 = vrot.lane.b32.xlu0 %v5609, 64
        %v5675 = vpop.permute.xlu0 %5674
        %5676 = vrot.lane.b32.xlu0 %v5610, 64
        %v5677 = vpop.permute.xlu0 %5676
        %5678 = vrot.lane.b32.xlu0 %v5611, 64
        %v5679 = vpop.permute.xlu0 %5678
        %5680 = vrot.lane.b32.xlu0 %v5612, 64
        %v5681 = vpop.permute.xlu0 %5680
        %5682 = vrot.lane.b32.xlu0 %v5613, 64
        %v5683 = vpop.permute.xlu0 %5682
        %5684 = vrot.lane.b32.xlu0 %v5614, 64
        %v5685 = vpop.permute.xlu0 %5684
        %5686 = vrot.lane.b32.xlu0 %v5615, 64
        %v5687 = vpop.permute.xlu0 %5686
        %5688 = vrot.lane.b32.xlu0 %v5616, 64
        %v5689 = vpop.permute.xlu0 %5688
        %5690 = vrot.lane.b32.xlu0 %v5617, 64
        %v5691 = vpop.permute.xlu0 %5690
        %5692 = vrot.lane.b32.xlu0 %v5618, 64
        %v5693 = vpop.permute.xlu0 %5692
        %5694 = vrot.lane.b32.xlu0 %v5619, 64
        %v5695 = vpop.permute.xlu0 %5694
        %5696 = vrot.lane.b32.xlu0 %v5620, 64
        %v5697 = vpop.permute.xlu0 %5696
        %5698 = vrot.lane.b32.xlu0 %v5621, 64
        %v5699 = vpop.permute.xlu0 %5698
        %5700 = vrot.lane.b32.xlu0 %v5622, 64
        %v5701 = vpop.permute.xlu0 %5700
        %5702 = vrot.lane.b32.xlu0 %v5623, 64
        %v5703 = vpop.permute.xlu0 %5702
        %5704 = vrot.lane.b32.xlu0 %v5624, 64
        %v5705 = vpop.permute.xlu0 %5704
        %5706 = vrot.lane.b32.xlu0 %v5625, 64
        %v5707 = vpop.permute.xlu0 %5706
        %5708 = vrot.lane.b32.xlu0 %v5626, 64
        %v5709 = vpop.permute.xlu0 %5708
        %5710 = vrot.lane.b32.xlu0 %v5627, 64
        %v5711 = vpop.permute.xlu0 %5710
        %5712 = vrot.lane.b32.xlu0 %v5628, 64
        %v5713 = vpop.permute.xlu0 %5712
        %5714 = vrot.lane.b32.xlu0 %v5629, 64
        %v5715 = vpop.permute.xlu0 %5714
        %5716 = vrot.lane.b32.xlu0 %v5630, 64
        %v5717 = vpop.permute.xlu0 %5716
        %5718 = vrot.lane.b32.xlu0 %v5631, 64
        %v5719 = vpop.permute.xlu0 %5718
        %5720 = vrot.lane.b32.xlu0 %v5632, 64
        %v5721 = vpop.permute.xlu0 %5720
        %5722 = vrot.lane.b32.xlu0 %v5633, 64
        %v5723 = vpop.permute.xlu0 %5722
        %5724 = vrot.lane.b32.xlu0 %v5634, 64
        %v5725 = vpop.permute.xlu0 %5724
        %5726 = vrot.lane.b32.xlu0 %v5635, 64
        %v5727 = vpop.permute.xlu0 %5726
        %5728 = vrot.lane.b32.xlu0 %v5636, 64
        %v5729 = vpop.permute.xlu0 %5728
        %5730 = vrot.lane.b32.xlu0 %v5637, 64
        %v5731 = vpop.permute.xlu0 %5730
        %5732 = vrot.lane.b32.xlu0 %v5638, 64
        %v5733 = vpop.permute.xlu0 %5732
        %5734 = vrot.lane.b32.xlu0 %v5639, 64
        %v5735 = vpop.permute.xlu0 %5734
        %5768 = vst.msk [vmem:[#allocation3 + $0xc] sm:$0xf] %vm1463, %v5673
        %5769 = vst.msk [vmem:[#allocation3 + $0x20] sm:$0xf] %vm1463, %v5675
        %5770 = vst.msk [vmem:[#allocation3 + $0x34] sm:$0xf] %vm1463, %v5677
        %5771 = vst.msk [vmem:[#allocation3 + $0x48] sm:$0xf] %vm1463, %v5679
        %5772 = vst.msk [vmem:[#allocation3 + $0x5c] sm:$0xf] %vm1463, %v5681
        %5773 = vst.msk [vmem:[#allocation3 + $0x70] sm:$0xf] %vm1463, %v5683
        %5774 = vst.msk [vmem:[#allocation3 + $0x84] sm:$0xf] %vm1463, %v5685
        %5775 = vst.msk [vmem:[#allocation3 + $0x98] sm:$0xf] %vm1463, %v5687
        %5776 = vst.msk [vmem:[#allocation3 + $0xac] sm:$0xf] %vm1463, %v5689
        %5777 = vst.msk [vmem:[#allocation3 + $0xc0] sm:$0xf] %vm1463, %v5691
        %5778 = vst.msk [vmem:[#allocation3 + $0xd4] sm:$0xf] %vm1463, %v5693
        %5779 = vst.msk [vmem:[#allocation3 + $0xe8] sm:$0xf] %vm1463, %v5695
        %5780 = vst.msk [vmem:[#allocation3 + $0xfc] sm:$0xf] %vm1463, %v5697
        %5781 = vst.msk [vmem:[#allocation3 + $0x110] sm:$0xf] %vm1463, %v5699
        %5782 = vst.msk [vmem:[#allocation3 + $0x124] sm:$0xf] %vm1463, %v5701
        %5783 = vst.msk [vmem:[#allocation3 + $0x138] sm:$0xf] %vm1463, %v5703
        %5784 = vst.msk [vmem:[#allocation3 + $0x14c] sm:$0xf] %vm1463, %v5705
        %5785 = vst.msk [vmem:[#allocation3 + $0x160] sm:$0xf] %vm1463, %v5707
        %5786 = vst.msk [vmem:[#allocation3 + $0x174] sm:$0xf] %vm1463, %v5709
        %5787 = vst.msk [vmem:[#allocation3 + $0x188] sm:$0xf] %vm1463, %v5711
        %5788 = vst.msk [vmem:[#allocation3 + $0x19c] sm:$0xf] %vm1463, %v5713
        %5789 = vst.msk [vmem:[#allocation3 + $0x1b0] sm:$0xf] %vm1463, %v5715
        %5790 = vst.msk [vmem:[#allocation3 + $0x1c4] sm:$0xf] %vm1463, %v5717
        %5791 = vst.msk [vmem:[#allocation3 + $0x1d8] sm:$0xf] %vm1463, %v5719
        %5792 = vst.msk [vmem:[#allocation3 + $0x1ec] sm:$0xf] %vm1463, %v5721
        %5793 = vst.msk [vmem:[#allocation3 + $0x200] sm:$0xf] %vm1463, %v5723
        %5794 = vst.msk [vmem:[#allocation3 + $0x214] sm:$0xf] %vm1463, %v5725
        %5795 = vst.msk [vmem:[#allocation3 + $0x228] sm:$0xf] %vm1463, %v5727
        %5796 = vst.msk [vmem:[#allocation3 + $0x23c] sm:$0xf] %vm1463, %v5729
        %5797 = vst.msk [vmem:[#allocation3 + $0x250] sm:$0xf] %vm1463, %v5731
        %5798 = vst.msk [vmem:[#allocation3 + $0x264] sm:$0xf] %vm1463, %v5733
        %5799 = vst.msk [vmem:[#allocation3 + $0x278] sm:$0xf] %vm1463, %v5735
        %v5800 = vld [vmem:[%s2136 + $0x9] sm:$0xff]
        %v5801 = vld [vmem:[%s2136 + $0x11] sm:$0xff]
        %v5802 = vld [vmem:[%s2136 + $0x29] sm:$0xff]
        %v5803 = vld [vmem:[%s2136 + $0x31] sm:$0xff]
        %v5804 = vld [vmem:[%s2136 + $0x49] sm:$0xff]
        %v5805 = vld [vmem:[%s2136 + $0x51] sm:$0xff]
        %v5806 = vld [vmem:[%s2136 + $0x69] sm:$0xff]
        %v5807 = vld [vmem:[%s2136 + $0x71] sm:$0xff]
        %v5808 = vld [vmem:[%s2136 + $0x89] sm:$0xff]
        %v5809 = vld [vmem:[%s2136 + $0x91] sm:$0xff]
        %v5810 = vld [vmem:[%s2136 + $0xa9] sm:$0xff]
        %v5811 = vld [vmem:[%s2136 + $0xb1] sm:$0xff]
        %v5812 = vld [vmem:[%s2136 + $0xc9] sm:$0xff]
        %v5813 = vld [vmem:[%s2136 + $0xd1] sm:$0xff]
        %v5814 = vld [vmem:[%s2136 + $0xe9] sm:$0xff]
        %v5815 = vld [vmem:[%s2136 + $0xf1] sm:$0xff]
        %v5816 = vld [vmem:[%s2136 + $0x109] sm:$0xff]
        %v5817 = vld [vmem:[%s2136 + $0x111] sm:$0xff]
        %v5818 = vld [vmem:[%s2136 + $0x129] sm:$0xff]
        %v5819 = vld [vmem:[%s2136 + $0x131] sm:$0xff]
        %v5820 = vld [vmem:[%s2136 + $0x149] sm:$0xff]
        %v5821 = vld [vmem:[%s2136 + $0x151] sm:$0xff]
        %v5822 = vld [vmem:[%s2136 + $0x169] sm:$0xff]
        %v5823 = vld [vmem:[%s2136 + $0x171] sm:$0xff]
        %v5824 = vld [vmem:[%s2136 + $0x189] sm:$0xff]
        %v5825 = vld [vmem:[%s2136 + $0x191] sm:$0xff]
        %v5826 = vld [vmem:[%s2136 + $0x1a9] sm:$0xff]
        %v5827 = vld [vmem:[%s2136 + $0x1b1] sm:$0xff]
        %v5828 = vld [vmem:[%s2136 + $0x1c9] sm:$0xff]
        %v5829 = vld [vmem:[%s2136 + $0x1d1] sm:$0xff]
        %v5830 = vld [vmem:[%s2136 + $0x1e9] sm:$0xff]
        %v5831 = vld [vmem:[%s2136 + $0x1f1] sm:$0xff]
        %v5832 = vpack.c.bf16 %v5800, %v5800
        %v5833 = vpack.c.bf16 %v5801, %v5801
        %v5834 = vpack.c.bf16 %v5802, %v5802
        %v5835 = vpack.c.bf16 %v5803, %v5803
        %v5836 = vpack.c.bf16 %v5804, %v5804
        %v5837 = vpack.c.bf16 %v5805, %v5805
        %v5838 = vpack.c.bf16 %v5806, %v5806
        %v5839 = vpack.c.bf16 %v5807, %v5807
        %v5840 = vpack.c.bf16 %v5808, %v5808
        %v5841 = vpack.c.bf16 %v5809, %v5809
        %v5842 = vpack.c.bf16 %v5810, %v5810
        %v5843 = vpack.c.bf16 %v5811, %v5811
        %v5844 = vpack.c.bf16 %v5812, %v5812
        %v5845 = vpack.c.bf16 %v5813, %v5813
        %v5846 = vpack.c.bf16 %v5814, %v5814
        %v5847 = vpack.c.bf16 %v5815, %v5815
        %v5848 = vpack.c.bf16 %v5816, %v5816
        %v5849 = vpack.c.bf16 %v5817, %v5817
        %v5850 = vpack.c.bf16 %v5818, %v5818
        %v5851 = vpack.c.bf16 %v5819, %v5819
        %v5852 = vpack.c.bf16 %v5820, %v5820
        %v5853 = vpack.c.bf16 %v5821, %v5821
        %v5854 = vpack.c.bf16 %v5822, %v5822
        %v5855 = vpack.c.bf16 %v5823, %v5823
        %v5856 = vpack.c.bf16 %v5824, %v5824
        %v5857 = vpack.c.bf16 %v5825, %v5825
        %v5858 = vpack.c.bf16 %v5826, %v5826
        %v5859 = vpack.c.bf16 %v5827, %v5827
        %v5860 = vpack.c.bf16 %v5828, %v5828
        %v5861 = vpack.c.bf16 %v5829, %v5829
        %v5862 = vpack.c.bf16 %v5830, %v5830
        %v5863 = vpack.c.bf16 %v5831, %v5831
        %5864 = vst.msk [vmem:[#allocation3 + $0x10] sm:$0xf] %vm1238, %v5832
        %5865 = vst.msk [vmem:[#allocation3 + $0x24] sm:$0xf] %vm1238, %v5833
        %5866 = vst.msk [vmem:[#allocation3 + $0x38] sm:$0xf] %vm1238, %v5834
        %5867 = vst.msk [vmem:[#allocation3 + $0x4c] sm:$0xf] %vm1238, %v5835
        %5868 = vst.msk [vmem:[#allocation3 + $0x60] sm:$0xf] %vm1238, %v5836
        %5869 = vst.msk [vmem:[#allocation3 + $0x74] sm:$0xf] %vm1238, %v5837
        %5870 = vst.msk [vmem:[#allocation3 + $0x88] sm:$0xf] %vm1238, %v5838
        %5871 = vst.msk [vmem:[#allocation3 + $0x9c] sm:$0xf] %vm1238, %v5839
        %5872 = vst.msk [vmem:[#allocation3 + $0xb0] sm:$0xf] %vm1238, %v5840
        %5873 = vst.msk [vmem:[#allocation3 + $0xc4] sm:$0xf] %vm1238, %v5841
        %5874 = vst.msk [vmem:[#allocation3 + $0xd8] sm:$0xf] %vm1238, %v5842
        %5875 = vst.msk [vmem:[#allocation3 + $0xec] sm:$0xf] %vm1238, %v5843
        %5876 = vst.msk [vmem:[#allocation3 + $0x100] sm:$0xf] %vm1238, %v5844
        %5877 = vst.msk [vmem:[#allocation3 + $0x114] sm:$0xf] %vm1238, %v5845
        %5878 = vst.msk [vmem:[#allocation3 + $0x128] sm:$0xf] %vm1238, %v5846
        %5879 = vst.msk [vmem:[#allocation3 + $0x13c] sm:$0xf] %vm1238, %v5847
        %5880 = vst.msk [vmem:[#allocation3 + $0x150] sm:$0xf] %vm1238, %v5848
        %5881 = vst.msk [vmem:[#allocation3 + $0x164] sm:$0xf] %vm1238, %v5849
        %5882 = vst.msk [vmem:[#allocation3 + $0x178] sm:$0xf] %vm1238, %v5850
        %5883 = vst.msk [vmem:[#allocation3 + $0x18c] sm:$0xf] %vm1238, %v5851
        %5884 = vst.msk [vmem:[#allocation3 + $0x1a0] sm:$0xf] %vm1238, %v5852
        %5885 = vst.msk [vmem:[#allocation3 + $0x1b4] sm:$0xf] %vm1238, %v5853
        %5886 = vst.msk [vmem:[#allocation3 + $0x1c8] sm:$0xf] %vm1238, %v5854
        %5887 = vst.msk [vmem:[#allocation3 + $0x1dc] sm:$0xf] %vm1238, %v5855
        %5888 = vst.msk [vmem:[#allocation3 + $0x1f0] sm:$0xf] %vm1238, %v5856
        %5889 = vst.msk [vmem:[#allocation3 + $0x204] sm:$0xf] %vm1238, %v5857
        %5890 = vst.msk [vmem:[#allocation3 + $0x218] sm:$0xf] %vm1238, %v5858
        %5891 = vst.msk [vmem:[#allocation3 + $0x22c] sm:$0xf] %vm1238, %v5859
        %5892 = vst.msk [vmem:[#allocation3 + $0x240] sm:$0xf] %vm1238, %v5860
        %5893 = vst.msk [vmem:[#allocation3 + $0x254] sm:$0xf] %vm1238, %v5861
        %5894 = vst.msk [vmem:[#allocation3 + $0x268] sm:$0xf] %vm1238, %v5862
        %5895 = vst.msk [vmem:[#allocation3 + $0x27c] sm:$0xf] %vm1238, %v5863
        %v5896 = vld [vmem:[#allocation3] sm:$0xff]
        %v5897 = vld [vmem:[#allocation3 + $0x8] sm:$0xff]
        %v5898 = vld [vmem:[#allocation3 + $0x10] sm:$0xf]
        %v5899 = vld [vmem:[#allocation3 + $0x14] sm:$0xff]
        %v5900 = vld [vmem:[#allocation3 + $0x1c] sm:$0xff]
        %v5901 = vld [vmem:[#allocation3 + $0x24] sm:$0xf]
        %v5902 = vld [vmem:[#allocation3 + $0x28] sm:$0xff]
        %v5903 = vld [vmem:[#allocation3 + $0x30] sm:$0xff]
        %v5904 = vld [vmem:[#allocation3 + $0x38] sm:$0xf]
        %v5905 = vld [vmem:[#allocation3 + $0x3c] sm:$0xff]
        %v5906 = vld [vmem:[#allocation3 + $0x44] sm:$0xff]
        %v5907 = vld [vmem:[#allocation3 + $0x4c] sm:$0xf]
        %v5908 = vld [vmem:[#allocation3 + $0x50] sm:$0xff]
        %v5909 = vld [vmem:[#allocation3 + $0x58] sm:$0xff]
        %v5910 = vld [vmem:[#allocation3 + $0x60] sm:$0xf]
        %v5911 = vld [vmem:[#allocation3 + $0x64] sm:$0xff]
        %v5912 = vld [vmem:[#allocation3 + $0x6c] sm:$0xff]
        %v5913 = vld [vmem:[#allocation3 + $0x74] sm:$0xf]
        %v5914 = vld [vmem:[#allocation3 + $0x78] sm:$0xff]
        %v5915 = vld [vmem:[#allocation3 + $0x80] sm:$0xff]
        %v5916 = vld [vmem:[#allocation3 + $0x88] sm:$0xf]
        %v5917 = vld [vmem:[#allocation3 + $0x8c] sm:$0xff]
        %v5918 = vld [vmem:[#allocation3 + $0x94] sm:$0xff]
        %v5919 = vld [vmem:[#allocation3 + $0x9c] sm:$0xf]
        %v5920 = vld [vmem:[#allocation3 + $0xa0] sm:$0xff]
        %v5921 = vld [vmem:[#allocation3 + $0xa8] sm:$0xff]
        %v5922 = vld [vmem:[#allocation3 + $0xb0] sm:$0xf]
        %v5923 = vld [vmem:[#allocation3 + $0xb4] sm:$0xff]
        %v5924 = vld [vmem:[#allocation3 + $0xbc] sm:$0xff]
        %v5925 = vld [vmem:[#allocation3 + $0xc4] sm:$0xf]
        %v5926 = vld [vmem:[#allocation3 + $0xc8] sm:$0xff]
        %v5927 = vld [vmem:[#allocation3 + $0xd0] sm:$0xff]
        %v5928 = vld [vmem:[#allocation3 + $0xd8] sm:$0xf]
        %v5929 = vld [vmem:[#allocation3 + $0xdc] sm:$0xff]
        %v5930 = vld [vmem:[#allocation3 + $0xe4] sm:$0xff]
        %v5931 = vld [vmem:[#allocation3 + $0xec] sm:$0xf]
        %v5932 = vld [vmem:[#allocation3 + $0xf0] sm:$0xff]
        %v5933 = vld [vmem:[#allocation3 + $0xf8] sm:$0xff]
        %v5934 = vld [vmem:[#allocation3 + $0x100] sm:$0xf]
        %v5935 = vld [vmem:[#allocation3 + $0x104] sm:$0xff]
        %v5936 = vld [vmem:[#allocation3 + $0x10c] sm:$0xff]
        %v5937 = vld [vmem:[#allocation3 + $0x114] sm:$0xf]
        %v5938 = vld [vmem:[#allocation3 + $0x118] sm:$0xff]
        %v5939 = vld [vmem:[#allocation3 + $0x120] sm:$0xff]
        %v5940 = vld [vmem:[#allocation3 + $0x128] sm:$0xf]
        %v5941 = vld [vmem:[#allocation3 + $0x12c] sm:$0xff]
        %v5942 = vld [vmem:[#allocation3 + $0x134] sm:$0xff]
        %v5943 = vld [vmem:[#allocation3 + $0x13c] sm:$0xf]
        %v5944 = vld [vmem:[#allocation3 + $0x140] sm:$0xff]
        %v5945 = vld [vmem:[#allocation3 + $0x148] sm:$0xff]
        %v5946 = vld [vmem:[#allocation3 + $0x150] sm:$0xf]
        %v5947 = vld [vmem:[#allocation3 + $0x154] sm:$0xff]
        %v5948 = vld [vmem:[#allocation3 + $0x15c] sm:$0xff]
        %v5949 = vld [vmem:[#allocation3 + $0x164] sm:$0xf]
        %v5950 = vld [vmem:[#allocation3 + $0x168] sm:$0xff]
        %v5951 = vld [vmem:[#allocation3 + $0x170] sm:$0xff]
        %v5952 = vld [vmem:[#allocation3 + $0x178] sm:$0xf]
        %v5953 = vld [vmem:[#allocation3 + $0x17c] sm:$0xff]
        %v5954 = vld [vmem:[#allocation3 + $0x184] sm:$0xff]
        %v5955 = vld [vmem:[#allocation3 + $0x18c] sm:$0xf]
        %v5956 = vld [vmem:[#allocation3 + $0x190] sm:$0xff]
        %v5957 = vld [vmem:[#allocation3 + $0x198] sm:$0xff]
        %v5958 = vld [vmem:[#allocation3 + $0x1a0] sm:$0xf]
        %v5959 = vld [vmem:[#allocation3 + $0x1a4] sm:$0xff]
        %v5960 = vld [vmem:[#allocation3 + $0x1ac] sm:$0xff]
        %v5961 = vld [vmem:[#allocation3 + $0x1b4] sm:$0xf]
        %v5962 = vld [vmem:[#allocation3 + $0x1b8] sm:$0xff]
        %v5963 = vld [vmem:[#allocation3 + $0x1c0] sm:$0xff]
        %v5964 = vld [vmem:[#allocation3 + $0x1c8] sm:$0xf]
        %v5965 = vld [vmem:[#allocation3 + $0x1cc] sm:$0xff]
        %v5966 = vld [vmem:[#allocation3 + $0x1d4] sm:$0xff]
        %v5967 = vld [vmem:[#allocation3 + $0x1dc] sm:$0xf]
        %v5968 = vld [vmem:[#allocation3 + $0x1e0] sm:$0xff]
        %v5969 = vld [vmem:[#allocation3 + $0x1e8] sm:$0xff]
        %v5970 = vld [vmem:[#allocation3 + $0x1f0] sm:$0xf]
        %v5971 = vld [vmem:[#allocation3 + $0x1f4] sm:$0xff]
        %v5972 = vld [vmem:[#allocation3 + $0x1fc] sm:$0xff]
        %v5973 = vld [vmem:[#allocation3 + $0x204] sm:$0xf]
        %v5974 = vld [vmem:[#allocation3 + $0x208] sm:$0xff]
        %v5975 = vld [vmem:[#allocation3 + $0x210] sm:$0xff]
        %v5976 = vld [vmem:[#allocation3 + $0x218] sm:$0xf]
        %v5977 = vld [vmem:[#allocation3 + $0x21c] sm:$0xff]
        %v5978 = vld [vmem:[#allocation3 + $0x224] sm:$0xff]
        %v5979 = vld [vmem:[#allocation3 + $0x22c] sm:$0xf]
        %v5980 = vld [vmem:[#allocation3 + $0x230] sm:$0xff]
        %v5981 = vld [vmem:[#allocation3 + $0x238] sm:$0xff]
        %v5982 = vld [vmem:[#allocation3 + $0x240] sm:$0xf]
        %v5983 = vld [vmem:[#allocation3 + $0x244] sm:$0xff]
        %v5984 = vld [vmem:[#allocation3 + $0x24c] sm:$0xff]
        %v5985 = vld [vmem:[#allocation3 + $0x254] sm:$0xf]
        %v5986 = vld [vmem:[#allocation3 + $0x258] sm:$0xff]
        %v5987 = vld [vmem:[#allocation3 + $0x260] sm:$0xff]
        %v5988 = vld [vmem:[#allocation3 + $0x268] sm:$0xf]
        %v5989 = vld [vmem:[#allocation3 + $0x26c] sm:$0xff]
        %v5990 = vld [vmem:[#allocation3 + $0x274] sm:$0xff]
        %v5991 = vld [vmem:[#allocation3 + $0x27c] sm:$0xf]
        %s5992 = scalar_lea.vmem %s6, 288
        %v5993 = vld [vmem:[%s5992] sm:$0xf]
        %v5994 = vld [vmem:[%s5992 + $0x4] sm:$0xf]
        %v5995 = vld [vmem:[%s5992 + $0x8] sm:$0xf]
        %v5996 = vld [vmem:[%s5992 + $0xc] sm:$0xf]
        %v5997 = vld [vmem:[%s5992 + $0x10] sm:$0xf]
        %v5998 = vld [vmem:[%s5992 + $0x14] sm:$0xf]
        %v5999 = vld [vmem:[%s5992 + $0x18] sm:$0xf]
        %v6000 = vld [vmem:[%s5992 + $0x1c] sm:$0xf]
        %v6001 = vld [vmem:[%s5992 + $0x20] sm:$0xf]
        %v6002 = vld [vmem:[%s5992 + $0x24] sm:$0xf]
        %v6003 = vld [vmem:[%s5992 + $0x28] sm:$0xf]
        %v6004 = vld [vmem:[%s5992 + $0x2c] sm:$0xf]
        %v6005 = vld [vmem:[%s5992 + $0x30] sm:$0xf]
        %v6006 = vld [vmem:[%s5992 + $0x34] sm:$0xf]
        %v6007 = vld [vmem:[%s5992 + $0x38] sm:$0xf]
        %v6008 = vld [vmem:[%s5992 + $0x3c] sm:$0xf]
        %v6009 = vld [vmem:[%s5992 + $0x40] sm:$0xf]
        %v6010 = vld [vmem:[%s5992 + $0x44] sm:$0xf]
        %v6011 = vld [vmem:[%s5992 + $0x48] sm:$0xf]
        %v6012 = vld [vmem:[%s5992 + $0x4c] sm:$0xf]
        %v6013 = vld [vmem:[%s5992 + $0x50] sm:$0xf]
        %v6014 = vld [vmem:[%s5992 + $0x54] sm:$0xf]
        %v6015 = vld [vmem:[%s5992 + $0x58] sm:$0xf]
        %v6016 = vld [vmem:[%s5992 + $0x5c] sm:$0xf]
        %v6017 = vld [vmem:[%s5992 + $0x60] sm:$0xf]
        %v6018 = vld [vmem:[%s5992 + $0x64] sm:$0xf]
        %v6019 = vld [vmem:[%s5992 + $0x68] sm:$0xf]
        %v6020 = vld [vmem:[%s5992 + $0x6c] sm:$0xf]
        %v6021 = vld [vmem:[%s5992 + $0x70] sm:$0xf]
        %v6022 = vld [vmem:[%s5992 + $0x74] sm:$0xf]
        %v6023 = vld [vmem:[%s5992 + $0x78] sm:$0xf]
        %v6024 = vld [vmem:[%s5992 + $0x7c] sm:$0xf]
        %v6025 = vld [vmem:[%s5992 + $0x80] sm:$0xf]
        %v6026 = vld [vmem:[%s5992 + $0x84] sm:$0xf]
        %v6027 = vld [vmem:[%s5992 + $0x88] sm:$0xf]
        %v6028 = vld [vmem:[%s5992 + $0x8c] sm:$0xf]
        %v6029 = vld [vmem:[%s5992 + $0x90] sm:$0xf]
        %v6030 = vld [vmem:[%s5992 + $0x94] sm:$0xf]
        %v6031 = vld [vmem:[%s5992 + $0x98] sm:$0xf]
        %v6032 = vld [vmem:[%s5992 + $0x9c] sm:$0xf]
        %v6033 = vld [vmem:[%s5992 + $0xa0] sm:$0xf]
        %v6034 = vld [vmem:[%s5992 + $0xa4] sm:$0xf]
        %v6035 = vld [vmem:[%s5992 + $0xa8] sm:$0xf]
        %v6036 = vld [vmem:[%s5992 + $0xac] sm:$0xf]
        %v6037 = vld [vmem:[%s5992 + $0xb0] sm:$0xf]
        %v6038 = vld [vmem:[%s5992 + $0xb4] sm:$0xf]
        %v6039 = vld [vmem:[%s5992 + $0xb8] sm:$0xf]
        %v6040 = vld [vmem:[%s5992 + $0xbc] sm:$0xf]
        %v6041 = vld [vmem:[%s5992 + $0xc0] sm:$0xf]
        %v6042 = vld [vmem:[%s5992 + $0xc4] sm:$0xf]
        %v6043 = vld [vmem:[%s5992 + $0xc8] sm:$0xf]
        %v6044 = vld [vmem:[%s5992 + $0xcc] sm:$0xf]
        %v6045 = vld [vmem:[%s5992 + $0xd0] sm:$0xf]
        %v6046 = vld [vmem:[%s5992 + $0xd4] sm:$0xf]
        %v6047 = vld [vmem:[%s5992 + $0xd8] sm:$0xf]
        %v6048 = vld [vmem:[%s5992 + $0xdc] sm:$0xf]
        %v6049 = vld [vmem:[%s5992 + $0xe0] sm:$0xf]
        %v6050 = vld [vmem:[%s5992 + $0xe4] sm:$0xf]
        %v6051 = vld [vmem:[%s5992 + $0xe8] sm:$0xf]
        %v6052 = vld [vmem:[%s5992 + $0xec] sm:$0xf]
        %v6053 = vld [vmem:[%s5992 + $0xf0] sm:$0xf]
        %v6054 = vld [vmem:[%s5992 + $0xf4] sm:$0xf]
        %v6055 = vld [vmem:[%s5992 + $0xf8] sm:$0xf]
        %v6056 = vld [vmem:[%s5992 + $0xfc] sm:$0xf]
        %v6057 = vld [vmem:[%s5992 + $0x100] sm:$0xf]
        %v6058 = vld [vmem:[%s5992 + $0x104] sm:$0xf]
        %v6059 = vld [vmem:[%s5992 + $0x108] sm:$0xf]
        %v6060 = vld [vmem:[%s5992 + $0x10c] sm:$0xf]
        %v6061 = vld [vmem:[%s5992 + $0x110] sm:$0xf]
        %v6062 = vld [vmem:[%s5992 + $0x114] sm:$0xf]
        %v6063 = vld [vmem:[%s5992 + $0x118] sm:$0xf]
        %v6064 = vld [vmem:[%s5992 + $0x11c] sm:$0xf]
        %s6065 = scalar_lea.vmem %s7, 1
        %v6066 = vld [vmem:[%s6065] sm:$0x1]
        %v6068 = vperm.slane %v6066, 0
        %v6166 = vunpack.c.l.b16 %v5896
        %v6167 = vunpack.c.h.b16 %v5896
        %v6168 = vunpack.c.l.b16 %v5897
        %v6169 = vunpack.c.h.b16 %v5897
        %v6170 = vunpack.c.l.b16 %v5898
        %v6171 = vunpack.c.l.b16 %v5899
        %v6172 = vunpack.c.h.b16 %v5899
        %v6173 = vunpack.c.l.b16 %v5900
        %v6174 = vunpack.c.h.b16 %v5900
        %v6175 = vunpack.c.l.b16 %v5901
        %v6176 = vunpack.c.l.b16 %v5902
        %v6177 = vunpack.c.h.b16 %v5902
        %v6178 = vunpack.c.l.b16 %v5903
        %v6179 = vunpack.c.h.b16 %v5903
        %v6180 = vunpack.c.l.b16 %v5904
        %v6181 = vunpack.c.l.b16 %v5905
        %v6182 = vunpack.c.h.b16 %v5905
        %v6183 = vunpack.c.l.b16 %v5906
        %v6184 = vunpack.c.h.b16 %v5906
        %v6185 = vunpack.c.l.b16 %v5907
        %v6186 = vunpack.c.l.b16 %v5908
        %v6187 = vunpack.c.h.b16 %v5908
        %v6188 = vunpack.c.l.b16 %v5909
        %v6189 = vunpack.c.h.b16 %v5909
        %v6190 = vunpack.c.l.b16 %v5910
        %v6191 = vunpack.c.l.b16 %v5911
        %v6192 = vunpack.c.h.b16 %v5911
        %v6193 = vunpack.c.l.b16 %v5912
        %v6194 = vunpack.c.h.b16 %v5912
        %v6195 = vunpack.c.l.b16 %v5913
        %v6196 = vunpack.c.l.b16 %v5914
        %v6197 = vunpack.c.h.b16 %v5914
        %v6198 = vunpack.c.l.b16 %v5915
        %v6199 = vunpack.c.h.b16 %v5915
        %v6200 = vunpack.c.l.b16 %v5916
        %v6201 = vunpack.c.l.b16 %v5917
        %v6202 = vunpack.c.h.b16 %v5917
        %v6203 = vunpack.c.l.b16 %v5918
        %v6204 = vunpack.c.h.b16 %v5918
        %v6205 = vunpack.c.l.b16 %v5919
        %v6206 = vunpack.c.l.b16 %v5920
        %v6207 = vunpack.c.h.b16 %v5920
        %v6208 = vunpack.c.l.b16 %v5921
        %v6209 = vunpack.c.h.b16 %v5921
        %v6210 = vunpack.c.l.b16 %v5922
        %v6211 = vunpack.c.l.b16 %v5923
        %v6212 = vunpack.c.h.b16 %v5923
        %v6213 = vunpack.c.l.b16 %v5924
        %v6214 = vunpack.c.h.b16 %v5924
        %v6215 = vunpack.c.l.b16 %v5925
        %v6216 = vunpack.c.l.b16 %v5926
        %v6217 = vunpack.c.h.b16 %v5926
        %v6218 = vunpack.c.l.b16 %v5927
        %v6219 = vunpack.c.h.b16 %v5927
        %v6220 = vunpack.c.l.b16 %v5928
        %v6221 = vunpack.c.l.b16 %v5929
        %v6222 = vunpack.c.h.b16 %v5929
        %v6223 = vunpack.c.l.b16 %v5930
        %v6224 = vunpack.c.h.b16 %v5930
        %v6225 = vunpack.c.l.b16 %v5931
        %v6226 = vunpack.c.l.b16 %v5932
        %v6227 = vunpack.c.h.b16 %v5932
        %v6228 = vunpack.c.l.b16 %v5933
        %v6229 = vunpack.c.h.b16 %v5933
        %v6230 = vunpack.c.l.b16 %v5934
        %v6231 = vunpack.c.l.b16 %v5935
        %v6232 = vunpack.c.h.b16 %v5935
        %v6233 = vunpack.c.l.b16 %v5936
        %v6234 = vunpack.c.h.b16 %v5936
        %v6235 = vunpack.c.l.b16 %v5937
        %v6236 = vunpack.c.l.b16 %v5938
        %v6237 = vunpack.c.h.b16 %v5938
        %v6238 = vunpack.c.l.b16 %v5939
        %v6239 = vunpack.c.h.b16 %v5939
        %v6240 = vunpack.c.l.b16 %v5940
        %v6241 = vunpack.c.l.b16 %v5941
        %v6242 = vunpack.c.h.b16 %v5941
        %v6243 = vunpack.c.l.b16 %v5942
        %v6244 = vunpack.c.h.b16 %v5942
        %v6245 = vunpack.c.l.b16 %v5943
        %v6246 = vunpack.c.l.b16 %v5944
        %v6247 = vunpack.c.h.b16 %v5944
        %v6248 = vunpack.c.l.b16 %v5945
        %v6249 = vunpack.c.h.b16 %v5945
        %v6250 = vunpack.c.l.b16 %v5946
        %v6251 = vunpack.c.l.b16 %v5947
        %v6252 = vunpack.c.h.b16 %v5947
        %v6253 = vunpack.c.l.b16 %v5948
        %v6254 = vunpack.c.h.b16 %v5948
        %v6255 = vunpack.c.l.b16 %v5949
        %v6256 = vunpack.c.l.b16 %v5950
        %v6257 = vunpack.c.h.b16 %v5950
        %v6258 = vunpack.c.l.b16 %v5951
        %v6259 = vunpack.c.h.b16 %v5951
        %v6260 = vunpack.c.l.b16 %v5952
        %v6261 = vunpack.c.l.b16 %v5953
        %v6262 = vunpack.c.h.b16 %v5953
        %v6263 = vunpack.c.l.b16 %v5954
        %v6264 = vunpack.c.h.b16 %v5954
        %v6265 = vunpack.c.l.b16 %v5955
        %v6266 = vunpack.c.l.b16 %v5956
        %v6267 = vunpack.c.h.b16 %v5956
        %v6268 = vunpack.c.l.b16 %v5957
        %v6269 = vunpack.c.h.b16 %v5957
        %v6270 = vunpack.c.l.b16 %v5958
        %v6271 = vunpack.c.l.b16 %v5959
        %v6272 = vunpack.c.h.b16 %v5959
        %v6273 = vunpack.c.l.b16 %v5960
        %v6274 = vunpack.c.h.b16 %v5960
        %v6275 = vunpack.c.l.b16 %v5961
        %v6276 = vunpack.c.l.b16 %v5962
        %v6277 = vunpack.c.h.b16 %v5962
        %v6278 = vunpack.c.l.b16 %v5963
        %v6279 = vunpack.c.h.b16 %v5963
        %v6280 = vunpack.c.l.b16 %v5964
        %v6281 = vunpack.c.l.b16 %v5965
        %v6282 = vunpack.c.h.b16 %v5965
        %v6283 = vunpack.c.l.b16 %v5966
        %v6284 = vunpack.c.h.b16 %v5966
        %v6285 = vunpack.c.l.b16 %v5967
        %v6286 = vunpack.c.l.b16 %v5968
        %v6287 = vunpack.c.h.b16 %v5968
        %v6288 = vunpack.c.l.b16 %v5969
        %v6289 = vunpack.c.h.b16 %v5969
        %v6290 = vunpack.c.l.b16 %v5970
        %v6291 = vunpack.c.l.b16 %v5971
        %v6292 = vunpack.c.h.b16 %v5971
        %v6293 = vunpack.c.l.b16 %v5972
        %v6294 = vunpack.c.h.b16 %v5972
        %v6295 = vunpack.c.l.b16 %v5973
        %v6296 = vunpack.c.l.b16 %v5974
        %v6297 = vunpack.c.h.b16 %v5974
        %v6298 = vunpack.c.l.b16 %v5975
        %v6299 = vunpack.c.h.b16 %v5975
        %v6300 = vunpack.c.l.b16 %v5976
        %v6301 = vunpack.c.l.b16 %v5977
        %v6302 = vunpack.c.h.b16 %v5977
        %v6303 = vunpack.c.l.b16 %v5978
        %v6304 = vunpack.c.h.b16 %v5978
        %v6305 = vunpack.c.l.b16 %v5979
        %v6306 = vunpack.c.l.b16 %v5980
        %v6307 = vunpack.c.h.b16 %v5980
        %v6308 = vunpack.c.l.b16 %v5981
        %v6309 = vunpack.c.h.b16 %v5981
        %v6310 = vunpack.c.l.b16 %v5982
        %v6311 = vunpack.c.l.b16 %v5983
        %v6312 = vunpack.c.h.b16 %v5983
        %v6313 = vunpack.c.l.b16 %v5984
        %v6314 = vunpack.c.h.b16 %v5984
        %v6315 = vunpack.c.l.b16 %v5985
        %v6316 = vunpack.c.l.b16 %v5986
        %v6317 = vunpack.c.h.b16 %v5986
        %v6318 = vunpack.c.l.b16 %v5987
        %v6319 = vunpack.c.h.b16 %v5987
        %v6320 = vunpack.c.l.b16 %v5988
        %v6321 = vunpack.c.l.b16 %v5989
        %v6322 = vunpack.c.h.b16 %v5989
        %v6323 = vunpack.c.l.b16 %v5990
        %v6324 = vunpack.c.h.b16 %v5990
        %v6325 = vunpack.c.l.b16 %v5991
        %v6326 = vpack.c.b16 %v6171, %v6166
        %v6327 = vpack.c.b16 %v6172, %v6167
        %v6328 = vpack.c.b16 %v6173, %v6168
        %v6329 = vpack.c.b16 %v6174, %v6169
        %v6330 = vpack.c.b16 %v6175, %v6170
        %v6331 = vpack.c.b16 %v6181, %v6176
        %v6332 = vpack.c.b16 %v6182, %v6177
        %v6333 = vpack.c.b16 %v6183, %v6178
        %v6334 = vpack.c.b16 %v6184, %v6179
        %v6335 = vpack.c.b16 %v6185, %v6180
        %v6336 = vpack.c.b16 %v6191, %v6186
        %v6337 = vpack.c.b16 %v6192, %v6187
        %v6338 = vpack.c.b16 %v6193, %v6188
        %v6339 = vpack.c.b16 %v6194, %v6189
        %v6340 = vpack.c.b16 %v6195, %v6190
        %v6341 = vpack.c.b16 %v6201, %v6196
        %v6342 = vpack.c.b16 %v6202, %v6197
        %v6343 = vpack.c.b16 %v6203, %v6198
        %v6344 = vpack.c.b16 %v6204, %v6199
        %v6345 = vpack.c.b16 %v6205, %v6200
        %v6346 = vpack.c.b16 %v6211, %v6206
        %v6347 = vpack.c.b16 %v6212, %v6207
        %v6348 = vpack.c.b16 %v6213, %v6208
        %v6349 = vpack.c.b16 %v6214, %v6209
        %v6350 = vpack.c.b16 %v6215, %v6210
        %v6351 = vpack.c.b16 %v6221, %v6216
        %v6352 = vpack.c.b16 %v6222, %v6217
        %v6353 = vpack.c.b16 %v6223, %v6218
        %v6354 = vpack.c.b16 %v6224, %v6219
        %v6355 = vpack.c.b16 %v6225, %v6220
        %v6356 = vpack.c.b16 %v6231, %v6226
        %v6357 = vpack.c.b16 %v6232, %v6227
        %v6358 = vpack.c.b16 %v6233, %v6228
        %v6359 = vpack.c.b16 %v6234, %v6229
        %v6360 = vpack.c.b16 %v6235, %v6230
        %v6361 = vpack.c.b16 %v6241, %v6236
        %v6362 = vpack.c.b16 %v6242, %v6237
        %v6363 = vpack.c.b16 %v6243, %v6238
        %v6364 = vpack.c.b16 %v6244, %v6239
        %v6365 = vpack.c.b16 %v6245, %v6240
        %v6366 = vpack.c.b16 %v6251, %v6246
        %v6367 = vpack.c.b16 %v6252, %v6247
        %v6368 = vpack.c.b16 %v6253, %v6248
        %v6369 = vpack.c.b16 %v6254, %v6249
        %v6370 = vpack.c.b16 %v6255, %v6250
        %v6371 = vpack.c.b16 %v6261, %v6256
        %v6372 = vpack.c.b16 %v6262, %v6257
        %v6373 = vpack.c.b16 %v6263, %v6258
        %v6374 = vpack.c.b16 %v6264, %v6259
        %v6375 = vpack.c.b16 %v6265, %v6260
        %v6376 = vpack.c.b16 %v6271, %v6266
        %v6377 = vpack.c.b16 %v6272, %v6267
        %v6378 = vpack.c.b16 %v6273, %v6268
        %v6379 = vpack.c.b16 %v6274, %v6269
        %v6380 = vpack.c.b16 %v6275, %v6270
        %v6381 = vpack.c.b16 %v6281, %v6276
        %v6382 = vpack.c.b16 %v6282, %v6277
        %v6383 = vpack.c.b16 %v6283, %v6278
        %v6384 = vpack.c.b16 %v6284, %v6279
        %v6385 = vpack.c.b16 %v6285, %v6280
        %v6386 = vpack.c.b16 %v6291, %v6286
        %v6387 = vpack.c.b16 %v6292, %v6287
        %v6388 = vpack.c.b16 %v6293, %v6288
        %v6389 = vpack.c.b16 %v6294, %v6289
        %v6390 = vpack.c.b16 %v6295, %v6290
        %v6391 = vpack.c.b16 %v6301, %v6296
        %v6392 = vpack.c.b16 %v6302, %v6297
        %v6393 = vpack.c.b16 %v6303, %v6298
        %v6394 = vpack.c.b16 %v6304, %v6299
        %v6395 = vpack.c.b16 %v6305, %v6300
        %v6396 = vpack.c.b16 %v6311, %v6306
        %v6397 = vpack.c.b16 %v6312, %v6307
        %v6398 = vpack.c.b16 %v6313, %v6308
        %v6399 = vpack.c.b16 %v6314, %v6309
        %v6400 = vpack.c.b16 %v6315, %v6310
        %v6401 = vpack.c.b16 %v6321, %v6316
        %v6402 = vpack.c.b16 %v6322, %v6317
        %v6403 = vpack.c.b16 %v6323, %v6318
        %v6404 = vpack.c.b16 %v6324, %v6319
        %v6405 = vpack.c.b16 %v6325, %v6320
        %v6542 = vunpack.c.l.b16 %v5993
        %v6543 = vunpack.c.l.b16 %v5994
        %v6544 = vunpack.c.l.b16 %v5995
        %v6545 = vunpack.c.l.b16 %v5996
        %v6546 = vunpack.c.l.b16 %v5997
        %v6547 = vunpack.c.l.b16 %v5998
        %v6548 = vunpack.c.l.b16 %v5999
        %v6549 = vunpack.c.l.b16 %v6000
        %v6550 = vunpack.c.l.b16 %v6001
        %v6551 = vunpack.c.l.b16 %v6002
        %v6552 = vunpack.c.l.b16 %v6003
        %v6553 = vunpack.c.l.b16 %v6004
        %v6554 = vunpack.c.l.b16 %v6005
        %v6555 = vunpack.c.l.b16 %v6006
        %v6556 = vunpack.c.l.b16 %v6007
        %v6557 = vunpack.c.l.b16 %v6008
        %v6558 = vunpack.c.l.b16 %v6009
        %v6559 = vunpack.c.l.b16 %v6010
        %v6560 = vunpack.c.l.b16 %v6011
        %v6561 = vunpack.c.l.b16 %v6012
        %v6562 = vunpack.c.l.b16 %v6013
        %v6563 = vunpack.c.l.b16 %v6014
        %v6564 = vunpack.c.l.b16 %v6015
        %v6565 = vunpack.c.l.b16 %v6016
        %v6566 = vunpack.c.l.b16 %v6017
        %v6567 = vunpack.c.l.b16 %v6018
        %v6568 = vunpack.c.l.b16 %v6019
        %v6569 = vunpack.c.l.b16 %v6020
        %v6570 = vunpack.c.l.b16 %v6021
        %v6571 = vunpack.c.l.b16 %v6022
        %v6572 = vunpack.c.l.b16 %v6023
        %v6573 = vunpack.c.l.b16 %v6024
        %v6574 = vunpack.c.l.b16 %v6025
        %v6575 = vunpack.c.l.b16 %v6026
        %v6576 = vunpack.c.l.b16 %v6027
        %v6577 = vunpack.c.l.b16 %v6028
        %v6578 = vunpack.c.l.b16 %v6029
        %v6579 = vunpack.c.l.b16 %v6030
        %v6580 = vunpack.c.l.b16 %v6031
        %v6581 = vunpack.c.l.b16 %v6032
        %v6582 = vunpack.c.l.b16 %v6033
        %v6583 = vunpack.c.l.b16 %v6034
        %v6584 = vunpack.c.l.b16 %v6035
        %v6585 = vunpack.c.l.b16 %v6036
        %v6586 = vunpack.c.l.b16 %v6037
        %v6587 = vunpack.c.l.b16 %v6038
        %v6588 = vunpack.c.l.b16 %v6039
        %v6589 = vunpack.c.l.b16 %v6040
        %v6590 = vunpack.c.l.b16 %v6041
        %v6591 = vunpack.c.l.b16 %v6042
        %v6592 = vunpack.c.l.b16 %v6043
        %v6593 = vunpack.c.l.b16 %v6044
        %v6594 = vunpack.c.l.b16 %v6045
        %v6595 = vunpack.c.l.b16 %v6046
        %v6596 = vunpack.c.l.b16 %v6047
        %v6597 = vunpack.c.l.b16 %v6048
        %v6598 = vunpack.c.l.b16 %v6049
        %v6599 = vunpack.c.l.b16 %v6050
        %v6600 = vunpack.c.l.b16 %v6051
        %v6601 = vunpack.c.l.b16 %v6052
        %v6602 = vunpack.c.l.b16 %v6053
        %v6603 = vunpack.c.l.b16 %v6054
        %v6604 = vunpack.c.l.b16 %v6055
        %v6605 = vunpack.c.l.b16 %v6056
        %v6606 = vunpack.c.l.b16 %v6057
        %v6607 = vunpack.c.l.b16 %v6058
        %v6608 = vunpack.c.l.b16 %v6059
        %v6609 = vunpack.c.l.b16 %v6060
        %v6610 = vunpack.c.l.b16 %v6061
        %v6611 = vunpack.c.l.b16 %v6062
        %v6612 = vunpack.c.l.b16 %v6063
        %v6613 = vunpack.c.l.b16 %v6064
        %v6614 = vpack.c.b16 %v6543, %v6542
        %v6615 = vpack.c.b16 %v6545, %v6544
        %v6616 = vpack.c.b16 %v6547, %v6546
        %v6617 = vpack.c.b16 %v6549, %v6548
        %v6618 = vpack.c.b16 %v6551, %v6550
        %v6619 = vpack.c.b16 %v6553, %v6552
        %v6620 = vpack.c.b16 %v6555, %v6554
        %v6621 = vpack.c.b16 %v6557, %v6556
        %v6622 = vpack.c.b16 %v6559, %v6558
        %v6623 = vpack.c.b16 %v6561, %v6560
        %v6624 = vpack.c.b16 %v6563, %v6562
        %v6625 = vpack.c.b16 %v6565, %v6564
        %v6626 = vpack.c.b16 %v6567, %v6566
        %v6627 = vpack.c.b16 %v6569, %v6568
        %v6628 = vpack.c.b16 %v6571, %v6570
        %v6629 = vpack.c.b16 %v6573, %v6572
        %v6630 = vpack.c.b16 %v6575, %v6574
        %v6631 = vpack.c.b16 %v6577, %v6576
        %v6632 = vpack.c.b16 %v6579, %v6578
        %v6633 = vpack.c.b16 %v6581, %v6580
        %v6634 = vpack.c.b16 %v6583, %v6582
        %v6635 = vpack.c.b16 %v6585, %v6584
        %v6636 = vpack.c.b16 %v6587, %v6586
        %v6637 = vpack.c.b16 %v6589, %v6588
        %v6638 = vpack.c.b16 %v6591, %v6590
        %v6639 = vpack.c.b16 %v6593, %v6592
        %v6640 = vpack.c.b16 %v6595, %v6594
        %v6641 = vpack.c.b16 %v6597, %v6596
        %v6642 = vpack.c.b16 %v6599, %v6598
        %v6643 = vpack.c.b16 %v6601, %v6600
        %v6644 = vpack.c.b16 %v6603, %v6602
        %v6645 = vpack.c.b16 %v6605, %v6604
        %v6646 = vpack.c.b16 %v6607, %v6606
        %v6647 = vpack.c.b16 %v6609, %v6608
        %v6648 = vpack.c.b16 %v6611, %v6610
        %v6649 = vpack.c.b16 %v6613, %v6612
        %v6687 = vsel %vm347, %v6330, 0
        %v6690 = vsel %vm347, %v6335, 0
        %v6693 = vsel %vm347, %v6340, 0
        %v6696 = vsel %vm347, %v6345, 0
        %v6699 = vsel %vm347, %v6350, 0
        %v6702 = vsel %vm347, %v6355, 0
        %v6705 = vsel %vm347, %v6360, 0
        %v6708 = vsel %vm347, %v6365, 0
        %v6711 = vsel %vm347, %v6370, 0
        %v6714 = vsel %vm347, %v6375, 0
        %v6717 = vsel %vm347, %v6380, 0
        %v6720 = vsel %vm347, %v6385, 0
        %v6723 = vsel %vm347, %v6390, 0
        %v6726 = vsel %vm347, %v6395, 0
        %v6729 = vsel %vm347, %v6400, 0
        %v6732 = vsel %vm347, %v6405, 0
        %6734 = vmatpush.bf16.msra.mxu0 %v6621
        %6735 = vmatpush.bf16.msra.mxu0 %v6620
        %6736 = vmatpush.bf16.msra.mxu0 %v6619
        %6737 = vmatpush.bf16.msra.mxu0 %v6618
        %6738 = vmatpush.bf16.msra.mxu0 %v6617
        %6739 = vmatpush.bf16.msra.mxu0 %v6616
        %6740 = vmatpush.bf16.msra.mxu0 %v6615
        %6741 = vmatpush.bf16.msra.mxu0 %v6614
        %6742 = vmatmul.bf16.gmra.mxu0 %v6326
        %v6743 = vpop.f32.mrf.mxu0
        %v6744 = vadd.f32 %v6068, %v6743
        %v6745 = vpop.f32.mrf.mxu0
        %v6746 = vadd.f32 %v6068, %v6745
        %6747 = vmatmul.bf16.gmra.mxu0 %v6331
        %v6748 = vpop.f32.mrf.mxu0
        %v6749 = vadd.f32 %v6068, %v6748
        %v6750 = vpop.f32.mrf.mxu0
        %v6751 = vadd.f32 %v6068, %v6750
        %6752 = vmatmul.bf16.gmra.mxu0 %v6336
        %v6753 = vpop.f32.mrf.mxu0
        %v6754 = vadd.f32 %v6068, %v6753
        %v6755 = vpop.f32.mrf.mxu0
        %v6756 = vadd.f32 %v6068, %v6755
        %6757 = vmatmul.bf16.gmra.mxu0 %v6341
        %v6758 = vpop.f32.mrf.mxu0
        %v6759 = vadd.f32 %v6068, %v6758
        %v6760 = vpop.f32.mrf.mxu0
        %v6761 = vadd.f32 %v6068, %v6760
        %6762 = vmatmul.bf16.gmra.mxu0 %v6346
        %v6763 = vpop.f32.mrf.mxu0
        %v6764 = vadd.f32 %v6068, %v6763
        %v6765 = vpop.f32.mrf.mxu0
        %v6766 = vadd.f32 %v6068, %v6765
        %6767 = vmatmul.bf16.gmra.mxu0 %v6351
        %v6768 = vpop.f32.mrf.mxu0
        %v6769 = vadd.f32 %v6068, %v6768
        %v6770 = vpop.f32.mrf.mxu0
        %v6771 = vadd.f32 %v6068, %v6770
        %6772 = vmatmul.bf16.gmra.mxu0 %v6356
        %v6773 = vpop.f32.mrf.mxu0
        %v6774 = vadd.f32 %v6068, %v6773
        %v6775 = vpop.f32.mrf.mxu0
        %v6776 = vadd.f32 %v6068, %v6775
        %6777 = vmatmul.bf16.gmra.mxu0 %v6361
        %v6778 = vpop.f32.mrf.mxu0
        %v6779 = vadd.f32 %v6068, %v6778
        %v6780 = vpop.f32.mrf.mxu0
        %v6781 = vadd.f32 %v6068, %v6780
        %6782 = vmatmul.bf16.gmra.mxu0 %v6366
        %v6783 = vpop.f32.mrf.mxu0
        %v6784 = vadd.f32 %v6068, %v6783
        %v6785 = vpop.f32.mrf.mxu0
        %v6786 = vadd.f32 %v6068, %v6785
        %6787 = vmatmul.bf16.gmra.mxu0 %v6371
        %v6788 = vpop.f32.mrf.mxu0
        %v6789 = vadd.f32 %v6068, %v6788
        %v6790 = vpop.f32.mrf.mxu0
        %v6791 = vadd.f32 %v6068, %v6790
        %6792 = vmatmul.bf16.gmra.mxu0 %v6376
        %v6793 = vpop.f32.mrf.mxu0
        %v6794 = vadd.f32 %v6068, %v6793
        %v6795 = vpop.f32.mrf.mxu0
        %v6796 = vadd.f32 %v6068, %v6795
        %6797 = vmatmul.bf16.gmra.mxu0 %v6381
        %v6798 = vpop.f32.mrf.mxu0
        %v6799 = vadd.f32 %v6068, %v6798
        %v6800 = vpop.f32.mrf.mxu0
        %v6801 = vadd.f32 %v6068, %v6800
        %6802 = vmatmul.bf16.gmra.mxu0 %v6386
        %v6803 = vpop.f32.mrf.mxu0
        %v6804 = vadd.f32 %v6068, %v6803
        %v6805 = vpop.f32.mrf.mxu0
        %v6806 = vadd.f32 %v6068, %v6805
        %6807 = vmatmul.bf16.gmra.mxu0 %v6391
        %v6808 = vpop.f32.mrf.mxu0
        %v6809 = vadd.f32 %v6068, %v6808
        %v6810 = vpop.f32.mrf.mxu0
        %v6811 = vadd.f32 %v6068, %v6810
        %6812 = vmatmul.bf16.gmra.mxu0 %v6396
        %v6813 = vpop.f32.mrf.mxu0
        %v6814 = vadd.f32 %v6068, %v6813
        %v6815 = vpop.f32.mrf.mxu0
        %v6816 = vadd.f32 %v6068, %v6815
        %6817 = vmatmul.bf16.gmra.mxu0 %v6401
        %v6818 = vpop.f32.mrf.mxu0
        %v6819 = vadd.f32 %v6068, %v6818
        %v6820 = vpop.f32.mrf.mxu0
        %v6821 = vadd.f32 %v6068, %v6820
        %6822 = vdwg.mxu0
        %6823 = vmatpush.bf16.msra.mxu0 %v6629
        %6824 = vmatpush.bf16.msra.mxu0 %v6628
        %6825 = vmatpush.bf16.msra.mxu0 %v6627
        %6826 = vmatpush.bf16.msra.mxu0 %v6626
        %6827 = vmatpush.bf16.msra.mxu0 %v6625
        %6828 = vmatpush.bf16.msra.mxu0 %v6624
        %6829 = vmatpush.bf16.msra.mxu0 %v6623
        %6830 = vmatpush.bf16.msra.mxu0 %v6622
        %6831 = vmatmul.bf16.gmra.mxu0 %v6327
        %v6832 = vpop.f32.mrf.mxu0
        %v6833 = vadd.f32 %v6744, %v6832
        %v6834 = vpop.f32.mrf.mxu0
        %v6835 = vadd.f32 %v6746, %v6834
        %6836 = vmatmul.bf16.gmra.mxu0 %v6332
        %v6837 = vpop.f32.mrf.mxu0
        %v6838 = vadd.f32 %v6749, %v6837
        %v6839 = vpop.f32.mrf.mxu0
        %v6840 = vadd.f32 %v6751, %v6839
        %6841 = vmatmul.bf16.gmra.mxu0 %v6337
        %v6842 = vpop.f32.mrf.mxu0
        %v6843 = vadd.f32 %v6754, %v6842
        %v6844 = vpop.f32.mrf.mxu0
        %v6845 = vadd.f32 %v6756, %v6844
        %6846 = vmatmul.bf16.gmra.mxu0 %v6342
        %v6847 = vpop.f32.mrf.mxu0
        %v6848 = vadd.f32 %v6759, %v6847
        %v6849 = vpop.f32.mrf.mxu0
        %v6850 = vadd.f32 %v6761, %v6849
        %6851 = vmatmul.bf16.gmra.mxu0 %v6347
        %v6852 = vpop.f32.mrf.mxu0
        %v6853 = vadd.f32 %v6764, %v6852
        %v6854 = vpop.f32.mrf.mxu0
        %v6855 = vadd.f32 %v6766, %v6854
        %6856 = vmatmul.bf16.gmra.mxu0 %v6352
        %v6857 = vpop.f32.mrf.mxu0
        %v6858 = vadd.f32 %v6769, %v6857
        %v6859 = vpop.f32.mrf.mxu0
        %v6860 = vadd.f32 %v6771, %v6859
        %6861 = vmatmul.bf16.gmra.mxu0 %v6357
        %v6862 = vpop.f32.mrf.mxu0
        %v6863 = vadd.f32 %v6774, %v6862
        %v6864 = vpop.f32.mrf.mxu0
        %v6865 = vadd.f32 %v6776, %v6864
        %6866 = vmatmul.bf16.gmra.mxu0 %v6362
        %v6867 = vpop.f32.mrf.mxu0
        %v6868 = vadd.f32 %v6779, %v6867
        %v6869 = vpop.f32.mrf.mxu0
        %v6870 = vadd.f32 %v6781, %v6869
        %6871 = vmatmul.bf16.gmra.mxu0 %v6367
        %v6872 = vpop.f32.mrf.mxu0
        %v6873 = vadd.f32 %v6784, %v6872
        %v6874 = vpop.f32.mrf.mxu0
        %v6875 = vadd.f32 %v6786, %v6874
        %6876 = vmatmul.bf16.gmra.mxu0 %v6372
        %v6877 = vpop.f32.mrf.mxu0
        %v6878 = vadd.f32 %v6789, %v6877
        %v6879 = vpop.f32.mrf.mxu0
        %v6880 = vadd.f32 %v6791, %v6879
        %6881 = vmatmul.bf16.gmra.mxu0 %v6377
        %v6882 = vpop.f32.mrf.mxu0
        %v6883 = vadd.f32 %v6794, %v6882
        %v6884 = vpop.f32.mrf.mxu0
        %v6885 = vadd.f32 %v6796, %v6884
        %6886 = vmatmul.bf16.gmra.mxu0 %v6382
        %v6887 = vpop.f32.mrf.mxu0
        %v6888 = vadd.f32 %v6799, %v6887
        %v6889 = vpop.f32.mrf.mxu0
        %v6890 = vadd.f32 %v6801, %v6889
        %6891 = vmatmul.bf16.gmra.mxu0 %v6387
        %v6892 = vpop.f32.mrf.mxu0
        %v6893 = vadd.f32 %v6804, %v6892
        %v6894 = vpop.f32.mrf.mxu0
        %v6895 = vadd.f32 %v6806, %v6894
        %6896 = vmatmul.bf16.gmra.mxu0 %v6392
        %v6897 = vpop.f32.mrf.mxu0
        %v6898 = vadd.f32 %v6809, %v6897
        %v6899 = vpop.f32.mrf.mxu0
        %v6900 = vadd.f32 %v6811, %v6899
        %6901 = vmatmul.bf16.gmra.mxu0 %v6397
        %v6902 = vpop.f32.mrf.mxu0
        %v6903 = vadd.f32 %v6814, %v6902
        %v6904 = vpop.f32.mrf.mxu0
        %v6905 = vadd.f32 %v6816, %v6904
        %6906 = vmatmul.bf16.gmra.mxu0 %v6402
        %v6907 = vpop.f32.mrf.mxu0
        %v6908 = vadd.f32 %v6819, %v6907
        %v6909 = vpop.f32.mrf.mxu0
        %v6910 = vadd.f32 %v6821, %v6909
        %6911 = vdwg.mxu0
        %6912 = vmatpush.bf16.msra.mxu0 %v6637
        %6913 = vmatpush.bf16.msra.mxu0 %v6636
        %6914 = vmatpush.bf16.msra.mxu0 %v6635
        %6915 = vmatpush.bf16.msra.mxu0 %v6634
        %6916 = vmatpush.bf16.msra.mxu0 %v6633
        %6917 = vmatpush.bf16.msra.mxu0 %v6632
        %6918 = vmatpush.bf16.msra.mxu0 %v6631
        %6919 = vmatpush.bf16.msra.mxu0 %v6630
        %6920 = vmatmul.bf16.gmra.mxu0 %v6328
        %v6921 = vpop.f32.mrf.mxu0
        %v6922 = vadd.f32 %v6833, %v6921
        %v6923 = vpop.f32.mrf.mxu0
        %v6924 = vadd.f32 %v6835, %v6923
        %6925 = vmatmul.bf16.gmra.mxu0 %v6333
        %v6926 = vpop.f32.mrf.mxu0
        %v6927 = vadd.f32 %v6838, %v6926
        %v6928 = vpop.f32.mrf.mxu0
        %v6929 = vadd.f32 %v6840, %v6928
        %6930 = vmatmul.bf16.gmra.mxu0 %v6338
        %v6931 = vpop.f32.mrf.mxu0
        %v6932 = vadd.f32 %v6843, %v6931
        %v6933 = vpop.f32.mrf.mxu0
        %v6934 = vadd.f32 %v6845, %v6933
        %6935 = vmatmul.bf16.gmra.mxu0 %v6343
        %v6936 = vpop.f32.mrf.mxu0
        %v6937 = vadd.f32 %v6848, %v6936
        %v6938 = vpop.f32.mrf.mxu0
        %v6939 = vadd.f32 %v6850, %v6938
        %6940 = vmatmul.bf16.gmra.mxu0 %v6348
        %v6941 = vpop.f32.mrf.mxu0
        %v6942 = vadd.f32 %v6853, %v6941
        %v6943 = vpop.f32.mrf.mxu0
        %v6944 = vadd.f32 %v6855, %v6943
        %6945 = vmatmul.bf16.gmra.mxu0 %v6353
        %v6946 = vpop.f32.mrf.mxu0
        %v6947 = vadd.f32 %v6858, %v6946
        %v6948 = vpop.f32.mrf.mxu0
        %v6949 = vadd.f32 %v6860, %v6948
        %6950 = vmatmul.bf16.gmra.mxu0 %v6358
        %v6951 = vpop.f32.mrf.mxu0
        %v6952 = vadd.f32 %v6863, %v6951
        %v6953 = vpop.f32.mrf.mxu0
        %v6954 = vadd.f32 %v6865, %v6953
        %6955 = vmatmul.bf16.gmra.mxu0 %v6363
        %v6956 = vpop.f32.mrf.mxu0
        %v6957 = vadd.f32 %v6868, %v6956
        %v6958 = vpop.f32.mrf.mxu0
        %v6959 = vadd.f32 %v6870, %v6958
        %6960 = vmatmul.bf16.gmra.mxu0 %v6368
        %v6961 = vpop.f32.mrf.mxu0
        %v6962 = vadd.f32 %v6873, %v6961
        %v6963 = vpop.f32.mrf.mxu0
        %v6964 = vadd.f32 %v6875, %v6963
        %6965 = vmatmul.bf16.gmra.mxu0 %v6373
        %v6966 = vpop.f32.mrf.mxu0
        %v6967 = vadd.f32 %v6878, %v6966
        %v6968 = vpop.f32.mrf.mxu0
        %v6969 = vadd.f32 %v6880, %v6968
        %6970 = vmatmul.bf16.gmra.mxu0 %v6378
        %v6971 = vpop.f32.mrf.mxu0
        %v6972 = vadd.f32 %v6883, %v6971
        %v6973 = vpop.f32.mrf.mxu0
        %v6974 = vadd.f32 %v6885, %v6973
        %6975 = vmatmul.bf16.gmra.mxu0 %v6383
        %v6976 = vpop.f32.mrf.mxu0
        %v6977 = vadd.f32 %v6888, %v6976
        %v6978 = vpop.f32.mrf.mxu0
        %v6979 = vadd.f32 %v6890, %v6978
        %6980 = vmatmul.bf16.gmra.mxu0 %v6388
        %v6981 = vpop.f32.mrf.mxu0
        %v6982 = vadd.f32 %v6893, %v6981
        %v6983 = vpop.f32.mrf.mxu0
        %v6984 = vadd.f32 %v6895, %v6983
        %6985 = vmatmul.bf16.gmra.mxu0 %v6393
        %v6986 = vpop.f32.mrf.mxu0
        %v6987 = vadd.f32 %v6898, %v6986
        %v6988 = vpop.f32.mrf.mxu0
        %v6989 = vadd.f32 %v6900, %v6988
        %6990 = vmatmul.bf16.gmra.mxu0 %v6398
        %v6991 = vpop.f32.mrf.mxu0
        %v6992 = vadd.f32 %v6903, %v6991
        %v6993 = vpop.f32.mrf.mxu0
        %v6994 = vadd.f32 %v6905, %v6993
        %6995 = vmatmul.bf16.gmra.mxu0 %v6403
        %v6996 = vpop.f32.mrf.mxu0
        %v6997 = vadd.f32 %v6908, %v6996
        %v6998 = vpop.f32.mrf.mxu0
        %v6999 = vadd.f32 %v6910, %v6998
        %7000 = vdwg.mxu0
        %7001 = vmatpush.bf16.msra.mxu0 %v6645
        %7002 = vmatpush.bf16.msra.mxu0 %v6644
        %7003 = vmatpush.bf16.msra.mxu0 %v6643
        %7004 = vmatpush.bf16.msra.mxu0 %v6642
        %7005 = vmatpush.bf16.msra.mxu0 %v6641
        %7006 = vmatpush.bf16.msra.mxu0 %v6640
        %7007 = vmatpush.bf16.msra.mxu0 %v6639
        %7008 = vmatpush.bf16.msra.mxu0 %v6638
        %7009 = vmatmul.bf16.gmra.mxu0 %v6329
        %v7010 = vpop.f32.mrf.mxu0
        %v7011 = vadd.f32 %v6922, %v7010
        %v7012 = vpop.f32.mrf.mxu0
        %v7013 = vadd.f32 %v6924, %v7012
        %7014 = vmatmul.bf16.gmra.mxu0 %v6334
        %v7015 = vpop.f32.mrf.mxu0
        %v7016 = vadd.f32 %v6927, %v7015
        %v7017 = vpop.f32.mrf.mxu0
        %v7018 = vadd.f32 %v6929, %v7017
        %7019 = vmatmul.bf16.gmra.mxu0 %v6339
        %v7020 = vpop.f32.mrf.mxu0
        %v7021 = vadd.f32 %v6932, %v7020
        %v7022 = vpop.f32.mrf.mxu0
        %v7023 = vadd.f32 %v6934, %v7022
        %7024 = vmatmul.bf16.gmra.mxu0 %v6344
        %v7025 = vpop.f32.mrf.mxu0
        %v7026 = vadd.f32 %v6937, %v7025
        %v7027 = vpop.f32.mrf.mxu0
        %v7028 = vadd.f32 %v6939, %v7027
        %7029 = vmatmul.bf16.gmra.mxu0 %v6349
        %v7030 = vpop.f32.mrf.mxu0
        %v7031 = vadd.f32 %v6942, %v7030
        %v7032 = vpop.f32.mrf.mxu0
        %v7033 = vadd.f32 %v6944, %v7032
        %7034 = vmatmul.bf16.gmra.mxu0 %v6354
        %v7035 = vpop.f32.mrf.mxu0
        %v7036 = vadd.f32 %v6947, %v7035
        %v7037 = vpop.f32.mrf.mxu0
        %v7038 = vadd.f32 %v6949, %v7037
        %7039 = vmatmul.bf16.gmra.mxu0 %v6359
        %v7040 = vpop.f32.mrf.mxu0
        %v7041 = vadd.f32 %v6952, %v7040
        %v7042 = vpop.f32.mrf.mxu0
        %v7043 = vadd.f32 %v6954, %v7042
        %7044 = vmatmul.bf16.gmra.mxu0 %v6364
        %v7045 = vpop.f32.mrf.mxu0
        %v7046 = vadd.f32 %v6957, %v7045
        %v7047 = vpop.f32.mrf.mxu0
        %v7048 = vadd.f32 %v6959, %v7047
        %7049 = vmatmul.bf16.gmra.mxu0 %v6369
        %v7050 = vpop.f32.mrf.mxu0
        %v7051 = vadd.f32 %v6962, %v7050
        %v7052 = vpop.f32.mrf.mxu0
        %v7053 = vadd.f32 %v6964, %v7052
        %7054 = vmatmul.bf16.gmra.mxu0 %v6374
        %v7055 = vpop.f32.mrf.mxu0
        %v7056 = vadd.f32 %v6967, %v7055
        %v7057 = vpop.f32.mrf.mxu0
        %v7058 = vadd.f32 %v6969, %v7057
        %7059 = vmatmul.bf16.gmra.mxu0 %v6379
        %v7060 = vpop.f32.mrf.mxu0
        %v7061 = vadd.f32 %v6972, %v7060
        %v7062 = vpop.f32.mrf.mxu0
        %v7063 = vadd.f32 %v6974, %v7062
        %7064 = vmatmul.bf16.gmra.mxu0 %v6384
        %v7065 = vpop.f32.mrf.mxu0
        %v7066 = vadd.f32 %v6977, %v7065
        %v7067 = vpop.f32.mrf.mxu0
        %v7068 = vadd.f32 %v6979, %v7067
        %7069 = vmatmul.bf16.gmra.mxu0 %v6389
        %v7070 = vpop.f32.mrf.mxu0
        %v7071 = vadd.f32 %v6982, %v7070
        %v7072 = vpop.f32.mrf.mxu0
        %v7073 = vadd.f32 %v6984, %v7072
        %7074 = vmatmul.bf16.gmra.mxu0 %v6394
        %v7075 = vpop.f32.mrf.mxu0
        %v7076 = vadd.f32 %v6987, %v7075
        %v7077 = vpop.f32.mrf.mxu0
        %v7078 = vadd.f32 %v6989, %v7077
        %7079 = vmatmul.bf16.gmra.mxu0 %v6399
        %v7080 = vpop.f32.mrf.mxu0
        %v7081 = vadd.f32 %v6992, %v7080
        %v7082 = vpop.f32.mrf.mxu0
        %v7083 = vadd.f32 %v6994, %v7082
        %7084 = vmatmul.bf16.gmra.mxu0 %v6404
        %v7085 = vpop.f32.mrf.mxu0
        %v7086 = vadd.f32 %v6997, %v7085
        %v7087 = vpop.f32.mrf.mxu0
        %v7088 = vadd.f32 %v6999, %v7087
        %7089 = vdwg.mxu0
        %7090 = vmatpush.bf16.msra.mxu0 0
        %7091 = vmatpush.bf16.msra.mxu0 0
        %7092 = vmatpush.bf16.msra.mxu0 0
        %7093 = vmatpush.bf16.msra.mxu0 0
        %7094 = vmatpush.bf16.msra.mxu0 %v6649
        %7095 = vmatpush.bf16.msra.mxu0 %v6648
        %7096 = vmatpush.bf16.msra.mxu0 %v6647
        %7097 = vmatpush.bf16.msra.mxu0 %v6646
        %7098 = vmatmul.bf16.gmra.mxu0 %v6687
        %v7099 = vpop.f32.mrf.mxu0
        %v7100 = vadd.f32 %v7011, %v7099
        %v7101 = vpop.f32.mrf.mxu0
        %v7102 = vadd.f32 %v7013, %v7101
        %7103 = vmatmul.bf16.gmra.mxu0 %v6690
        %v7104 = vpop.f32.mrf.mxu0
        %v7105 = vadd.f32 %v7016, %v7104
        %v7106 = vpop.f32.mrf.mxu0
        %v7107 = vadd.f32 %v7018, %v7106
        %7108 = vmatmul.bf16.gmra.mxu0 %v6693
        %v7109 = vpop.f32.mrf.mxu0
        %v7110 = vadd.f32 %v7021, %v7109
        %v7111 = vpop.f32.mrf.mxu0
        %v7112 = vadd.f32 %v7023, %v7111
        %7113 = vmatmul.bf16.gmra.mxu0 %v6696
        %v7114 = vpop.f32.mrf.mxu0
        %v7115 = vadd.f32 %v7026, %v7114
        %v7116 = vpop.f32.mrf.mxu0
        %v7117 = vadd.f32 %v7028, %v7116
        %7118 = vmatmul.bf16.gmra.mxu0 %v6699
        %v7119 = vpop.f32.mrf.mxu0
        %v7120 = vadd.f32 %v7031, %v7119
        %v7121 = vpop.f32.mrf.mxu0
        %v7122 = vadd.f32 %v7033, %v7121
        %7123 = vmatmul.bf16.gmra.mxu0 %v6702
        %v7124 = vpop.f32.mrf.mxu0
        %v7125 = vadd.f32 %v7036, %v7124
        %v7126 = vpop.f32.mrf.mxu0
        %v7127 = vadd.f32 %v7038, %v7126
        %7128 = vmatmul.bf16.gmra.mxu0 %v6705
        %v7129 = vpop.f32.mrf.mxu0
        %v7130 = vadd.f32 %v7041, %v7129
        %v7131 = vpop.f32.mrf.mxu0
        %v7132 = vadd.f32 %v7043, %v7131
        %7133 = vmatmul.bf16.gmra.mxu0 %v6708
        %v7134 = vpop.f32.mrf.mxu0
        %v7135 = vadd.f32 %v7046, %v7134
        %v7136 = vpop.f32.mrf.mxu0
        %v7137 = vadd.f32 %v7048, %v7136
        %7138 = vmatmul.bf16.gmra.mxu0 %v6711
        %v7139 = vpop.f32.mrf.mxu0
        %v7140 = vadd.f32 %v7051, %v7139
        %v7141 = vpop.f32.mrf.mxu0
        %v7142 = vadd.f32 %v7053, %v7141
        %7143 = vmatmul.bf16.gmra.mxu0 %v6714
        %v7144 = vpop.f32.mrf.mxu0
        %v7145 = vadd.f32 %v7056, %v7144
        %v7146 = vpop.f32.mrf.mxu0
        %v7147 = vadd.f32 %v7058, %v7146
        %7148 = vmatmul.bf16.gmra.mxu0 %v6717
        %v7149 = vpop.f32.mrf.mxu0
        %v7150 = vadd.f32 %v7061, %v7149
        %v7151 = vpop.f32.mrf.mxu0
        %v7152 = vadd.f32 %v7063, %v7151
        %7153 = vmatmul.bf16.gmra.mxu0 %v6720
        %v7154 = vpop.f32.mrf.mxu0
        %v7155 = vadd.f32 %v7066, %v7154
        %v7156 = vpop.f32.mrf.mxu0
        %v7157 = vadd.f32 %v7068, %v7156
        %7158 = vmatmul.bf16.gmra.mxu0 %v6723
        %v7159 = vpop.f32.mrf.mxu0
        %v7160 = vadd.f32 %v7071, %v7159
        %v7161 = vpop.f32.mrf.mxu0
        %v7162 = vadd.f32 %v7073, %v7161
        %7163 = vmatmul.bf16.gmra.mxu0 %v6726
        %v7164 = vpop.f32.mrf.mxu0
        %v7165 = vadd.f32 %v7076, %v7164
        %v7166 = vpop.f32.mrf.mxu0
        %v7167 = vadd.f32 %v7078, %v7166
        %7168 = vmatmul.bf16.gmra.mxu0 %v6729
        %v7169 = vpop.f32.mrf.mxu0
        %v7170 = vadd.f32 %v7081, %v7169
        %v7171 = vpop.f32.mrf.mxu0
        %v7172 = vadd.f32 %v7083, %v7171
        %7173 = vmatmul.bf16.gmra.mxu0 %v6732
        %v7174 = vpop.f32.mrf.mxu0
        %v7175 = vadd.f32 %v7086, %v7174
        %v7176 = vpop.f32.mrf.mxu0
        %v7177 = vadd.f32 %v7088, %v7176
        %7178 = vdwg.mxu0
        %v7179 = vadd.f32 %v394, %v7100
        %v7180 = vadd.f32 %v395, %v7102
        %v7181 = vadd.f32 %v396, %v7105
        %v7182 = vadd.f32 %v397, %v7107
        %v7183 = vadd.f32 %v398, %v7110
        %v7184 = vadd.f32 %v399, %v7112
        %v7185 = vadd.f32 %v400, %v7115
        %v7186 = vadd.f32 %v401, %v7117
        %v7187 = vadd.f32 %v402, %v7120
        %v7188 = vadd.f32 %v403, %v7122
        %v7189 = vadd.f32 %v404, %v7125
        %v7190 = vadd.f32 %v405, %v7127
        %v7191 = vadd.f32 %v406, %v7130
        %v7192 = vadd.f32 %v407, %v7132
        %v7193 = vadd.f32 %v408, %v7135
        %v7194 = vadd.f32 %v409, %v7137
        %v7195 = vadd.f32 %v410, %v7140
        %v7196 = vadd.f32 %v411, %v7142
        %v7197 = vadd.f32 %v412, %v7145
        %v7198 = vadd.f32 %v413, %v7147
        %v7199 = vadd.f32 %v414, %v7150
        %v7200 = vadd.f32 %v415, %v7152
        %v7201 = vadd.f32 %v416, %v7155
        %v7202 = vadd.f32 %v417, %v7157
        %v7203 = vadd.f32 %v418, %v7160
        %v7204 = vadd.f32 %v419, %v7162
        %v7205 = vadd.f32 %v420, %v7165
        %v7206 = vadd.f32 %v421, %v7167
        %v7207 = vadd.f32 %v422, %v7170
        %v7208 = vadd.f32 %v423, %v7172
        %v7209 = vadd.f32 %v424, %v7175
        %v7210 = vadd.f32 %v425, %v7177
        %7211 = vst.msk [vmem:[%s340] sm:$0xff] %vm347, %v7179
        %7212 = vst.msk [vmem:[%s340 + $0x8] sm:$0xff] %vm347, %v7180
        %7213 = vst.msk [vmem:[%s340 + $0x10] sm:$0xff] %vm347, %v7181
        %7214 = vst.msk [vmem:[%s340 + $0x18] sm:$0xff] %vm347, %v7182
        %7215 = vst.msk [vmem:[%s340 + $0x20] sm:$0xff] %vm347, %v7183
        %7216 = vst.msk [vmem:[%s340 + $0x28] sm:$0xff] %vm347, %v7184
        %7217 = vst.msk [vmem:[%s340 + $0x30] sm:$0xff] %vm347, %v7185
        %7218 = vst.msk [vmem:[%s340 + $0x38] sm:$0xff] %vm347, %v7186
        %7219 = vst.msk [vmem:[%s340 + $0x40] sm:$0xff] %vm347, %v7187
        %7220 = vst.msk [vmem:[%s340 + $0x48] sm:$0xff] %vm347, %v7188
        %7221 = vst.msk [vmem:[%s340 + $0x50] sm:$0xff] %vm347, %v7189
        %7222 = vst.msk [vmem:[%s340 + $0x58] sm:$0xff] %vm347, %v7190
        %7223 = vst.msk [vmem:[%s340 + $0x60] sm:$0xff] %vm347, %v7191
        %7224 = vst.msk [vmem:[%s340 + $0x68] sm:$0xff] %vm347, %v7192
        %7225 = vst.msk [vmem:[%s340 + $0x70] sm:$0xff] %vm347, %v7193
        %7226 = vst.msk [vmem:[%s340 + $0x78] sm:$0xff] %vm347, %v7194
        %7227 = vst.msk [vmem:[%s340 + $0x80] sm:$0xff] %vm347, %v7195
        %7228 = vst.msk [vmem:[%s340 + $0x88] sm:$0xff] %vm347, %v7196
        %7229 = vst.msk [vmem:[%s340 + $0x90] sm:$0xff] %vm347, %v7197
        %7230 = vst.msk [vmem:[%s340 + $0x98] sm:$0xff] %vm347, %v7198
        %7231 = vst.msk [vmem:[%s340 + $0xa0] sm:$0xff] %vm347, %v7199
        %7232 = vst.msk [vmem:[%s340 + $0xa8] sm:$0xff] %vm347, %v7200
        %7233 = vst.msk [vmem:[%s340 + $0xb0] sm:$0xff] %vm347, %v7201
        %7234 = vst.msk [vmem:[%s340 + $0xb8] sm:$0xff] %vm347, %v7202
        %7235 = vst.msk [vmem:[%s340 + $0xc0] sm:$0xff] %vm347, %v7203
        %7236 = vst.msk [vmem:[%s340 + $0xc8] sm:$0xff] %vm347, %v7204
        %7237 = vst.msk [vmem:[%s340 + $0xd0] sm:$0xff] %vm347, %v7205
        %7238 = vst.msk [vmem:[%s340 + $0xd8] sm:$0xff] %vm347, %v7206
        %7239 = vst.msk [vmem:[%s340 + $0xe0] sm:$0xff] %vm347, %v7207
        %7240 = vst.msk [vmem:[%s340 + $0xe8] sm:$0xff] %vm347, %v7208
        %7241 = vst.msk [vmem:[%s340 + $0xf0] sm:$0xff] %vm347, %v7209
        %7242 = vst.msk [vmem:[%s340 + $0xf8] sm:$0xff] %vm347, %v7210
        %s7243 = sand.u32 %s211, 1
        %s7244 = scalar_lea.sflag [#allocation6], %s7243
        %s7245 = sand.u32 %s211, 1
        %s7246 = smul.addr %s7245, 256
        %s7247 = scalar_lea.vmem [#allocation7], %s7246
        // Predicated region
        $region57: #{tpu_custom_call.1} parent=51 // pred_check
          %p7248 = pneg %p221
        $region58: #{tpu_custom_call.1} parent=51 // pred_check_branch
          %7250 = sbr.rel (%p7248) target = $region60
        $region59: #{tpu_custom_call.1} parent=51 // pred_region
          %7252 = vsyncadd %s7244, 0
          %s7253 = smul.addr %s25, 32
          %s7254 = smul.addr %s7253, 8
          %s7255 = scalar_lea.hbm %s8, %s7254
          %s7256 = sshll.u32 %s7247, 4
          %s7257 = int_to_ptr.vmem [resolvable:$true] %s7256
          %s7258 = sshll.u32 %s7255, 4
          %s7259 = int_to_ptr.hbm [resolvable:$true] %s7258
          %7264 = dma.vmem_to_hbm [thread:$0]  %s7257, 4096, %s7259, %s7244, 128, 128, 8
        $region60: #{tpu_custom_call.1} parent=51 // pred_fallthru
          _
      $region52: #{tpu_custom_call.1} parent=5 // pred_fallthru
        _
      %p7265 = scmp.le.s32.totalorder 2, %s20
      // Predicated region
      $region61: #{tpu_custom_call.1} parent=5 // pred_check
        %p7266 = pneg %p7265
      $region62: #{tpu_custom_call.1} parent=5 // pred_check_branch
        %7268 = sbr.rel (%p7266) target = $region64
      $region63: #{tpu_custom_call.1} parent=5 // pred_region
        %s7269 = ssub.s32 %s20, 2
        // Predicated region
        $region65: #{tpu_custom_call.1} parent=63 // pred_check
          %p7270 = pneg %p227
        $region66: #{tpu_custom_call.1} parent=63 // pred_check_branch
          %7272 = sbr.rel (%p7270) target = $region68
        $region67: #{tpu_custom_call.1} parent=63 // pred_region
          %s7273 = sand.u32 %s212, 1
          %s7274 = scalar_lea.sflag [#allocation6], %s7273
          %s7275 = sand.u32 %s212, 1
          %s7276 = smul.addr %s7275, 256
          %s7277 = scalar_lea.vmem [#allocation7], %s7276
          %7279 = dma.done %s7274, 4096
        $region68: #{tpu_custom_call.1} parent=63 // pred_fallthru
          _
      $region64: #{tpu_custom_call.1} parent=5 // pred_fallthru
        _
    $region6: #{tpu_custom_call.1} parent=1 // loop_footer
      %s24 = sadd.s32 1, %s20
    $region7: #{tpu_custom_call.1} parent=1 // loop_footer_branch
      %19 = sbr.rel target = $region3
    $region8: #{tpu_custom_call.1} parent=1 // loop_exit
      _
    %7280 = vsyncpa [#allocation5], 1
    %s7281 = scalar_lea.sflag [#allocation5], 1
    %7282 = vsyncpa %s7281, 1
    %7283 = vsyncpa [#allocation6], 1
    %s7284 = scalar_lea.sflag [#allocation6], 1
    %7285 = vsyncpa %s7284, 1

</llo_original>
